<compile_context>
chip_gen: v7x
topology: tpu7x:2x2x1
jax: 0.10.0
libtpu: 0.0.40
codegen_flags: <defaults>
</compile_context>

<pallas_src>
import numpy as np
import jax
import jax.numpy as jnp
from jax.experimental import pallas as pl
from jax.experimental.pallas import tpu as pltpu


# ---------------------------- VMEM budget / tiling ----------------------------

def _vmem_physical_bytes():
    try:
        info = pltpu.get_tpu_info()
        for name in ("vmem_capacity_bytes", "vmem_size_bytes", "vmem_bytes"):
            v = getattr(info, name, None)
            if v:
                return int(v)
    except Exception:
        pass
    return 64 << 20                      # conservative default (v7x-sized VMEM)


# ~40 MiB budget on v7x (64 MiB physical), ~96 MiB on v5e/v6e (128 MiB physical).
_VMEM_BUDGET = int(min(max(_vmem_physical_bytes() - (24 << 20), 16 << 20), 96 << 20))


def _rows_cap(stream_row_bytes, resident_bytes):
    """Max streamed (double-buffered) rows per tile under the VMEM budget."""
    avail = max(_VMEM_BUDGET - int(resident_bytes) - (4 << 20), 2 << 20)
    return max(8, int(avail // max(int(stream_row_bytes), 1)))


def _pick_rows(R, cap):
    """Divisor of R that is a multiple of 8 and <= cap; prefers >= 2 grid steps
    (v7x has 2 TensorCores).  Falls back to the full extent if R % 8 != 0."""
    if R % 8 != 0 or R <= 8:
        return R
    cap = max(8, min(int(cap), R))
    cap -= cap % 8
    nsteps = R // 8
    best = None
    for k in range(cap // 8, 0, -1):
        if nsteps % k == 0:
            t = 8 * k
            if best is None:
                best = t
            if R // t >= 2:
                return t
    return best if best is not None else R


def _cparams(tile_bytes):
    budget = int(min(max(int(tile_bytes) + (2 << 20), 8 << 20), _VMEM_BUDGET))
    return pltpu.CompilerParams(dimension_semantics=("parallel",),
                                vmem_limit_bytes=budget)


def _dense_group(M, Cout):
    """Pixel rows packed per lane-dense output row so g*Cout == 128 when possible."""
    g = 128 // Cout if (0 < Cout <= 128 and 128 % Cout == 0) else 1
    while g > 1 and M % g:
        g //= 2
    return max(g, 1)


# ------------------------------- Pallas kernels -------------------------------

def _mm_thresh(x_ref, w_ref, t_ref):
    """f32 accumulate of a bf16 matmul + __threshold_learn__ in f32.
    (Asymmetric leaky slopes 0.001 / 0.01 match the PyTorch spec exactly.)"""
    y = jnp.dot(x_ref[...], w_ref[...], preferred_element_type=jnp.float32)
    t = t_ref[...]                       # (1, g*Cout), already scaled by thr, f32
    d = y - t
    nd = -y - t
    return (jnp.where(d >= 0, d, 0.001 * d)
            - jnp.where(nd >= 0, nd, 0.01 * nd))


def _conv_thresh_kernel(x_ref, w_ref, t_ref, o_ref):
    o_ref[...] = _mm_thresh(x_ref, w_ref, t_ref).astype(o_ref.dtype)


def _conv_thresh_fused_out_kernel(x_ref, w_ref, t_ref, ow_ref, l_ref, o_ref):
    # Final decoder conv + threshold, with outputLayer (1x1 conv, no bias, clamp) fused.
    L = _mm_thresh(x_ref, w_ref, t_ref)
    l_ref[...] = L
    o_ref[...] = jnp.clip(L * ow_ref[...], 0.0, 1.0)


def _haar_dwt_kernel(x_ref, o_ref):
    # x lanes: [ee | eo | oe | oo], each (W/2)*C wide.  o lanes: [LL | HL | LH | HH].
    wc = x_ref.shape[-1] // 4
    x = x_ref[...].astype(jnp.float32)
    ee, eo = x[:, :wc], x[:, wc:2 * wc]
    oe, oo = x[:, 2 * wc:3 * wc], x[:, 3 * wc:]
    ll = (ee + oe + eo + oo) * 0.5
    hl = (eo + oo - ee - oe) * 0.5
    lh = (oe + oo - ee - eo) * 0.5
    hh = (ee + oo - oe - eo) * 0.5
    o_ref[...] = jnp.concatenate([ll, hl, lh, hh], axis=-1).astype(o_ref.dtype)


def _haar_idwt_kernel(x_ref, o_ref):
    # x lanes: [LL | HL | LH | HH].  o lanes: [ee | eo | oe | oo]  (exact dwt inverse).
    wc = x_ref.shape[-1] // 4
    x = x_ref[...].astype(jnp.float32)
    ll, hl = x[:, :wc], x[:, wc:2 * wc]
    lh, hh = x[:, 2 * wc:3 * wc], x[:, 3 * wc:]
    ee = (ll - hl - lh + hh) * 0.5
    eo = (ll + hl - lh - hh) * 0.5
    oe = (ll - hl + lh - hh) * 0.5
    oo = (ll + hl + lh + hh) * 0.5
    o_ref[...] = jnp.concatenate([ee, eo, oe, oo], axis=-1).astype(o_ref.dtype)


# -------------------------------- op wrappers ---------------------------------

def conv3x3_replicate_thresh(pairs, t_param, thr, ol_w=None, out_dtype=jnp.bfloat16):
    """Sum over `pairs` of replicate-padded 3x3 convs, then __threshold_learn__.

    pairs   : list of (x: (N,H,W,Cin) NHWC, w: (Cout,Cin,3,3) OIHW)
    t_param : (Cout,1,1) threshold parameter (torch layout)
    ol_w    : optional (1,1,1,1) outputLayer weight; if given, also returns
              clamp(ol_w * thresh(conv), 0, 1) from the same fused kernel (both f32).
    """
    N, H, W, _ = pairs[0][0].shape
    Cout = int(pairs[0][1].shape[0])
    M = N * H * W
    cols, wmats = [], []
    for x, w in pairs:
        Cin = int(x.shape[-1])
        xb = x if x.dtype == jnp.bfloat16 else x.astype(jnp.bfloat16)
        xp = jnp.pad(xb, ((0, 0), (1, 1), (1, 1), (0, 0)), mode='edge')   # replicate
        patches = [xp[:, kh:kh + H, kw:kw + W, :].reshape(M, Cin)
                   for kh in range(3) for kw in range(3)]
        cols.append(jnp.concatenate(patches, axis=-1))                    # (M, 9*Cin)
        # OIHW -> (kh, kw, Cin, Cout) -> (9*Cin, Cout): matches im2col column order.
        wmats.append(jnp.transpose(w, (2, 3, 1, 0)).reshape(9 * Cin, Cout)
                     .astype(jnp.bfloat16))
    X = cols[0] if len(cols) == 1 else jnp.concatenate(cols, axis=-1)
    Wm = wmats[0] if len(wmats) == 1 else jnp.concatenate(wmats, axis=0)
    K = int(X.shape[1])

    # ---- lane-dense packing: g pixel rows -> one 128-lane output row -----------
    g = _dense_group(M, Cout)
    pad = (-M) % (8 * g)
    if pad:
        X = jnp.concatenate([X, jnp.zeros((pad, K), X.dtype)], axis=0)
    Mp = M + pad
    R, gK, gC = Mp // g, g * K, g * Cout
    Xd = X.reshape(R, gK)                                 # contiguous -> free reshape
    Wd = Wm if g == 1 else jnp.kron(jnp.eye(g, dtype=Wm.dtype), Wm)   # (gK, gC) block-diag
    T = jnp.tile((t_param.reshape(1, Cout) * thr).astype(jnp.float32), (1, g))

    n_out = 1 if ol_w is None else 2
    out_bytes = jnp.dtype(out_dtype).itemsize if ol_w is None else 4
    stream_row = 2 * (gK * 2) + n_out * 2 * (gC * out_bytes)          # double-buffered
    resident = 2 * (gK * gC * 2) + gC * 4 + 8
    TR = _pick_rows(R, _rows_cap(stream_row, resident))
    grid = (R // TR,)                                     # TR divides R by construction
    tile_bytes = TR * stream_row + resident

    x_spec = pl.BlockSpec((TR, gK), lambda i: (i, 0))     # streamed row tiles
    w_spec = pl.BlockSpec((gK, gC), lambda i: (0, 0))     # resident block-diag weights
    t_spec = pl.BlockSpec((1, gC), lambda i: (0, 0))      # resident thresholds
    o_spec = pl.BlockSpec((TR, gC), lambda i: (i, 0))     # 128-lane-wide stores

    flops = 2 * R * gK * gC
    bytes_acc = R * gK * 2 + gK * gC * 2 + gC * 4 + n_out * R * gC * out_bytes

    if ol_w is None:
        out = pl.pallas_call(
            _conv_thresh_kernel,
            out_shape=jax.ShapeDtypeStruct((R, gC), out_dtype),
            grid=grid,
            in_specs=[x_spec, w_spec, t_spec],
            out_specs=o_spec,
            compiler_params=_cparams(tile_bytes),
            cost_estimate=pl.CostEstimate(flops=flops, transcendentals=0,
                                          bytes_accessed=bytes_acc),
        )(Xd, Wd, T)
        out = out.reshape(Mp, Cout)
        if pad:
            out = out[:M]
        return out.reshape(N, H, W, Cout)

    ow = ol_w.reshape(1, 1).astype(jnp.float32)
    L, out = pl.pallas_call(
        _conv_thresh_fused_out_kernel,
        out_shape=(jax.ShapeDtypeStruct((R, gC), jnp.float32),
                   jax.ShapeDtypeStruct((R, gC), jnp.float32)),
        grid=grid,
        in_specs=[x_spec, w_spec, t_spec, pl.BlockSpec((1, 1), lambda i: (0, 0))],
        out_specs=(o_spec, o_spec),
        compiler_params=_cparams(tile_bytes),
        cost_estimate=pl.CostEstimate(flops=flops, transcendentals=0,
                                      bytes_accessed=bytes_acc + 4),
    )(Xd, Wd, T, ow)
    L = L.reshape(Mp, Cout)
    out = out.reshape(Mp, Cout)
    if pad:
        L, out = L[:M], out[:M]
    return L.reshape(N, H, W, Cout), out.reshape(N, H, W, Cout)


def _haar_call(kernel, arr):
    """Run a lane-dense Haar butterfly kernel over (rows, 4*wc) row tiles."""
    rows, lanes = arr.shape
    itemsize = jnp.dtype(arr.dtype).itemsize
    stream_row = 4 * lanes * itemsize                     # in + out, double-buffered
    TR = _pick_rows(rows, _rows_cap(stream_row, 0))
    return pl.pallas_call(
        kernel,
        out_shape=jax.ShapeDtypeStruct((rows, lanes), arr.dtype),
        grid=(rows // TR,),
        in_specs=[pl.BlockSpec((TR, lanes), lambda i: (i, 0))],
        out_specs=pl.BlockSpec((TR, lanes), lambda i: (i, 0)),
        compiler_params=_cparams(TR * stream_row),
        cost_estimate=pl.CostEstimate(flops=4 * rows * lanes, transcendentals=0,
                                      bytes_accessed=2 * rows * lanes * itemsize),
    )(arr)


def haar_dwt(x):
    """x: (N,H,W,C) -> (LL: (N,H/2,W/2,C), Hstack: (3,N,H/2,W/2,C) = [HL,LH,HH])."""
    N, H, W, C = x.shape
    h, w = H // 2, W // 2
    wc = w * C
    rows = N * h
    # stride-2 deinterleave folded into the lane axis: one reshape+transpose.
    xs = (x.reshape(N, h, 2, w, 2, C)
           .transpose(0, 1, 2, 4, 3, 5)                   # (N, h, rp, cp, w, C)
           .reshape(rows, 4 * wc))
    out = _haar_call(_haar_dwt_kernel, xs).reshape(N, h, 4, w, C)
    ll = out[:, :, 0]
    hstack = jnp.moveaxis(out[:, :, 1:4], 2, 0)           # (3, N, h, w, C)
    return ll, hstack


def haar_idwt(ll, hstack):
    """Exact inverse of haar_dwt: (LL, [HL,LH,HH]) -> (N, 2h, 2w, C)."""
    N, h, w, C = ll.shape
    wc = w * C
    rows = N * h
    subs = jnp.concatenate([ll[:, :, None], jnp.moveaxis(hstack, 0, 2)], axis=2)
    subs = subs.reshape(rows, 4 * wc)                     # lanes: [LL | HL | LH | HH]
    out = _haar_call(_haar_idwt_kernel, subs)
    # stride-2 interleave as one reshape+transpose (no zeros + strided scatters).
    y = (out.reshape(N, h, 2, 2, w, C)
            .transpose(0, 1, 2, 4, 3, 5)                  # (N, h, rp, w, cp, C)
            .reshape(N, 2 * h, 2 * w, C))
    return y


# ----------------------------- parameters / model -----------------------------

def _conv_w(key, cout, cin, kh=3, kw=3):
    fan_in = cin * kh * kw
    bound = 1.0 / np.sqrt(fan_in)
    return jax.random.uniform(key, (cout, cin, kh, kw), jnp.float32, -bound, bound)


def init_params(key, in_channels=1, depth=1, wf=4):
    keys = iter(jax.random.split(key, 128))
    params = {'enc': [], 'dec': []}
    pc = in_channels
    for i in range(depth):
        oc = wf * 2 ** i
        params['enc'].append({
            'c1_w': _conv_w(next(keys), oc, pc),
            's1_t': 0.05 * jax.random.normal(next(keys), (oc, 1, 1), jnp.float32),
            'c2_w': _conv_w(next(keys), oc, oc),
            's2_t': 0.05 * jax.random.normal(next(keys), (oc, 1, 1), jnp.float32),
        })
        params['dec'].append({
            'c1_w': _conv_w(next(keys), oc, oc),
            'c12_w': _conv_w(next(keys), oc, oc),
            's1_t': 0.05 * jax.random.normal(next(keys), (oc, 1, 1), jnp.float32),
            'c2_w': _conv_w(next(keys), pc, oc),
            's2_t': 0.05 * jax.random.normal(next(keys), (pc, 1, 1), jnp.float32),
        })
        pc = oc
    oc = wf * 2 ** depth
    params['dl'] = {
        'c1_w': _conv_w(next(keys), oc, pc),
        's1_t': 0.05 * jax.random.normal(next(keys), (oc, 1, 1), jnp.float32),
        'c2_w': _conv_w(next(keys), pc, oc),
        's2_t': 0.05 * jax.random.normal(next(keys), (pc, 1, 1), jnp.float32),
    }
    params['ol_w'] = _conv_w(next(keys), 1, 1, 1, 1)       # Conv2d(1,1,1, bias=False)
    return params


def sum2d_forward(params, x_nchw, thr=1.0):
    """Returns (clamp(out_conv(L), 0, 1), L) in NCHW, matching SUM_2d.forward."""
    x = jnp.transpose(x_nchw, (0, 2, 3, 1)).astype(jnp.float32)   # NCHW -> NHWC
    L = x
    H_list, F_list = [], []
    # encoder (downBlocks)
    for enc in params['enc']:
        c1 = conv3x3_replicate_thresh([(L, enc['c1_w'])], enc['s1_t'], thr)
        c2 = conv3x3_replicate_thresh([(c1, enc['c2_w'])], enc['s2_t'], thr)
        Lw, Hw = haar_dwt(c2)
        H_list.append(Hw)
        F_list.append(c2)
        L = Lw
    # deepest layer
    dl = params['dl']
    d1 = conv3x3_replicate_thresh([(L, dl['c1_w'])], dl['s1_t'], thr)
    L = conv3x3_replicate_thresh([(d1, dl['c2_w'])], dl['s2_t'], thr)
    # decoder (upBlocks), reversed; outputLayer fused into the final conv kernel.
    out_img = None
    for i in reversed(range(len(params['dec']))):
        dec = params['dec'][i]
        y = haar_idwt(L, H_list[i])
        # c1(y) + c12(f) fused into a single matmul (concat along K) + threshold
        u1 = conv3x3_replicate_thresh(
            [(y, dec['c1_w']), (F_list[i], dec['c12_w'])], dec['s1_t'], thr)
        if i == 0:
            L, out_img = conv3x3_replicate_thresh(
                [(u1, dec['c2_w'])], dec['s2_t'], thr, ol_w=params['ol_w'])
        else:
            L = conv3x3_replicate_thresh([(u1, dec['c2_w'])], dec['s2_t'], thr)
    return (jnp.transpose(out_img, (0, 3, 1, 2)),          # NHWC -> NCHW
            jnp.transpose(L, (0, 3, 1, 2)))


# ------------------------------------ main ------------------------------------

if __name__ == "__main__":
    key = jax.random.PRNGKey(0)
    pkey, xkey = jax.random.split(key)
    params = init_params(pkey, in_channels=1, depth=1, wf=4)
    # 32x32 keeps shapes small while exercising multi-step parallel grids.
    x = jax.random.normal(xkey, (2, 1, 32, 32), jnp.float32)        # NCHW, like torch

    fwd = jax.jit(lambda p, xx: sum2d_forward(p, xx, thr=1.0))
    out, L = fwd(params, x)
    jax.block_until_ready((out, L))

    assert out.shape == (2, 1, 32, 32) and L.shape == (2, 1, 32, 32)
    assert bool(jnp.all(jnp.isfinite(out))) and bool(jnp.all(jnp.isfinite(L)))
    assert float(jnp.min(out)) >= 0.0 and float(jnp.max(out)) <= 1.0
    # fused output layer must equal clamp(w * L, 0, 1) computed outside the kernel
    ref_out = jnp.clip(L * params['ol_w'].reshape(()), 0.0, 1.0)
    assert float(jnp.max(jnp.abs(ref_out - out))) < 1e-5
    print("KERNEL_OK")
</pallas_src>

<mosaic_0001>
module attributes {stable_mosaic.version = 11 : i64} {
  func.func @_conv_thresh_kernel(%arg0: i32, %arg1: memref<32x288xbf16, #tpu.memory_space<vmem>>, %arg2: memref<288x128xbf16, #tpu.memory_space<vmem>>, %arg3: memref<1x128xf32, #tpu.memory_space<vmem>>, %arg4: memref<32x128xbf16, #tpu.memory_space<vmem>>) attributes {dimension_semantics = [#tpu.dimension_semantics<parallel>], iteration_bounds = array<i64: 2>, scalar_prefetch = 0 : i64, scratch_operands = 0 : i64, tpu.core_type = #tpu.core_type<tc>, window_params = [{transform_indices = @transform_0, window_bounds = array<i64: 32, 288>}, {pipeline_mode = #tpu.pipeline_mode<synchronous>, transform_indices = @transform_1, window_bounds = array<i64: 288, 128>}, {pipeline_mode = #tpu.pipeline_mode<synchronous>, transform_indices = @transform_2, window_bounds = array<i64: 1, 128>}, {transform_indices = @transform_3, window_bounds = array<i64: 32, 128>}]} {
    %c0 = arith.constant 0 : index
    %c0_0 = arith.constant 0 : index
    %0 = vector.load %arg1[%c0, %c0_0] : memref<32x288xbf16, #tpu.memory_space<vmem>>, vector<32x288xbf16>
    %c0_1 = arith.constant 0 : index
    %c0_2 = arith.constant 0 : index
    %1 = vector.load %arg2[%c0_1, %c0_2] : memref<288x128xbf16, #tpu.memory_space<vmem>>, vector<288x128xbf16>
    %cst = arith.constant dense<0.000000e+00> : vector<32x128xf32>
    %2 = tpu.matmul %0, %1, %cst {dimension_numbers = #tpu.dot_dimension_numbers<[1], [0], [0], [1], [0, 0, 1, 1], [], []>} : vector<32x288xbf16>, vector<288x128xbf16>, vector<32x128xf32> -> vector<32x128xf32>
    %c0_3 = arith.constant 0 : index
    %c0_4 = arith.constant 0 : index
    %3 = vector.load %arg3[%c0_3, %c0_4] : memref<1x128xf32, #tpu.memory_space<vmem>>, vector<1x128xf32>
    %4 = vector.broadcast %3 : vector<1x128xf32> to vector<32x128xf32>
    %5 = arith.subf %2, %4 : vector<32x128xf32>
    %cst_5 = arith.constant 0.000000e+00 : f32
    %6 = vector.broadcast %cst_5 : f32 to vector<32x128xf32>
    %7 = arith.subf %6, %2 : vector<32x128xf32>
    %8 = vector.broadcast %3 : vector<1x128xf32> to vector<32x128xf32>
    %9 = arith.subf %7, %8 : vector<32x128xf32>
    %cst_6 = arith.constant 0.000000e+00 : f32
    %10 = vector.broadcast %cst_6 : f32 to vector<32x128xf32>
    %11 = arith.cmpf oge, %5, %10 : vector<32x128xf32>
    %cst_7 = arith.constant 1.000000e-03 : f32
    %12 = vector.broadcast %cst_7 : f32 to vector<32x128xf32>
    %13 = arith.mulf %12, %5 : vector<32x128xf32>
    %14 = arith.select %11, %5, %13 : vector<32x128xi1>, vector<32x128xf32>
    %cst_8 = arith.constant 0.000000e+00 : f32
    %15 = vector.broadcast %cst_8 : f32 to vector<32x128xf32>
    %16 = arith.cmpf oge, %9, %15 : vector<32x128xf32>
    %cst_9 = arith.constant 0.00999999977 : f32
    %17 = vector.broadcast %cst_9 : f32 to vector<32x128xf32>
    %18 = arith.mulf %17, %9 : vector<32x128xf32>
    %19 = arith.select %16, %9, %18 : vector<32x128xi1>, vector<32x128xf32>
    %20 = arith.subf %14, %19 : vector<32x128xf32>
    %21 = arith.truncf %20 : vector<32x128xf32> to vector<32x128xbf16>
    %c0_10 = arith.constant 0 : index
    %c0_11 = arith.constant 0 : index
    %22 = vector.load %arg4[%c0_10, %c0_11] : memref<32x128xbf16, #tpu.memory_space<vmem>>, vector<32x128xbf16>
    tpu.vector_store %arg4[%c0_10, %c0_11], %21 {strides = array<i32>} : memref<32x128xbf16, #tpu.memory_space<vmem>>, vector<32x128xbf16>,
    return
  }
  func.func @transform_0(%arg0: i32) -> (i32, i32) {
    %c0_i32 = arith.constant 0 : i32
    %c0_i32_0 = arith.constant 0 : i32
    return %arg0, %c0_i32 : i32, i32
  }
  func.func @transform_1(%arg0: i32) -> (i32, i32) {
    %c0_i32 = arith.constant 0 : i32
    %c0_i32_0 = arith.constant 0 : i32
    %c0_i32_1 = arith.constant 0 : i32
    return %c0_i32, %c0_i32_0 : i32, i32
  }
  func.func @transform_2(%arg0: i32) -> (i32, i32) {
    %c0_i32 = arith.constant 0 : i32
    %c0_i32_0 = arith.constant 0 : i32
    %c0_i32_1 = arith.constant 0 : i32
    return %c0_i32, %c0_i32_0 : i32, i32
  }
  func.func @transform_3(%arg0: i32) -> (i32, i32) {
    %c0_i32 = arith.constant 0 : i32
    %c0_i32_0 = arith.constant 0 : i32
    return %arg0, %c0_i32 : i32, i32
  }
}

module attributes {stable_mosaic.version = 11 : i64} {
  func.func @_conv_thresh_kernel(%arg0: i32, %arg1: memref<32x1152xbf16, #tpu.memory_space<vmem>>, %arg2: memref<1152x128xbf16, #tpu.memory_space<vmem>>, %arg3: memref<1x128xf32, #tpu.memory_space<vmem>>, %arg4: memref<32x128xbf16, #tpu.memory_space<vmem>>) attributes {dimension_semantics = [#tpu.dimension_semantics<parallel>], iteration_bounds = array<i64: 2>, scalar_prefetch = 0 : i64, scratch_operands = 0 : i64, tpu.core_type = #tpu.core_type<tc>, window_params = [{transform_indices = @transform_0, window_bounds = array<i64: 32, 1152>}, {pipeline_mode = #tpu.pipeline_mode<synchronous>, transform_indices = @transform_1, window_bounds = array<i64: 1152, 128>}, {pipeline_mode = #tpu.pipeline_mode<synchronous>, transform_indices = @transform_2, window_bounds = array<i64: 1, 128>}, {transform_indices = @transform_3, window_bounds = array<i64: 32, 128>}]} {
    %c0 = arith.constant 0 : index
    %c0_0 = arith.constant 0 : index
    %0 = vector.load %arg1[%c0, %c0_0] : memref<32x1152xbf16, #tpu.memory_space<vmem>>, vector<32x1152xbf16>
    %c0_1 = arith.constant 0 : index
    %c0_2 = arith.constant 0 : index
    %1 = vector.load %arg2[%c0_1, %c0_2] : memref<1152x128xbf16, #tpu.memory_space<vmem>>, vector<1152x128xbf16>
    %cst = arith.constant dense<0.000000e+00> : vector<32x128xf32>
    %2 = tpu.matmul %0, %1, %cst {dimension_numbers = #tpu.dot_dimension_numbers<[1], [0], [0], [1], [0, 0, 1, 1], [], []>} : vector<32x1152xbf16>, vector<1152x128xbf16>, vector<32x128xf32> -> vector<32x128xf32>
    %c0_3 = arith.constant 0 : index
    %c0_4 = arith.constant 0 : index
    %3 = vector.load %arg3[%c0_3, %c0_4] : memref<1x128xf32, #tpu.memory_space<vmem>>, vector<1x128xf32>
    %4 = vector.broadcast %3 : vector<1x128xf32> to vector<32x128xf32>
    %5 = arith.subf %2, %4 : vector<32x128xf32>
    %cst_5 = arith.constant 0.000000e+00 : f32
    %6 = vector.broadcast %cst_5 : f32 to vector<32x128xf32>
    %7 = arith.subf %6, %2 : vector<32x128xf32>
    %8 = vector.broadcast %3 : vector<1x128xf32> to vector<32x128xf32>
    %9 = arith.subf %7, %8 : vector<32x128xf32>
    %cst_6 = arith.constant 0.000000e+00 : f32
    %10 = vector.broadcast %cst_6 : f32 to vector<32x128xf32>
    %11 = arith.cmpf oge, %5, %10 : vector<32x128xf32>
    %cst_7 = arith.constant 1.000000e-03 : f32
    %12 = vector.broadcast %cst_7 : f32 to vector<32x128xf32>
    %13 = arith.mulf %12, %5 : vector<32x128xf32>
    %14 = arith.select %11, %5, %13 : vector<32x128xi1>, vector<32x128xf32>
    %cst_8 = arith.constant 0.000000e+00 : f32
    %15 = vector.broadcast %cst_8 : f32 to vector<32x128xf32>
    %16 = arith.cmpf oge, %9, %15 : vector<32x128xf32>
    %cst_9 = arith.constant 0.00999999977 : f32
    %17 = vector.broadcast %cst_9 : f32 to vector<32x128xf32>
    %18 = arith.mulf %17, %9 : vector<32x128xf32>
    %19 = arith.select %16, %9, %18 : vector<32x128xi1>, vector<32x128xf32>
    %20 = arith.subf %14, %19 : vector<32x128xf32>
    %21 = arith.truncf %20 : vector<32x128xf32> to vector<32x128xbf16>
    %c0_10 = arith.constant 0 : index
    %c0_11 = arith.constant 0 : index
    %22 = vector.load %arg4[%c0_10, %c0_11] : memref<32x128xbf16, #tpu.memory_space<vmem>>, vector<32x128xbf16>
    tpu.vector_store %arg4[%c0_10, %c0_11], %21 {strides = array<i32>} : memref<32x128xbf16, #tpu.memory_space<vmem>>, vector<32x128xbf16>,
    return
  }
  func.func @transform_0(%arg0: i32) -> (i32, i32) {
    %c0_i32 = arith.constant 0 : i32
    %c0_i32_0 = arith.constant 0 : i32
    return %arg0, %c0_i32 : i32, i32
  }
  func.func @transform_1(%arg0: i32) -> (i32, i32) {
    %c0_i32 = arith.constant 0 : i32
    %c0_i32_0 = arith.constant 0 : i32
    %c0_i32_1 = arith.constant 0 : i32
    return %c0_i32, %c0_i32_0 : i32, i32
  }
  func.func @transform_2(%arg0: i32) -> (i32, i32) {
    %c0_i32 = arith.constant 0 : i32
    %c0_i32_0 = arith.constant 0 : i32
    %c0_i32_1 = arith.constant 0 : i32
    return %c0_i32, %c0_i32_0 : i32, i32
  }
  func.func @transform_3(%arg0: i32) -> (i32, i32) {
    %c0_i32 = arith.constant 0 : i32
    %c0_i32_0 = arith.constant 0 : i32
    return %arg0, %c0_i32 : i32, i32
  }
}

module attributes {stable_mosaic.version = 11 : i64} {
  func.func @_haar_dwt_kernel(%arg0: i32, %arg1: memref<16x256xbf16, #tpu.memory_space<vmem>>, %arg2: memref<16x256xbf16, #tpu.memory_space<vmem>>) attributes {dimension_semantics = [#tpu.dimension_semantics<parallel>], iteration_bounds = array<i64: 2>, scalar_prefetch = 0 : i64, scratch_operands = 0 : i64, tpu.core_type = #tpu.core_type<tc>, window_params = [{transform_indices = @transform_0, window_bounds = array<i64: 16, 256>}, {transform_indices = @transform_1, window_bounds = array<i64: 16, 256>}]} {
    %c0 = arith.constant 0 : index
    %c0_0 = arith.constant 0 : index
    %0 = vector.load %arg1[%c0, %c0_0] : memref<16x256xbf16, #tpu.memory_space<vmem>>, vector<16x256xbf16>
    %1 = arith.extf %0 : vector<16x256xbf16> to vector<16x256xf32>
    %2 = vector.extract_strided_slice %1 {offsets = [0, 0], sizes = [16, 64], strides = [1, 1]} : vector<16x256xf32> to vector<16x64xf32>
    %3 = vector.extract_strided_slice %1 {offsets = [0, 64], sizes = [16, 64], strides = [1, 1]} : vector<16x256xf32> to vector<16x64xf32>
    %4 = vector.extract_strided_slice %1 {offsets = [0, 128], sizes = [16, 64], strides = [1, 1]} : vector<16x256xf32> to vector<16x64xf32>
    %5 = vector.extract_strided_slice %1 {offsets = [0, 192], sizes = [16, 64], strides = [1, 1]} : vector<16x256xf32> to vector<16x64xf32>
    %6 = arith.addf %2, %4 : vector<16x64xf32>
    %7 = arith.addf %6, %3 : vector<16x64xf32>
    %8 = arith.addf %7, %5 : vector<16x64xf32>
    %cst = arith.constant 5.000000e-01 : f32
    %9 = vector.broadcast %cst : f32 to vector<16x64xf32>
    %10 = arith.mulf %8, %9 : vector<16x64xf32>
    %11 = arith.addf %3, %5 : vector<16x64xf32>
    %12 = arith.subf %11, %2 : vector<16x64xf32>
    %13 = arith.subf %12, %4 : vector<16x64xf32>
    %cst_1 = arith.constant 5.000000e-01 : f32
    %14 = vector.broadcast %cst_1 : f32 to vector<16x64xf32>
    %15 = arith.mulf %13, %14 : vector<16x64xf32>
    %16 = arith.addf %4, %5 : vector<16x64xf32>
    %17 = arith.subf %16, %2 : vector<16x64xf32>
    %18 = arith.subf %17, %3 : vector<16x64xf32>
    %cst_2 = arith.constant 5.000000e-01 : f32
    %19 = vector.broadcast %cst_2 : f32 to vector<16x64xf32>
    %20 = arith.mulf %18, %19 : vector<16x64xf32>
    %21 = arith.addf %2, %5 : vector<16x64xf32>
    %22 = arith.subf %21, %4 : vector<16x64xf32>
    %23 = arith.subf %22, %3 : vector<16x64xf32>
    %cst_3 = arith.constant 5.000000e-01 : f32
    %24 = vector.broadcast %cst_3 : f32 to vector<16x64xf32>
    %25 = arith.mulf %23, %24 : vector<16x64xf32>
    %26 = tpu.concatenate %10, %15, %20, %25 in 1 : vector<16x64xf32>, vector<16x64xf32>, vector<16x64xf32>, vector<16x64xf32> -> vector<16x256xf32>
    %27 = arith.truncf %26 : vector<16x256xf32> to vector<16x256xbf16>
    %c0_4 = arith.constant 0 : index
    %c0_5 = arith.constant 0 : index
    %28 = vector.load %arg2[%c0_4, %c0_5] : memref<16x256xbf16, #tpu.memory_space<vmem>>, vector<16x256xbf16>
    tpu.vector_store %arg2[%c0_4, %c0_5], %27 {strides = array<i32>} : memref<16x256xbf16, #tpu.memory_space<vmem>>, vector<16x256xbf16>,
    return
  }
  func.func @transform_0(%arg0: i32) -> (i32, i32) {
    %c0_i32 = arith.constant 0 : i32
    %c0_i32_0 = arith.constant 0 : i32
    return %arg0, %c0_i32 : i32, i32
  }
  func.func @transform_1(%arg0: i32) -> (i32, i32) {
    %c0_i32 = arith.constant 0 : i32
    %c0_i32_0 = arith.constant 0 : i32
    return %arg0, %c0_i32 : i32, i32
  }
}

module attributes {stable_mosaic.version = 11 : i64} {
  func.func @_conv_thresh_kernel(%arg0: i32, %arg1: memref<16x576xbf16, #tpu.memory_space<vmem>>, %arg2: memref<576x128xbf16, #tpu.memory_space<vmem>>, %arg3: memref<1x128xf32, #tpu.memory_space<vmem>>, %arg4: memref<16x128xbf16, #tpu.memory_space<vmem>>) attributes {dimension_semantics = [#tpu.dimension_semantics<parallel>], iteration_bounds = array<i64: 2>, scalar_prefetch = 0 : i64, scratch_operands = 0 : i64, tpu.core_type = #tpu.core_type<tc>, window_params = [{transform_indices = @transform_0, window_bounds = array<i64: 16, 576>}, {pipeline_mode = #tpu.pipeline_mode<synchronous>, transform_indices = @transform_1, window_bounds = array<i64: 576, 128>}, {pipeline_mode = #tpu.pipeline_mode<synchronous>, transform_indices = @transform_2, window_bounds = array<i64: 1, 128>}, {transform_indices = @transform_3, window_bounds = array<i64: 16, 128>}]} {
    %c0 = arith.constant 0 : index
    %c0_0 = arith.constant 0 : index
    %0 = vector.load %arg1[%c0, %c0_0] : memref<16x576xbf16, #tpu.memory_space<vmem>>, vector<16x576xbf16>
    %c0_1 = arith.constant 0 : index
    %c0_2 = arith.constant 0 : index
    %1 = vector.load %arg2[%c0_1, %c0_2] : memref<576x128xbf16, #tpu.memory_space<vmem>>, vector<576x128xbf16>
    %cst = arith.constant dense<0.000000e+00> : vector<16x128xf32>
    %2 = tpu.matmul %0, %1, %cst {dimension_numbers = #tpu.dot_dimension_numbers<[1], [0], [0], [1], [0, 0, 1, 1], [], []>} : vector<16x576xbf16>, vector<576x128xbf16>, vector<16x128xf32> -> vector<16x128xf32>
    %c0_3 = arith.constant 0 : index
    %c0_4 = arith.constant 0 : index
    %3 = vector.load %arg3[%c0_3, %c0_4] : memref<1x128xf32, #tpu.memory_space<vmem>>, vector<1x128xf32>
    %4 = vector.broadcast %3 : vector<1x128xf32> to vector<16x128xf32>
    %5 = arith.subf %2, %4 : vector<16x128xf32>
    %cst_5 = arith.constant 0.000000e+00 : f32
    %6 = vector.broadcast %cst_5 : f32 to vector<16x128xf32>
    %7 = arith.subf %6, %2 : vector<16x128xf32>
    %8 = vector.broadcast %3 : vector<1x128xf32> to vector<16x128xf32>
    %9 = arith.subf %7, %8 : vector<16x128xf32>
    %cst_6 = arith.constant 0.000000e+00 : f32
    %10 = vector.broadcast %cst_6 : f32 to vector<16x128xf32>
    %11 = arith.cmpf oge, %5, %10 : vector<16x128xf32>
    %cst_7 = arith.constant 1.000000e-03 : f32
    %12 = vector.broadcast %cst_7 : f32 to vector<16x128xf32>
    %13 = arith.mulf %12, %5 : vector<16x128xf32>
    %14 = arith.select %11, %5, %13 : vector<16x128xi1>, vector<16x128xf32>
    %cst_8 = arith.constant 0.000000e+00 : f32
    %15 = vector.broadcast %cst_8 : f32 to vector<16x128xf32>
    %16 = arith.cmpf oge, %9, %15 : vector<16x128xf32>
    %cst_9 = arith.constant 0.00999999977 : f32
    %17 = vector.broadcast %cst_9 : f32 to vector<16x128xf32>
    %18 = arith.mulf %17, %9 : vector<16x128xf32>
    %19 = arith.select %16, %9, %18 : vector<16x128xi1>, vector<16x128xf32>
    %20 = arith.subf %14, %19 : vector<16x128xf32>
    %21 = arith.truncf %20 : vector<16x128xf32> to vector<16x128xbf16>
    %c0_10 = arith.constant 0 : index
    %c0_11 = arith.constant 0 : index
    %22 = vector.load %arg4[%c0_10, %c0_11] : memref<16x128xbf16, #tpu.memory_space<vmem>>, vector<16x128xbf16>
    tpu.vector_store %arg4[%c0_10, %c0_11], %21 {strides = array<i32>} : memref<16x128xbf16, #tpu.memory_space<vmem>>, vector<16x128xbf16>,
    return
  }
  func.func @transform_0(%arg0: i32) -> (i32, i32) {
    %c0_i32 = arith.constant 0 : i32
    %c0_i32_0 = arith.constant 0 : i32
    return %arg0, %c0_i32 : i32, i32
  }
  func.func @transform_1(%arg0: i32) -> (i32, i32) {
    %c0_i32 = arith.constant 0 : i32
    %c0_i32_0 = arith.constant 0 : i32
    %c0_i32_1 = arith.constant 0 : i32
    return %c0_i32, %c0_i32_0 : i32, i32
  }
  func.func @transform_2(%arg0: i32) -> (i32, i32) {
    %c0_i32 = arith.constant 0 : i32
    %c0_i32_0 = arith.constant 0 : i32
    %c0_i32_1 = arith.constant 0 : i32
    return %c0_i32, %c0_i32_0 : i32, i32
  }
  func.func @transform_3(%arg0: i32) -> (i32, i32) {
    %c0_i32 = arith.constant 0 : i32
    %c0_i32_0 = arith.constant 0 : i32
    return %arg0, %c0_i32 : i32, i32
  }
}

module attributes {stable_mosaic.version = 11 : i64} {
  func.func @_conv_thresh_kernel(%arg0: i32, %arg1: memref<8x2304xbf16, #tpu.memory_space<vmem>>, %arg2: memref<2304x128xbf16, #tpu.memory_space<vmem>>, %arg3: memref<1x128xf32, #tpu.memory_space<vmem>>, %arg4: memref<8x128xbf16, #tpu.memory_space<vmem>>) attributes {dimension_semantics = [#tpu.dimension_semantics<parallel>], iteration_bounds = array<i64: 2>, scalar_prefetch = 0 : i64, scratch_operands = 0 : i64, tpu.core_type = #tpu.core_type<tc>, window_params = [{transform_indices = @transform_0, window_bounds = array<i64: 8, 2304>}, {pipeline_mode = #tpu.pipeline_mode<synchronous>, transform_indices = @transform_1, window_bounds = array<i64: 2304, 128>}, {pipeline_mode = #tpu.pipeline_mode<synchronous>, transform_indices = @transform_2, window_bounds = array<i64: 1, 128>}, {transform_indices = @transform_3, window_bounds = array<i64: 8, 128>}]} {
    %c0 = arith.constant 0 : index
    %c0_0 = arith.constant 0 : index
    %0 = vector.load %arg1[%c0, %c0_0] : memref<8x2304xbf16, #tpu.memory_space<vmem>>, vector<8x2304xbf16>
    %c0_1 = arith.constant 0 : index
    %c0_2 = arith.constant 0 : index
    %1 = vector.load %arg2[%c0_1, %c0_2] : memref<2304x128xbf16, #tpu.memory_space<vmem>>, vector<2304x128xbf16>
    %cst = arith.constant dense<0.000000e+00> : vector<8x128xf32>
    %2 = tpu.matmul %0, %1, %cst {dimension_numbers = #tpu.dot_dimension_numbers<[1], [0], [0], [1], [0, 0, 1, 1], [], []>} : vector<8x2304xbf16>, vector<2304x128xbf16>, vector<8x128xf32> -> vector<8x128xf32>
    %c0_3 = arith.constant 0 : index
    %c0_4 = arith.constant 0 : index
    %3 = vector.load %arg3[%c0_3, %c0_4] : memref<1x128xf32, #tpu.memory_space<vmem>>, vector<1x128xf32>
    %4 = vector.broadcast %3 : vector<1x128xf32> to vector<8x128xf32>
    %5 = arith.subf %2, %4 : vector<8x128xf32>
    %cst_5 = arith.constant 0.000000e+00 : f32
    %6 = vector.broadcast %cst_5 : f32 to vector<8x128xf32>
    %7 = arith.subf %6, %2 : vector<8x128xf32>
    %8 = vector.broadcast %3 : vector<1x128xf32> to vector<8x128xf32>
    %9 = arith.subf %7, %8 : vector<8x128xf32>
    %cst_6 = arith.constant 0.000000e+00 : f32
    %10 = vector.broadcast %cst_6 : f32 to vector<8x128xf32>
    %11 = arith.cmpf oge, %5, %10 : vector<8x128xf32>
    %cst_7 = arith.constant 1.000000e-03 : f32
    %12 = vector.broadcast %cst_7 : f32 to vector<8x128xf32>
    %13 = arith.mulf %12, %5 : vector<8x128xf32>
    %14 = arith.select %11, %5, %13 : vector<8x128xi1>, vector<8x128xf32>
    %cst_8 = arith.constant 0.000000e+00 : f32
    %15 = vector.broadcast %cst_8 : f32 to vector<8x128xf32>
    %16 = arith.cmpf oge, %9, %15 : vector<8x128xf32>
    %cst_9 = arith.constant 0.00999999977 : f32
    %17 = vector.broadcast %cst_9 : f32 to vector<8x128xf32>
    %18 = arith.mulf %17, %9 : vector<8x128xf32>
    %19 = arith.select %16, %9, %18 : vector<8x128xi1>, vector<8x128xf32>
    %20 = arith.subf %14, %19 : vector<8x128xf32>
    %21 = arith.truncf %20 : vector<8x128xf32> to vector<8x128xbf16>
    %c0_10 = arith.constant 0 : index
    %c0_11 = arith.constant 0 : index
    %22 = vector.load %arg4[%c0_10, %c0_11] : memref<8x128xbf16, #tpu.memory_space<vmem>>, vector<8x128xbf16>
    tpu.vector_store %arg4[%c0_10, %c0_11], %21 {strides = array<i32>} : memref<8x128xbf16, #tpu.memory_space<vmem>>, vector<8x128xbf16>,
    return
  }
  func.func @transform_0(%arg0: i32) -> (i32, i32) {
    %c0_i32 = arith.constant 0 : i32
    %c0_i32_0 = arith.constant 0 : i32
    return %arg0, %c0_i32 : i32, i32
  }
  func.func @transform_1(%arg0: i32) -> (i32, i32) {
    %c0_i32 = arith.constant 0 : i32
    %c0_i32_0 = arith.constant 0 : i32
    %c0_i32_1 = arith.constant 0 : i32
    return %c0_i32, %c0_i32_0 : i32, i32
  }
  func.func @transform_2(%arg0: i32) -> (i32, i32) {
    %c0_i32 = arith.constant 0 : i32
    %c0_i32_0 = arith.constant 0 : i32
    %c0_i32_1 = arith.constant 0 : i32
    return %c0_i32, %c0_i32_0 : i32, i32
  }
  func.func @transform_3(%arg0: i32) -> (i32, i32) {
    %c0_i32 = arith.constant 0 : i32
    %c0_i32_0 = arith.constant 0 : i32
    return %arg0, %c0_i32 : i32, i32
  }
}

module attributes {stable_mosaic.version = 11 : i64} {
  func.func @_haar_idwt_kernel(%arg0: i32, %arg1: memref<16x256xbf16, #tpu.memory_space<vmem>>, %arg2: memref<16x256xbf16, #tpu.memory_space<vmem>>) attributes {dimension_semantics = [#tpu.dimension_semantics<parallel>], iteration_bounds = array<i64: 2>, scalar_prefetch = 0 : i64, scratch_operands = 0 : i64, tpu.core_type = #tpu.core_type<tc>, window_params = [{transform_indices = @transform_0, window_bounds = array<i64: 16, 256>}, {transform_indices = @transform_1, window_bounds = array<i64: 16, 256>}]} {
    %c0 = arith.constant 0 : index
    %c0_0 = arith.constant 0 : index
    %0 = vector.load %arg1[%c0, %c0_0] : memref<16x256xbf16, #tpu.memory_space<vmem>>, vector<16x256xbf16>
    %1 = arith.extf %0 : vector<16x256xbf16> to vector<16x256xf32>
    %2 = vector.extract_strided_slice %1 {offsets = [0, 0], sizes = [16, 64], strides = [1, 1]} : vector<16x256xf32> to vector<16x64xf32>
    %3 = vector.extract_strided_slice %1 {offsets = [0, 64], sizes = [16, 64], strides = [1, 1]} : vector<16x256xf32> to vector<16x64xf32>
    %4 = vector.extract_strided_slice %1 {offsets = [0, 128], sizes = [16, 64], strides = [1, 1]} : vector<16x256xf32> to vector<16x64xf32>
    %5 = vector.extract_strided_slice %1 {offsets = [0, 192], sizes = [16, 64], strides = [1, 1]} : vector<16x256xf32> to vector<16x64xf32>
    %6 = arith.subf %2, %3 : vector<16x64xf32>
    %7 = arith.subf %6, %4 : vector<16x64xf32>
    %8 = arith.addf %7, %5 : vector<16x64xf32>
    %cst = arith.constant 5.000000e-01 : f32
    %9 = vector.broadcast %cst : f32 to vector<16x64xf32>
    %10 = arith.mulf %8, %9 : vector<16x64xf32>
    %11 = arith.addf %2, %3 : vector<16x64xf32>
    %12 = arith.subf %11, %4 : vector<16x64xf32>
    %13 = arith.subf %12, %5 : vector<16x64xf32>
    %cst_1 = arith.constant 5.000000e-01 : f32
    %14 = vector.broadcast %cst_1 : f32 to vector<16x64xf32>
    %15 = arith.mulf %13, %14 : vector<16x64xf32>
    %16 = arith.subf %2, %3 : vector<16x64xf32>
    %17 = arith.addf %16, %4 : vector<16x64xf32>
    %18 = arith.subf %17, %5 : vector<16x64xf32>
    %cst_2 = arith.constant 5.000000e-01 : f32
    %19 = vector.broadcast %cst_2 : f32 to vector<16x64xf32>
    %20 = arith.mulf %18, %19 : vector<16x64xf32>
    %21 = arith.addf %2, %3 : vector<16x64xf32>
    %22 = arith.addf %21, %4 : vector<16x64xf32>
    %23 = arith.addf %22, %5 : vector<16x64xf32>
    %cst_3 = arith.constant 5.000000e-01 : f32
    %24 = vector.broadcast %cst_3 : f32 to vector<16x64xf32>
    %25 = arith.mulf %23, %24 : vector<16x64xf32>
    %26 = tpu.concatenate %10, %15, %20, %25 in 1 : vector<16x64xf32>, vector<16x64xf32>, vector<16x64xf32>, vector<16x64xf32> -> vector<16x256xf32>
    %27 = arith.truncf %26 : vector<16x256xf32> to vector<16x256xbf16>
    %c0_4 = arith.constant 0 : index
    %c0_5 = arith.constant 0 : index
    %28 = vector.load %arg2[%c0_4, %c0_5] : memref<16x256xbf16, #tpu.memory_space<vmem>>, vector<16x256xbf16>
    tpu.vector_store %arg2[%c0_4, %c0_5], %27 {strides = array<i32>} : memref<16x256xbf16, #tpu.memory_space<vmem>>, vector<16x256xbf16>,
    return
  }
  func.func @transform_0(%arg0: i32) -> (i32, i32) {
    %c0_i32 = arith.constant 0 : i32
    %c0_i32_0 = arith.constant 0 : i32
    return %arg0, %c0_i32 : i32, i32
  }
  func.func @transform_1(%arg0: i32) -> (i32, i32) {
    %c0_i32 = arith.constant 0 : i32
    %c0_i32_0 = arith.constant 0 : i32
    return %arg0, %c0_i32 : i32, i32
  }
}

module attributes {stable_mosaic.version = 11 : i64} {
  func.func @_conv_thresh_kernel(%arg0: i32, %arg1: memref<32x2304xbf16, #tpu.memory_space<vmem>>, %arg2: memref<2304x128xbf16, #tpu.memory_space<vmem>>, %arg3: memref<1x128xf32, #tpu.memory_space<vmem>>, %arg4: memref<32x128xbf16, #tpu.memory_space<vmem>>) attributes {dimension_semantics = [#tpu.dimension_semantics<parallel>], iteration_bounds = array<i64: 2>, scalar_prefetch = 0 : i64, scratch_operands = 0 : i64, tpu.core_type = #tpu.core_type<tc>, window_params = [{transform_indices = @transform_0, window_bounds = array<i64: 32, 2304>}, {pipeline_mode = #tpu.pipeline_mode<synchronous>, transform_indices = @transform_1, window_bounds = array<i64: 2304, 128>}, {pipeline_mode = #tpu.pipeline_mode<synchronous>, transform_indices = @transform_2, window_bounds = array<i64: 1, 128>}, {transform_indices = @transform_3, window_bounds = array<i64: 32, 128>}]} {
    %c0 = arith.constant 0 : index
    %c0_0 = arith.constant 0 : index
    %0 = vector.load %arg1[%c0, %c0_0] : memref<32x2304xbf16, #tpu.memory_space<vmem>>, vector<32x2304xbf16>
    %c0_1 = arith.constant 0 : index
    %c0_2 = arith.constant 0 : index
    %1 = vector.load %arg2[%c0_1, %c0_2] : memref<2304x128xbf16, #tpu.memory_space<vmem>>, vector<2304x128xbf16>
    %cst = arith.constant dense<0.000000e+00> : vector<32x128xf32>
    %2 = tpu.matmul %0, %1, %cst {dimension_numbers = #tpu.dot_dimension_numbers<[1], [0], [0], [1], [0, 0, 1, 1], [], []>} : vector<32x2304xbf16>, vector<2304x128xbf16>, vector<32x128xf32> -> vector<32x128xf32>
    %c0_3 = arith.constant 0 : index
    %c0_4 = arith.constant 0 : index
    %3 = vector.load %arg3[%c0_3, %c0_4] : memref<1x128xf32, #tpu.memory_space<vmem>>, vector<1x128xf32>
    %4 = vector.broadcast %3 : vector<1x128xf32> to vector<32x128xf32>
    %5 = arith.subf %2, %4 : vector<32x128xf32>
    %cst_5 = arith.constant 0.000000e+00 : f32
    %6 = vector.broadcast %cst_5 : f32 to vector<32x128xf32>
    %7 = arith.subf %6, %2 : vector<32x128xf32>
    %8 = vector.broadcast %3 : vector<1x128xf32> to vector<32x128xf32>
    %9 = arith.subf %7, %8 : vector<32x128xf32>
    %cst_6 = arith.constant 0.000000e+00 : f32
    %10 = vector.broadcast %cst_6 : f32 to vector<32x128xf32>
    %11 = arith.cmpf oge, %5, %10 : vector<32x128xf32>
    %cst_7 = arith.constant 1.000000e-03 : f32
    %12 = vector.broadcast %cst_7 : f32 to vector<32x128xf32>
    %13 = arith.mulf %12, %5 : vector<32x128xf32>
    %14 = arith.select %11, %5, %13 : vector<32x128xi1>, vector<32x128xf32>
    %cst_8 = arith.constant 0.000000e+00 : f32
    %15 = vector.broadcast %cst_8 : f32 to vector<32x128xf32>
    %16 = arith.cmpf oge, %9, %15 : vector<32x128xf32>
    %cst_9 = arith.constant 0.00999999977 : f32
    %17 = vector.broadcast %cst_9 : f32 to vector<32x128xf32>
    %18 = arith.mulf %17, %9 : vector<32x128xf32>
    %19 = arith.select %16, %9, %18 : vector<32x128xi1>, vector<32x128xf32>
    %20 = arith.subf %14, %19 : vector<32x128xf32>
    %21 = arith.truncf %20 : vector<32x128xf32> to vector<32x128xbf16>
    %c0_10 = arith.constant 0 : index
    %c0_11 = arith.constant 0 : index
    %22 = vector.load %arg4[%c0_10, %c0_11] : memref<32x128xbf16, #tpu.memory_space<vmem>>, vector<32x128xbf16>
    tpu.vector_store %arg4[%c0_10, %c0_11], %21 {strides = array<i32>} : memref<32x128xbf16, #tpu.memory_space<vmem>>, vector<32x128xbf16>,
    return
  }
  func.func @transform_0(%arg0: i32) -> (i32, i32) {
    %c0_i32 = arith.constant 0 : i32
    %c0_i32_0 = arith.constant 0 : i32
    return %arg0, %c0_i32 : i32, i32
  }
  func.func @transform_1(%arg0: i32) -> (i32, i32) {
    %c0_i32 = arith.constant 0 : i32
    %c0_i32_0 = arith.constant 0 : i32
    %c0_i32_1 = arith.constant 0 : i32
    return %c0_i32, %c0_i32_0 : i32, i32
  }
  func.func @transform_2(%arg0: i32) -> (i32, i32) {
    %c0_i32 = arith.constant 0 : i32
    %c0_i32_0 = arith.constant 0 : i32
    %c0_i32_1 = arith.constant 0 : i32
    return %c0_i32, %c0_i32_0 : i32, i32
  }
  func.func @transform_3(%arg0: i32) -> (i32, i32) {
    %c0_i32 = arith.constant 0 : i32
    %c0_i32_0 = arith.constant 0 : i32
    return %arg0, %c0_i32 : i32, i32
  }
}

module attributes {stable_mosaic.version = 11 : i64} {
  func.func @_conv_thresh_fused_out_kernel(%arg0: i32, %arg1: memref<8x4608xbf16, #tpu.memory_space<vmem>>, %arg2: memref<4608x128xbf16, #tpu.memory_space<vmem>>, %arg3: memref<1x128xf32, #tpu.memory_space<vmem>>, %arg4: memref<1x1xf32, #tpu.memory_space<vmem>>, %arg5: memref<8x128xf32, #tpu.memory_space<vmem>>, %arg6: memref<8x128xf32, #tpu.memory_space<vmem>>) attributes {dimension_semantics = [#tpu.dimension_semantics<parallel>], iteration_bounds = array<i64: 2>, scalar_prefetch = 0 : i64, scratch_operands = 0 : i64, tpu.core_type = #tpu.core_type<tc>, window_params = [{transform_indices = @transform_0, window_bounds = array<i64: 8, 4608>}, {pipeline_mode = #tpu.pipeline_mode<synchronous>, transform_indices = @transform_1, window_bounds = array<i64: 4608, 128>}, {pipeline_mode = #tpu.pipeline_mode<synchronous>, transform_indices = @transform_2, window_bounds = array<i64: 1, 128>}, {pipeline_mode = #tpu.pipeline_mode<synchronous>, transform_indices = @transform_3, window_bounds = array<i64: 1, 1>}, {transform_indices = @transform_4, window_bounds = array<i64: 8, 128>}, {transform_indices = @transform_5, window_bounds = array<i64: 8, 128>}]} {
    %c0 = arith.constant 0 : index
    %c0_0 = arith.constant 0 : index
    %0 = vector.load %arg1[%c0, %c0_0] : memref<8x4608xbf16, #tpu.memory_space<vmem>>, vector<8x4608xbf16>
    %c0_1 = arith.constant 0 : index
    %c0_2 = arith.constant 0 : index
    %1 = vector.load %arg2[%c0_1, %c0_2] : memref<4608x128xbf16, #tpu.memory_space<vmem>>, vector<4608x128xbf16>
    %cst = arith.constant dense<0.000000e+00> : vector<8x128xf32>
    %2 = tpu.matmul %0, %1, %cst {dimension_numbers = #tpu.dot_dimension_numbers<[1], [0], [0], [1], [0, 0, 1, 1], [], []>} : vector<8x4608xbf16>, vector<4608x128xbf16>, vector<8x128xf32> -> vector<8x128xf32>
    %c0_3 = arith.constant 0 : index
    %c0_4 = arith.constant 0 : index
    %3 = vector.load %arg3[%c0_3, %c0_4] : memref<1x128xf32, #tpu.memory_space<vmem>>, vector<1x128xf32>
    %4 = vector.broadcast %3 : vector<1x128xf32> to vector<8x128xf32>
    %5 = arith.subf %2, %4 : vector<8x128xf32>
    %cst_5 = arith.constant 0.000000e+00 : f32
    %6 = vector.broadcast %cst_5 : f32 to vector<8x128xf32>
    %7 = arith.subf %6, %2 : vector<8x128xf32>
    %8 = vector.broadcast %3 : vector<1x128xf32> to vector<8x128xf32>
    %9 = arith.subf %7, %8 : vector<8x128xf32>
    %cst_6 = arith.constant 0.000000e+00 : f32
    %10 = vector.broadcast %cst_6 : f32 to vector<8x128xf32>
    %11 = arith.cmpf oge, %5, %10 : vector<8x128xf32>
    %cst_7 = arith.constant 1.000000e-03 : f32
    %12 = vector.broadcast %cst_7 : f32 to vector<8x128xf32>
    %13 = arith.mulf %12, %5 : vector<8x128xf32>
    %14 = arith.select %11, %5, %13 : vector<8x128xi1>, vector<8x128xf32>
    %cst_8 = arith.constant 0.000000e+00 : f32
    %15 = vector.broadcast %cst_8 : f32 to vector<8x128xf32>
    %16 = arith.cmpf oge, %9, %15 : vector<8x128xf32>
    %cst_9 = arith.constant 0.00999999977 : f32
    %17 = vector.broadcast %cst_9 : f32 to vector<8x128xf32>
    %18 = arith.mulf %17, %9 : vector<8x128xf32>
    %19 = arith.select %16, %9, %18 : vector<8x128xi1>, vector<8x128xf32>
    %20 = arith.subf %14, %19 : vector<8x128xf32>
    %c0_10 = arith.constant 0 : index
    %c0_11 = arith.constant 0 : index
    %21 = vector.load %arg5[%c0_10, %c0_11] : memref<8x128xf32, #tpu.memory_space<vmem>>, vector<8x128xf32>
    tpu.vector_store %arg5[%c0_10, %c0_11], %20 {strides = array<i32>} : memref<8x128xf32, #tpu.memory_space<vmem>>, vector<8x128xf32>,
    %c0_12 = arith.constant 0 : index
    %c0_13 = arith.constant 0 : index
    %22 = vector.load %arg4[%c0_12, %c0_13] : memref<1x1xf32, #tpu.memory_space<vmem>>, vector<1x1xf32>
    %23 = vector.broadcast %22 : vector<1x1xf32> to vector<8x128xf32>
    %24 = arith.mulf %20, %23 : vector<8x128xf32>
    %cst_14 = arith.constant 0.000000e+00 : f32
    %cst_15 = arith.constant 1.000000e+00 : f32
    %25 = vector.broadcast %cst_14 : f32 to vector<8x128xf32>
    %26 = arith.maximumf %25, %24 : vector<8x128xf32>
    %27 = vector.broadcast %cst_15 : f32 to vector<8x128xf32>
    %28 = arith.minimumf %27, %26 : vector<8x128xf32>
    %c0_16 = arith.constant 0 : index
    %c0_17 = arith.constant 0 : index
    %29 = vector.load %arg6[%c0_16, %c0_17] : memref<8x128xf32, #tpu.memory_space<vmem>>, vector<8x128xf32>
    tpu.vector_store %arg6[%c0_16, %c0_17], %28 {strides = array<i32>} : memref<8x128xf32, #tpu.memory_space<vmem>>, vector<8x128xf32>,
    return
  }
  func.func @transform_0(%arg0: i32) -> (i32, i32) {
    %c0_i32 = arith.constant 0 : i32
    %c0_i32_0 = arith.constant 0 : i32
    return %arg0, %c0_i32 : i32, i32
  }
  func.func @transform_1(%arg0: i32) -> (i32, i32) {
    %c0_i32 = arith.constant 0 : i32
    %c0_i32_0 = arith.constant 0 : i32
    %c0_i32_1 = arith.constant 0 : i32
    return %c0_i32, %c0_i32_0 : i32, i32
  }
  func.func @transform_2(%arg0: i32) -> (i32, i32) {
    %c0_i32 = arith.constant 0 : i32
    %c0_i32_0 = arith.constant 0 : i32
    %c0_i32_1 = arith.constant 0 : i32
    return %c0_i32, %c0_i32_0 : i32, i32
  }
  func.func @transform_3(%arg0: i32) -> (i32, i32) {
    %c0_i32 = arith.constant 0 : i32
    %c0_i32_0 = arith.constant 0 : i32
    %c0_i32_1 = arith.constant 0 : i32
    return %c0_i32, %c0_i32_0 : i32, i32
  }
  func.func @transform_4(%arg0: i32) -> (i32, i32) {
    %c0_i32 = arith.constant 0 : i32
    %c0_i32_0 = arith.constant 0 : i32
    return %arg0, %c0_i32 : i32, i32
  }
  func.func @transform_5(%arg0: i32) -> (i32, i32) {
    %c0_i32 = arith.constant 0 : i32
    %c0_i32_0 = arith.constant 0 : i32
    return %arg0, %c0_i32 : i32, i32
  }
}

</mosaic_0001>

<llo_original>
// kernel: _lambda_.8
$region0: #{_lambda_.8}
  #allocation0 [shape = 'u32[]', space=smem, size = 0x4, offset = 0x4, fixed_abs, tag = 'smem constant byte address 0x4 - core index']
  #allocation1 [shape = 'u32[144,128]{1,0:T(1,128)}', space=vmem, size = 0x12000, scoped, tag = 'internal scratch']
  %s0 = inlined_call_operand.vmem [shape: bf16[64,288], index: 0, kind: input, shape index: {}]
  %s1 = inlined_call_operand.vmem [shape: bf16[288,128], index: 1, kind: input, shape index: {}]
  %s2 = inlined_call_operand.vmem [shape: f32[1,128], index: 2, kind: input, shape index: {}]
  %s3 = inlined_call_operand.vmem [shape: bf16[64,128], index: 3, kind: output, shape index: {}]
  %s4 = sld [smem:[#allocation0]]
  $region45: #{_lambda_.8} parent=0
    _
  %s6 = ssub.s32 1, %s4
  %s7 = scalar_select 0, %s6, %s4
  loop: start=0, step=1, limit=4
  $region2: #{_lambda_.8} parent=0 // loop_pre_header
    _
  $region3: #{_lambda_.8} parent=0 // loop_header
    %s9 = sphi 0, %s13
    %p10 = scmp.ge.s32.totalorder %s9, 4
    %s19 = sphi 0, %s21
    %s22 = sphi 0, %s19
    %s23 = sphi 0, %s22
    %s39 = sphi 0, %s23
    %s43 = sphi 0, %s43
    %s45 = sphi 0, %s43
    %s46 = sphi 0, %s45
    %s60 = sphi 0, %s46
    %s64 = sphi 0, %s64
    %s66 = sphi 0, %s64
    %s67 = sphi 0, %s66
    %s81 = sphi 0, %s67
    %s87 = sphi 0, %s89
    %s90 = sphi 0, %s87
    %s91 = sphi 0, %s90
    %s107 = sphi 0, %s91
  $region4: #{_lambda_.8} parent=0 // loop_header_branch
    %12 = sbr.rel (%p10) target = $region8
  $region5: #{_lambda_.8} parent=0 // loop_body
    %s14 = ssub.s32 %s9, 1
    %s15 = ssub.s32 %s9, 2
    %s16 = sadd.s32 %s9, 1
    %s17 = ssub.s32 %s9, %s16
    %p18 = scmp.eq.s32.totalorder %s17, 0
    %s20 = sadd.s32 %s19, 1
    %s21 = scalar_select %p18, %s19, %s20
    %p24 = pneg %p18
    %p25 = scmp.eq.s32.totalorder %s9, 1
    %p26 = por %p24, %p25
    %p27 = scmp.ne.s32.totalorder %s19, %s22
    %p28 = scmp.eq.s32.totalorder %s9, 0
    %p29 = por %p27, %p28
    %p30 = scmp.ne.s32.totalorder %s19, %s22
    %p31 = scmp.eq.s32.totalorder %s14, 1
    %p32 = por %p30, %p31
    %p33 = scmp.ne.s32.totalorder %s22, %s23
    %p34 = scmp.eq.s32.totalorder %s14, 0
    %p35 = por %p33, %p34
    %p36 = scmp.ne.s32.totalorder %s22, %s23
    %p37 = scmp.eq.s32.totalorder %s15, 1
    %p38 = por %p36, %p37
    %p40 = scmp.ne.s32.totalorder %s23, %s39
    %p41 = scmp.eq.s32.totalorder %s15, 0
    %p42 = por %p40, %p41
    %s44 = sadd.s32 %s43, 1
    %p47 = scmp.eq.s32.totalorder %s9, 1
    %p48 = scmp.ne.s32.totalorder %s43, %s45
    %p49 = scmp.eq.s32.totalorder %s9, 0
    %p50 = por %p48, %p49
    %p51 = scmp.ne.s32.totalorder %s43, %s45
    %p52 = scmp.eq.s32.totalorder %s14, 1
    %p53 = por %p51, %p52
    %p54 = scmp.ne.s32.totalorder %s45, %s46
    %p55 = scmp.eq.s32.totalorder %s14, 0
    %p56 = por %p54, %p55
    %p57 = scmp.ne.s32.totalorder %s45, %s46
    %p58 = scmp.eq.s32.totalorder %s15, 1
    %p59 = por %p57, %p58
    %p61 = scmp.ne.s32.totalorder %s46, %s60
    %p62 = scmp.eq.s32.totalorder %s15, 0
    %p63 = por %p61, %p62
    %s65 = sadd.s32 %s64, 1
    %p68 = scmp.eq.s32.totalorder %s9, 1
    %p69 = scmp.ne.s32.totalorder %s64, %s66
    %p70 = scmp.eq.s32.totalorder %s9, 0
    %p71 = por %p69, %p70
    %p72 = scmp.ne.s32.totalorder %s64, %s66
    %p73 = scmp.eq.s32.totalorder %s14, 1
    %p74 = por %p72, %p73
    %p75 = scmp.ne.s32.totalorder %s66, %s67
    %p76 = scmp.eq.s32.totalorder %s14, 0
    %p77 = por %p75, %p76
    %p78 = scmp.ne.s32.totalorder %s66, %s67
    %p79 = scmp.eq.s32.totalorder %s15, 1
    %p80 = por %p78, %p79
    %p82 = scmp.ne.s32.totalorder %s67, %s81
    %p83 = scmp.eq.s32.totalorder %s15, 0
    %p84 = por %p82, %p83
    %s85 = ssub.s32 %s9, %s16
    %p86 = scmp.eq.s32.totalorder %s85, 0
    %s88 = sadd.s32 %s87, 1
    %s89 = scalar_select %p86, %s87, %s88
    %p92 = pneg %p86
    %p93 = scmp.eq.s32.totalorder %s9, 1
    %p94 = por %p92, %p93
    %p95 = scmp.ne.s32.totalorder %s87, %s90
    %p96 = scmp.eq.s32.totalorder %s9, 0
    %p97 = por %p95, %p96
    %p98 = scmp.ne.s32.totalorder %s87, %s90
    %p99 = scmp.eq.s32.totalorder %s14, 1
    %p100 = por %p98, %p99
    %p101 = scmp.ne.s32.totalorder %s90, %s91
    %p102 = scmp.eq.s32.totalorder %s14, 0
    %p103 = por %p101, %p102
    %p104 = scmp.ne.s32.totalorder %s90, %s91
    %p105 = scmp.eq.s32.totalorder %s15, 1
    %p106 = por %p104, %p105
    %p108 = scmp.ne.s32.totalorder %s91, %s107
    %p109 = scmp.eq.s32.totalorder %s15, 0
    %p110 = por %p108, %p109
    %p111 = scmp.le.s32.totalorder 1, %s9
    %p112 = scmp.lt.s32.totalorder %s9, 3
    %p113 = pnand %p111, %p112
    %p114 = pneg %p113
    // Predicated region
    $region9: #{_lambda_.8} parent=5 // pred_check
      _
    $region10: #{_lambda_.8} parent=5 // pred_check_branch
      %116 = sbr.rel (%p113) target = $region12
    $region11: #{_lambda_.8} parent=5 // pred_region
      %s117 = ssub.s32 %s9, 1
      // Predicated region
      $region13: #{_lambda_.8} parent=11 // pred_check
        %p118 = pneg %p56
      $region14: #{_lambda_.8} parent=11 // pred_check_branch
        %120 = sbr.rel (%p118) target = $region16
      $region15: #{_lambda_.8} parent=11 // pred_region
        _
      $region16: #{_lambda_.8} parent=11 // pred_fallthru
        _
      // Predicated region
      $region17: #{_lambda_.8} parent=11 // pred_check
        %p121 = pneg %p77
      $region18: #{_lambda_.8} parent=11 // pred_check_branch
        %123 = sbr.rel (%p121) target = $region20
      $region19: #{_lambda_.8} parent=11 // pred_region
        _
      $region20: #{_lambda_.8} parent=11 // pred_fallthru
        _
    $region12: #{_lambda_.8} parent=5 // pred_fallthru
      _
    %p124 = scmp.lt.s32.totalorder %s9, 2
    // Predicated region
    $region21: #{_lambda_.8} parent=5 // pred_check
      %p125 = pneg %p124
    $region22: #{_lambda_.8} parent=5 // pred_check_branch
      %127 = sbr.rel (%p125) target = $region24
    $region23: #{_lambda_.8} parent=5 // pred_region
      // Predicated region
      $region25: #{_lambda_.8} parent=23 // pred_check
        %p128 = pneg %p29
      $region26: #{_lambda_.8} parent=23 // pred_check_branch
        %130 = sbr.rel (%p128) target = $region28
      $region27: #{_lambda_.8} parent=23 // pred_region
        %s131 = smul.u32 4, %s9
        %p132 = scmp.lt.s32.totalorder %s131, 7
        %s133 = scalar_select %p132, %s131, 7
        %s134 = smul.addr %s133, 3
        %s135 = smul.addr %s134, 4
        %s136 = scalar_lea.vmem %s0, %s135
        %s137 = smul.u32 4, %s9
      $region28: #{_lambda_.8} parent=23 // pred_fallthru
        _
    $region24: #{_lambda_.8} parent=5 // pred_fallthru
      _
    %p138 = scmp.le.s32.totalorder 1, %s9
    %p139 = scmp.lt.s32.totalorder %s9, 3
    %p140 = pnand %p138, %p139
    %p141 = pneg %p140
    // Predicated region
    $region29: #{_lambda_.8} parent=5 // pred_check
      _
    $region30: #{_lambda_.8} parent=5 // pred_check_branch
      %143 = sbr.rel (%p140) target = $region32
    $region31: #{_lambda_.8} parent=5 // pred_region
      %s144 = ssub.s32 %s9, 1
      %s145 = smul.u32 4, %s14
      %p146 = scmp.lt.s32.totalorder %s145, 7
      %s147 = scalar_select %p146, %s145, 7
      %s148 = smul.addr %s147, 3
      %s149 = smul.addr %s148, 4
      %s150 = scalar_lea.vmem %s0, %s149
      %p151 = pneg %p35
      %p152 = pneg %p32
      %p153 = pneg %p56
      %p154 = pneg %p53
      %p155 = pneg %p77
      %p156 = pneg %p74
      %p157 = pneg %p103
      %p158 = pneg %p100
      %s159 = smul.u32 4, %s14
      %p160 = scmp.lt.s32.totalorder %s159, 7
      %s161 = scalar_select %p160, %s159, 7
      %s162 = smul.addr %s161, 4
      %s163 = scalar_lea.vmem %s3, %s162
      %s164 = smul.u32 4, %s14
      %p165 = scmp.lt.s32.totalorder %s164, 7
      %s166 = scalar_select %p165, %s164, 7
      %s167 = smul.addr %s166, 3
      %s168 = smul.addr %s167, 4
      %s169 = scalar_lea.vmem %s0, %s168
      %s170 = smul.u32 4, %s14
      %s171 = smul.u32 4, %s14
      %p172 = scmp.lt.s32.totalorder %s171, 7
      %s173 = scalar_select %p172, %s171, 7
      %s174 = smul.addr %s173, 4
      %s175 = scalar_lea.vmem %s3, %s174
      %s176 = smul.u32 4, %s14
      %v178 = vld [vmem:[%s169] sm:$0xff]
      %v179 = vld [vmem:[%s169 + $0x8] sm:$0xf]
      %v180 = vld [vmem:[%s169 + $0xc] sm:$0xff]
      %v181 = vld [vmem:[%s169 + $0x14] sm:$0xf]
      %v182 = vld [vmem:[%s169 + $0x18] sm:$0xff]
      %v183 = vld [vmem:[%s169 + $0x20] sm:$0xf]
      %v184 = vld [vmem:[%s169 + $0x24] sm:$0xff]
      %v185 = vld [vmem:[%s169 + $0x2c] sm:$0xf]
      %v186 = vld [vmem:[%s1] sm:$0xf]
      %v187 = vld [vmem:[%s1 + $0x4] sm:$0xf]
      %v188 = vld [vmem:[%s1 + $0x8] sm:$0xf]
      %v189 = vld [vmem:[%s1 + $0xc] sm:$0xf]
      %v190 = vld [vmem:[%s1 + $0x10] sm:$0xf]
      %v191 = vld [vmem:[%s1 + $0x14] sm:$0xf]
      %v192 = vld [vmem:[%s1 + $0x18] sm:$0xf]
      %v193 = vld [vmem:[%s1 + $0x1c] sm:$0xf]
      %v194 = vld [vmem:[%s1 + $0x20] sm:$0xf]
      %v195 = vld [vmem:[%s1 + $0x24] sm:$0xf]
      %v196 = vld [vmem:[%s1 + $0x28] sm:$0xf]
      %v197 = vld [vmem:[%s1 + $0x2c] sm:$0xf]
      %v198 = vld [vmem:[%s1 + $0x30] sm:$0xf]
      %v199 = vld [vmem:[%s1 + $0x34] sm:$0xf]
      %v200 = vld [vmem:[%s1 + $0x38] sm:$0xf]
      %v201 = vld [vmem:[%s1 + $0x3c] sm:$0xf]
      %v202 = vld [vmem:[%s1 + $0x40] sm:$0xf]
      %v203 = vld [vmem:[%s1 + $0x44] sm:$0xf]
      %v204 = vld [vmem:[%s1 + $0x48] sm:$0xf]
      %v205 = vld [vmem:[%s1 + $0x4c] sm:$0xf]
      %v206 = vld [vmem:[%s1 + $0x50] sm:$0xf]
      %v207 = vld [vmem:[%s1 + $0x54] sm:$0xf]
      %v208 = vld [vmem:[%s1 + $0x58] sm:$0xf]
      %v209 = vld [vmem:[%s1 + $0x5c] sm:$0xf]
      %v210 = vld [vmem:[%s1 + $0x60] sm:$0xf]
      %v211 = vld [vmem:[%s1 + $0x64] sm:$0xf]
      %v212 = vld [vmem:[%s1 + $0x68] sm:$0xf]
      %v213 = vld [vmem:[%s1 + $0x6c] sm:$0xf]
      %v214 = vld [vmem:[%s1 + $0x70] sm:$0xf]
      %v215 = vld [vmem:[%s1 + $0x74] sm:$0xf]
      %v216 = vld [vmem:[%s1 + $0x78] sm:$0xf]
      %v217 = vld [vmem:[%s1 + $0x7c] sm:$0xf]
      %v218 = vld [vmem:[%s1 + $0x80] sm:$0xf]
      %v219 = vld [vmem:[%s1 + $0x84] sm:$0xf]
      %v220 = vld [vmem:[%s1 + $0x88] sm:$0xf]
      %v221 = vld [vmem:[%s1 + $0x8c] sm:$0xf]
      %v230 = vunpack.c.l.b16 %v178
      %v231 = vunpack.c.h.b16 %v178
      %v232 = vunpack.c.l.b16 %v179
      %v233 = vunpack.c.l.b16 %v180
      %v234 = vunpack.c.h.b16 %v180
      %v235 = vunpack.c.l.b16 %v181
      %v236 = vunpack.c.l.b16 %v182
      %v237 = vunpack.c.h.b16 %v182
      %v238 = vunpack.c.l.b16 %v183
      %v239 = vunpack.c.l.b16 %v184
      %v240 = vunpack.c.h.b16 %v184
      %v241 = vunpack.c.l.b16 %v185
      %v242 = vpack.c.b16 %v233, %v230
      %v243 = vpack.c.b16 %v234, %v231
      %v244 = vpack.c.b16 %v235, %v232
      %v245 = vpack.c.b16 %v239, %v236
      %v246 = vpack.c.b16 %v240, %v237
      %v247 = vpack.c.b16 %v241, %v238
      %v288 = vunpack.c.l.b16 %v186
      %v289 = vunpack.c.l.b16 %v187
      %v290 = vunpack.c.l.b16 %v188
      %v291 = vunpack.c.l.b16 %v189
      %v292 = vunpack.c.l.b16 %v190
      %v293 = vunpack.c.l.b16 %v191
      %v294 = vunpack.c.l.b16 %v192
      %v295 = vunpack.c.l.b16 %v193
      %v296 = vunpack.c.l.b16 %v194
      %v297 = vunpack.c.l.b16 %v195
      %v298 = vunpack.c.l.b16 %v196
      %v299 = vunpack.c.l.b16 %v197
      %v300 = vunpack.c.l.b16 %v198
      %v301 = vunpack.c.l.b16 %v199
      %v302 = vunpack.c.l.b16 %v200
      %v303 = vunpack.c.l.b16 %v201
      %v304 = vunpack.c.l.b16 %v202
      %v305 = vunpack.c.l.b16 %v203
      %v306 = vunpack.c.l.b16 %v204
      %v307 = vunpack.c.l.b16 %v205
      %v308 = vunpack.c.l.b16 %v206
      %v309 = vunpack.c.l.b16 %v207
      %v310 = vunpack.c.l.b16 %v208
      %v311 = vunpack.c.l.b16 %v209
      %v312 = vunpack.c.l.b16 %v210
      %v313 = vunpack.c.l.b16 %v211
      %v314 = vunpack.c.l.b16 %v212
      %v315 = vunpack.c.l.b16 %v213
      %v316 = vunpack.c.l.b16 %v214
      %v317 = vunpack.c.l.b16 %v215
      %v318 = vunpack.c.l.b16 %v216
      %v319 = vunpack.c.l.b16 %v217
      %v320 = vunpack.c.l.b16 %v218
      %v321 = vunpack.c.l.b16 %v219
      %v322 = vunpack.c.l.b16 %v220
      %v323 = vunpack.c.l.b16 %v221
      %v324 = vpack.c.b16 %v289, %v288
      %v325 = vpack.c.b16 %v291, %v290
      %v326 = vpack.c.b16 %v293, %v292
      %v327 = vpack.c.b16 %v295, %v294
      %v328 = vpack.c.b16 %v297, %v296
      %v329 = vpack.c.b16 %v299, %v298
      %v330 = vpack.c.b16 %v301, %v300
      %v331 = vpack.c.b16 %v303, %v302
      %v332 = vpack.c.b16 %v305, %v304
      %v333 = vpack.c.b16 %v307, %v306
      %v334 = vpack.c.b16 %v309, %v308
      %v335 = vpack.c.b16 %v311, %v310
      %v336 = vpack.c.b16 %v313, %v312
      %v337 = vpack.c.b16 %v315, %v314
      %v338 = vpack.c.b16 %v317, %v316
      %v339 = vpack.c.b16 %v319, %v318
      %v340 = vpack.c.b16 %v321, %v320
      %v341 = vpack.c.b16 %v323, %v322
      %vm360 = vcmask 261120
      %v362 = vsel %vm360, %v244, 0
      %v365 = vsel %vm360, %v247, 0
      %367 = vmatprep.subr.bf16.mxu0 0
      %368 = vmatpush1.bf16.msra.mxu0 %v324
      %369 = vmatprep.subr.bf16.mxu0 0
      %370 = vmatpush1.bf16.msra.mxu0 %v325
      %371 = vmatprep.subr.bf16.mxu0 0
      %372 = vmatpush1.bf16.msra.mxu0 %v326
      %373 = vmatprep.subr.bf16.mxu0 0
      %374 = vmatpush1.bf16.msra.mxu0 %v327
      %375 = vmatprep.subr.bf16.mxu0 0
      %376 = vmatpush1.bf16.msra.mxu0 %v328
      %377 = vmatprep.subr.bf16.mxu0 0
      %378 = vmatpush1.bf16.msra.mxu0 %v329
      %379 = vmatprep.subr.bf16.mxu0 0
      %380 = vmatpush1.bf16.msra.mxu0 %v330
      %381 = vmatprep.subr.bf16.mxu0 0
      %382 = vmatpush1.bf16.msra.mxu0 %v331
      %383 = vmatprep.subr.bf16.mxu0 0
      %384 = vmatpush1.bf16.msra.mxu0 %v332
      %385 = vmatprep.subr.bf16.mxu0 0
      %386 = vmatpush1.bf16.msra.mxu0 %v333
      %387 = vmatprep.subr.bf16.mxu0 0
      %388 = vmatpush1.bf16.msra.mxu0 %v334
      %389 = vmatprep.subr.bf16.mxu0 0
      %390 = vmatpush1.bf16.msra.mxu0 %v335
      %391 = vmatprep.subr.bf16.mxu0 0
      %392 = vmatpush1.bf16.msra.mxu0 %v336
      %393 = vmatprep.subr.bf16.mxu0 0
      %394 = vmatpush1.bf16.msra.mxu0 %v337
      %395 = vmatprep.subr.bf16.mxu0 0
      %396 = vmatpush1.bf16.msra.mxu0 %v338
      %397 = vmatprep.subr.bf16.mxu0 0
      %398 = vmatpush1.bf16.msra.mxu0 %v339
      %399 = vmatprep.mubr.bf16.mxu0 %v243
      %400 = vmatmul.mubr.bf16.gmra.mrb[0].mxu0 %v242
      %v401 = vpop.f32.mrb[0].mxu0
      %v402 = vadd.f32 0.0, %v401
      %v403 = vpop.f32.mrb[0].mxu0
      %v404 = vpop.f32.mrb[0].mxu0
      %v405 = vadd.f32 0.0, %v404
      %v406 = vpop.f32.mrb[0].mxu0
      %407 = vmatprep.mubr.bf16.mxu0 %v246
      %408 = vmatmul.mubr.bf16.gmra.mrb[0].mxu0 %v245
      %v409 = vpop.f32.mrb[0].mxu0
      %v410 = vadd.f32 0.0, %v409
      %v411 = vpop.f32.mrb[0].mxu0
      %v412 = vpop.f32.mrb[0].mxu0
      %v413 = vadd.f32 0.0, %v412
      %v414 = vpop.f32.mrb[0].mxu0
      %415 = vdwg.mxu0
      %416 = vmatprep.subr.bf16.mxu0 0
      %417 = vmatpush1.bf16.msra.mxu0 %v340
      %418 = vmatprep.subr.bf16.mxu0 0
      %419 = vmatpush1.bf16.msra.mxu0 %v341
      %420 = vmatprep.subr.bf16.mxu0 0
      %421 = vmatpush1.bf16.msra.mxu0 0
      %422 = vmatprep.subr.bf16.mxu0 0
      %423 = vmatpush1.bf16.msra.mxu0 0
      %424 = vmatprep.subr.bf16.mxu0 0
      %425 = vmatpush1.bf16.msra.mxu0 0
      %426 = vmatprep.subr.bf16.mxu0 0
      %427 = vmatpush1.bf16.msra.mxu0 0
      %428 = vmatprep.subr.bf16.mxu0 0
      %429 = vmatpush1.bf16.msra.mxu0 0
      %430 = vmatprep.subr.bf16.mxu0 0
      %431 = vmatpush1.bf16.msra.mxu0 0
      %432 = vmatprep.subr.bf16.mxu0 0
      %433 = vmatpush1.bf16.msra.mxu0 0
      %434 = vmatprep.subr.bf16.mxu0 0
      %435 = vmatpush1.bf16.msra.mxu0 0
      %436 = vmatprep.subr.bf16.mxu0 0
      %437 = vmatpush1.bf16.msra.mxu0 0
      %438 = vmatprep.subr.bf16.mxu0 0
      %439 = vmatpush1.bf16.msra.mxu0 0
      %440 = vmatprep.subr.bf16.mxu0 0
      %441 = vmatpush1.bf16.msra.mxu0 0
      %442 = vmatprep.subr.bf16.mxu0 0
      %443 = vmatpush1.bf16.msra.mxu0 0
      %444 = vmatprep.subr.bf16.mxu0 0
      %445 = vmatpush1.bf16.msra.mxu0 0
      %446 = vmatprep.subr.bf16.mxu0 0
      %447 = vmatpush1.bf16.msra.mxu0 0
      %448 = vmatprep.mubr.bf16.mxu0 0
      %449 = vmatmul.mubr.bf16.gmra.mrb[0].mxu0 %v362
      %v450 = vpop.f32.mrb[0].mxu0
      %v451 = vadd.f32 %v402, %v450
      %v452 = vpop.f32.mrb[0].mxu0
      %v453 = vpop.f32.mrb[0].mxu0
      %v454 = vadd.f32 %v405, %v453
      %v455 = vpop.f32.mrb[0].mxu0
      %456 = vmatprep.mubr.bf16.mxu0 0
      %457 = vmatmul.mubr.bf16.gmra.mrb[0].mxu0 %v365
      %v458 = vpop.f32.mrb[0].mxu0
      %v459 = vadd.f32 %v410, %v458
      %v460 = vpop.f32.mrb[0].mxu0
      %v461 = vpop.f32.mrb[0].mxu0
      %v462 = vadd.f32 %v413, %v461
      %v463 = vpop.f32.mrb[0].mxu0
      %464 = vdwg.mxu0
      %v465 = vld [vmem:[%s2] sm:$0x1]
      %v467 = vlaneseq
      %v468 = vshrl.u32 %v467, 7
      %v469 = vsub.s32 0, %v468
      %v470 = vrot.slane %v465, %v469
      %v472 = vsub.f32 %v451, %v470
      %v473 = vsub.f32 %v454, %v470
      %v474 = vsub.f32 %v459, %v470
      %v475 = vsub.f32 %v462, %v470
      %v476 = vsub.f32 0.0, %v451
      %v477 = vsub.f32 0.0, %v454
      %v478 = vsub.f32 0.0, %v459
      %v479 = vsub.f32 0.0, %v462
      %v480 = vsub.f32 %v476, %v470
      %v481 = vsub.f32 %v477, %v470
      %v482 = vsub.f32 %v478, %v470
      %v483 = vsub.f32 %v479, %v470
      %vm484 = vcmp.ge.f32.partialorder %v472, 0.0
      %vm485 = vcmp.ge.f32.partialorder %v473, 0.0
      %vm486 = vcmp.ge.f32.partialorder %v474, 0.0
      %vm487 = vcmp.ge.f32.partialorder %v475, 0.0
      %v488 = vmul.f32 %v472, 0.001
      %v489 = vmul.f32 %v473, 0.001
      %v490 = vmul.f32 %v474, 0.001
      %v491 = vmul.f32 %v475, 0.001
      %v492 = vsel %vm484, %v472, %v488
      %v493 = vsel %vm485, %v473, %v489
      %v494 = vsel %vm486, %v474, %v490
      %v495 = vsel %vm487, %v475, %v491
      %vm496 = vcmp.ge.f32.partialorder %v480, 0.0
      %vm497 = vcmp.ge.f32.partialorder %v481, 0.0
      %vm498 = vcmp.ge.f32.partialorder %v482, 0.0
      %vm499 = vcmp.ge.f32.partialorder %v483, 0.0
      %v500 = vmul.f32 %v480, 0.01
      %v501 = vmul.f32 %v481, 0.01
      %v502 = vmul.f32 %v482, 0.01
      %v503 = vmul.f32 %v483, 0.01
      %v504 = vsel %vm496, %v480, %v500
      %v505 = vsel %vm497, %v481, %v501
      %v506 = vsel %vm498, %v482, %v502
      %v507 = vsel %vm499, %v483, %v503
      %v508 = vsub.f32 %v492, %v504
      %v509 = vsub.f32 %v493, %v505
      %v510 = vsub.f32 %v494, %v506
      %v511 = vsub.f32 %v495, %v507
      %v512 = vpack.c.bf16 %v509, %v508
      %v513 = vpack.c.bf16 %v511, %v510
      %v516 = vunpack.c.l.b16 %v512
      %v517 = vunpack.c.h.b16 %v512
      %v518 = vunpack.c.l.b16 %v513
      %v519 = vunpack.c.h.b16 %v513
      %v520 = vpack.c.b16 %v516, %v516
      %v521 = vpack.c.b16 %v517, %v517
      %v522 = vpack.c.b16 %v518, %v518
      %v523 = vpack.c.b16 %v519, %v519
      %528 = vst [vmem:[%s175] sm:$0xf] %v520
      %529 = vst [vmem:[%s175 + $0x4] sm:$0xf] %v521
      %530 = vst [vmem:[%s175 + $0x8] sm:$0xf] %v522
      %531 = vst [vmem:[%s175 + $0xc] sm:$0xf] %v523
      %s532 = smul.u32 4, %s14
      %p533 = scmp.lt.s32.totalorder %s532, 7
      %s534 = scalar_select %p533, %s532, 7
      %s535 = smul.addr %s534, 4
      %s536 = scalar_lea.vmem %s3, %s535
      // Predicated region
      $region33: #{_lambda_.8} parent=31 // pred_check
        %p537 = pneg %p100
      $region34: #{_lambda_.8} parent=31 // pred_check_branch
        %539 = sbr.rel (%p537) target = $region36
      $region35: #{_lambda_.8} parent=31 // pred_region
        %s540 = smul.u32 4, %s14
      $region36: #{_lambda_.8} parent=31 // pred_fallthru
        _
    $region32: #{_lambda_.8} parent=5 // pred_fallthru
      _
    %p541 = scmp.le.s32.totalorder 2, %s9
    // Predicated region
    $region37: #{_lambda_.8} parent=5 // pred_check
      %p542 = pneg %p541
    $region38: #{_lambda_.8} parent=5 // pred_check_branch
      %544 = sbr.rel (%p542) target = $region40
    $region39: #{_lambda_.8} parent=5 // pred_region
      %s545 = ssub.s32 %s9, 2
      // Predicated region
      $region41: #{_lambda_.8} parent=39 // pred_check
        %p546 = pneg %p106
      $region42: #{_lambda_.8} parent=39 // pred_check_branch
        %548 = sbr.rel (%p546) target = $region44
      $region43: #{_lambda_.8} parent=39 // pred_region
        %s549 = smul.u32 4, %s15
        %p550 = scmp.lt.s32.totalorder %s549, 7
        %s551 = scalar_select %p550, %s549, 7
        %s552 = smul.addr %s551, 4
        %s553 = scalar_lea.vmem %s3, %s552
      $region44: #{_lambda_.8} parent=39 // pred_fallthru
        _
    $region40: #{_lambda_.8} parent=5 // pred_fallthru
      _
  $region6: #{_lambda_.8} parent=0 // loop_footer
    %s13 = sadd.s32 1, %s9
  $region7: #{_lambda_.8} parent=0 // loop_footer_branch
    %8 = sbr.rel target = $region3
  $region8: #{_lambda_.8} parent=0 // loop_exit
    _

// kernel: _lambda_.9
$region0: #{_lambda_.9}
  #allocation0 [shape = 'u32[]', space=smem, size = 0x4, offset = 0x4, fixed_abs, tag = 'smem constant byte address 0x4 - core index']
  #allocation1 [shape = 'u32[144,128]{1,0:T(1,128)}', space=vmem, size = 0x12000, scoped, tag = 'internal scratch']
  %s0 = inlined_call_operand.vmem [shape: bf16[64,1152], index: 0, kind: input, shape index: {}]
  %s1 = inlined_call_operand.vmem [shape: bf16[1152,128], index: 1, kind: input, shape index: {}]
  %s2 = inlined_call_operand.vmem [shape: f32[1,128], index: 2, kind: input, shape index: {}]
  %s3 = inlined_call_operand.vmem [shape: bf16[64,128], index: 3, kind: output, shape index: {}]
  %s4 = sld [smem:[#allocation0]]
  $region45: #{_lambda_.9} parent=0
    _
  %s6 = ssub.s32 1, %s4
  %s7 = scalar_select 0, %s6, %s4
  loop: start=0, step=1, limit=4
  $region2: #{_lambda_.9} parent=0 // loop_pre_header
    _
  $region3: #{_lambda_.9} parent=0 // loop_header
    %s9 = sphi 0, %s13
    %p10 = scmp.ge.s32.totalorder %s9, 4
    %s19 = sphi 0, %s21
    %s22 = sphi 0, %s19
    %s23 = sphi 0, %s22
    %s39 = sphi 0, %s23
    %s43 = sphi 0, %s43
    %s45 = sphi 0, %s43
    %s46 = sphi 0, %s45
    %s60 = sphi 0, %s46
    %s64 = sphi 0, %s64
    %s66 = sphi 0, %s64
    %s67 = sphi 0, %s66
    %s81 = sphi 0, %s67
    %s87 = sphi 0, %s89
    %s90 = sphi 0, %s87
    %s91 = sphi 0, %s90
    %s107 = sphi 0, %s91
  $region4: #{_lambda_.9} parent=0 // loop_header_branch
    %12 = sbr.rel (%p10) target = $region8
  $region5: #{_lambda_.9} parent=0 // loop_body
    %s14 = ssub.s32 %s9, 1
    %s15 = ssub.s32 %s9, 2
    %s16 = sadd.s32 %s9, 1
    %s17 = ssub.s32 %s9, %s16
    %p18 = scmp.eq.s32.totalorder %s17, 0
    %s20 = sadd.s32 %s19, 1
    %s21 = scalar_select %p18, %s19, %s20
    %p24 = pneg %p18
    %p25 = scmp.eq.s32.totalorder %s9, 1
    %p26 = por %p24, %p25
    %p27 = scmp.ne.s32.totalorder %s19, %s22
    %p28 = scmp.eq.s32.totalorder %s9, 0
    %p29 = por %p27, %p28
    %p30 = scmp.ne.s32.totalorder %s19, %s22
    %p31 = scmp.eq.s32.totalorder %s14, 1
    %p32 = por %p30, %p31
    %p33 = scmp.ne.s32.totalorder %s22, %s23
    %p34 = scmp.eq.s32.totalorder %s14, 0
    %p35 = por %p33, %p34
    %p36 = scmp.ne.s32.totalorder %s22, %s23
    %p37 = scmp.eq.s32.totalorder %s15, 1
    %p38 = por %p36, %p37
    %p40 = scmp.ne.s32.totalorder %s23, %s39
    %p41 = scmp.eq.s32.totalorder %s15, 0
    %p42 = por %p40, %p41
    %s44 = sadd.s32 %s43, 1
    %p47 = scmp.eq.s32.totalorder %s9, 1
    %p48 = scmp.ne.s32.totalorder %s43, %s45
    %p49 = scmp.eq.s32.totalorder %s9, 0
    %p50 = por %p48, %p49
    %p51 = scmp.ne.s32.totalorder %s43, %s45
    %p52 = scmp.eq.s32.totalorder %s14, 1
    %p53 = por %p51, %p52
    %p54 = scmp.ne.s32.totalorder %s45, %s46
    %p55 = scmp.eq.s32.totalorder %s14, 0
    %p56 = por %p54, %p55
    %p57 = scmp.ne.s32.totalorder %s45, %s46
    %p58 = scmp.eq.s32.totalorder %s15, 1
    %p59 = por %p57, %p58
    %p61 = scmp.ne.s32.totalorder %s46, %s60
    %p62 = scmp.eq.s32.totalorder %s15, 0
    %p63 = por %p61, %p62
    %s65 = sadd.s32 %s64, 1
    %p68 = scmp.eq.s32.totalorder %s9, 1
    %p69 = scmp.ne.s32.totalorder %s64, %s66
    %p70 = scmp.eq.s32.totalorder %s9, 0
    %p71 = por %p69, %p70
    %p72 = scmp.ne.s32.totalorder %s64, %s66
    %p73 = scmp.eq.s32.totalorder %s14, 1
    %p74 = por %p72, %p73
    %p75 = scmp.ne.s32.totalorder %s66, %s67
    %p76 = scmp.eq.s32.totalorder %s14, 0
    %p77 = por %p75, %p76
    %p78 = scmp.ne.s32.totalorder %s66, %s67
    %p79 = scmp.eq.s32.totalorder %s15, 1
    %p80 = por %p78, %p79
    %p82 = scmp.ne.s32.totalorder %s67, %s81
    %p83 = scmp.eq.s32.totalorder %s15, 0
    %p84 = por %p82, %p83
    %s85 = ssub.s32 %s9, %s16
    %p86 = scmp.eq.s32.totalorder %s85, 0
    %s88 = sadd.s32 %s87, 1
    %s89 = scalar_select %p86, %s87, %s88
    %p92 = pneg %p86
    %p93 = scmp.eq.s32.totalorder %s9, 1
    %p94 = por %p92, %p93
    %p95 = scmp.ne.s32.totalorder %s87, %s90
    %p96 = scmp.eq.s32.totalorder %s9, 0
    %p97 = por %p95, %p96
    %p98 = scmp.ne.s32.totalorder %s87, %s90
    %p99 = scmp.eq.s32.totalorder %s14, 1
    %p100 = por %p98, %p99
    %p101 = scmp.ne.s32.totalorder %s90, %s91
    %p102 = scmp.eq.s32.totalorder %s14, 0
    %p103 = por %p101, %p102
    %p104 = scmp.ne.s32.totalorder %s90, %s91
    %p105 = scmp.eq.s32.totalorder %s15, 1
    %p106 = por %p104, %p105
    %p108 = scmp.ne.s32.totalorder %s91, %s107
    %p109 = scmp.eq.s32.totalorder %s15, 0
    %p110 = por %p108, %p109
    %p111 = scmp.le.s32.totalorder 1, %s9
    %p112 = scmp.lt.s32.totalorder %s9, 3
    %p113 = pnand %p111, %p112
    %p114 = pneg %p113
    // Predicated region
    $region9: #{_lambda_.9} parent=5 // pred_check
      _
    $region10: #{_lambda_.9} parent=5 // pred_check_branch
      %116 = sbr.rel (%p113) target = $region12
    $region11: #{_lambda_.9} parent=5 // pred_region
      %s117 = ssub.s32 %s9, 1
      // Predicated region
      $region13: #{_lambda_.9} parent=11 // pred_check
        %p118 = pneg %p56
      $region14: #{_lambda_.9} parent=11 // pred_check_branch
        %120 = sbr.rel (%p118) target = $region16
      $region15: #{_lambda_.9} parent=11 // pred_region
        _
      $region16: #{_lambda_.9} parent=11 // pred_fallthru
        _
      // Predicated region
      $region17: #{_lambda_.9} parent=11 // pred_check
        %p121 = pneg %p77
      $region18: #{_lambda_.9} parent=11 // pred_check_branch
        %123 = sbr.rel (%p121) target = $region20
      $region19: #{_lambda_.9} parent=11 // pred_region
        _
      $region20: #{_lambda_.9} parent=11 // pred_fallthru
        _
    $region12: #{_lambda_.9} parent=5 // pred_fallthru
      _
    %p124 = scmp.lt.s32.totalorder %s9, 2
    // Predicated region
    $region21: #{_lambda_.9} parent=5 // pred_check
      %p125 = pneg %p124
    $region22: #{_lambda_.9} parent=5 // pred_check_branch
      %127 = sbr.rel (%p125) target = $region24
    $region23: #{_lambda_.9} parent=5 // pred_region
      // Predicated region
      $region25: #{_lambda_.9} parent=23 // pred_check
        %p128 = pneg %p29
      $region26: #{_lambda_.9} parent=23 // pred_check_branch
        %130 = sbr.rel (%p128) target = $region28
      $region27: #{_lambda_.9} parent=23 // pred_region
        %s131 = smul.u32 4, %s9
        %p132 = scmp.lt.s32.totalorder %s131, 7
        %s133 = scalar_select %p132, %s131, 7
        %s134 = smul.addr %s133, 9
        %s135 = smul.addr %s134, 4
        %s136 = scalar_lea.vmem %s0, %s135
        %s137 = smul.u32 4, %s9
      $region28: #{_lambda_.9} parent=23 // pred_fallthru
        _
    $region24: #{_lambda_.9} parent=5 // pred_fallthru
      _
    %p138 = scmp.le.s32.totalorder 1, %s9
    %p139 = scmp.lt.s32.totalorder %s9, 3
    %p140 = pnand %p138, %p139
    %p141 = pneg %p140
    // Predicated region
    $region29: #{_lambda_.9} parent=5 // pred_check
      _
    $region30: #{_lambda_.9} parent=5 // pred_check_branch
      %143 = sbr.rel (%p140) target = $region32
    $region31: #{_lambda_.9} parent=5 // pred_region
      %s144 = ssub.s32 %s9, 1
      %s145 = smul.u32 4, %s14
      %p146 = scmp.lt.s32.totalorder %s145, 7
      %s147 = scalar_select %p146, %s145, 7
      %s148 = smul.addr %s147, 9
      %s149 = smul.addr %s148, 4
      %s150 = scalar_lea.vmem %s0, %s149
      %p151 = pneg %p35
      %p152 = pneg %p32
      %p153 = pneg %p56
      %p154 = pneg %p53
      %p155 = pneg %p77
      %p156 = pneg %p74
      %p157 = pneg %p103
      %p158 = pneg %p100
      %s159 = smul.u32 4, %s14
      %p160 = scmp.lt.s32.totalorder %s159, 7
      %s161 = scalar_select %p160, %s159, 7
      %s162 = smul.addr %s161, 4
      %s163 = scalar_lea.vmem %s3, %s162
      %s164 = smul.u32 4, %s14
      %p165 = scmp.lt.s32.totalorder %s164, 7
      %s166 = scalar_select %p165, %s164, 7
      %s167 = smul.addr %s166, 9
      %s168 = smul.addr %s167, 4
      %s169 = scalar_lea.vmem %s0, %s168
      %s170 = smul.u32 4, %s14
      %s171 = smul.u32 4, %s14
      %p172 = scmp.lt.s32.totalorder %s171, 7
      %s173 = scalar_select %p172, %s171, 7
      %s174 = smul.addr %s173, 4
      %s175 = scalar_lea.vmem %s3, %s174
      %s176 = smul.u32 4, %s14
      %v178 = vld [vmem:[%s169] sm:$0xff]
      %v179 = vld [vmem:[%s169 + $0x8] sm:$0xff]
      %v180 = vld [vmem:[%s169 + $0x10] sm:$0xff]
      %v181 = vld [vmem:[%s169 + $0x18] sm:$0xff]
      %v182 = vld [vmem:[%s169 + $0x20] sm:$0xf]
      %v183 = vld [vmem:[%s169 + $0x24] sm:$0xff]
      %v184 = vld [vmem:[%s169 + $0x2c] sm:$0xff]
      %v185 = vld [vmem:[%s169 + $0x34] sm:$0xff]
      %v186 = vld [vmem:[%s169 + $0x3c] sm:$0xff]
      %v187 = vld [vmem:[%s169 + $0x44] sm:$0xf]
      %v188 = vld [vmem:[%s169 + $0x48] sm:$0xff]
      %v189 = vld [vmem:[%s169 + $0x50] sm:$0xff]
      %v190 = vld [vmem:[%s169 + $0x58] sm:$0xff]
      %v191 = vld [vmem:[%s169 + $0x60] sm:$0xff]
      %v192 = vld [vmem:[%s169 + $0x68] sm:$0xf]
      %v193 = vld [vmem:[%s169 + $0x6c] sm:$0xff]
      %v194 = vld [vmem:[%s169 + $0x74] sm:$0xff]
      %v195 = vld [vmem:[%s169 + $0x7c] sm:$0xff]
      %v196 = vld [vmem:[%s169 + $0x84] sm:$0xff]
      %v197 = vld [vmem:[%s169 + $0x8c] sm:$0xf]
      %v198 = vld [vmem:[%s1] sm:$0xf]
      %v199 = vld [vmem:[%s1 + $0x4] sm:$0xf]
      %v200 = vld [vmem:[%s1 + $0x8] sm:$0xf]
      %v201 = vld [vmem:[%s1 + $0xc] sm:$0xf]
      %v202 = vld [vmem:[%s1 + $0x10] sm:$0xf]
      %v203 = vld [vmem:[%s1 + $0x14] sm:$0xf]
      %v204 = vld [vmem:[%s1 + $0x18] sm:$0xf]
      %v205 = vld [vmem:[%s1 + $0x1c] sm:$0xf]
      %v206 = vld [vmem:[%s1 + $0x20] sm:$0xf]
      %v207 = vld [vmem:[%s1 + $0x24] sm:$0xf]
      %v208 = vld [vmem:[%s1 + $0x28] sm:$0xf]
      %v209 = vld [vmem:[%s1 + $0x2c] sm:$0xf]
      %v210 = vld [vmem:[%s1 + $0x30] sm:$0xf]
      %v211 = vld [vmem:[%s1 + $0x34] sm:$0xf]
      %v212 = vld [vmem:[%s1 + $0x38] sm:$0xf]
      %v213 = vld [vmem:[%s1 + $0x3c] sm:$0xf]
      %v214 = vld [vmem:[%s1 + $0x40] sm:$0xf]
      %v215 = vld [vmem:[%s1 + $0x44] sm:$0xf]
      %v216 = vld [vmem:[%s1 + $0x48] sm:$0xf]
      %v217 = vld [vmem:[%s1 + $0x4c] sm:$0xf]
      %v218 = vld [vmem:[%s1 + $0x50] sm:$0xf]
      %v219 = vld [vmem:[%s1 + $0x54] sm:$0xf]
      %v220 = vld [vmem:[%s1 + $0x58] sm:$0xf]
      %v221 = vld [vmem:[%s1 + $0x5c] sm:$0xf]
      %v222 = vld [vmem:[%s1 + $0x60] sm:$0xf]
      %v223 = vld [vmem:[%s1 + $0x64] sm:$0xf]
      %v224 = vld [vmem:[%s1 + $0x68] sm:$0xf]
      %v225 = vld [vmem:[%s1 + $0x6c] sm:$0xf]
      %v226 = vld [vmem:[%s1 + $0x70] sm:$0xf]
      %v227 = vld [vmem:[%s1 + $0x74] sm:$0xf]
      %v228 = vld [vmem:[%s1 + $0x78] sm:$0xf]
      %v229 = vld [vmem:[%s1 + $0x7c] sm:$0xf]
      %v230 = vld [vmem:[%s1 + $0x80] sm:$0xf]
      %v231 = vld [vmem:[%s1 + $0x84] sm:$0xf]
      %v232 = vld [vmem:[%s1 + $0x88] sm:$0xf]
      %v233 = vld [vmem:[%s1 + $0x8c] sm:$0xf]
      %v234 = vld [vmem:[%s1 + $0x90] sm:$0xf]
      %v235 = vld [vmem:[%s1 + $0x94] sm:$0xf]
      %v236 = vld [vmem:[%s1 + $0x98] sm:$0xf]
      %v237 = vld [vmem:[%s1 + $0x9c] sm:$0xf]
      %v238 = vld [vmem:[%s1 + $0xa0] sm:$0xf]
      %v239 = vld [vmem:[%s1 + $0xa4] sm:$0xf]
      %v240 = vld [vmem:[%s1 + $0xa8] sm:$0xf]
      %v241 = vld [vmem:[%s1 + $0xac] sm:$0xf]
      %v242 = vld [vmem:[%s1 + $0xb0] sm:$0xf]
      %v243 = vld [vmem:[%s1 + $0xb4] sm:$0xf]
      %v244 = vld [vmem:[%s1 + $0xb8] sm:$0xf]
      %v245 = vld [vmem:[%s1 + $0xbc] sm:$0xf]
      %v246 = vld [vmem:[%s1 + $0xc0] sm:$0xf]
      %v247 = vld [vmem:[%s1 + $0xc4] sm:$0xf]
      %v248 = vld [vmem:[%s1 + $0xc8] sm:$0xf]
      %v249 = vld [vmem:[%s1 + $0xcc] sm:$0xf]
      %v250 = vld [vmem:[%s1 + $0xd0] sm:$0xf]
      %v251 = vld [vmem:[%s1 + $0xd4] sm:$0xf]
      %v252 = vld [vmem:[%s1 + $0xd8] sm:$0xf]
      %v253 = vld [vmem:[%s1 + $0xdc] sm:$0xf]
      %v254 = vld [vmem:[%s1 + $0xe0] sm:$0xf]
      %v255 = vld [vmem:[%s1 + $0xe4] sm:$0xf]
      %v256 = vld [vmem:[%s1 + $0xe8] sm:$0xf]
      %v257 = vld [vmem:[%s1 + $0xec] sm:$0xf]
      %v258 = vld [vmem:[%s1 + $0xf0] sm:$0xf]
      %v259 = vld [vmem:[%s1 + $0xf4] sm:$0xf]
      %v260 = vld [vmem:[%s1 + $0xf8] sm:$0xf]
      %v261 = vld [vmem:[%s1 + $0xfc] sm:$0xf]
      %v262 = vld [vmem:[%s1 + $0x100] sm:$0xf]
      %v263 = vld [vmem:[%s1 + $0x104] sm:$0xf]
      %v264 = vld [vmem:[%s1 + $0x108] sm:$0xf]
      %v265 = vld [vmem:[%s1 + $0x10c] sm:$0xf]
      %v266 = vld [vmem:[%s1 + $0x110] sm:$0xf]
      %v267 = vld [vmem:[%s1 + $0x114] sm:$0xf]
      %v268 = vld [vmem:[%s1 + $0x118] sm:$0xf]
      %v269 = vld [vmem:[%s1 + $0x11c] sm:$0xf]
      %v270 = vld [vmem:[%s1 + $0x120] sm:$0xf]
      %v271 = vld [vmem:[%s1 + $0x124] sm:$0xf]
      %v272 = vld [vmem:[%s1 + $0x128] sm:$0xf]
      %v273 = vld [vmem:[%s1 + $0x12c] sm:$0xf]
      %v274 = vld [vmem:[%s1 + $0x130] sm:$0xf]
      %v275 = vld [vmem:[%s1 + $0x134] sm:$0xf]
      %v276 = vld [vmem:[%s1 + $0x138] sm:$0xf]
      %v277 = vld [vmem:[%s1 + $0x13c] sm:$0xf]
      %v278 = vld [vmem:[%s1 + $0x140] sm:$0xf]
      %v279 = vld [vmem:[%s1 + $0x144] sm:$0xf]
      %v280 = vld [vmem:[%s1 + $0x148] sm:$0xf]
      %v281 = vld [vmem:[%s1 + $0x14c] sm:$0xf]
      %v282 = vld [vmem:[%s1 + $0x150] sm:$0xf]
      %v283 = vld [vmem:[%s1 + $0x154] sm:$0xf]
      %v284 = vld [vmem:[%s1 + $0x158] sm:$0xf]
      %v285 = vld [vmem:[%s1 + $0x15c] sm:$0xf]
      %v286 = vld [vmem:[%s1 + $0x160] sm:$0xf]
      %v287 = vld [vmem:[%s1 + $0x164] sm:$0xf]
      %v288 = vld [vmem:[%s1 + $0x168] sm:$0xf]
      %v289 = vld [vmem:[%s1 + $0x16c] sm:$0xf]
      %v290 = vld [vmem:[%s1 + $0x170] sm:$0xf]
      %v291 = vld [vmem:[%s1 + $0x174] sm:$0xf]
      %v292 = vld [vmem:[%s1 + $0x178] sm:$0xf]
      %v293 = vld [vmem:[%s1 + $0x17c] sm:$0xf]
      %v294 = vld [vmem:[%s1 + $0x180] sm:$0xf]
      %v295 = vld [vmem:[%s1 + $0x184] sm:$0xf]
      %v296 = vld [vmem:[%s1 + $0x188] sm:$0xf]
      %v297 = vld [vmem:[%s1 + $0x18c] sm:$0xf]
      %v298 = vld [vmem:[%s1 + $0x190] sm:$0xf]
      %v299 = vld [vmem:[%s1 + $0x194] sm:$0xf]
      %v300 = vld [vmem:[%s1 + $0x198] sm:$0xf]
      %v301 = vld [vmem:[%s1 + $0x19c] sm:$0xf]
      %v302 = vld [vmem:[%s1 + $0x1a0] sm:$0xf]
      %v303 = vld [vmem:[%s1 + $0x1a4] sm:$0xf]
      %v304 = vld [vmem:[%s1 + $0x1a8] sm:$0xf]
      %v305 = vld [vmem:[%s1 + $0x1ac] sm:$0xf]
      %v306 = vld [vmem:[%s1 + $0x1b0] sm:$0xf]
      %v307 = vld [vmem:[%s1 + $0x1b4] sm:$0xf]
      %v308 = vld [vmem:[%s1 + $0x1b8] sm:$0xf]
      %v309 = vld [vmem:[%s1 + $0x1bc] sm:$0xf]
      %v310 = vld [vmem:[%s1 + $0x1c0] sm:$0xf]
      %v311 = vld [vmem:[%s1 + $0x1c4] sm:$0xf]
      %v312 = vld [vmem:[%s1 + $0x1c8] sm:$0xf]
      %v313 = vld [vmem:[%s1 + $0x1cc] sm:$0xf]
      %v314 = vld [vmem:[%s1 + $0x1d0] sm:$0xf]
      %v315 = vld [vmem:[%s1 + $0x1d4] sm:$0xf]
      %v316 = vld [vmem:[%s1 + $0x1d8] sm:$0xf]
      %v317 = vld [vmem:[%s1 + $0x1dc] sm:$0xf]
      %v318 = vld [vmem:[%s1 + $0x1e0] sm:$0xf]
      %v319 = vld [vmem:[%s1 + $0x1e4] sm:$0xf]
      %v320 = vld [vmem:[%s1 + $0x1e8] sm:$0xf]
      %v321 = vld [vmem:[%s1 + $0x1ec] sm:$0xf]
      %v322 = vld [vmem:[%s1 + $0x1f0] sm:$0xf]
      %v323 = vld [vmem:[%s1 + $0x1f4] sm:$0xf]
      %v324 = vld [vmem:[%s1 + $0x1f8] sm:$0xf]
      %v325 = vld [vmem:[%s1 + $0x1fc] sm:$0xf]
      %v326 = vld [vmem:[%s1 + $0x200] sm:$0xf]
      %v327 = vld [vmem:[%s1 + $0x204] sm:$0xf]
      %v328 = vld [vmem:[%s1 + $0x208] sm:$0xf]
      %v329 = vld [vmem:[%s1 + $0x20c] sm:$0xf]
      %v330 = vld [vmem:[%s1 + $0x210] sm:$0xf]
      %v331 = vld [vmem:[%s1 + $0x214] sm:$0xf]
      %v332 = vld [vmem:[%s1 + $0x218] sm:$0xf]
      %v333 = vld [vmem:[%s1 + $0x21c] sm:$0xf]
      %v334 = vld [vmem:[%s1 + $0x220] sm:$0xf]
      %v335 = vld [vmem:[%s1 + $0x224] sm:$0xf]
      %v336 = vld [vmem:[%s1 + $0x228] sm:$0xf]
      %v337 = vld [vmem:[%s1 + $0x22c] sm:$0xf]
      %v338 = vld [vmem:[%s1 + $0x230] sm:$0xf]
      %v339 = vld [vmem:[%s1 + $0x234] sm:$0xf]
      %v340 = vld [vmem:[%s1 + $0x238] sm:$0xf]
      %v341 = vld [vmem:[%s1 + $0x23c] sm:$0xf]
      %v362 = vunpack.c.l.b16 %v178
      %v363 = vunpack.c.h.b16 %v178
      %v364 = vunpack.c.l.b16 %v179
      %v365 = vunpack.c.h.b16 %v179
      %v366 = vunpack.c.l.b16 %v180
      %v367 = vunpack.c.h.b16 %v180
      %v368 = vunpack.c.l.b16 %v181
      %v369 = vunpack.c.h.b16 %v181
      %v370 = vunpack.c.l.b16 %v182
      %v371 = vunpack.c.l.b16 %v183
      %v372 = vunpack.c.h.b16 %v183
      %v373 = vunpack.c.l.b16 %v184
      %v374 = vunpack.c.h.b16 %v184
      %v375 = vunpack.c.l.b16 %v185
      %v376 = vunpack.c.h.b16 %v185
      %v377 = vunpack.c.l.b16 %v186
      %v378 = vunpack.c.h.b16 %v186
      %v379 = vunpack.c.l.b16 %v187
      %v380 = vunpack.c.l.b16 %v188
      %v381 = vunpack.c.h.b16 %v188
      %v382 = vunpack.c.l.b16 %v189
      %v383 = vunpack.c.h.b16 %v189
      %v384 = vunpack.c.l.b16 %v190
      %v385 = vunpack.c.h.b16 %v190
      %v386 = vunpack.c.l.b16 %v191
      %v387 = vunpack.c.h.b16 %v191
      %v388 = vunpack.c.l.b16 %v192
      %v389 = vunpack.c.l.b16 %v193
      %v390 = vunpack.c.h.b16 %v193
      %v391 = vunpack.c.l.b16 %v194
      %v392 = vunpack.c.h.b16 %v194
      %v393 = vunpack.c.l.b16 %v195
      %v394 = vunpack.c.h.b16 %v195
      %v395 = vunpack.c.l.b16 %v196
      %v396 = vunpack.c.h.b16 %v196
      %v397 = vunpack.c.l.b16 %v197
      %v398 = vpack.c.b16 %v371, %v362
      %v399 = vpack.c.b16 %v372, %v363
      %v400 = vpack.c.b16 %v373, %v364
      %v401 = vpack.c.b16 %v374, %v365
      %v402 = vpack.c.b16 %v375, %v366
      %v403 = vpack.c.b16 %v376, %v367
      %v404 = vpack.c.b16 %v377, %v368
      %v405 = vpack.c.b16 %v378, %v369
      %v406 = vpack.c.b16 %v379, %v370
      %v407 = vpack.c.b16 %v389, %v380
      %v408 = vpack.c.b16 %v390, %v381
      %v409 = vpack.c.b16 %v391, %v382
      %v410 = vpack.c.b16 %v392, %v383
      %v411 = vpack.c.b16 %v393, %v384
      %v412 = vpack.c.b16 %v394, %v385
      %v413 = vpack.c.b16 %v395, %v386
      %v414 = vpack.c.b16 %v396, %v387
      %v415 = vpack.c.b16 %v397, %v388
      %v578 = vunpack.c.l.b16 %v198
      %v579 = vunpack.c.l.b16 %v199
      %v580 = vunpack.c.l.b16 %v200
      %v581 = vunpack.c.l.b16 %v201
      %v582 = vunpack.c.l.b16 %v202
      %v583 = vunpack.c.l.b16 %v203
      %v584 = vunpack.c.l.b16 %v204
      %v585 = vunpack.c.l.b16 %v205
      %v586 = vunpack.c.l.b16 %v206
      %v587 = vunpack.c.l.b16 %v207
      %v588 = vunpack.c.l.b16 %v208
      %v589 = vunpack.c.l.b16 %v209
      %v590 = vunpack.c.l.b16 %v210
      %v591 = vunpack.c.l.b16 %v211
      %v592 = vunpack.c.l.b16 %v212
      %v593 = vunpack.c.l.b16 %v213
      %v594 = vunpack.c.l.b16 %v214
      %v595 = vunpack.c.l.b16 %v215
      %v596 = vunpack.c.l.b16 %v216
      %v597 = vunpack.c.l.b16 %v217
      %v598 = vunpack.c.l.b16 %v218
      %v599 = vunpack.c.l.b16 %v219
      %v600 = vunpack.c.l.b16 %v220
      %v601 = vunpack.c.l.b16 %v221
      %v602 = vunpack.c.l.b16 %v222
      %v603 = vunpack.c.l.b16 %v223
      %v604 = vunpack.c.l.b16 %v224
      %v605 = vunpack.c.l.b16 %v225
      %v606 = vunpack.c.l.b16 %v226
      %v607 = vunpack.c.l.b16 %v227
      %v608 = vunpack.c.l.b16 %v228
      %v609 = vunpack.c.l.b16 %v229
      %v610 = vunpack.c.l.b16 %v230
      %v611 = vunpack.c.l.b16 %v231
      %v612 = vunpack.c.l.b16 %v232
      %v613 = vunpack.c.l.b16 %v233
      %v614 = vunpack.c.l.b16 %v234
      %v615 = vunpack.c.l.b16 %v235
      %v616 = vunpack.c.l.b16 %v236
      %v617 = vunpack.c.l.b16 %v237
      %v618 = vunpack.c.l.b16 %v238
      %v619 = vunpack.c.l.b16 %v239
      %v620 = vunpack.c.l.b16 %v240
      %v621 = vunpack.c.l.b16 %v241
      %v622 = vunpack.c.l.b16 %v242
      %v623 = vunpack.c.l.b16 %v243
      %v624 = vunpack.c.l.b16 %v244
      %v625 = vunpack.c.l.b16 %v245
      %v626 = vunpack.c.l.b16 %v246
      %v627 = vunpack.c.l.b16 %v247
      %v628 = vunpack.c.l.b16 %v248
      %v629 = vunpack.c.l.b16 %v249
      %v630 = vunpack.c.l.b16 %v250
      %v631 = vunpack.c.l.b16 %v251
      %v632 = vunpack.c.l.b16 %v252
      %v633 = vunpack.c.l.b16 %v253
      %v634 = vunpack.c.l.b16 %v254
      %v635 = vunpack.c.l.b16 %v255
      %v636 = vunpack.c.l.b16 %v256
      %v637 = vunpack.c.l.b16 %v257
      %v638 = vunpack.c.l.b16 %v258
      %v639 = vunpack.c.l.b16 %v259
      %v640 = vunpack.c.l.b16 %v260
      %v641 = vunpack.c.l.b16 %v261
      %v642 = vunpack.c.l.b16 %v262
      %v643 = vunpack.c.l.b16 %v263
      %v644 = vunpack.c.l.b16 %v264
      %v645 = vunpack.c.l.b16 %v265
      %v646 = vunpack.c.l.b16 %v266
      %v647 = vunpack.c.l.b16 %v267
      %v648 = vunpack.c.l.b16 %v268
      %v649 = vunpack.c.l.b16 %v269
      %v650 = vunpack.c.l.b16 %v270
      %v651 = vunpack.c.l.b16 %v271
      %v652 = vunpack.c.l.b16 %v272
      %v653 = vunpack.c.l.b16 %v273
      %v654 = vunpack.c.l.b16 %v274
      %v655 = vunpack.c.l.b16 %v275
      %v656 = vunpack.c.l.b16 %v276
      %v657 = vunpack.c.l.b16 %v277
      %v658 = vunpack.c.l.b16 %v278
      %v659 = vunpack.c.l.b16 %v279
      %v660 = vunpack.c.l.b16 %v280
      %v661 = vunpack.c.l.b16 %v281
      %v662 = vunpack.c.l.b16 %v282
      %v663 = vunpack.c.l.b16 %v283
      %v664 = vunpack.c.l.b16 %v284
      %v665 = vunpack.c.l.b16 %v285
      %v666 = vunpack.c.l.b16 %v286
      %v667 = vunpack.c.l.b16 %v287
      %v668 = vunpack.c.l.b16 %v288
      %v669 = vunpack.c.l.b16 %v289
      %v670 = vunpack.c.l.b16 %v290
      %v671 = vunpack.c.l.b16 %v291
      %v672 = vunpack.c.l.b16 %v292
      %v673 = vunpack.c.l.b16 %v293
      %v674 = vunpack.c.l.b16 %v294
      %v675 = vunpack.c.l.b16 %v295
      %v676 = vunpack.c.l.b16 %v296
      %v677 = vunpack.c.l.b16 %v297
      %v678 = vunpack.c.l.b16 %v298
      %v679 = vunpack.c.l.b16 %v299
      %v680 = vunpack.c.l.b16 %v300
      %v681 = vunpack.c.l.b16 %v301
      %v682 = vunpack.c.l.b16 %v302
      %v683 = vunpack.c.l.b16 %v303
      %v684 = vunpack.c.l.b16 %v304
      %v685 = vunpack.c.l.b16 %v305
      %v686 = vunpack.c.l.b16 %v306
      %v687 = vunpack.c.l.b16 %v307
      %v688 = vunpack.c.l.b16 %v308
      %v689 = vunpack.c.l.b16 %v309
      %v690 = vunpack.c.l.b16 %v310
      %v691 = vunpack.c.l.b16 %v311
      %v692 = vunpack.c.l.b16 %v312
      %v693 = vunpack.c.l.b16 %v313
      %v694 = vunpack.c.l.b16 %v314
      %v695 = vunpack.c.l.b16 %v315
      %v696 = vunpack.c.l.b16 %v316
      %v697 = vunpack.c.l.b16 %v317
      %v698 = vunpack.c.l.b16 %v318
      %v699 = vunpack.c.l.b16 %v319
      %v700 = vunpack.c.l.b16 %v320
      %v701 = vunpack.c.l.b16 %v321
      %v702 = vunpack.c.l.b16 %v322
      %v703 = vunpack.c.l.b16 %v323
      %v704 = vunpack.c.l.b16 %v324
      %v705 = vunpack.c.l.b16 %v325
      %v706 = vunpack.c.l.b16 %v326
      %v707 = vunpack.c.l.b16 %v327
      %v708 = vunpack.c.l.b16 %v328
      %v709 = vunpack.c.l.b16 %v329
      %v710 = vunpack.c.l.b16 %v330
      %v711 = vunpack.c.l.b16 %v331
      %v712 = vunpack.c.l.b16 %v332
      %v713 = vunpack.c.l.b16 %v333
      %v714 = vunpack.c.l.b16 %v334
      %v715 = vunpack.c.l.b16 %v335
      %v716 = vunpack.c.l.b16 %v336
      %v717 = vunpack.c.l.b16 %v337
      %v718 = vunpack.c.l.b16 %v338
      %v719 = vunpack.c.l.b16 %v339
      %v720 = vunpack.c.l.b16 %v340
      %v721 = vunpack.c.l.b16 %v341
      %v722 = vpack.c.b16 %v579, %v578
      %v723 = vpack.c.b16 %v581, %v580
      %v724 = vpack.c.b16 %v583, %v582
      %v725 = vpack.c.b16 %v585, %v584
      %v726 = vpack.c.b16 %v587, %v586
      %v727 = vpack.c.b16 %v589, %v588
      %v728 = vpack.c.b16 %v591, %v590
      %v729 = vpack.c.b16 %v593, %v592
      %v730 = vpack.c.b16 %v595, %v594
      %v731 = vpack.c.b16 %v597, %v596
      %v732 = vpack.c.b16 %v599, %v598
      %v733 = vpack.c.b16 %v601, %v600
      %v734 = vpack.c.b16 %v603, %v602
      %v735 = vpack.c.b16 %v605, %v604
      %v736 = vpack.c.b16 %v607, %v606
      %v737 = vpack.c.b16 %v609, %v608
      %v738 = vpack.c.b16 %v611, %v610
      %v739 = vpack.c.b16 %v613, %v612
      %v740 = vpack.c.b16 %v615, %v614
      %v741 = vpack.c.b16 %v617, %v616
      %v742 = vpack.c.b16 %v619, %v618
      %v743 = vpack.c.b16 %v621, %v620
      %v744 = vpack.c.b16 %v623, %v622
      %v745 = vpack.c.b16 %v625, %v624
      %v746 = vpack.c.b16 %v627, %v626
      %v747 = vpack.c.b16 %v629, %v628
      %v748 = vpack.c.b16 %v631, %v630
      %v749 = vpack.c.b16 %v633, %v632
      %v750 = vpack.c.b16 %v635, %v634
      %v751 = vpack.c.b16 %v637, %v636
      %v752 = vpack.c.b16 %v639, %v638
      %v753 = vpack.c.b16 %v641, %v640
      %v754 = vpack.c.b16 %v643, %v642
      %v755 = vpack.c.b16 %v645, %v644
      %v756 = vpack.c.b16 %v647, %v646
      %v757 = vpack.c.b16 %v649, %v648
      %v758 = vpack.c.b16 %v651, %v650
      %v759 = vpack.c.b16 %v653, %v652
      %v760 = vpack.c.b16 %v655, %v654
      %v761 = vpack.c.b16 %v657, %v656
      %v762 = vpack.c.b16 %v659, %v658
      %v763 = vpack.c.b16 %v661, %v660
      %v764 = vpack.c.b16 %v663, %v662
      %v765 = vpack.c.b16 %v665, %v664
      %v766 = vpack.c.b16 %v667, %v666
      %v767 = vpack.c.b16 %v669, %v668
      %v768 = vpack.c.b16 %v671, %v670
      %v769 = vpack.c.b16 %v673, %v672
      %v770 = vpack.c.b16 %v675, %v674
      %v771 = vpack.c.b16 %v677, %v676
      %v772 = vpack.c.b16 %v679, %v678
      %v773 = vpack.c.b16 %v681, %v680
      %v774 = vpack.c.b16 %v683, %v682
      %v775 = vpack.c.b16 %v685, %v684
      %v776 = vpack.c.b16 %v687, %v686
      %v777 = vpack.c.b16 %v689, %v688
      %v778 = vpack.c.b16 %v691, %v690
      %v779 = vpack.c.b16 %v693, %v692
      %v780 = vpack.c.b16 %v695, %v694
      %v781 = vpack.c.b16 %v697, %v696
      %v782 = vpack.c.b16 %v699, %v698
      %v783 = vpack.c.b16 %v701, %v700
      %v784 = vpack.c.b16 %v703, %v702
      %v785 = vpack.c.b16 %v705, %v704
      %v786 = vpack.c.b16 %v707, %v706
      %v787 = vpack.c.b16 %v709, %v708
      %v788 = vpack.c.b16 %v711, %v710
      %v789 = vpack.c.b16 %v713, %v712
      %v790 = vpack.c.b16 %v715, %v714
      %v791 = vpack.c.b16 %v717, %v716
      %v792 = vpack.c.b16 %v719, %v718
      %v793 = vpack.c.b16 %v721, %v720
      %866 = vmatprep.subr.bf16.mxu0 0
      %867 = vmatpush1.bf16.msra.mxu0 %v722
      %868 = vmatprep.subr.bf16.mxu0 0
      %869 = vmatpush1.bf16.msra.mxu0 %v723
      %870 = vmatprep.subr.bf16.mxu0 0
      %871 = vmatpush1.bf16.msra.mxu0 %v724
      %872 = vmatprep.subr.bf16.mxu0 0
      %873 = vmatpush1.bf16.msra.mxu0 %v725
      %874 = vmatprep.subr.bf16.mxu0 0
      %875 = vmatpush1.bf16.msra.mxu0 %v726
      %876 = vmatprep.subr.bf16.mxu0 0
      %877 = vmatpush1.bf16.msra.mxu0 %v727
      %878 = vmatprep.subr.bf16.mxu0 0
      %879 = vmatpush1.bf16.msra.mxu0 %v728
      %880 = vmatprep.subr.bf16.mxu0 0
      %881 = vmatpush1.bf16.msra.mxu0 %v729
      %882 = vmatprep.subr.bf16.mxu0 0
      %883 = vmatpush1.bf16.msra.mxu0 %v730
      %884 = vmatprep.subr.bf16.mxu0 0
      %885 = vmatpush1.bf16.msra.mxu0 %v731
      %886 = vmatprep.subr.bf16.mxu0 0
      %887 = vmatpush1.bf16.msra.mxu0 %v732
      %888 = vmatprep.subr.bf16.mxu0 0
      %889 = vmatpush1.bf16.msra.mxu0 %v733
      %890 = vmatprep.subr.bf16.mxu0 0
      %891 = vmatpush1.bf16.msra.mxu0 %v734
      %892 = vmatprep.subr.bf16.mxu0 0
      %893 = vmatpush1.bf16.msra.mxu0 %v735
      %894 = vmatprep.subr.bf16.mxu0 0
      %895 = vmatpush1.bf16.msra.mxu0 %v736
      %896 = vmatprep.subr.bf16.mxu0 0
      %897 = vmatpush1.bf16.msra.mxu0 %v737
      %898 = vmatprep.mubr.bf16.mxu0 %v399
      %899 = vmatmul.mubr.bf16.gmra.mrb[0].mxu0 %v398
      %v900 = vpop.f32.mrb[0].mxu0
      %v901 = vadd.f32 0.0, %v900
      %v902 = vpop.f32.mrb[0].mxu0
      %v903 = vpop.f32.mrb[0].mxu0
      %v904 = vadd.f32 0.0, %v903
      %v905 = vpop.f32.mrb[0].mxu0
      %906 = vmatprep.mubr.bf16.mxu0 %v408
      %907 = vmatmul.mubr.bf16.gmra.mrb[0].mxu0 %v407
      %v908 = vpop.f32.mrb[0].mxu0
      %v909 = vadd.f32 0.0, %v908
      %v910 = vpop.f32.mrb[0].mxu0
      %v911 = vpop.f32.mrb[0].mxu0
      %v912 = vadd.f32 0.0, %v911
      %v913 = vpop.f32.mrb[0].mxu0
      %914 = vdwg.mxu0
      %915 = vmatprep.subr.bf16.mxu0 0
      %916 = vmatpush1.bf16.msra.mxu0 %v738
      %917 = vmatprep.subr.bf16.mxu0 0
      %918 = vmatpush1.bf16.msra.mxu0 %v739
      %919 = vmatprep.subr.bf16.mxu0 0
      %920 = vmatpush1.bf16.msra.mxu0 %v740
      %921 = vmatprep.subr.bf16.mxu0 0
      %922 = vmatpush1.bf16.msra.mxu0 %v741
      %923 = vmatprep.subr.bf16.mxu0 0
      %924 = vmatpush1.bf16.msra.mxu0 %v742
      %925 = vmatprep.subr.bf16.mxu0 0
      %926 = vmatpush1.bf16.msra.mxu0 %v743
      %927 = vmatprep.subr.bf16.mxu0 0
      %928 = vmatpush1.bf16.msra.mxu0 %v744
      %929 = vmatprep.subr.bf16.mxu0 0
      %930 = vmatpush1.bf16.msra.mxu0 %v745
      %931 = vmatprep.subr.bf16.mxu0 0
      %932 = vmatpush1.bf16.msra.mxu0 %v746
      %933 = vmatprep.subr.bf16.mxu0 0
      %934 = vmatpush1.bf16.msra.mxu0 %v747
      %935 = vmatprep.subr.bf16.mxu0 0
      %936 = vmatpush1.bf16.msra.mxu0 %v748
      %937 = vmatprep.subr.bf16.mxu0 0
      %938 = vmatpush1.bf16.msra.mxu0 %v749
      %939 = vmatprep.subr.bf16.mxu0 0
      %940 = vmatpush1.bf16.msra.mxu0 %v750
      %941 = vmatprep.subr.bf16.mxu0 0
      %942 = vmatpush1.bf16.msra.mxu0 %v751
      %943 = vmatprep.subr.bf16.mxu0 0
      %944 = vmatpush1.bf16.msra.mxu0 %v752
      %945 = vmatprep.subr.bf16.mxu0 0
      %946 = vmatpush1.bf16.msra.mxu0 %v753
      %947 = vmatprep.mubr.bf16.mxu0 %v401
      %948 = vmatmul.mubr.bf16.gmra.mrb[0].mxu0 %v400
      %v949 = vpop.f32.mrb[0].mxu0
      %v950 = vadd.f32 %v901, %v949
      %v951 = vpop.f32.mrb[0].mxu0
      %v952 = vpop.f32.mrb[0].mxu0
      %v953 = vadd.f32 %v904, %v952
      %v954 = vpop.f32.mrb[0].mxu0
      %955 = vmatprep.mubr.bf16.mxu0 %v410
      %956 = vmatmul.mubr.bf16.gmra.mrb[0].mxu0 %v409
      %v957 = vpop.f32.mrb[0].mxu0
      %v958 = vadd.f32 %v909, %v957
      %v959 = vpop.f32.mrb[0].mxu0
      %v960 = vpop.f32.mrb[0].mxu0
      %v961 = vadd.f32 %v912, %v960
      %v962 = vpop.f32.mrb[0].mxu0
      %963 = vdwg.mxu0
      %964 = vmatprep.subr.bf16.mxu0 0
      %965 = vmatpush1.bf16.msra.mxu0 %v754
      %966 = vmatprep.subr.bf16.mxu0 0
      %967 = vmatpush1.bf16.msra.mxu0 %v755
      %968 = vmatprep.subr.bf16.mxu0 0
      %969 = vmatpush1.bf16.msra.mxu0 %v756
      %970 = vmatprep.subr.bf16.mxu0 0
      %971 = vmatpush1.bf16.msra.mxu0 %v757
      %972 = vmatprep.subr.bf16.mxu0 0
      %973 = vmatpush1.bf16.msra.mxu0 %v758
      %974 = vmatprep.subr.bf16.mxu0 0
      %975 = vmatpush1.bf16.msra.mxu0 %v759
      %976 = vmatprep.subr.bf16.mxu0 0
      %977 = vmatpush1.bf16.msra.mxu0 %v760
      %978 = vmatprep.subr.bf16.mxu0 0
      %979 = vmatpush1.bf16.msra.mxu0 %v761
      %980 = vmatprep.subr.bf16.mxu0 0
      %981 = vmatpush1.bf16.msra.mxu0 %v762
      %982 = vmatprep.subr.bf16.mxu0 0
      %983 = vmatpush1.bf16.msra.mxu0 %v763
      %984 = vmatprep.subr.bf16.mxu0 0
      %985 = vmatpush1.bf16.msra.mxu0 %v764
      %986 = vmatprep.subr.bf16.mxu0 0
      %987 = vmatpush1.bf16.msra.mxu0 %v765
      %988 = vmatprep.subr.bf16.mxu0 0
      %989 = vmatpush1.bf16.msra.mxu0 %v766
      %990 = vmatprep.subr.bf16.mxu0 0
      %991 = vmatpush1.bf16.msra.mxu0 %v767
      %992 = vmatprep.subr.bf16.mxu0 0
      %993 = vmatpush1.bf16.msra.mxu0 %v768
      %994 = vmatprep.subr.bf16.mxu0 0
      %995 = vmatpush1.bf16.msra.mxu0 %v769
      %996 = vmatprep.mubr.bf16.mxu0 %v403
      %997 = vmatmul.mubr.bf16.gmra.mrb[0].mxu0 %v402
      %v998 = vpop.f32.mrb[0].mxu0
      %v999 = vadd.f32 %v950, %v998
      %v1000 = vpop.f32.mrb[0].mxu0
      %v1001 = vpop.f32.mrb[0].mxu0
      %v1002 = vadd.f32 %v953, %v1001
      %v1003 = vpop.f32.mrb[0].mxu0
      %1004 = vmatprep.mubr.bf16.mxu0 %v412
      %1005 = vmatmul.mubr.bf16.gmra.mrb[0].mxu0 %v411
      %v1006 = vpop.f32.mrb[0].mxu0
      %v1007 = vadd.f32 %v958, %v1006
      %v1008 = vpop.f32.mrb[0].mxu0
      %v1009 = vpop.f32.mrb[0].mxu0
      %v1010 = vadd.f32 %v961, %v1009
      %v1011 = vpop.f32.mrb[0].mxu0
      %1012 = vdwg.mxu0
      %1013 = vmatprep.subr.bf16.mxu0 0
      %1014 = vmatpush1.bf16.msra.mxu0 %v770
      %1015 = vmatprep.subr.bf16.mxu0 0
      %1016 = vmatpush1.bf16.msra.mxu0 %v771
      %1017 = vmatprep.subr.bf16.mxu0 0
      %1018 = vmatpush1.bf16.msra.mxu0 %v772
      %1019 = vmatprep.subr.bf16.mxu0 0
      %1020 = vmatpush1.bf16.msra.mxu0 %v773
      %1021 = vmatprep.subr.bf16.mxu0 0
      %1022 = vmatpush1.bf16.msra.mxu0 %v774
      %1023 = vmatprep.subr.bf16.mxu0 0
      %1024 = vmatpush1.bf16.msra.mxu0 %v775
      %1025 = vmatprep.subr.bf16.mxu0 0
      %1026 = vmatpush1.bf16.msra.mxu0 %v776
      %1027 = vmatprep.subr.bf16.mxu0 0
      %1028 = vmatpush1.bf16.msra.mxu0 %v777
      %1029 = vmatprep.subr.bf16.mxu0 0
      %1030 = vmatpush1.bf16.msra.mxu0 %v778
      %1031 = vmatprep.subr.bf16.mxu0 0
      %1032 = vmatpush1.bf16.msra.mxu0 %v779
      %1033 = vmatprep.subr.bf16.mxu0 0
      %1034 = vmatpush1.bf16.msra.mxu0 %v780
      %1035 = vmatprep.subr.bf16.mxu0 0
      %1036 = vmatpush1.bf16.msra.mxu0 %v781
      %1037 = vmatprep.subr.bf16.mxu0 0
      %1038 = vmatpush1.bf16.msra.mxu0 %v782
      %1039 = vmatprep.subr.bf16.mxu0 0
      %1040 = vmatpush1.bf16.msra.mxu0 %v783
      %1041 = vmatprep.subr.bf16.mxu0 0
      %1042 = vmatpush1.bf16.msra.mxu0 %v784
      %1043 = vmatprep.subr.bf16.mxu0 0
      %1044 = vmatpush1.bf16.msra.mxu0 %v785
      %1045 = vmatprep.mubr.bf16.mxu0 %v405
      %1046 = vmatmul.mubr.bf16.gmra.mrb[0].mxu0 %v404
      %v1047 = vpop.f32.mrb[0].mxu0
      %v1048 = vadd.f32 %v999, %v1047
      %v1049 = vpop.f32.mrb[0].mxu0
      %v1050 = vpop.f32.mrb[0].mxu0
      %v1051 = vadd.f32 %v1002, %v1050
      %v1052 = vpop.f32.mrb[0].mxu0
      %1053 = vmatprep.mubr.bf16.mxu0 %v414
      %1054 = vmatmul.mubr.bf16.gmra.mrb[0].mxu0 %v413
      %v1055 = vpop.f32.mrb[0].mxu0
      %v1056 = vadd.f32 %v1007, %v1055
      %v1057 = vpop.f32.mrb[0].mxu0
      %v1058 = vpop.f32.mrb[0].mxu0
      %v1059 = vadd.f32 %v1010, %v1058
      %v1060 = vpop.f32.mrb[0].mxu0
      %1061 = vdwg.mxu0
      %1062 = vmatprep.subr.bf16.mxu0 0
      %1063 = vmatpush1.bf16.msra.mxu0 %v786
      %1064 = vmatprep.subr.bf16.mxu0 0
      %1065 = vmatpush1.bf16.msra.mxu0 %v787
      %1066 = vmatprep.subr.bf16.mxu0 0
      %1067 = vmatpush1.bf16.msra.mxu0 %v788
      %1068 = vmatprep.subr.bf16.mxu0 0
      %1069 = vmatpush1.bf16.msra.mxu0 %v789
      %1070 = vmatprep.subr.bf16.mxu0 0
      %1071 = vmatpush1.bf16.msra.mxu0 %v790
      %1072 = vmatprep.subr.bf16.mxu0 0
      %1073 = vmatpush1.bf16.msra.mxu0 %v791
      %1074 = vmatprep.subr.bf16.mxu0 0
      %1075 = vmatpush1.bf16.msra.mxu0 %v792
      %1076 = vmatprep.subr.bf16.mxu0 0
      %1077 = vmatpush1.bf16.msra.mxu0 %v793
      %1078 = vmatprep.subr.bf16.mxu0 0
      %1079 = vmatpush1.bf16.msra.mxu0 0
      %1080 = vmatprep.subr.bf16.mxu0 0
      %1081 = vmatpush1.bf16.msra.mxu0 0
      %1082 = vmatprep.subr.bf16.mxu0 0
      %1083 = vmatpush1.bf16.msra.mxu0 0
      %1084 = vmatprep.subr.bf16.mxu0 0
      %1085 = vmatpush1.bf16.msra.mxu0 0
      %1086 = vmatprep.subr.bf16.mxu0 0
      %1087 = vmatpush1.bf16.msra.mxu0 0
      %1088 = vmatprep.subr.bf16.mxu0 0
      %1089 = vmatpush1.bf16.msra.mxu0 0
      %1090 = vmatprep.subr.bf16.mxu0 0
      %1091 = vmatpush1.bf16.msra.mxu0 0
      %1092 = vmatprep.subr.bf16.mxu0 0
      %1093 = vmatpush1.bf16.msra.mxu0 0
      %1094 = vmatprep.mubr.bf16.mxu0 0
      %1095 = vmatmul.mubr.bf16.gmra.mrb[0].mxu0 %v406
      %v1096 = vpop.f32.mrb[0].mxu0
      %v1097 = vadd.f32 %v1048, %v1096
      %v1098 = vpop.f32.mrb[0].mxu0
      %v1099 = vpop.f32.mrb[0].mxu0
      %v1100 = vadd.f32 %v1051, %v1099
      %v1101 = vpop.f32.mrb[0].mxu0
      %1102 = vmatprep.mubr.bf16.mxu0 0
      %1103 = vmatmul.mubr.bf16.gmra.mrb[0].mxu0 %v415
      %v1104 = vpop.f32.mrb[0].mxu0
      %v1105 = vadd.f32 %v1056, %v1104
      %v1106 = vpop.f32.mrb[0].mxu0
      %v1107 = vpop.f32.mrb[0].mxu0
      %v1108 = vadd.f32 %v1059, %v1107
      %v1109 = vpop.f32.mrb[0].mxu0
      %1110 = vdwg.mxu0
      %v1111 = vld [vmem:[%s2] sm:$0x1]
      %v1113 = vlaneseq
      %v1114 = vshrl.u32 %v1113, 7
      %v1115 = vsub.s32 0, %v1114
      %v1116 = vrot.slane %v1111, %v1115
      %v1118 = vsub.f32 %v1097, %v1116
      %v1119 = vsub.f32 %v1100, %v1116
      %v1120 = vsub.f32 %v1105, %v1116
      %v1121 = vsub.f32 %v1108, %v1116
      %v1122 = vsub.f32 0.0, %v1097
      %v1123 = vsub.f32 0.0, %v1100
      %v1124 = vsub.f32 0.0, %v1105
      %v1125 = vsub.f32 0.0, %v1108
      %v1126 = vsub.f32 %v1122, %v1116
      %v1127 = vsub.f32 %v1123, %v1116
      %v1128 = vsub.f32 %v1124, %v1116
      %v1129 = vsub.f32 %v1125, %v1116
      %vm1130 = vcmp.ge.f32.partialorder %v1118, 0.0
      %vm1131 = vcmp.ge.f32.partialorder %v1119, 0.0
      %vm1132 = vcmp.ge.f32.partialorder %v1120, 0.0
      %vm1133 = vcmp.ge.f32.partialorder %v1121, 0.0
      %v1134 = vmul.f32 %v1118, 0.001
      %v1135 = vmul.f32 %v1119, 0.001
      %v1136 = vmul.f32 %v1120, 0.001
      %v1137 = vmul.f32 %v1121, 0.001
      %v1138 = vsel %vm1130, %v1118, %v1134
      %v1139 = vsel %vm1131, %v1119, %v1135
      %v1140 = vsel %vm1132, %v1120, %v1136
      %v1141 = vsel %vm1133, %v1121, %v1137
      %vm1142 = vcmp.ge.f32.partialorder %v1126, 0.0
      %vm1143 = vcmp.ge.f32.partialorder %v1127, 0.0
      %vm1144 = vcmp.ge.f32.partialorder %v1128, 0.0
      %vm1145 = vcmp.ge.f32.partialorder %v1129, 0.0
      %v1146 = vmul.f32 %v1126, 0.01
      %v1147 = vmul.f32 %v1127, 0.01
      %v1148 = vmul.f32 %v1128, 0.01
      %v1149 = vmul.f32 %v1129, 0.01
      %v1150 = vsel %vm1142, %v1126, %v1146
      %v1151 = vsel %vm1143, %v1127, %v1147
      %v1152 = vsel %vm1144, %v1128, %v1148
      %v1153 = vsel %vm1145, %v1129, %v1149
      %v1154 = vsub.f32 %v1138, %v1150
      %v1155 = vsub.f32 %v1139, %v1151
      %v1156 = vsub.f32 %v1140, %v1152
      %v1157 = vsub.f32 %v1141, %v1153
      %v1158 = vpack.c.bf16 %v1155, %v1154
      %v1159 = vpack.c.bf16 %v1157, %v1156
      %v1162 = vunpack.c.l.b16 %v1158
      %v1163 = vunpack.c.h.b16 %v1158
      %v1164 = vunpack.c.l.b16 %v1159
      %v1165 = vunpack.c.h.b16 %v1159
      %v1166 = vpack.c.b16 %v1162, %v1162
      %v1167 = vpack.c.b16 %v1163, %v1163
      %v1168 = vpack.c.b16 %v1164, %v1164
      %v1169 = vpack.c.b16 %v1165, %v1165
      %1174 = vst [vmem:[%s175] sm:$0xf] %v1166
      %1175 = vst [vmem:[%s175 + $0x4] sm:$0xf] %v1167
      %1176 = vst [vmem:[%s175 + $0x8] sm:$0xf] %v1168
      %1177 = vst [vmem:[%s175 + $0xc] sm:$0xf] %v1169
      %s1178 = smul.u32 4, %s14
      %p1179 = scmp.lt.s32.totalorder %s1178, 7
      %s1180 = scalar_select %p1179, %s1178, 7
      %s1181 = smul.addr %s1180, 4
      %s1182 = scalar_lea.vmem %s3, %s1181
      // Predicated region
      $region33: #{_lambda_.9} parent=31 // pred_check
        %p1183 = pneg %p100
      $region34: #{_lambda_.9} parent=31 // pred_check_branch
        %1185 = sbr.rel (%p1183) target = $region36
      $region35: #{_lambda_.9} parent=31 // pred_region
        %s1186 = smul.u32 4, %s14
      $region36: #{_lambda_.9} parent=31 // pred_fallthru
        _
    $region32: #{_lambda_.9} parent=5 // pred_fallthru
      _
    %p1187 = scmp.le.s32.totalorder 2, %s9
    // Predicated region
    $region37: #{_lambda_.9} parent=5 // pred_check
      %p1188 = pneg %p1187
    $region38: #{_lambda_.9} parent=5 // pred_check_branch
      %1190 = sbr.rel (%p1188) target = $region40
    $region39: #{_lambda_.9} parent=5 // pred_region
      %s1191 = ssub.s32 %s9, 2
      // Predicated region
      $region41: #{_lambda_.9} parent=39 // pred_check
        %p1192 = pneg %p106
      $region42: #{_lambda_.9} parent=39 // pred_check_branch
        %1194 = sbr.rel (%p1192) target = $region44
      $region43: #{_lambda_.9} parent=39 // pred_region
        %s1195 = smul.u32 4, %s15
        %p1196 = scmp.lt.s32.totalorder %s1195, 7
        %s1197 = scalar_select %p1196, %s1195, 7
        %s1198 = smul.addr %s1197, 4
        %s1199 = scalar_lea.vmem %s3, %s1198
      $region44: #{_lambda_.9} parent=39 // pred_fallthru
        _
    $region40: #{_lambda_.9} parent=5 // pred_fallthru
      _
  $region6: #{_lambda_.9} parent=0 // loop_footer
    %s13 = sadd.s32 1, %s9
  $region7: #{_lambda_.9} parent=0 // loop_footer_branch
    %8 = sbr.rel target = $region3
  $region8: #{_lambda_.9} parent=0 // loop_exit
    _

// kernel: _lambda_.10
$region0: #{_lambda_.10}
  #allocation0 [shape = 'u32[]', space=smem, size = 0x4, offset = 0x4, fixed_abs, tag = 'smem constant byte address 0x4 - core index']
  #allocation1 [shape = 'u32[144,128]{1,0:T(1,128)}', space=vmem, size = 0x12000, scoped, tag = 'internal scratch']
  %s0 = inlined_call_operand.vmem [shape: bf16[32,256], index: 0, kind: input, shape index: {}]
  %s1 = inlined_call_operand.vmem [shape: bf16[32,256], index: 1, kind: output, shape index: {}]
  %s2 = sld [smem:[#allocation0]]
  $region37: #{_lambda_.10} parent=0
    _
  %s4 = ssub.s32 1, %s2
  %s5 = scalar_select 0, %s4, %s2
  loop: start=0, step=1, limit=4
  $region2: #{_lambda_.10} parent=0 // loop_pre_header
    _
  $region3: #{_lambda_.10} parent=0 // loop_header
    %s7 = sphi 0, %s11
    %p8 = scmp.ge.s32.totalorder %s7, 4
    %s17 = sphi 0, %s19
    %s20 = sphi 0, %s17
    %s21 = sphi 0, %s20
    %s37 = sphi 0, %s21
    %s43 = sphi 0, %s45
    %s46 = sphi 0, %s43
    %s47 = sphi 0, %s46
    %s63 = sphi 0, %s47
  $region4: #{_lambda_.10} parent=0 // loop_header_branch
    %10 = sbr.rel (%p8) target = $region8
  $region5: #{_lambda_.10} parent=0 // loop_body
    %s12 = ssub.s32 %s7, 1
    %s13 = ssub.s32 %s7, 2
    %s14 = sadd.s32 %s7, 1
    %s15 = ssub.s32 %s7, %s14
    %p16 = scmp.eq.s32.totalorder %s15, 0
    %s18 = sadd.s32 %s17, 1
    %s19 = scalar_select %p16, %s17, %s18
    %p22 = pneg %p16
    %p23 = scmp.eq.s32.totalorder %s7, 1
    %p24 = por %p22, %p23
    %p25 = scmp.ne.s32.totalorder %s17, %s20
    %p26 = scmp.eq.s32.totalorder %s7, 0
    %p27 = por %p25, %p26
    %p28 = scmp.ne.s32.totalorder %s17, %s20
    %p29 = scmp.eq.s32.totalorder %s12, 1
    %p30 = por %p28, %p29
    %p31 = scmp.ne.s32.totalorder %s20, %s21
    %p32 = scmp.eq.s32.totalorder %s12, 0
    %p33 = por %p31, %p32
    %p34 = scmp.ne.s32.totalorder %s20, %s21
    %p35 = scmp.eq.s32.totalorder %s13, 1
    %p36 = por %p34, %p35
    %p38 = scmp.ne.s32.totalorder %s21, %s37
    %p39 = scmp.eq.s32.totalorder %s13, 0
    %p40 = por %p38, %p39
    %s41 = ssub.s32 %s7, %s14
    %p42 = scmp.eq.s32.totalorder %s41, 0
    %s44 = sadd.s32 %s43, 1
    %s45 = scalar_select %p42, %s43, %s44
    %p48 = pneg %p42
    %p49 = scmp.eq.s32.totalorder %s7, 1
    %p50 = por %p48, %p49
    %p51 = scmp.ne.s32.totalorder %s43, %s46
    %p52 = scmp.eq.s32.totalorder %s7, 0
    %p53 = por %p51, %p52
    %p54 = scmp.ne.s32.totalorder %s43, %s46
    %p55 = scmp.eq.s32.totalorder %s12, 1
    %p56 = por %p54, %p55
    %p57 = scmp.ne.s32.totalorder %s46, %s47
    %p58 = scmp.eq.s32.totalorder %s12, 0
    %p59 = por %p57, %p58
    %p60 = scmp.ne.s32.totalorder %s46, %s47
    %p61 = scmp.eq.s32.totalorder %s13, 1
    %p62 = por %p60, %p61
    %p64 = scmp.ne.s32.totalorder %s47, %s63
    %p65 = scmp.eq.s32.totalorder %s13, 0
    %p66 = por %p64, %p65
    %p67 = scmp.le.s32.totalorder 1, %s7
    %p68 = scmp.lt.s32.totalorder %s7, 3
    %p69 = pnand %p67, %p68
    %p70 = pneg %p69
    // Predicated region
    $region9: #{_lambda_.10} parent=5 // pred_check
      _
    $region10: #{_lambda_.10} parent=5 // pred_check_branch
      %72 = sbr.rel (%p69) target = $region12
    $region11: #{_lambda_.10} parent=5 // pred_region
      %s73 = ssub.s32 %s7, 1
    $region12: #{_lambda_.10} parent=5 // pred_fallthru
      _
    %p74 = scmp.lt.s32.totalorder %s7, 2
    // Predicated region
    $region13: #{_lambda_.10} parent=5 // pred_check
      %p75 = pneg %p74
    $region14: #{_lambda_.10} parent=5 // pred_check_branch
      %77 = sbr.rel (%p75) target = $region16
    $region15: #{_lambda_.10} parent=5 // pred_region
      // Predicated region
      $region17: #{_lambda_.10} parent=15 // pred_check
        %p78 = pneg %p27
      $region18: #{_lambda_.10} parent=15 // pred_check_branch
        %80 = sbr.rel (%p78) target = $region20
      $region19: #{_lambda_.10} parent=15 // pred_region
        %s81 = smul.u32 2, %s7
        %p82 = scmp.lt.s32.totalorder %s81, 3
        %s83 = scalar_select %p82, %s81, 3
        %s84 = smul.addr %s83, 2
        %s85 = smul.addr %s84, 4
        %s86 = scalar_lea.vmem %s0, %s85
        %s87 = smul.u32 2, %s7
      $region20: #{_lambda_.10} parent=15 // pred_fallthru
        _
    $region16: #{_lambda_.10} parent=5 // pred_fallthru
      _
    %p88 = scmp.le.s32.totalorder 1, %s7
    %p89 = scmp.lt.s32.totalorder %s7, 3
    %p90 = pnand %p88, %p89
    %p91 = pneg %p90
    // Predicated region
    $region21: #{_lambda_.10} parent=5 // pred_check
      _
    $region22: #{_lambda_.10} parent=5 // pred_check_branch
      %93 = sbr.rel (%p90) target = $region24
    $region23: #{_lambda_.10} parent=5 // pred_region
      %s94 = ssub.s32 %s7, 1
      %s95 = smul.u32 2, %s12
      %p96 = scmp.lt.s32.totalorder %s95, 3
      %s97 = scalar_select %p96, %s95, 3
      %s98 = smul.addr %s97, 2
      %s99 = smul.addr %s98, 4
      %s100 = scalar_lea.vmem %s0, %s99
      %p101 = pneg %p33
      %p102 = pneg %p30
      %p103 = pneg %p59
      %p104 = pneg %p56
      %s105 = smul.u32 2, %s12
      %p106 = scmp.lt.s32.totalorder %s105, 3
      %s107 = scalar_select %p106, %s105, 3
      %s108 = smul.addr %s107, 2
      %s109 = smul.addr %s108, 4
      %s110 = scalar_lea.vmem %s1, %s109
      %s111 = smul.u32 2, %s12
      %p112 = scmp.lt.s32.totalorder %s111, 3
      %s113 = scalar_select %p112, %s111, 3
      %s114 = smul.addr %s113, 2
      %s115 = smul.addr %s114, 4
      %s116 = scalar_lea.vmem %s0, %s115
      %s117 = smul.u32 2, %s12
      %s118 = smul.u32 2, %s12
      %p119 = scmp.lt.s32.totalorder %s118, 3
      %s120 = scalar_select %p119, %s118, 3
      %s121 = smul.addr %s120, 2
      %s122 = smul.addr %s121, 4
      %s123 = scalar_lea.vmem %s1, %s122
      %s124 = smul.u32 2, %s12
      %v125 = vld [vmem:[%s116] sm:$0xff]
      %v126 = vld [vmem:[%s116 + $0x8] sm:$0xff]
      %v127 = vunpack.c.l.bf16 %v125
      %v128 = vunpack.c.h.bf16 %v125
      %v129 = vunpack.c.l.bf16 %v126
      %v130 = vunpack.c.h.bf16 %v126
      %v131 = vadd.f32 %v127, %v128
      %v132 = vadd.f32 %v129, %v130
      %135 = vrot.lane.b32.xlu0 %v127, 64
      %v136 = vpop.permute.xlu0 %135
      %137 = vrot.lane.b32.xlu0 %v129, 64
      %v138 = vpop.permute.xlu0 %137
      %v141 = vadd.f32 %v131, %v136
      %v142 = vadd.f32 %v132, %v138
      %145 = vrot.lane.b32.xlu0 %v128, 64
      %v146 = vpop.permute.xlu0 %145
      %147 = vrot.lane.b32.xlu0 %v130, 64
      %v148 = vpop.permute.xlu0 %147
      %v151 = vadd.f32 %v141, %v146
      %v152 = vadd.f32 %v142, %v148
      %v153 = vmul.f32 %v151, 0.5
      %v154 = vmul.f32 %v152, 0.5
      %v155 = vsub.f32 %v131, %v136
      %v156 = vsub.f32 %v132, %v138
      %v157 = vsub.f32 %v155, %v146
      %v158 = vsub.f32 %v156, %v148
      %v159 = vmul.f32 %v157, 0.5
      %v160 = vmul.f32 %v158, 0.5
      %v161 = vadd.f32 %v128, %v146
      %v162 = vadd.f32 %v130, %v148
      %v163 = vsub.f32 %v161, %v127
      %v164 = vsub.f32 %v162, %v129
      %v165 = vsub.f32 %v163, %v136
      %v166 = vsub.f32 %v164, %v138
      %v167 = vmul.f32 %v165, 0.5
      %v168 = vmul.f32 %v166, 0.5
      %v169 = vadd.f32 %v127, %v146
      %v170 = vadd.f32 %v129, %v148
      %v171 = vsub.f32 %v169, %v128
      %v172 = vsub.f32 %v170, %v130
      %v173 = vsub.f32 %v171, %v136
      %v174 = vsub.f32 %v172, %v138
      %v175 = vmul.f32 %v173, 0.5
      %v176 = vmul.f32 %v174, 0.5
      %179 = vrot.lane.b32.xlu0 %v175, 64
      %v180 = vpop.permute.xlu0 %179
      %181 = vrot.lane.b32.xlu0 %v176, 64
      %v182 = vpop.permute.xlu0 %181
      %vm185 = vcmask 523264
      %v186 = vsel %vm185, %v153, %v159
      %v187 = vsel %vm185, %v154, %v160
      %v188 = vsel %vm185, %v167, %v180
      %v189 = vsel %vm185, %v168, %v182
      %v190 = vpack.c.bf16 %v187, %v186
      %v191 = vpack.c.bf16 %v189, %v188
      %v194 = vunpack.c.l.b16 %v190
      %v195 = vunpack.c.l.b16 %v191
      %v196 = vunpack.c.h.b16 %v190
      %v197 = vunpack.c.h.b16 %v191
      %v198 = vpack.c.b16 %v195, %v194
      %v199 = vpack.c.b16 %v197, %v196
      %202 = vst [vmem:[%s123] sm:$0xff] %v198
      %203 = vst [vmem:[%s123 + $0x8] sm:$0xff] %v199
      %s204 = smul.u32 2, %s12
      %p205 = scmp.lt.s32.totalorder %s204, 3
      %s206 = scalar_select %p205, %s204, 3
      %s207 = smul.addr %s206, 2
      %s208 = smul.addr %s207, 4
      %s209 = scalar_lea.vmem %s1, %s208
      // Predicated region
      $region25: #{_lambda_.10} parent=23 // pred_check
        %p210 = pneg %p56
      $region26: #{_lambda_.10} parent=23 // pred_check_branch
        %212 = sbr.rel (%p210) target = $region28
      $region27: #{_lambda_.10} parent=23 // pred_region
        %s213 = smul.u32 2, %s12
      $region28: #{_lambda_.10} parent=23 // pred_fallthru
        _
    $region24: #{_lambda_.10} parent=5 // pred_fallthru
      _
    %p214 = scmp.le.s32.totalorder 2, %s7
    // Predicated region
    $region29: #{_lambda_.10} parent=5 // pred_check
      %p215 = pneg %p214
    $region30: #{_lambda_.10} parent=5 // pred_check_branch
      %217 = sbr.rel (%p215) target = $region32
    $region31: #{_lambda_.10} parent=5 // pred_region
      %s218 = ssub.s32 %s7, 2
      // Predicated region
      $region33: #{_lambda_.10} parent=31 // pred_check
        %p219 = pneg %p62
      $region34: #{_lambda_.10} parent=31 // pred_check_branch
        %221 = sbr.rel (%p219) target = $region36
      $region35: #{_lambda_.10} parent=31 // pred_region
        %s222 = smul.u32 2, %s13
        %p223 = scmp.lt.s32.totalorder %s222, 3
        %s224 = scalar_select %p223, %s222, 3
        %s225 = smul.addr %s224, 2
        %s226 = smul.addr %s225, 4
        %s227 = scalar_lea.vmem %s1, %s226
      $region36: #{_lambda_.10} parent=31 // pred_fallthru
        _
    $region32: #{_lambda_.10} parent=5 // pred_fallthru
      _
  $region6: #{_lambda_.10} parent=0 // loop_footer
    %s11 = sadd.s32 1, %s7
  $region7: #{_lambda_.10} parent=0 // loop_footer_branch
    %6 = sbr.rel target = $region3
  $region8: #{_lambda_.10} parent=0 // loop_exit
    _

// kernel: _lambda_.11
$region0: #{_lambda_.11}
  #allocation0 [shape = 'u32[]', space=smem, size = 0x4, offset = 0x4, fixed_abs, tag = 'smem constant byte address 0x4 - core index']
  #allocation1 [shape = 'u32[144,128]{1,0:T(1,128)}', space=vmem, size = 0x12000, scoped, tag = 'internal scratch']
  %s0 = inlined_call_operand.vmem [shape: bf16[32,576], index: 0, kind: input, shape index: {}]
  %s1 = inlined_call_operand.vmem [shape: bf16[576,128], index: 1, kind: input, shape index: {}]
  %s2 = inlined_call_operand.vmem [shape: f32[1,128], index: 2, kind: input, shape index: {}]
  %s3 = inlined_call_operand.vmem [shape: bf16[32,128], index: 3, kind: output, shape index: {}]
  %s4 = sld [smem:[#allocation0]]
  $region45: #{_lambda_.11} parent=0
    _
  %s6 = ssub.s32 1, %s4
  %s7 = scalar_select 0, %s6, %s4
  loop: start=0, step=1, limit=4
  $region2: #{_lambda_.11} parent=0 // loop_pre_header
    _
  $region3: #{_lambda_.11} parent=0 // loop_header
    %s9 = sphi 0, %s13
    %p10 = scmp.ge.s32.totalorder %s9, 4
    %s19 = sphi 0, %s21
    %s22 = sphi 0, %s19
    %s23 = sphi 0, %s22
    %s39 = sphi 0, %s23
    %s43 = sphi 0, %s43
    %s45 = sphi 0, %s43
    %s46 = sphi 0, %s45
    %s60 = sphi 0, %s46
    %s64 = sphi 0, %s64
    %s66 = sphi 0, %s64
    %s67 = sphi 0, %s66
    %s81 = sphi 0, %s67
    %s87 = sphi 0, %s89
    %s90 = sphi 0, %s87
    %s91 = sphi 0, %s90
    %s107 = sphi 0, %s91
  $region4: #{_lambda_.11} parent=0 // loop_header_branch
    %12 = sbr.rel (%p10) target = $region8
  $region5: #{_lambda_.11} parent=0 // loop_body
    %s14 = ssub.s32 %s9, 1
    %s15 = ssub.s32 %s9, 2
    %s16 = sadd.s32 %s9, 1
    %s17 = ssub.s32 %s9, %s16
    %p18 = scmp.eq.s32.totalorder %s17, 0
    %s20 = sadd.s32 %s19, 1
    %s21 = scalar_select %p18, %s19, %s20
    %p24 = pneg %p18
    %p25 = scmp.eq.s32.totalorder %s9, 1
    %p26 = por %p24, %p25
    %p27 = scmp.ne.s32.totalorder %s19, %s22
    %p28 = scmp.eq.s32.totalorder %s9, 0
    %p29 = por %p27, %p28
    %p30 = scmp.ne.s32.totalorder %s19, %s22
    %p31 = scmp.eq.s32.totalorder %s14, 1
    %p32 = por %p30, %p31
    %p33 = scmp.ne.s32.totalorder %s22, %s23
    %p34 = scmp.eq.s32.totalorder %s14, 0
    %p35 = por %p33, %p34
    %p36 = scmp.ne.s32.totalorder %s22, %s23
    %p37 = scmp.eq.s32.totalorder %s15, 1
    %p38 = por %p36, %p37
    %p40 = scmp.ne.s32.totalorder %s23, %s39
    %p41 = scmp.eq.s32.totalorder %s15, 0
    %p42 = por %p40, %p41
    %s44 = sadd.s32 %s43, 1
    %p47 = scmp.eq.s32.totalorder %s9, 1
    %p48 = scmp.ne.s32.totalorder %s43, %s45
    %p49 = scmp.eq.s32.totalorder %s9, 0
    %p50 = por %p48, %p49
    %p51 = scmp.ne.s32.totalorder %s43, %s45
    %p52 = scmp.eq.s32.totalorder %s14, 1
    %p53 = por %p51, %p52
    %p54 = scmp.ne.s32.totalorder %s45, %s46
    %p55 = scmp.eq.s32.totalorder %s14, 0
    %p56 = por %p54, %p55
    %p57 = scmp.ne.s32.totalorder %s45, %s46
    %p58 = scmp.eq.s32.totalorder %s15, 1
    %p59 = por %p57, %p58
    %p61 = scmp.ne.s32.totalorder %s46, %s60
    %p62 = scmp.eq.s32.totalorder %s15, 0
    %p63 = por %p61, %p62
    %s65 = sadd.s32 %s64, 1
    %p68 = scmp.eq.s32.totalorder %s9, 1
    %p69 = scmp.ne.s32.totalorder %s64, %s66
    %p70 = scmp.eq.s32.totalorder %s9, 0
    %p71 = por %p69, %p70
    %p72 = scmp.ne.s32.totalorder %s64, %s66
    %p73 = scmp.eq.s32.totalorder %s14, 1
    %p74 = por %p72, %p73
    %p75 = scmp.ne.s32.totalorder %s66, %s67
    %p76 = scmp.eq.s32.totalorder %s14, 0
    %p77 = por %p75, %p76
    %p78 = scmp.ne.s32.totalorder %s66, %s67
    %p79 = scmp.eq.s32.totalorder %s15, 1
    %p80 = por %p78, %p79
    %p82 = scmp.ne.s32.totalorder %s67, %s81
    %p83 = scmp.eq.s32.totalorder %s15, 0
    %p84 = por %p82, %p83
    %s85 = ssub.s32 %s9, %s16
    %p86 = scmp.eq.s32.totalorder %s85, 0
    %s88 = sadd.s32 %s87, 1
    %s89 = scalar_select %p86, %s87, %s88
    %p92 = pneg %p86
    %p93 = scmp.eq.s32.totalorder %s9, 1
    %p94 = por %p92, %p93
    %p95 = scmp.ne.s32.totalorder %s87, %s90
    %p96 = scmp.eq.s32.totalorder %s9, 0
    %p97 = por %p95, %p96
    %p98 = scmp.ne.s32.totalorder %s87, %s90
    %p99 = scmp.eq.s32.totalorder %s14, 1
    %p100 = por %p98, %p99
    %p101 = scmp.ne.s32.totalorder %s90, %s91
    %p102 = scmp.eq.s32.totalorder %s14, 0
    %p103 = por %p101, %p102
    %p104 = scmp.ne.s32.totalorder %s90, %s91
    %p105 = scmp.eq.s32.totalorder %s15, 1
    %p106 = por %p104, %p105
    %p108 = scmp.ne.s32.totalorder %s91, %s107
    %p109 = scmp.eq.s32.totalorder %s15, 0
    %p110 = por %p108, %p109
    %p111 = scmp.le.s32.totalorder 1, %s9
    %p112 = scmp.lt.s32.totalorder %s9, 3
    %p113 = pnand %p111, %p112
    %p114 = pneg %p113
    // Predicated region
    $region9: #{_lambda_.11} parent=5 // pred_check
      _
    $region10: #{_lambda_.11} parent=5 // pred_check_branch
      %116 = sbr.rel (%p113) target = $region12
    $region11: #{_lambda_.11} parent=5 // pred_region
      %s117 = ssub.s32 %s9, 1
      // Predicated region
      $region13: #{_lambda_.11} parent=11 // pred_check
        %p118 = pneg %p56
      $region14: #{_lambda_.11} parent=11 // pred_check_branch
        %120 = sbr.rel (%p118) target = $region16
      $region15: #{_lambda_.11} parent=11 // pred_region
        _
      $region16: #{_lambda_.11} parent=11 // pred_fallthru
        _
      // Predicated region
      $region17: #{_lambda_.11} parent=11 // pred_check
        %p121 = pneg %p77
      $region18: #{_lambda_.11} parent=11 // pred_check_branch
        %123 = sbr.rel (%p121) target = $region20
      $region19: #{_lambda_.11} parent=11 // pred_region
        _
      $region20: #{_lambda_.11} parent=11 // pred_fallthru
        _
    $region12: #{_lambda_.11} parent=5 // pred_fallthru
      _
    %p124 = scmp.lt.s32.totalorder %s9, 2
    // Predicated region
    $region21: #{_lambda_.11} parent=5 // pred_check
      %p125 = pneg %p124
    $region22: #{_lambda_.11} parent=5 // pred_check_branch
      %127 = sbr.rel (%p125) target = $region24
    $region23: #{_lambda_.11} parent=5 // pred_region
      // Predicated region
      $region25: #{_lambda_.11} parent=23 // pred_check
        %p128 = pneg %p29
      $region26: #{_lambda_.11} parent=23 // pred_check_branch
        %130 = sbr.rel (%p128) target = $region28
      $region27: #{_lambda_.11} parent=23 // pred_region
        %s131 = smul.u32 2, %s9
        %p132 = scmp.lt.s32.totalorder %s131, 3
        %s133 = scalar_select %p132, %s131, 3
        %s134 = smul.addr %s133, 5
        %s135 = smul.addr %s134, 4
        %s136 = scalar_lea.vmem %s0, %s135
        %s137 = smul.u32 2, %s9
      $region28: #{_lambda_.11} parent=23 // pred_fallthru
        _
    $region24: #{_lambda_.11} parent=5 // pred_fallthru
      _
    %p138 = scmp.le.s32.totalorder 1, %s9
    %p139 = scmp.lt.s32.totalorder %s9, 3
    %p140 = pnand %p138, %p139
    %p141 = pneg %p140
    // Predicated region
    $region29: #{_lambda_.11} parent=5 // pred_check
      _
    $region30: #{_lambda_.11} parent=5 // pred_check_branch
      %143 = sbr.rel (%p140) target = $region32
    $region31: #{_lambda_.11} parent=5 // pred_region
      %s144 = ssub.s32 %s9, 1
      %s145 = smul.u32 2, %s14
      %p146 = scmp.lt.s32.totalorder %s145, 3
      %s147 = scalar_select %p146, %s145, 3
      %s148 = smul.addr %s147, 5
      %s149 = smul.addr %s148, 4
      %s150 = scalar_lea.vmem %s0, %s149
      %p151 = pneg %p35
      %p152 = pneg %p32
      %p153 = pneg %p56
      %p154 = pneg %p53
      %p155 = pneg %p77
      %p156 = pneg %p74
      %p157 = pneg %p103
      %p158 = pneg %p100
      %s159 = smul.u32 2, %s14
      %p160 = scmp.lt.s32.totalorder %s159, 3
      %s161 = scalar_select %p160, %s159, 3
      %s162 = smul.addr %s161, 4
      %s163 = scalar_lea.vmem %s3, %s162
      %s164 = smul.u32 2, %s14
      %p165 = scmp.lt.s32.totalorder %s164, 3
      %s166 = scalar_select %p165, %s164, 3
      %s167 = smul.addr %s166, 5
      %s168 = smul.addr %s167, 4
      %s169 = scalar_lea.vmem %s0, %s168
      %s170 = smul.u32 2, %s14
      %s171 = smul.u32 2, %s14
      %p172 = scmp.lt.s32.totalorder %s171, 3
      %s173 = scalar_select %p172, %s171, 3
      %s174 = smul.addr %s173, 4
      %s175 = scalar_lea.vmem %s3, %s174
      %s176 = smul.u32 2, %s14
      %v178 = vld [vmem:[%s169] sm:$0xff]
      %v179 = vld [vmem:[%s169 + $0x8] sm:$0xff]
      %v180 = vld [vmem:[%s169 + $0x10] sm:$0xf]
      %v181 = vld [vmem:[%s169 + $0x14] sm:$0xff]
      %v182 = vld [vmem:[%s169 + $0x1c] sm:$0xff]
      %v183 = vld [vmem:[%s169 + $0x24] sm:$0xf]
      %v184 = vld [vmem:[%s1] sm:$0xf]
      %v185 = vld [vmem:[%s1 + $0x4] sm:$0xf]
      %v186 = vld [vmem:[%s1 + $0x8] sm:$0xf]
      %v187 = vld [vmem:[%s1 + $0xc] sm:$0xf]
      %v188 = vld [vmem:[%s1 + $0x10] sm:$0xf]
      %v189 = vld [vmem:[%s1 + $0x14] sm:$0xf]
      %v190 = vld [vmem:[%s1 + $0x18] sm:$0xf]
      %v191 = vld [vmem:[%s1 + $0x1c] sm:$0xf]
      %v192 = vld [vmem:[%s1 + $0x20] sm:$0xf]
      %v193 = vld [vmem:[%s1 + $0x24] sm:$0xf]
      %v194 = vld [vmem:[%s1 + $0x28] sm:$0xf]
      %v195 = vld [vmem:[%s1 + $0x2c] sm:$0xf]
      %v196 = vld [vmem:[%s1 + $0x30] sm:$0xf]
      %v197 = vld [vmem:[%s1 + $0x34] sm:$0xf]
      %v198 = vld [vmem:[%s1 + $0x38] sm:$0xf]
      %v199 = vld [vmem:[%s1 + $0x3c] sm:$0xf]
      %v200 = vld [vmem:[%s1 + $0x40] sm:$0xf]
      %v201 = vld [vmem:[%s1 + $0x44] sm:$0xf]
      %v202 = vld [vmem:[%s1 + $0x48] sm:$0xf]
      %v203 = vld [vmem:[%s1 + $0x4c] sm:$0xf]
      %v204 = vld [vmem:[%s1 + $0x50] sm:$0xf]
      %v205 = vld [vmem:[%s1 + $0x54] sm:$0xf]
      %v206 = vld [vmem:[%s1 + $0x58] sm:$0xf]
      %v207 = vld [vmem:[%s1 + $0x5c] sm:$0xf]
      %v208 = vld [vmem:[%s1 + $0x60] sm:$0xf]
      %v209 = vld [vmem:[%s1 + $0x64] sm:$0xf]
      %v210 = vld [vmem:[%s1 + $0x68] sm:$0xf]
      %v211 = vld [vmem:[%s1 + $0x6c] sm:$0xf]
      %v212 = vld [vmem:[%s1 + $0x70] sm:$0xf]
      %v213 = vld [vmem:[%s1 + $0x74] sm:$0xf]
      %v214 = vld [vmem:[%s1 + $0x78] sm:$0xf]
      %v215 = vld [vmem:[%s1 + $0x7c] sm:$0xf]
      %v216 = vld [vmem:[%s1 + $0x80] sm:$0xf]
      %v217 = vld [vmem:[%s1 + $0x84] sm:$0xf]
      %v218 = vld [vmem:[%s1 + $0x88] sm:$0xf]
      %v219 = vld [vmem:[%s1 + $0x8c] sm:$0xf]
      %v220 = vld [vmem:[%s1 + $0x90] sm:$0xf]
      %v221 = vld [vmem:[%s1 + $0x94] sm:$0xf]
      %v222 = vld [vmem:[%s1 + $0x98] sm:$0xf]
      %v223 = vld [vmem:[%s1 + $0x9c] sm:$0xf]
      %v224 = vld [vmem:[%s1 + $0xa0] sm:$0xf]
      %v225 = vld [vmem:[%s1 + $0xa4] sm:$0xf]
      %v226 = vld [vmem:[%s1 + $0xa8] sm:$0xf]
      %v227 = vld [vmem:[%s1 + $0xac] sm:$0xf]
      %v228 = vld [vmem:[%s1 + $0xb0] sm:$0xf]
      %v229 = vld [vmem:[%s1 + $0xb4] sm:$0xf]
      %v230 = vld [vmem:[%s1 + $0xb8] sm:$0xf]
      %v231 = vld [vmem:[%s1 + $0xbc] sm:$0xf]
      %v232 = vld [vmem:[%s1 + $0xc0] sm:$0xf]
      %v233 = vld [vmem:[%s1 + $0xc4] sm:$0xf]
      %v234 = vld [vmem:[%s1 + $0xc8] sm:$0xf]
      %v235 = vld [vmem:[%s1 + $0xcc] sm:$0xf]
      %v236 = vld [vmem:[%s1 + $0xd0] sm:$0xf]
      %v237 = vld [vmem:[%s1 + $0xd4] sm:$0xf]
      %v238 = vld [vmem:[%s1 + $0xd8] sm:$0xf]
      %v239 = vld [vmem:[%s1 + $0xdc] sm:$0xf]
      %v240 = vld [vmem:[%s1 + $0xe0] sm:$0xf]
      %v241 = vld [vmem:[%s1 + $0xe4] sm:$0xf]
      %v242 = vld [vmem:[%s1 + $0xe8] sm:$0xf]
      %v243 = vld [vmem:[%s1 + $0xec] sm:$0xf]
      %v244 = vld [vmem:[%s1 + $0xf0] sm:$0xf]
      %v245 = vld [vmem:[%s1 + $0xf4] sm:$0xf]
      %v246 = vld [vmem:[%s1 + $0xf8] sm:$0xf]
      %v247 = vld [vmem:[%s1 + $0xfc] sm:$0xf]
      %v248 = vld [vmem:[%s1 + $0x100] sm:$0xf]
      %v249 = vld [vmem:[%s1 + $0x104] sm:$0xf]
      %v250 = vld [vmem:[%s1 + $0x108] sm:$0xf]
      %v251 = vld [vmem:[%s1 + $0x10c] sm:$0xf]
      %v252 = vld [vmem:[%s1 + $0x110] sm:$0xf]
      %v253 = vld [vmem:[%s1 + $0x114] sm:$0xf]
      %v254 = vld [vmem:[%s1 + $0x118] sm:$0xf]
      %v255 = vld [vmem:[%s1 + $0x11c] sm:$0xf]
      %v262 = vunpack.c.l.b16 %v178
      %v263 = vunpack.c.h.b16 %v178
      %v264 = vunpack.c.l.b16 %v179
      %v265 = vunpack.c.h.b16 %v179
      %v266 = vunpack.c.l.b16 %v180
      %v267 = vunpack.c.l.b16 %v181
      %v268 = vunpack.c.h.b16 %v181
      %v269 = vunpack.c.l.b16 %v182
      %v270 = vunpack.c.h.b16 %v182
      %v271 = vunpack.c.l.b16 %v183
      %v272 = vpack.c.b16 %v267, %v262
      %v273 = vpack.c.b16 %v268, %v263
      %v274 = vpack.c.b16 %v269, %v264
      %v275 = vpack.c.b16 %v270, %v265
      %v276 = vpack.c.b16 %v271, %v266
      %v353 = vunpack.c.l.b16 %v184
      %v354 = vunpack.c.l.b16 %v185
      %v355 = vunpack.c.l.b16 %v186
      %v356 = vunpack.c.l.b16 %v187
      %v357 = vunpack.c.l.b16 %v188
      %v358 = vunpack.c.l.b16 %v189
      %v359 = vunpack.c.l.b16 %v190
      %v360 = vunpack.c.l.b16 %v191
      %v361 = vunpack.c.l.b16 %v192
      %v362 = vunpack.c.l.b16 %v193
      %v363 = vunpack.c.l.b16 %v194
      %v364 = vunpack.c.l.b16 %v195
      %v365 = vunpack.c.l.b16 %v196
      %v366 = vunpack.c.l.b16 %v197
      %v367 = vunpack.c.l.b16 %v198
      %v368 = vunpack.c.l.b16 %v199
      %v369 = vunpack.c.l.b16 %v200
      %v370 = vunpack.c.l.b16 %v201
      %v371 = vunpack.c.l.b16 %v202
      %v372 = vunpack.c.l.b16 %v203
      %v373 = vunpack.c.l.b16 %v204
      %v374 = vunpack.c.l.b16 %v205
      %v375 = vunpack.c.l.b16 %v206
      %v376 = vunpack.c.l.b16 %v207
      %v377 = vunpack.c.l.b16 %v208
      %v378 = vunpack.c.l.b16 %v209
      %v379 = vunpack.c.l.b16 %v210
      %v380 = vunpack.c.l.b16 %v211
      %v381 = vunpack.c.l.b16 %v212
      %v382 = vunpack.c.l.b16 %v213
      %v383 = vunpack.c.l.b16 %v214
      %v384 = vunpack.c.l.b16 %v215
      %v385 = vunpack.c.l.b16 %v216
      %v386 = vunpack.c.l.b16 %v217
      %v387 = vunpack.c.l.b16 %v218
      %v388 = vunpack.c.l.b16 %v219
      %v389 = vunpack.c.l.b16 %v220
      %v390 = vunpack.c.l.b16 %v221
      %v391 = vunpack.c.l.b16 %v222
      %v392 = vunpack.c.l.b16 %v223
      %v393 = vunpack.c.l.b16 %v224
      %v394 = vunpack.c.l.b16 %v225
      %v395 = vunpack.c.l.b16 %v226
      %v396 = vunpack.c.l.b16 %v227
      %v397 = vunpack.c.l.b16 %v228
      %v398 = vunpack.c.l.b16 %v229
      %v399 = vunpack.c.l.b16 %v230
      %v400 = vunpack.c.l.b16 %v231
      %v401 = vunpack.c.l.b16 %v232
      %v402 = vunpack.c.l.b16 %v233
      %v403 = vunpack.c.l.b16 %v234
      %v404 = vunpack.c.l.b16 %v235
      %v405 = vunpack.c.l.b16 %v236
      %v406 = vunpack.c.l.b16 %v237
      %v407 = vunpack.c.l.b16 %v238
      %v408 = vunpack.c.l.b16 %v239
      %v409 = vunpack.c.l.b16 %v240
      %v410 = vunpack.c.l.b16 %v241
      %v411 = vunpack.c.l.b16 %v242
      %v412 = vunpack.c.l.b16 %v243
      %v413 = vunpack.c.l.b16 %v244
      %v414 = vunpack.c.l.b16 %v245
      %v415 = vunpack.c.l.b16 %v246
      %v416 = vunpack.c.l.b16 %v247
      %v417 = vunpack.c.l.b16 %v248
      %v418 = vunpack.c.l.b16 %v249
      %v419 = vunpack.c.l.b16 %v250
      %v420 = vunpack.c.l.b16 %v251
      %v421 = vunpack.c.l.b16 %v252
      %v422 = vunpack.c.l.b16 %v253
      %v423 = vunpack.c.l.b16 %v254
      %v424 = vunpack.c.l.b16 %v255
      %v425 = vpack.c.b16 %v354, %v353
      %v426 = vpack.c.b16 %v356, %v355
      %v427 = vpack.c.b16 %v358, %v357
      %v428 = vpack.c.b16 %v360, %v359
      %v429 = vpack.c.b16 %v362, %v361
      %v430 = vpack.c.b16 %v364, %v363
      %v431 = vpack.c.b16 %v366, %v365
      %v432 = vpack.c.b16 %v368, %v367
      %v433 = vpack.c.b16 %v370, %v369
      %v434 = vpack.c.b16 %v372, %v371
      %v435 = vpack.c.b16 %v374, %v373
      %v436 = vpack.c.b16 %v376, %v375
      %v437 = vpack.c.b16 %v378, %v377
      %v438 = vpack.c.b16 %v380, %v379
      %v439 = vpack.c.b16 %v382, %v381
      %v440 = vpack.c.b16 %v384, %v383
      %v441 = vpack.c.b16 %v386, %v385
      %v442 = vpack.c.b16 %v388, %v387
      %v443 = vpack.c.b16 %v390, %v389
      %v444 = vpack.c.b16 %v392, %v391
      %v445 = vpack.c.b16 %v394, %v393
      %v446 = vpack.c.b16 %v396, %v395
      %v447 = vpack.c.b16 %v398, %v397
      %v448 = vpack.c.b16 %v400, %v399
      %v449 = vpack.c.b16 %v402, %v401
      %v450 = vpack.c.b16 %v404, %v403
      %v451 = vpack.c.b16 %v406, %v405
      %v452 = vpack.c.b16 %v408, %v407
      %v453 = vpack.c.b16 %v410, %v409
      %v454 = vpack.c.b16 %v412, %v411
      %v455 = vpack.c.b16 %v414, %v413
      %v456 = vpack.c.b16 %v416, %v415
      %v457 = vpack.c.b16 %v418, %v417
      %v458 = vpack.c.b16 %v420, %v419
      %v459 = vpack.c.b16 %v422, %v421
      %v460 = vpack.c.b16 %v424, %v423
      %vm497 = vcmask 523264
      %v499 = vsel %vm497, %v276, 0
      %501 = vmatprep.subr.bf16.mxu0 0
      %502 = vmatpush1.bf16.msra.mxu0 %v425
      %503 = vmatprep.subr.bf16.mxu0 0
      %504 = vmatpush1.bf16.msra.mxu0 %v426
      %505 = vmatprep.subr.bf16.mxu0 0
      %506 = vmatpush1.bf16.msra.mxu0 %v427
      %507 = vmatprep.subr.bf16.mxu0 0
      %508 = vmatpush1.bf16.msra.mxu0 %v428
      %509 = vmatprep.subr.bf16.mxu0 0
      %510 = vmatpush1.bf16.msra.mxu0 %v429
      %511 = vmatprep.subr.bf16.mxu0 0
      %512 = vmatpush1.bf16.msra.mxu0 %v430
      %513 = vmatprep.subr.bf16.mxu0 0
      %514 = vmatpush1.bf16.msra.mxu0 %v431
      %515 = vmatprep.subr.bf16.mxu0 0
      %516 = vmatpush1.bf16.msra.mxu0 %v432
      %517 = vmatprep.subr.bf16.mxu0 0
      %518 = vmatpush1.bf16.msra.mxu0 %v433
      %519 = vmatprep.subr.bf16.mxu0 0
      %520 = vmatpush1.bf16.msra.mxu0 %v434
      %521 = vmatprep.subr.bf16.mxu0 0
      %522 = vmatpush1.bf16.msra.mxu0 %v435
      %523 = vmatprep.subr.bf16.mxu0 0
      %524 = vmatpush1.bf16.msra.mxu0 %v436
      %525 = vmatprep.subr.bf16.mxu0 0
      %526 = vmatpush1.bf16.msra.mxu0 %v437
      %527 = vmatprep.subr.bf16.mxu0 0
      %528 = vmatpush1.bf16.msra.mxu0 %v438
      %529 = vmatprep.subr.bf16.mxu0 0
      %530 = vmatpush1.bf16.msra.mxu0 %v439
      %531 = vmatprep.subr.bf16.mxu0 0
      %532 = vmatpush1.bf16.msra.mxu0 %v440
      %533 = vmatprep.mubr.bf16.mxu0 %v273
      %534 = vmatmul.mubr.bf16.gmra.mrb[0].mxu0 %v272
      %v535 = vpop.f32.mrb[0].mxu0
      %v536 = vadd.f32 0.0, %v535
      %v537 = vpop.f32.mrb[0].mxu0
      %v538 = vpop.f32.mrb[0].mxu0
      %v539 = vadd.f32 0.0, %v538
      %v540 = vpop.f32.mrb[0].mxu0
      %541 = vdwg.mxu0
      %542 = vmatprep.subr.bf16.mxu0 0
      %543 = vmatpush1.bf16.msra.mxu0 %v441
      %544 = vmatprep.subr.bf16.mxu0 0
      %545 = vmatpush1.bf16.msra.mxu0 %v442
      %546 = vmatprep.subr.bf16.mxu0 0
      %547 = vmatpush1.bf16.msra.mxu0 %v443
      %548 = vmatprep.subr.bf16.mxu0 0
      %549 = vmatpush1.bf16.msra.mxu0 %v444
      %550 = vmatprep.subr.bf16.mxu0 0
      %551 = vmatpush1.bf16.msra.mxu0 %v445
      %552 = vmatprep.subr.bf16.mxu0 0
      %553 = vmatpush1.bf16.msra.mxu0 %v446
      %554 = vmatprep.subr.bf16.mxu0 0
      %555 = vmatpush1.bf16.msra.mxu0 %v447
      %556 = vmatprep.subr.bf16.mxu0 0
      %557 = vmatpush1.bf16.msra.mxu0 %v448
      %558 = vmatprep.subr.bf16.mxu0 0
      %559 = vmatpush1.bf16.msra.mxu0 %v449
      %560 = vmatprep.subr.bf16.mxu0 0
      %561 = vmatpush1.bf16.msra.mxu0 %v450
      %562 = vmatprep.subr.bf16.mxu0 0
      %563 = vmatpush1.bf16.msra.mxu0 %v451
      %564 = vmatprep.subr.bf16.mxu0 0
      %565 = vmatpush1.bf16.msra.mxu0 %v452
      %566 = vmatprep.subr.bf16.mxu0 0
      %567 = vmatpush1.bf16.msra.mxu0 %v453
      %568 = vmatprep.subr.bf16.mxu0 0
      %569 = vmatpush1.bf16.msra.mxu0 %v454
      %570 = vmatprep.subr.bf16.mxu0 0
      %571 = vmatpush1.bf16.msra.mxu0 %v455
      %572 = vmatprep.subr.bf16.mxu0 0
      %573 = vmatpush1.bf16.msra.mxu0 %v456
      %574 = vmatprep.mubr.bf16.mxu0 %v275
      %575 = vmatmul.mubr.bf16.gmra.mrb[0].mxu0 %v274
      %v576 = vpop.f32.mrb[0].mxu0
      %v577 = vadd.f32 %v536, %v576
      %v578 = vpop.f32.mrb[0].mxu0
      %v579 = vpop.f32.mrb[0].mxu0
      %v580 = vadd.f32 %v539, %v579
      %v581 = vpop.f32.mrb[0].mxu0
      %582 = vdwg.mxu0
      %583 = vmatprep.subr.bf16.mxu0 0
      %584 = vmatpush1.bf16.msra.mxu0 %v457
      %585 = vmatprep.subr.bf16.mxu0 0
      %586 = vmatpush1.bf16.msra.mxu0 %v458
      %587 = vmatprep.subr.bf16.mxu0 0
      %588 = vmatpush1.bf16.msra.mxu0 %v459
      %589 = vmatprep.subr.bf16.mxu0 0
      %590 = vmatpush1.bf16.msra.mxu0 %v460
      %591 = vmatprep.subr.bf16.mxu0 0
      %592 = vmatpush1.bf16.msra.mxu0 0
      %593 = vmatprep.subr.bf16.mxu0 0
      %594 = vmatpush1.bf16.msra.mxu0 0
      %595 = vmatprep.subr.bf16.mxu0 0
      %596 = vmatpush1.bf16.msra.mxu0 0
      %597 = vmatprep.subr.bf16.mxu0 0
      %598 = vmatpush1.bf16.msra.mxu0 0
      %599 = vmatprep.subr.bf16.mxu0 0
      %600 = vmatpush1.bf16.msra.mxu0 0
      %601 = vmatprep.subr.bf16.mxu0 0
      %602 = vmatpush1.bf16.msra.mxu0 0
      %603 = vmatprep.subr.bf16.mxu0 0
      %604 = vmatpush1.bf16.msra.mxu0 0
      %605 = vmatprep.subr.bf16.mxu0 0
      %606 = vmatpush1.bf16.msra.mxu0 0
      %607 = vmatprep.subr.bf16.mxu0 0
      %608 = vmatpush1.bf16.msra.mxu0 0
      %609 = vmatprep.subr.bf16.mxu0 0
      %610 = vmatpush1.bf16.msra.mxu0 0
      %611 = vmatprep.subr.bf16.mxu0 0
      %612 = vmatpush1.bf16.msra.mxu0 0
      %613 = vmatprep.subr.bf16.mxu0 0
      %614 = vmatpush1.bf16.msra.mxu0 0
      %615 = vmatprep.mubr.bf16.mxu0 0
      %616 = vmatmul.mubr.bf16.gmra.mrb[0].mxu0 %v499
      %v617 = vpop.f32.mrb[0].mxu0
      %v618 = vadd.f32 %v577, %v617
      %v619 = vpop.f32.mrb[0].mxu0
      %v620 = vpop.f32.mrb[0].mxu0
      %v621 = vadd.f32 %v580, %v620
      %v622 = vpop.f32.mrb[0].mxu0
      %623 = vdwg.mxu0
      %v624 = vld [vmem:[%s2] sm:$0x1]
      %v626 = vlaneseq
      %v627 = vshrl.u32 %v626, 7
      %v628 = vsub.s32 0, %v627
      %v629 = vrot.slane %v624, %v628
      %v631 = vsub.f32 %v618, %v629
      %v632 = vsub.f32 %v621, %v629
      %v633 = vsub.f32 0.0, %v618
      %v634 = vsub.f32 0.0, %v621
      %v635 = vsub.f32 %v633, %v629
      %v636 = vsub.f32 %v634, %v629
      %vm637 = vcmp.ge.f32.partialorder %v631, 0.0
      %vm638 = vcmp.ge.f32.partialorder %v632, 0.0
      %v639 = vmul.f32 %v631, 0.001
      %v640 = vmul.f32 %v632, 0.001
      %v641 = vsel %vm637, %v631, %v639
      %v642 = vsel %vm638, %v632, %v640
      %vm643 = vcmp.ge.f32.partialorder %v635, 0.0
      %vm644 = vcmp.ge.f32.partialorder %v636, 0.0
      %v645 = vmul.f32 %v635, 0.01
      %v646 = vmul.f32 %v636, 0.01
      %v647 = vsel %vm643, %v635, %v645
      %v648 = vsel %vm644, %v636, %v646
      %v649 = vsub.f32 %v641, %v647
      %v650 = vsub.f32 %v642, %v648
      %v651 = vpack.c.bf16 %v650, %v649
      %v653 = vunpack.c.l.b16 %v651
      %v654 = vunpack.c.h.b16 %v651
      %v655 = vpack.c.b16 %v653, %v653
      %v656 = vpack.c.b16 %v654, %v654
      %659 = vst [vmem:[%s175] sm:$0xf] %v655
      %660 = vst [vmem:[%s175 + $0x4] sm:$0xf] %v656
      %s661 = smul.u32 2, %s14
      %p662 = scmp.lt.s32.totalorder %s661, 3
      %s663 = scalar_select %p662, %s661, 3
      %s664 = smul.addr %s663, 4
      %s665 = scalar_lea.vmem %s3, %s664
      // Predicated region
      $region33: #{_lambda_.11} parent=31 // pred_check
        %p666 = pneg %p100
      $region34: #{_lambda_.11} parent=31 // pred_check_branch
        %668 = sbr.rel (%p666) target = $region36
      $region35: #{_lambda_.11} parent=31 // pred_region
        %s669 = smul.u32 2, %s14
      $region36: #{_lambda_.11} parent=31 // pred_fallthru
        _
    $region32: #{_lambda_.11} parent=5 // pred_fallthru
      _
    %p670 = scmp.le.s32.totalorder 2, %s9
    // Predicated region
    $region37: #{_lambda_.11} parent=5 // pred_check
      %p671 = pneg %p670
    $region38: #{_lambda_.11} parent=5 // pred_check_branch
      %673 = sbr.rel (%p671) target = $region40
    $region39: #{_lambda_.11} parent=5 // pred_region
      %s674 = ssub.s32 %s9, 2
      // Predicated region
      $region41: #{_lambda_.11} parent=39 // pred_check
        %p675 = pneg %p106
      $region42: #{_lambda_.11} parent=39 // pred_check_branch
        %677 = sbr.rel (%p675) target = $region44
      $region43: #{_lambda_.11} parent=39 // pred_region
        %s678 = smul.u32 2, %s15
        %p679 = scmp.lt.s32.totalorder %s678, 3
        %s680 = scalar_select %p679, %s678, 3
        %s681 = smul.addr %s680, 4
        %s682 = scalar_lea.vmem %s3, %s681
      $region44: #{_lambda_.11} parent=39 // pred_fallthru
        _
    $region40: #{_lambda_.11} parent=5 // pred_fallthru
      _
  $region6: #{_lambda_.11} parent=0 // loop_footer
    %s13 = sadd.s32 1, %s9
  $region7: #{_lambda_.11} parent=0 // loop_footer_branch
    %8 = sbr.rel target = $region3
  $region8: #{_lambda_.11} parent=0 // loop_exit
    _

// kernel: _lambda_.12
$region0: #{_lambda_.12}
  #allocation0 [shape = 'u32[]', space=smem, size = 0x4, offset = 0x4, fixed_abs, tag = 'smem constant byte address 0x4 - core index']
  #allocation1 [shape = 'u32[144,128]{1,0:T(1,128)}', space=vmem, size = 0x12000, scoped, tag = 'internal scratch']
  %s0 = inlined_call_operand.vmem [shape: bf16[16,2304], index: 0, kind: input, shape index: {}]
  %s1 = inlined_call_operand.vmem [shape: bf16[2304,128], index: 1, kind: input, shape index: {}]
  %s2 = inlined_call_operand.vmem [shape: f32[1,128], index: 2, kind: input, shape index: {}]
  %s3 = inlined_call_operand.vmem [shape: bf16[16,128], index: 3, kind: output, shape index: {}]
  %s4 = sld [smem:[#allocation0]]
  $region45: #{_lambda_.12} parent=0
    _
  %s6 = ssub.s32 1, %s4
  %s7 = scalar_select 0, %s6, %s4
  loop: start=0, step=1, limit=4
  $region2: #{_lambda_.12} parent=0 // loop_pre_header
    _
  $region3: #{_lambda_.12} parent=0 // loop_header
    %s9 = sphi 0, %s13
    %p10 = scmp.ge.s32.totalorder %s9, 4
    %s19 = sphi 0, %s21
    %s22 = sphi 0, %s19
    %s23 = sphi 0, %s22
    %s39 = sphi 0, %s23
    %s43 = sphi 0, %s43
    %s45 = sphi 0, %s43
    %s46 = sphi 0, %s45
    %s60 = sphi 0, %s46
    %s64 = sphi 0, %s64
    %s66 = sphi 0, %s64
    %s67 = sphi 0, %s66
    %s81 = sphi 0, %s67
    %s87 = sphi 0, %s89
    %s90 = sphi 0, %s87
    %s91 = sphi 0, %s90
    %s107 = sphi 0, %s91
  $region4: #{_lambda_.12} parent=0 // loop_header_branch
    %12 = sbr.rel (%p10) target = $region8
  $region5: #{_lambda_.12} parent=0 // loop_body
    %s14 = ssub.s32 %s9, 1
    %s15 = ssub.s32 %s9, 2
    %s16 = sadd.s32 %s9, 1
    %s17 = ssub.s32 %s9, %s16
    %p18 = scmp.eq.s32.totalorder %s17, 0
    %s20 = sadd.s32 %s19, 1
    %s21 = scalar_select %p18, %s19, %s20
    %p24 = pneg %p18
    %p25 = scmp.eq.s32.totalorder %s9, 1
    %p26 = por %p24, %p25
    %p27 = scmp.ne.s32.totalorder %s19, %s22
    %p28 = scmp.eq.s32.totalorder %s9, 0
    %p29 = por %p27, %p28
    %p30 = scmp.ne.s32.totalorder %s19, %s22
    %p31 = scmp.eq.s32.totalorder %s14, 1
    %p32 = por %p30, %p31
    %p33 = scmp.ne.s32.totalorder %s22, %s23
    %p34 = scmp.eq.s32.totalorder %s14, 0
    %p35 = por %p33, %p34
    %p36 = scmp.ne.s32.totalorder %s22, %s23
    %p37 = scmp.eq.s32.totalorder %s15, 1
    %p38 = por %p36, %p37
    %p40 = scmp.ne.s32.totalorder %s23, %s39
    %p41 = scmp.eq.s32.totalorder %s15, 0
    %p42 = por %p40, %p41
    %s44 = sadd.s32 %s43, 1
    %p47 = scmp.eq.s32.totalorder %s9, 1
    %p48 = scmp.ne.s32.totalorder %s43, %s45
    %p49 = scmp.eq.s32.totalorder %s9, 0
    %p50 = por %p48, %p49
    %p51 = scmp.ne.s32.totalorder %s43, %s45
    %p52 = scmp.eq.s32.totalorder %s14, 1
    %p53 = por %p51, %p52
    %p54 = scmp.ne.s32.totalorder %s45, %s46
    %p55 = scmp.eq.s32.totalorder %s14, 0
    %p56 = por %p54, %p55
    %p57 = scmp.ne.s32.totalorder %s45, %s46
    %p58 = scmp.eq.s32.totalorder %s15, 1
    %p59 = por %p57, %p58
    %p61 = scmp.ne.s32.totalorder %s46, %s60
    %p62 = scmp.eq.s32.totalorder %s15, 0
    %p63 = por %p61, %p62
    %s65 = sadd.s32 %s64, 1
    %p68 = scmp.eq.s32.totalorder %s9, 1
    %p69 = scmp.ne.s32.totalorder %s64, %s66
    %p70 = scmp.eq.s32.totalorder %s9, 0
    %p71 = por %p69, %p70
    %p72 = scmp.ne.s32.totalorder %s64, %s66
    %p73 = scmp.eq.s32.totalorder %s14, 1
    %p74 = por %p72, %p73
    %p75 = scmp.ne.s32.totalorder %s66, %s67
    %p76 = scmp.eq.s32.totalorder %s14, 0
    %p77 = por %p75, %p76
    %p78 = scmp.ne.s32.totalorder %s66, %s67
    %p79 = scmp.eq.s32.totalorder %s15, 1
    %p80 = por %p78, %p79
    %p82 = scmp.ne.s32.totalorder %s67, %s81
    %p83 = scmp.eq.s32.totalorder %s15, 0
    %p84 = por %p82, %p83
    %s85 = ssub.s32 %s9, %s16
    %p86 = scmp.eq.s32.totalorder %s85, 0
    %s88 = sadd.s32 %s87, 1
    %s89 = scalar_select %p86, %s87, %s88
    %p92 = pneg %p86
    %p93 = scmp.eq.s32.totalorder %s9, 1
    %p94 = por %p92, %p93
    %p95 = scmp.ne.s32.totalorder %s87, %s90
    %p96 = scmp.eq.s32.totalorder %s9, 0
    %p97 = por %p95, %p96
    %p98 = scmp.ne.s32.totalorder %s87, %s90
    %p99 = scmp.eq.s32.totalorder %s14, 1
    %p100 = por %p98, %p99
    %p101 = scmp.ne.s32.totalorder %s90, %s91
    %p102 = scmp.eq.s32.totalorder %s14, 0
    %p103 = por %p101, %p102
    %p104 = scmp.ne.s32.totalorder %s90, %s91
    %p105 = scmp.eq.s32.totalorder %s15, 1
    %p106 = por %p104, %p105
    %p108 = scmp.ne.s32.totalorder %s91, %s107
    %p109 = scmp.eq.s32.totalorder %s15, 0
    %p110 = por %p108, %p109
    %p111 = scmp.le.s32.totalorder 1, %s9
    %p112 = scmp.lt.s32.totalorder %s9, 3
    %p113 = pnand %p111, %p112
    %p114 = pneg %p113
    // Predicated region
    $region9: #{_lambda_.12} parent=5 // pred_check
      _
    $region10: #{_lambda_.12} parent=5 // pred_check_branch
      %116 = sbr.rel (%p113) target = $region12
    $region11: #{_lambda_.12} parent=5 // pred_region
      %s117 = ssub.s32 %s9, 1
      // Predicated region
      $region13: #{_lambda_.12} parent=11 // pred_check
        %p118 = pneg %p56
      $region14: #{_lambda_.12} parent=11 // pred_check_branch
        %120 = sbr.rel (%p118) target = $region16
      $region15: #{_lambda_.12} parent=11 // pred_region
        _
      $region16: #{_lambda_.12} parent=11 // pred_fallthru
        _
      // Predicated region
      $region17: #{_lambda_.12} parent=11 // pred_check
        %p121 = pneg %p77
      $region18: #{_lambda_.12} parent=11 // pred_check_branch
        %123 = sbr.rel (%p121) target = $region20
      $region19: #{_lambda_.12} parent=11 // pred_region
        _
      $region20: #{_lambda_.12} parent=11 // pred_fallthru
        _
    $region12: #{_lambda_.12} parent=5 // pred_fallthru
      _
    %p124 = scmp.lt.s32.totalorder %s9, 2
    // Predicated region
    $region21: #{_lambda_.12} parent=5 // pred_check
      %p125 = pneg %p124
    $region22: #{_lambda_.12} parent=5 // pred_check_branch
      %127 = sbr.rel (%p125) target = $region24
    $region23: #{_lambda_.12} parent=5 // pred_region
      // Predicated region
      $region25: #{_lambda_.12} parent=23 // pred_check
        %p128 = pneg %p29
      $region26: #{_lambda_.12} parent=23 // pred_check_branch
        %130 = sbr.rel (%p128) target = $region28
      $region27: #{_lambda_.12} parent=23 // pred_region
        %p131 = scmp.lt.s32.totalorder %s9, 1
        %s132 = scalar_select %p131, %s9, 1
        %s133 = smul.addr %s132, 18
        %s134 = smul.addr %s133, 4
        %s135 = scalar_lea.vmem %s0, %s134
      $region28: #{_lambda_.12} parent=23 // pred_fallthru
        _
    $region24: #{_lambda_.12} parent=5 // pred_fallthru
      _
    %p136 = scmp.le.s32.totalorder 1, %s9
    %p137 = scmp.lt.s32.totalorder %s9, 3
    %p138 = pnand %p136, %p137
    %p139 = pneg %p138
    // Predicated region
    $region29: #{_lambda_.12} parent=5 // pred_check
      _
    $region30: #{_lambda_.12} parent=5 // pred_check_branch
      %141 = sbr.rel (%p138) target = $region32
    $region31: #{_lambda_.12} parent=5 // pred_region
      %s142 = ssub.s32 %s9, 1
      %p143 = scmp.lt.s32.totalorder %s14, 1
      %s144 = scalar_select %p143, %s14, 1
      %s145 = smul.addr %s144, 18
      %s146 = smul.addr %s145, 4
      %s147 = scalar_lea.vmem %s0, %s146
      %p148 = pneg %p35
      %p149 = pneg %p32
      %p150 = pneg %p56
      %p151 = pneg %p53
      %p152 = pneg %p77
      %p153 = pneg %p74
      %p154 = pneg %p103
      %p155 = pneg %p100
      %p156 = scmp.lt.s32.totalorder %s14, 1
      %s157 = scalar_select %p156, %s14, 1
      %s158 = smul.addr %s157, 4
      %s159 = scalar_lea.vmem %s3, %s158
      %p160 = scmp.lt.s32.totalorder %s14, 1
      %s161 = scalar_select %p160, %s14, 1
      %s162 = smul.addr %s161, 18
      %s163 = smul.addr %s162, 4
      %s164 = scalar_lea.vmem %s0, %s163
      %p165 = scmp.lt.s32.totalorder %s14, 1
      %s166 = scalar_select %p165, %s14, 1
      %s167 = smul.addr %s166, 4
      %s168 = scalar_lea.vmem %s3, %s167
      %v170 = vld [vmem:[%s164] sm:$0xff]
      %v171 = vld [vmem:[%s164 + $0x8] sm:$0xff]
      %v172 = vld [vmem:[%s164 + $0x10] sm:$0xff]
      %v173 = vld [vmem:[%s164 + $0x18] sm:$0xff]
      %v174 = vld [vmem:[%s164 + $0x20] sm:$0xff]
      %v175 = vld [vmem:[%s164 + $0x28] sm:$0xff]
      %v176 = vld [vmem:[%s164 + $0x30] sm:$0xff]
      %v177 = vld [vmem:[%s164 + $0x38] sm:$0xff]
      %v178 = vld [vmem:[%s164 + $0x40] sm:$0xff]
      %v179 = vld [vmem:[%s1] sm:$0xf]
      %v180 = vld [vmem:[%s1 + $0x4] sm:$0xf]
      %v181 = vld [vmem:[%s1 + $0x8] sm:$0xf]
      %v182 = vld [vmem:[%s1 + $0xc] sm:$0xf]
      %v183 = vld [vmem:[%s1 + $0x10] sm:$0xf]
      %v184 = vld [vmem:[%s1 + $0x14] sm:$0xf]
      %v185 = vld [vmem:[%s1 + $0x18] sm:$0xf]
      %v186 = vld [vmem:[%s1 + $0x1c] sm:$0xf]
      %v187 = vld [vmem:[%s1 + $0x20] sm:$0xf]
      %v188 = vld [vmem:[%s1 + $0x24] sm:$0xf]
      %v189 = vld [vmem:[%s1 + $0x28] sm:$0xf]
      %v190 = vld [vmem:[%s1 + $0x2c] sm:$0xf]
      %v191 = vld [vmem:[%s1 + $0x30] sm:$0xf]
      %v192 = vld [vmem:[%s1 + $0x34] sm:$0xf]
      %v193 = vld [vmem:[%s1 + $0x38] sm:$0xf]
      %v194 = vld [vmem:[%s1 + $0x3c] sm:$0xf]
      %v195 = vld [vmem:[%s1 + $0x40] sm:$0xf]
      %v196 = vld [vmem:[%s1 + $0x44] sm:$0xf]
      %v197 = vld [vmem:[%s1 + $0x48] sm:$0xf]
      %v198 = vld [vmem:[%s1 + $0x4c] sm:$0xf]
      %v199 = vld [vmem:[%s1 + $0x50] sm:$0xf]
      %v200 = vld [vmem:[%s1 + $0x54] sm:$0xf]
      %v201 = vld [vmem:[%s1 + $0x58] sm:$0xf]
      %v202 = vld [vmem:[%s1 + $0x5c] sm:$0xf]
      %v203 = vld [vmem:[%s1 + $0x60] sm:$0xf]
      %v204 = vld [vmem:[%s1 + $0x64] sm:$0xf]
      %v205 = vld [vmem:[%s1 + $0x68] sm:$0xf]
      %v206 = vld [vmem:[%s1 + $0x6c] sm:$0xf]
      %v207 = vld [vmem:[%s1 + $0x70] sm:$0xf]
      %v208 = vld [vmem:[%s1 + $0x74] sm:$0xf]
      %v209 = vld [vmem:[%s1 + $0x78] sm:$0xf]
      %v210 = vld [vmem:[%s1 + $0x7c] sm:$0xf]
      %v211 = vld [vmem:[%s1 + $0x80] sm:$0xf]
      %v212 = vld [vmem:[%s1 + $0x84] sm:$0xf]
      %v213 = vld [vmem:[%s1 + $0x88] sm:$0xf]
      %v214 = vld [vmem:[%s1 + $0x8c] sm:$0xf]
      %v215 = vld [vmem:[%s1 + $0x90] sm:$0xf]
      %v216 = vld [vmem:[%s1 + $0x94] sm:$0xf]
      %v217 = vld [vmem:[%s1 + $0x98] sm:$0xf]
      %v218 = vld [vmem:[%s1 + $0x9c] sm:$0xf]
      %v219 = vld [vmem:[%s1 + $0xa0] sm:$0xf]
      %v220 = vld [vmem:[%s1 + $0xa4] sm:$0xf]
      %v221 = vld [vmem:[%s1 + $0xa8] sm:$0xf]
      %v222 = vld [vmem:[%s1 + $0xac] sm:$0xf]
      %v223 = vld [vmem:[%s1 + $0xb0] sm:$0xf]
      %v224 = vld [vmem:[%s1 + $0xb4] sm:$0xf]
      %v225 = vld [vmem:[%s1 + $0xb8] sm:$0xf]
      %v226 = vld [vmem:[%s1 + $0xbc] sm:$0xf]
      %v227 = vld [vmem:[%s1 + $0xc0] sm:$0xf]
      %v228 = vld [vmem:[%s1 + $0xc4] sm:$0xf]
      %v229 = vld [vmem:[%s1 + $0xc8] sm:$0xf]
      %v230 = vld [vmem:[%s1 + $0xcc] sm:$0xf]
      %v231 = vld [vmem:[%s1 + $0xd0] sm:$0xf]
      %v232 = vld [vmem:[%s1 + $0xd4] sm:$0xf]
      %v233 = vld [vmem:[%s1 + $0xd8] sm:$0xf]
      %v234 = vld [vmem:[%s1 + $0xdc] sm:$0xf]
      %v235 = vld [vmem:[%s1 + $0xe0] sm:$0xf]
      %v236 = vld [vmem:[%s1 + $0xe4] sm:$0xf]
      %v237 = vld [vmem:[%s1 + $0xe8] sm:$0xf]
      %v238 = vld [vmem:[%s1 + $0xec] sm:$0xf]
      %v239 = vld [vmem:[%s1 + $0xf0] sm:$0xf]
      %v240 = vld [vmem:[%s1 + $0xf4] sm:$0xf]
      %v241 = vld [vmem:[%s1 + $0xf8] sm:$0xf]
      %v242 = vld [vmem:[%s1 + $0xfc] sm:$0xf]
      %v243 = vld [vmem:[%s1 + $0x100] sm:$0xf]
      %v244 = vld [vmem:[%s1 + $0x104] sm:$0xf]
      %v245 = vld [vmem:[%s1 + $0x108] sm:$0xf]
      %v246 = vld [vmem:[%s1 + $0x10c] sm:$0xf]
      %v247 = vld [vmem:[%s1 + $0x110] sm:$0xf]
      %v248 = vld [vmem:[%s1 + $0x114] sm:$0xf]
      %v249 = vld [vmem:[%s1 + $0x118] sm:$0xf]
      %v250 = vld [vmem:[%s1 + $0x11c] sm:$0xf]
      %v251 = vld [vmem:[%s1 + $0x120] sm:$0xf]
      %v252 = vld [vmem:[%s1 + $0x124] sm:$0xf]
      %v253 = vld [vmem:[%s1 + $0x128] sm:$0xf]
      %v254 = vld [vmem:[%s1 + $0x12c] sm:$0xf]
      %v255 = vld [vmem:[%s1 + $0x130] sm:$0xf]
      %v256 = vld [vmem:[%s1 + $0x134] sm:$0xf]
      %v257 = vld [vmem:[%s1 + $0x138] sm:$0xf]
      %v258 = vld [vmem:[%s1 + $0x13c] sm:$0xf]
      %v259 = vld [vmem:[%s1 + $0x140] sm:$0xf]
      %v260 = vld [vmem:[%s1 + $0x144] sm:$0xf]
      %v261 = vld [vmem:[%s1 + $0x148] sm:$0xf]
      %v262 = vld [vmem:[%s1 + $0x14c] sm:$0xf]
      %v263 = vld [vmem:[%s1 + $0x150] sm:$0xf]
      %v264 = vld [vmem:[%s1 + $0x154] sm:$0xf]
      %v265 = vld [vmem:[%s1 + $0x158] sm:$0xf]
      %v266 = vld [vmem:[%s1 + $0x15c] sm:$0xf]
      %v267 = vld [vmem:[%s1 + $0x160] sm:$0xf]
      %v268 = vld [vmem:[%s1 + $0x164] sm:$0xf]
      %v269 = vld [vmem:[%s1 + $0x168] sm:$0xf]
      %v270 = vld [vmem:[%s1 + $0x16c] sm:$0xf]
      %v271 = vld [vmem:[%s1 + $0x170] sm:$0xf]
      %v272 = vld [vmem:[%s1 + $0x174] sm:$0xf]
      %v273 = vld [vmem:[%s1 + $0x178] sm:$0xf]
      %v274 = vld [vmem:[%s1 + $0x17c] sm:$0xf]
      %v275 = vld [vmem:[%s1 + $0x180] sm:$0xf]
      %v276 = vld [vmem:[%s1 + $0x184] sm:$0xf]
      %v277 = vld [vmem:[%s1 + $0x188] sm:$0xf]
      %v278 = vld [vmem:[%s1 + $0x18c] sm:$0xf]
      %v279 = vld [vmem:[%s1 + $0x190] sm:$0xf]
      %v280 = vld [vmem:[%s1 + $0x194] sm:$0xf]
      %v281 = vld [vmem:[%s1 + $0x198] sm:$0xf]
      %v282 = vld [vmem:[%s1 + $0x19c] sm:$0xf]
      %v283 = vld [vmem:[%s1 + $0x1a0] sm:$0xf]
      %v284 = vld [vmem:[%s1 + $0x1a4] sm:$0xf]
      %v285 = vld [vmem:[%s1 + $0x1a8] sm:$0xf]
      %v286 = vld [vmem:[%s1 + $0x1ac] sm:$0xf]
      %v287 = vld [vmem:[%s1 + $0x1b0] sm:$0xf]
      %v288 = vld [vmem:[%s1 + $0x1b4] sm:$0xf]
      %v289 = vld [vmem:[%s1 + $0x1b8] sm:$0xf]
      %v290 = vld [vmem:[%s1 + $0x1bc] sm:$0xf]
      %v291 = vld [vmem:[%s1 + $0x1c0] sm:$0xf]
      %v292 = vld [vmem:[%s1 + $0x1c4] sm:$0xf]
      %v293 = vld [vmem:[%s1 + $0x1c8] sm:$0xf]
      %v294 = vld [vmem:[%s1 + $0x1cc] sm:$0xf]
      %v295 = vld [vmem:[%s1 + $0x1d0] sm:$0xf]
      %v296 = vld [vmem:[%s1 + $0x1d4] sm:$0xf]
      %v297 = vld [vmem:[%s1 + $0x1d8] sm:$0xf]
      %v298 = vld [vmem:[%s1 + $0x1dc] sm:$0xf]
      %v299 = vld [vmem:[%s1 + $0x1e0] sm:$0xf]
      %v300 = vld [vmem:[%s1 + $0x1e4] sm:$0xf]
      %v301 = vld [vmem:[%s1 + $0x1e8] sm:$0xf]
      %v302 = vld [vmem:[%s1 + $0x1ec] sm:$0xf]
      %v303 = vld [vmem:[%s1 + $0x1f0] sm:$0xf]
      %v304 = vld [vmem:[%s1 + $0x1f4] sm:$0xf]
      %v305 = vld [vmem:[%s1 + $0x1f8] sm:$0xf]
      %v306 = vld [vmem:[%s1 + $0x1fc] sm:$0xf]
      %v307 = vld [vmem:[%s1 + $0x200] sm:$0xf]
      %v308 = vld [vmem:[%s1 + $0x204] sm:$0xf]
      %v309 = vld [vmem:[%s1 + $0x208] sm:$0xf]
      %v310 = vld [vmem:[%s1 + $0x20c] sm:$0xf]
      %v311 = vld [vmem:[%s1 + $0x210] sm:$0xf]
      %v312 = vld [vmem:[%s1 + $0x214] sm:$0xf]
      %v313 = vld [vmem:[%s1 + $0x218] sm:$0xf]
      %v314 = vld [vmem:[%s1 + $0x21c] sm:$0xf]
      %v315 = vld [vmem:[%s1 + $0x220] sm:$0xf]
      %v316 = vld [vmem:[%s1 + $0x224] sm:$0xf]
      %v317 = vld [vmem:[%s1 + $0x228] sm:$0xf]
      %v318 = vld [vmem:[%s1 + $0x22c] sm:$0xf]
      %v319 = vld [vmem:[%s1 + $0x230] sm:$0xf]
      %v320 = vld [vmem:[%s1 + $0x234] sm:$0xf]
      %v321 = vld [vmem:[%s1 + $0x238] sm:$0xf]
      %v322 = vld [vmem:[%s1 + $0x23c] sm:$0xf]
      %v323 = vld [vmem:[%s1 + $0x240] sm:$0xf]
      %v324 = vld [vmem:[%s1 + $0x244] sm:$0xf]
      %v325 = vld [vmem:[%s1 + $0x248] sm:$0xf]
      %v326 = vld [vmem:[%s1 + $0x24c] sm:$0xf]
      %v327 = vld [vmem:[%s1 + $0x250] sm:$0xf]
      %v328 = vld [vmem:[%s1 + $0x254] sm:$0xf]
      %v329 = vld [vmem:[%s1 + $0x258] sm:$0xf]
      %v330 = vld [vmem:[%s1 + $0x25c] sm:$0xf]
      %v331 = vld [vmem:[%s1 + $0x260] sm:$0xf]
      %v332 = vld [vmem:[%s1 + $0x264] sm:$0xf]
      %v333 = vld [vmem:[%s1 + $0x268] sm:$0xf]
      %v334 = vld [vmem:[%s1 + $0x26c] sm:$0xf]
      %v335 = vld [vmem:[%s1 + $0x270] sm:$0xf]
      %v336 = vld [vmem:[%s1 + $0x274] sm:$0xf]
      %v337 = vld [vmem:[%s1 + $0x278] sm:$0xf]
      %v338 = vld [vmem:[%s1 + $0x27c] sm:$0xf]
      %v339 = vld [vmem:[%s1 + $0x280] sm:$0xf]
      %v340 = vld [vmem:[%s1 + $0x284] sm:$0xf]
      %v341 = vld [vmem:[%s1 + $0x288] sm:$0xf]
      %v342 = vld [vmem:[%s1 + $0x28c] sm:$0xf]
      %v343 = vld [vmem:[%s1 + $0x290] sm:$0xf]
      %v344 = vld [vmem:[%s1 + $0x294] sm:$0xf]
      %v345 = vld [vmem:[%s1 + $0x298] sm:$0xf]
      %v346 = vld [vmem:[%s1 + $0x29c] sm:$0xf]
      %v347 = vld [vmem:[%s1 + $0x2a0] sm:$0xf]
      %v348 = vld [vmem:[%s1 + $0x2a4] sm:$0xf]
      %v349 = vld [vmem:[%s1 + $0x2a8] sm:$0xf]
      %v350 = vld [vmem:[%s1 + $0x2ac] sm:$0xf]
      %v351 = vld [vmem:[%s1 + $0x2b0] sm:$0xf]
      %v352 = vld [vmem:[%s1 + $0x2b4] sm:$0xf]
      %v353 = vld [vmem:[%s1 + $0x2b8] sm:$0xf]
      %v354 = vld [vmem:[%s1 + $0x2bc] sm:$0xf]
      %v355 = vld [vmem:[%s1 + $0x2c0] sm:$0xf]
      %v356 = vld [vmem:[%s1 + $0x2c4] sm:$0xf]
      %v357 = vld [vmem:[%s1 + $0x2c8] sm:$0xf]
      %v358 = vld [vmem:[%s1 + $0x2cc] sm:$0xf]
      %v359 = vld [vmem:[%s1 + $0x2d0] sm:$0xf]
      %v360 = vld [vmem:[%s1 + $0x2d4] sm:$0xf]
      %v361 = vld [vmem:[%s1 + $0x2d8] sm:$0xf]
      %v362 = vld [vmem:[%s1 + $0x2dc] sm:$0xf]
      %v363 = vld [vmem:[%s1 + $0x2e0] sm:$0xf]
      %v364 = vld [vmem:[%s1 + $0x2e4] sm:$0xf]
      %v365 = vld [vmem:[%s1 + $0x2e8] sm:$0xf]
      %v366 = vld [vmem:[%s1 + $0x2ec] sm:$0xf]
      %v367 = vld [vmem:[%s1 + $0x2f0] sm:$0xf]
      %v368 = vld [vmem:[%s1 + $0x2f4] sm:$0xf]
      %v369 = vld [vmem:[%s1 + $0x2f8] sm:$0xf]
      %v370 = vld [vmem:[%s1 + $0x2fc] sm:$0xf]
      %v371 = vld [vmem:[%s1 + $0x300] sm:$0xf]
      %v372 = vld [vmem:[%s1 + $0x304] sm:$0xf]
      %v373 = vld [vmem:[%s1 + $0x308] sm:$0xf]
      %v374 = vld [vmem:[%s1 + $0x30c] sm:$0xf]
      %v375 = vld [vmem:[%s1 + $0x310] sm:$0xf]
      %v376 = vld [vmem:[%s1 + $0x314] sm:$0xf]
      %v377 = vld [vmem:[%s1 + $0x318] sm:$0xf]
      %v378 = vld [vmem:[%s1 + $0x31c] sm:$0xf]
      %v379 = vld [vmem:[%s1 + $0x320] sm:$0xf]
      %v380 = vld [vmem:[%s1 + $0x324] sm:$0xf]
      %v381 = vld [vmem:[%s1 + $0x328] sm:$0xf]
      %v382 = vld [vmem:[%s1 + $0x32c] sm:$0xf]
      %v383 = vld [vmem:[%s1 + $0x330] sm:$0xf]
      %v384 = vld [vmem:[%s1 + $0x334] sm:$0xf]
      %v385 = vld [vmem:[%s1 + $0x338] sm:$0xf]
      %v386 = vld [vmem:[%s1 + $0x33c] sm:$0xf]
      %v387 = vld [vmem:[%s1 + $0x340] sm:$0xf]
      %v388 = vld [vmem:[%s1 + $0x344] sm:$0xf]
      %v389 = vld [vmem:[%s1 + $0x348] sm:$0xf]
      %v390 = vld [vmem:[%s1 + $0x34c] sm:$0xf]
      %v391 = vld [vmem:[%s1 + $0x350] sm:$0xf]
      %v392 = vld [vmem:[%s1 + $0x354] sm:$0xf]
      %v393 = vld [vmem:[%s1 + $0x358] sm:$0xf]
      %v394 = vld [vmem:[%s1 + $0x35c] sm:$0xf]
      %v395 = vld [vmem:[%s1 + $0x360] sm:$0xf]
      %v396 = vld [vmem:[%s1 + $0x364] sm:$0xf]
      %v397 = vld [vmem:[%s1 + $0x368] sm:$0xf]
      %v398 = vld [vmem:[%s1 + $0x36c] sm:$0xf]
      %v399 = vld [vmem:[%s1 + $0x370] sm:$0xf]
      %v400 = vld [vmem:[%s1 + $0x374] sm:$0xf]
      %v401 = vld [vmem:[%s1 + $0x378] sm:$0xf]
      %v402 = vld [vmem:[%s1 + $0x37c] sm:$0xf]
      %v403 = vld [vmem:[%s1 + $0x380] sm:$0xf]
      %v404 = vld [vmem:[%s1 + $0x384] sm:$0xf]
      %v405 = vld [vmem:[%s1 + $0x388] sm:$0xf]
      %v406 = vld [vmem:[%s1 + $0x38c] sm:$0xf]
      %v407 = vld [vmem:[%s1 + $0x390] sm:$0xf]
      %v408 = vld [vmem:[%s1 + $0x394] sm:$0xf]
      %v409 = vld [vmem:[%s1 + $0x398] sm:$0xf]
      %v410 = vld [vmem:[%s1 + $0x39c] sm:$0xf]
      %v411 = vld [vmem:[%s1 + $0x3a0] sm:$0xf]
      %v412 = vld [vmem:[%s1 + $0x3a4] sm:$0xf]
      %v413 = vld [vmem:[%s1 + $0x3a8] sm:$0xf]
      %v414 = vld [vmem:[%s1 + $0x3ac] sm:$0xf]
      %v415 = vld [vmem:[%s1 + $0x3b0] sm:$0xf]
      %v416 = vld [vmem:[%s1 + $0x3b4] sm:$0xf]
      %v417 = vld [vmem:[%s1 + $0x3b8] sm:$0xf]
      %v418 = vld [vmem:[%s1 + $0x3bc] sm:$0xf]
      %v419 = vld [vmem:[%s1 + $0x3c0] sm:$0xf]
      %v420 = vld [vmem:[%s1 + $0x3c4] sm:$0xf]
      %v421 = vld [vmem:[%s1 + $0x3c8] sm:$0xf]
      %v422 = vld [vmem:[%s1 + $0x3cc] sm:$0xf]
      %v423 = vld [vmem:[%s1 + $0x3d0] sm:$0xf]
      %v424 = vld [vmem:[%s1 + $0x3d4] sm:$0xf]
      %v425 = vld [vmem:[%s1 + $0x3d8] sm:$0xf]
      %v426 = vld [vmem:[%s1 + $0x3dc] sm:$0xf]
      %v427 = vld [vmem:[%s1 + $0x3e0] sm:$0xf]
      %v428 = vld [vmem:[%s1 + $0x3e4] sm:$0xf]
      %v429 = vld [vmem:[%s1 + $0x3e8] sm:$0xf]
      %v430 = vld [vmem:[%s1 + $0x3ec] sm:$0xf]
      %v431 = vld [vmem:[%s1 + $0x3f0] sm:$0xf]
      %v432 = vld [vmem:[%s1 + $0x3f4] sm:$0xf]
      %v433 = vld [vmem:[%s1 + $0x3f8] sm:$0xf]
      %v434 = vld [vmem:[%s1 + $0x3fc] sm:$0xf]
      %v435 = vld [vmem:[%s1 + $0x400] sm:$0xf]
      %v436 = vld [vmem:[%s1 + $0x404] sm:$0xf]
      %v437 = vld [vmem:[%s1 + $0x408] sm:$0xf]
      %v438 = vld [vmem:[%s1 + $0x40c] sm:$0xf]
      %v439 = vld [vmem:[%s1 + $0x410] sm:$0xf]
      %v440 = vld [vmem:[%s1 + $0x414] sm:$0xf]
      %v441 = vld [vmem:[%s1 + $0x418] sm:$0xf]
      %v442 = vld [vmem:[%s1 + $0x41c] sm:$0xf]
      %v443 = vld [vmem:[%s1 + $0x420] sm:$0xf]
      %v444 = vld [vmem:[%s1 + $0x424] sm:$0xf]
      %v445 = vld [vmem:[%s1 + $0x428] sm:$0xf]
      %v446 = vld [vmem:[%s1 + $0x42c] sm:$0xf]
      %v447 = vld [vmem:[%s1 + $0x430] sm:$0xf]
      %v448 = vld [vmem:[%s1 + $0x434] sm:$0xf]
      %v449 = vld [vmem:[%s1 + $0x438] sm:$0xf]
      %v450 = vld [vmem:[%s1 + $0x43c] sm:$0xf]
      %v451 = vld [vmem:[%s1 + $0x440] sm:$0xf]
      %v452 = vld [vmem:[%s1 + $0x444] sm:$0xf]
      %v453 = vld [vmem:[%s1 + $0x448] sm:$0xf]
      %v454 = vld [vmem:[%s1 + $0x44c] sm:$0xf]
      %v455 = vld [vmem:[%s1 + $0x450] sm:$0xf]
      %v456 = vld [vmem:[%s1 + $0x454] sm:$0xf]
      %v457 = vld [vmem:[%s1 + $0x458] sm:$0xf]
      %v458 = vld [vmem:[%s1 + $0x45c] sm:$0xf]
      %v459 = vld [vmem:[%s1 + $0x460] sm:$0xf]
      %v460 = vld [vmem:[%s1 + $0x464] sm:$0xf]
      %v461 = vld [vmem:[%s1 + $0x468] sm:$0xf]
      %v462 = vld [vmem:[%s1 + $0x46c] sm:$0xf]
      %v463 = vld [vmem:[%s1 + $0x470] sm:$0xf]
      %v464 = vld [vmem:[%s1 + $0x474] sm:$0xf]
      %v465 = vld [vmem:[%s1 + $0x478] sm:$0xf]
      %v466 = vld [vmem:[%s1 + $0x47c] sm:$0xf]
      %v476 = vunpack.c.l.b16 %v170
      %v477 = vunpack.c.h.b16 %v170
      %v478 = vunpack.c.l.b16 %v171
      %v479 = vunpack.c.h.b16 %v171
      %v480 = vunpack.c.l.b16 %v172
      %v481 = vunpack.c.h.b16 %v172
      %v482 = vunpack.c.l.b16 %v173
      %v483 = vunpack.c.h.b16 %v173
      %v484 = vunpack.c.l.b16 %v174
      %v485 = vunpack.c.h.b16 %v174
      %v486 = vunpack.c.l.b16 %v175
      %v487 = vunpack.c.h.b16 %v175
      %v488 = vunpack.c.l.b16 %v176
      %v489 = vunpack.c.h.b16 %v176
      %v490 = vunpack.c.l.b16 %v177
      %v491 = vunpack.c.h.b16 %v177
      %v492 = vunpack.c.l.b16 %v178
      %v493 = vunpack.c.h.b16 %v178
      %v494 = vpack.c.b16 %v476, %v476
      %v495 = vpack.c.b16 %v477, %v477
      %v496 = vpack.c.b16 %v478, %v478
      %v497 = vpack.c.b16 %v479, %v479
      %v498 = vpack.c.b16 %v480, %v480
      %v499 = vpack.c.b16 %v481, %v481
      %v500 = vpack.c.b16 %v482, %v482
      %v501 = vpack.c.b16 %v483, %v483
      %v502 = vpack.c.b16 %v484, %v484
      %v503 = vpack.c.b16 %v485, %v485
      %v504 = vpack.c.b16 %v486, %v486
      %v505 = vpack.c.b16 %v487, %v487
      %v506 = vpack.c.b16 %v488, %v488
      %v507 = vpack.c.b16 %v489, %v489
      %v508 = vpack.c.b16 %v490, %v490
      %v509 = vpack.c.b16 %v491, %v491
      %v510 = vpack.c.b16 %v492, %v492
      %v511 = vpack.c.b16 %v493, %v493
      %v818 = vunpack.c.l.b16 %v179
      %v819 = vunpack.c.l.b16 %v180
      %v820 = vunpack.c.l.b16 %v181
      %v821 = vunpack.c.l.b16 %v182
      %v822 = vunpack.c.l.b16 %v183
      %v823 = vunpack.c.l.b16 %v184
      %v824 = vunpack.c.l.b16 %v185
      %v825 = vunpack.c.l.b16 %v186
      %v826 = vunpack.c.l.b16 %v187
      %v827 = vunpack.c.l.b16 %v188
      %v828 = vunpack.c.l.b16 %v189
      %v829 = vunpack.c.l.b16 %v190
      %v830 = vunpack.c.l.b16 %v191
      %v831 = vunpack.c.l.b16 %v192
      %v832 = vunpack.c.l.b16 %v193
      %v833 = vunpack.c.l.b16 %v194
      %v834 = vunpack.c.l.b16 %v195
      %v835 = vunpack.c.l.b16 %v196
      %v836 = vunpack.c.l.b16 %v197
      %v837 = vunpack.c.l.b16 %v198
      %v838 = vunpack.c.l.b16 %v199
      %v839 = vunpack.c.l.b16 %v200
      %v840 = vunpack.c.l.b16 %v201
      %v841 = vunpack.c.l.b16 %v202
      %v842 = vunpack.c.l.b16 %v203
      %v843 = vunpack.c.l.b16 %v204
      %v844 = vunpack.c.l.b16 %v205
      %v845 = vunpack.c.l.b16 %v206
      %v846 = vunpack.c.l.b16 %v207
      %v847 = vunpack.c.l.b16 %v208
      %v848 = vunpack.c.l.b16 %v209
      %v849 = vunpack.c.l.b16 %v210
      %v850 = vunpack.c.l.b16 %v211
      %v851 = vunpack.c.l.b16 %v212
      %v852 = vunpack.c.l.b16 %v213
      %v853 = vunpack.c.l.b16 %v214
      %v854 = vunpack.c.l.b16 %v215
      %v855 = vunpack.c.l.b16 %v216
      %v856 = vunpack.c.l.b16 %v217
      %v857 = vunpack.c.l.b16 %v218
      %v858 = vunpack.c.l.b16 %v219
      %v859 = vunpack.c.l.b16 %v220
      %v860 = vunpack.c.l.b16 %v221
      %v861 = vunpack.c.l.b16 %v222
      %v862 = vunpack.c.l.b16 %v223
      %v863 = vunpack.c.l.b16 %v224
      %v864 = vunpack.c.l.b16 %v225
      %v865 = vunpack.c.l.b16 %v226
      %v866 = vunpack.c.l.b16 %v227
      %v867 = vunpack.c.l.b16 %v228
      %v868 = vunpack.c.l.b16 %v229
      %v869 = vunpack.c.l.b16 %v230
      %v870 = vunpack.c.l.b16 %v231
      %v871 = vunpack.c.l.b16 %v232
      %v872 = vunpack.c.l.b16 %v233
      %v873 = vunpack.c.l.b16 %v234
      %v874 = vunpack.c.l.b16 %v235
      %v875 = vunpack.c.l.b16 %v236
      %v876 = vunpack.c.l.b16 %v237
      %v877 = vunpack.c.l.b16 %v238
      %v878 = vunpack.c.l.b16 %v239
      %v879 = vunpack.c.l.b16 %v240
      %v880 = vunpack.c.l.b16 %v241
      %v881 = vunpack.c.l.b16 %v242
      %v882 = vunpack.c.l.b16 %v243
      %v883 = vunpack.c.l.b16 %v244
      %v884 = vunpack.c.l.b16 %v245
      %v885 = vunpack.c.l.b16 %v246
      %v886 = vunpack.c.l.b16 %v247
      %v887 = vunpack.c.l.b16 %v248
      %v888 = vunpack.c.l.b16 %v249
      %v889 = vunpack.c.l.b16 %v250
      %v890 = vunpack.c.l.b16 %v251
      %v891 = vunpack.c.l.b16 %v252
      %v892 = vunpack.c.l.b16 %v253
      %v893 = vunpack.c.l.b16 %v254
      %v894 = vunpack.c.l.b16 %v255
      %v895 = vunpack.c.l.b16 %v256
      %v896 = vunpack.c.l.b16 %v257
      %v897 = vunpack.c.l.b16 %v258
      %v898 = vunpack.c.l.b16 %v259
      %v899 = vunpack.c.l.b16 %v260
      %v900 = vunpack.c.l.b16 %v261
      %v901 = vunpack.c.l.b16 %v262
      %v902 = vunpack.c.l.b16 %v263
      %v903 = vunpack.c.l.b16 %v264
      %v904 = vunpack.c.l.b16 %v265
      %v905 = vunpack.c.l.b16 %v266
      %v906 = vunpack.c.l.b16 %v267
      %v907 = vunpack.c.l.b16 %v268
      %v908 = vunpack.c.l.b16 %v269
      %v909 = vunpack.c.l.b16 %v270
      %v910 = vunpack.c.l.b16 %v271
      %v911 = vunpack.c.l.b16 %v272
      %v912 = vunpack.c.l.b16 %v273
      %v913 = vunpack.c.l.b16 %v274
      %v914 = vunpack.c.l.b16 %v275
      %v915 = vunpack.c.l.b16 %v276
      %v916 = vunpack.c.l.b16 %v277
      %v917 = vunpack.c.l.b16 %v278
      %v918 = vunpack.c.l.b16 %v279
      %v919 = vunpack.c.l.b16 %v280
      %v920 = vunpack.c.l.b16 %v281
      %v921 = vunpack.c.l.b16 %v282
      %v922 = vunpack.c.l.b16 %v283
      %v923 = vunpack.c.l.b16 %v284
      %v924 = vunpack.c.l.b16 %v285
      %v925 = vunpack.c.l.b16 %v286
      %v926 = vunpack.c.l.b16 %v287
      %v927 = vunpack.c.l.b16 %v288
      %v928 = vunpack.c.l.b16 %v289
      %v929 = vunpack.c.l.b16 %v290
      %v930 = vunpack.c.l.b16 %v291
      %v931 = vunpack.c.l.b16 %v292
      %v932 = vunpack.c.l.b16 %v293
      %v933 = vunpack.c.l.b16 %v294
      %v934 = vunpack.c.l.b16 %v295
      %v935 = vunpack.c.l.b16 %v296
      %v936 = vunpack.c.l.b16 %v297
      %v937 = vunpack.c.l.b16 %v298
      %v938 = vunpack.c.l.b16 %v299
      %v939 = vunpack.c.l.b16 %v300
      %v940 = vunpack.c.l.b16 %v301
      %v941 = vunpack.c.l.b16 %v302
      %v942 = vunpack.c.l.b16 %v303
      %v943 = vunpack.c.l.b16 %v304
      %v944 = vunpack.c.l.b16 %v305
      %v945 = vunpack.c.l.b16 %v306
      %v946 = vunpack.c.l.b16 %v307
      %v947 = vunpack.c.l.b16 %v308
      %v948 = vunpack.c.l.b16 %v309
      %v949 = vunpack.c.l.b16 %v310
      %v950 = vunpack.c.l.b16 %v311
      %v951 = vunpack.c.l.b16 %v312
      %v952 = vunpack.c.l.b16 %v313
      %v953 = vunpack.c.l.b16 %v314
      %v954 = vunpack.c.l.b16 %v315
      %v955 = vunpack.c.l.b16 %v316
      %v956 = vunpack.c.l.b16 %v317
      %v957 = vunpack.c.l.b16 %v318
      %v958 = vunpack.c.l.b16 %v319
      %v959 = vunpack.c.l.b16 %v320
      %v960 = vunpack.c.l.b16 %v321
      %v961 = vunpack.c.l.b16 %v322
      %v962 = vunpack.c.l.b16 %v323
      %v963 = vunpack.c.l.b16 %v324
      %v964 = vunpack.c.l.b16 %v325
      %v965 = vunpack.c.l.b16 %v326
      %v966 = vunpack.c.l.b16 %v327
      %v967 = vunpack.c.l.b16 %v328
      %v968 = vunpack.c.l.b16 %v329
      %v969 = vunpack.c.l.b16 %v330
      %v970 = vunpack.c.l.b16 %v331
      %v971 = vunpack.c.l.b16 %v332
      %v972 = vunpack.c.l.b16 %v333
      %v973 = vunpack.c.l.b16 %v334
      %v974 = vunpack.c.l.b16 %v335
      %v975 = vunpack.c.l.b16 %v336
      %v976 = vunpack.c.l.b16 %v337
      %v977 = vunpack.c.l.b16 %v338
      %v978 = vunpack.c.l.b16 %v339
      %v979 = vunpack.c.l.b16 %v340
      %v980 = vunpack.c.l.b16 %v341
      %v981 = vunpack.c.l.b16 %v342
      %v982 = vunpack.c.l.b16 %v343
      %v983 = vunpack.c.l.b16 %v344
      %v984 = vunpack.c.l.b16 %v345
      %v985 = vunpack.c.l.b16 %v346
      %v986 = vunpack.c.l.b16 %v347
      %v987 = vunpack.c.l.b16 %v348
      %v988 = vunpack.c.l.b16 %v349
      %v989 = vunpack.c.l.b16 %v350
      %v990 = vunpack.c.l.b16 %v351
      %v991 = vunpack.c.l.b16 %v352
      %v992 = vunpack.c.l.b16 %v353
      %v993 = vunpack.c.l.b16 %v354
      %v994 = vunpack.c.l.b16 %v355
      %v995 = vunpack.c.l.b16 %v356
      %v996 = vunpack.c.l.b16 %v357
      %v997 = vunpack.c.l.b16 %v358
      %v998 = vunpack.c.l.b16 %v359
      %v999 = vunpack.c.l.b16 %v360
      %v1000 = vunpack.c.l.b16 %v361
      %v1001 = vunpack.c.l.b16 %v362
      %v1002 = vunpack.c.l.b16 %v363
      %v1003 = vunpack.c.l.b16 %v364
      %v1004 = vunpack.c.l.b16 %v365
      %v1005 = vunpack.c.l.b16 %v366
      %v1006 = vunpack.c.l.b16 %v367
      %v1007 = vunpack.c.l.b16 %v368
      %v1008 = vunpack.c.l.b16 %v369
      %v1009 = vunpack.c.l.b16 %v370
      %v1010 = vunpack.c.l.b16 %v371
      %v1011 = vunpack.c.l.b16 %v372
      %v1012 = vunpack.c.l.b16 %v373
      %v1013 = vunpack.c.l.b16 %v374
      %v1014 = vunpack.c.l.b16 %v375
      %v1015 = vunpack.c.l.b16 %v376
      %v1016 = vunpack.c.l.b16 %v377
      %v1017 = vunpack.c.l.b16 %v378
      %v1018 = vunpack.c.l.b16 %v379
      %v1019 = vunpack.c.l.b16 %v380
      %v1020 = vunpack.c.l.b16 %v381
      %v1021 = vunpack.c.l.b16 %v382
      %v1022 = vunpack.c.l.b16 %v383
      %v1023 = vunpack.c.l.b16 %v384
      %v1024 = vunpack.c.l.b16 %v385
      %v1025 = vunpack.c.l.b16 %v386
      %v1026 = vunpack.c.l.b16 %v387
      %v1027 = vunpack.c.l.b16 %v388
      %v1028 = vunpack.c.l.b16 %v389
      %v1029 = vunpack.c.l.b16 %v390
      %v1030 = vunpack.c.l.b16 %v391
      %v1031 = vunpack.c.l.b16 %v392
      %v1032 = vunpack.c.l.b16 %v393
      %v1033 = vunpack.c.l.b16 %v394
      %v1034 = vunpack.c.l.b16 %v395
      %v1035 = vunpack.c.l.b16 %v396
      %v1036 = vunpack.c.l.b16 %v397
      %v1037 = vunpack.c.l.b16 %v398
      %v1038 = vunpack.c.l.b16 %v399
      %v1039 = vunpack.c.l.b16 %v400
      %v1040 = vunpack.c.l.b16 %v401
      %v1041 = vunpack.c.l.b16 %v402
      %v1042 = vunpack.c.l.b16 %v403
      %v1043 = vunpack.c.l.b16 %v404
      %v1044 = vunpack.c.l.b16 %v405
      %v1045 = vunpack.c.l.b16 %v406
      %v1046 = vunpack.c.l.b16 %v407
      %v1047 = vunpack.c.l.b16 %v408
      %v1048 = vunpack.c.l.b16 %v409
      %v1049 = vunpack.c.l.b16 %v410
      %v1050 = vunpack.c.l.b16 %v411
      %v1051 = vunpack.c.l.b16 %v412
      %v1052 = vunpack.c.l.b16 %v413
      %v1053 = vunpack.c.l.b16 %v414
      %v1054 = vunpack.c.l.b16 %v415
      %v1055 = vunpack.c.l.b16 %v416
      %v1056 = vunpack.c.l.b16 %v417
      %v1057 = vunpack.c.l.b16 %v418
      %v1058 = vunpack.c.l.b16 %v419
      %v1059 = vunpack.c.l.b16 %v420
      %v1060 = vunpack.c.l.b16 %v421
      %v1061 = vunpack.c.l.b16 %v422
      %v1062 = vunpack.c.l.b16 %v423
      %v1063 = vunpack.c.l.b16 %v424
      %v1064 = vunpack.c.l.b16 %v425
      %v1065 = vunpack.c.l.b16 %v426
      %v1066 = vunpack.c.l.b16 %v427
      %v1067 = vunpack.c.l.b16 %v428
      %v1068 = vunpack.c.l.b16 %v429
      %v1069 = vunpack.c.l.b16 %v430
      %v1070 = vunpack.c.l.b16 %v431
      %v1071 = vunpack.c.l.b16 %v432
      %v1072 = vunpack.c.l.b16 %v433
      %v1073 = vunpack.c.l.b16 %v434
      %v1074 = vunpack.c.l.b16 %v435
      %v1075 = vunpack.c.l.b16 %v436
      %v1076 = vunpack.c.l.b16 %v437
      %v1077 = vunpack.c.l.b16 %v438
      %v1078 = vunpack.c.l.b16 %v439
      %v1079 = vunpack.c.l.b16 %v440
      %v1080 = vunpack.c.l.b16 %v441
      %v1081 = vunpack.c.l.b16 %v442
      %v1082 = vunpack.c.l.b16 %v443
      %v1083 = vunpack.c.l.b16 %v444
      %v1084 = vunpack.c.l.b16 %v445
      %v1085 = vunpack.c.l.b16 %v446
      %v1086 = vunpack.c.l.b16 %v447
      %v1087 = vunpack.c.l.b16 %v448
      %v1088 = vunpack.c.l.b16 %v449
      %v1089 = vunpack.c.l.b16 %v450
      %v1090 = vunpack.c.l.b16 %v451
      %v1091 = vunpack.c.l.b16 %v452
      %v1092 = vunpack.c.l.b16 %v453
      %v1093 = vunpack.c.l.b16 %v454
      %v1094 = vunpack.c.l.b16 %v455
      %v1095 = vunpack.c.l.b16 %v456
      %v1096 = vunpack.c.l.b16 %v457
      %v1097 = vunpack.c.l.b16 %v458
      %v1098 = vunpack.c.l.b16 %v459
      %v1099 = vunpack.c.l.b16 %v460
      %v1100 = vunpack.c.l.b16 %v461
      %v1101 = vunpack.c.l.b16 %v462
      %v1102 = vunpack.c.l.b16 %v463
      %v1103 = vunpack.c.l.b16 %v464
      %v1104 = vunpack.c.l.b16 %v465
      %v1105 = vunpack.c.l.b16 %v466
      %v1106 = vpack.c.b16 %v819, %v818
      %v1107 = vpack.c.b16 %v821, %v820
      %v1108 = vpack.c.b16 %v823, %v822
      %v1109 = vpack.c.b16 %v825, %v824
      %v1110 = vpack.c.b16 %v827, %v826
      %v1111 = vpack.c.b16 %v829, %v828
      %v1112 = vpack.c.b16 %v831, %v830
      %v1113 = vpack.c.b16 %v833, %v832
      %v1114 = vpack.c.b16 %v835, %v834
      %v1115 = vpack.c.b16 %v837, %v836
      %v1116 = vpack.c.b16 %v839, %v838
      %v1117 = vpack.c.b16 %v841, %v840
      %v1118 = vpack.c.b16 %v843, %v842
      %v1119 = vpack.c.b16 %v845, %v844
      %v1120 = vpack.c.b16 %v847, %v846
      %v1121 = vpack.c.b16 %v849, %v848
      %v1122 = vpack.c.b16 %v851, %v850
      %v1123 = vpack.c.b16 %v853, %v852
      %v1124 = vpack.c.b16 %v855, %v854
      %v1125 = vpack.c.b16 %v857, %v856
      %v1126 = vpack.c.b16 %v859, %v858
      %v1127 = vpack.c.b16 %v861, %v860
      %v1128 = vpack.c.b16 %v863, %v862
      %v1129 = vpack.c.b16 %v865, %v864
      %v1130 = vpack.c.b16 %v867, %v866
      %v1131 = vpack.c.b16 %v869, %v868
      %v1132 = vpack.c.b16 %v871, %v870
      %v1133 = vpack.c.b16 %v873, %v872
      %v1134 = vpack.c.b16 %v875, %v874
      %v1135 = vpack.c.b16 %v877, %v876
      %v1136 = vpack.c.b16 %v879, %v878
      %v1137 = vpack.c.b16 %v881, %v880
      %v1138 = vpack.c.b16 %v883, %v882
      %v1139 = vpack.c.b16 %v885, %v884
      %v1140 = vpack.c.b16 %v887, %v886
      %v1141 = vpack.c.b16 %v889, %v888
      %v1142 = vpack.c.b16 %v891, %v890
      %v1143 = vpack.c.b16 %v893, %v892
      %v1144 = vpack.c.b16 %v895, %v894
      %v1145 = vpack.c.b16 %v897, %v896
      %v1146 = vpack.c.b16 %v899, %v898
      %v1147 = vpack.c.b16 %v901, %v900
      %v1148 = vpack.c.b16 %v903, %v902
      %v1149 = vpack.c.b16 %v905, %v904
      %v1150 = vpack.c.b16 %v907, %v906
      %v1151 = vpack.c.b16 %v909, %v908
      %v1152 = vpack.c.b16 %v911, %v910
      %v1153 = vpack.c.b16 %v913, %v912
      %v1154 = vpack.c.b16 %v915, %v914
      %v1155 = vpack.c.b16 %v917, %v916
      %v1156 = vpack.c.b16 %v919, %v918
      %v1157 = vpack.c.b16 %v921, %v920
      %v1158 = vpack.c.b16 %v923, %v922
      %v1159 = vpack.c.b16 %v925, %v924
      %v1160 = vpack.c.b16 %v927, %v926
      %v1161 = vpack.c.b16 %v929, %v928
      %v1162 = vpack.c.b16 %v931, %v930
      %v1163 = vpack.c.b16 %v933, %v932
      %v1164 = vpack.c.b16 %v935, %v934
      %v1165 = vpack.c.b16 %v937, %v936
      %v1166 = vpack.c.b16 %v939, %v938
      %v1167 = vpack.c.b16 %v941, %v940
      %v1168 = vpack.c.b16 %v943, %v942
      %v1169 = vpack.c.b16 %v945, %v944
      %v1170 = vpack.c.b16 %v947, %v946
      %v1171 = vpack.c.b16 %v949, %v948
      %v1172 = vpack.c.b16 %v951, %v950
      %v1173 = vpack.c.b16 %v953, %v952
      %v1174 = vpack.c.b16 %v955, %v954
      %v1175 = vpack.c.b16 %v957, %v956
      %v1176 = vpack.c.b16 %v959, %v958
      %v1177 = vpack.c.b16 %v961, %v960
      %v1178 = vpack.c.b16 %v963, %v962
      %v1179 = vpack.c.b16 %v965, %v964
      %v1180 = vpack.c.b16 %v967, %v966
      %v1181 = vpack.c.b16 %v969, %v968
      %v1182 = vpack.c.b16 %v971, %v970
      %v1183 = vpack.c.b16 %v973, %v972
      %v1184 = vpack.c.b16 %v975, %v974
      %v1185 = vpack.c.b16 %v977, %v976
      %v1186 = vpack.c.b16 %v979, %v978
      %v1187 = vpack.c.b16 %v981, %v980
      %v1188 = vpack.c.b16 %v983, %v982
      %v1189 = vpack.c.b16 %v985, %v984
      %v1190 = vpack.c.b16 %v987, %v986
      %v1191 = vpack.c.b16 %v989, %v988
      %v1192 = vpack.c.b16 %v991, %v990
      %v1193 = vpack.c.b16 %v993, %v992
      %v1194 = vpack.c.b16 %v995, %v994
      %v1195 = vpack.c.b16 %v997, %v996
      %v1196 = vpack.c.b16 %v999, %v998
      %v1197 = vpack.c.b16 %v1001, %v1000
      %v1198 = vpack.c.b16 %v1003, %v1002
      %v1199 = vpack.c.b16 %v1005, %v1004
      %v1200 = vpack.c.b16 %v1007, %v1006
      %v1201 = vpack.c.b16 %v1009, %v1008
      %v1202 = vpack.c.b16 %v1011, %v1010
      %v1203 = vpack.c.b16 %v1013, %v1012
      %v1204 = vpack.c.b16 %v1015, %v1014
      %v1205 = vpack.c.b16 %v1017, %v1016
      %v1206 = vpack.c.b16 %v1019, %v1018
      %v1207 = vpack.c.b16 %v1021, %v1020
      %v1208 = vpack.c.b16 %v1023, %v1022
      %v1209 = vpack.c.b16 %v1025, %v1024
      %v1210 = vpack.c.b16 %v1027, %v1026
      %v1211 = vpack.c.b16 %v1029, %v1028
      %v1212 = vpack.c.b16 %v1031, %v1030
      %v1213 = vpack.c.b16 %v1033, %v1032
      %v1214 = vpack.c.b16 %v1035, %v1034
      %v1215 = vpack.c.b16 %v1037, %v1036
      %v1216 = vpack.c.b16 %v1039, %v1038
      %v1217 = vpack.c.b16 %v1041, %v1040
      %v1218 = vpack.c.b16 %v1043, %v1042
      %v1219 = vpack.c.b16 %v1045, %v1044
      %v1220 = vpack.c.b16 %v1047, %v1046
      %v1221 = vpack.c.b16 %v1049, %v1048
      %v1222 = vpack.c.b16 %v1051, %v1050
      %v1223 = vpack.c.b16 %v1053, %v1052
      %v1224 = vpack.c.b16 %v1055, %v1054
      %v1225 = vpack.c.b16 %v1057, %v1056
      %v1226 = vpack.c.b16 %v1059, %v1058
      %v1227 = vpack.c.b16 %v1061, %v1060
      %v1228 = vpack.c.b16 %v1063, %v1062
      %v1229 = vpack.c.b16 %v1065, %v1064
      %v1230 = vpack.c.b16 %v1067, %v1066
      %v1231 = vpack.c.b16 %v1069, %v1068
      %v1232 = vpack.c.b16 %v1071, %v1070
      %v1233 = vpack.c.b16 %v1073, %v1072
      %v1234 = vpack.c.b16 %v1075, %v1074
      %v1235 = vpack.c.b16 %v1077, %v1076
      %v1236 = vpack.c.b16 %v1079, %v1078
      %v1237 = vpack.c.b16 %v1081, %v1080
      %v1238 = vpack.c.b16 %v1083, %v1082
      %v1239 = vpack.c.b16 %v1085, %v1084
      %v1240 = vpack.c.b16 %v1087, %v1086
      %v1241 = vpack.c.b16 %v1089, %v1088
      %v1242 = vpack.c.b16 %v1091, %v1090
      %v1243 = vpack.c.b16 %v1093, %v1092
      %v1244 = vpack.c.b16 %v1095, %v1094
      %v1245 = vpack.c.b16 %v1097, %v1096
      %v1246 = vpack.c.b16 %v1099, %v1098
      %v1247 = vpack.c.b16 %v1101, %v1100
      %v1248 = vpack.c.b16 %v1103, %v1102
      %v1249 = vpack.c.b16 %v1105, %v1104
      %1394 = vmatprep.subr.bf16.mxu0 0
      %1395 = vmatpush1.bf16.msra.mxu0 %v1106
      %1396 = vmatprep.subr.bf16.mxu0 0
      %1397 = vmatpush1.bf16.msra.mxu0 %v1107
      %1398 = vmatprep.subr.bf16.mxu0 0
      %1399 = vmatpush1.bf16.msra.mxu0 %v1108
      %1400 = vmatprep.subr.bf16.mxu0 0
      %1401 = vmatpush1.bf16.msra.mxu0 %v1109
      %1402 = vmatprep.subr.bf16.mxu0 0
      %1403 = vmatpush1.bf16.msra.mxu0 %v1110
      %1404 = vmatprep.subr.bf16.mxu0 0
      %1405 = vmatpush1.bf16.msra.mxu0 %v1111
      %1406 = vmatprep.subr.bf16.mxu0 0
      %1407 = vmatpush1.bf16.msra.mxu0 %v1112
      %1408 = vmatprep.subr.bf16.mxu0 0
      %1409 = vmatpush1.bf16.msra.mxu0 %v1113
      %1410 = vmatprep.subr.bf16.mxu0 0
      %1411 = vmatpush1.bf16.msra.mxu0 %v1114
      %1412 = vmatprep.subr.bf16.mxu0 0
      %1413 = vmatpush1.bf16.msra.mxu0 %v1115
      %1414 = vmatprep.subr.bf16.mxu0 0
      %1415 = vmatpush1.bf16.msra.mxu0 %v1116
      %1416 = vmatprep.subr.bf16.mxu0 0
      %1417 = vmatpush1.bf16.msra.mxu0 %v1117
      %1418 = vmatprep.subr.bf16.mxu0 0
      %1419 = vmatpush1.bf16.msra.mxu0 %v1118
      %1420 = vmatprep.subr.bf16.mxu0 0
      %1421 = vmatpush1.bf16.msra.mxu0 %v1119
      %1422 = vmatprep.subr.bf16.mxu0 0
      %1423 = vmatpush1.bf16.msra.mxu0 %v1120
      %1424 = vmatprep.subr.bf16.mxu0 0
      %1425 = vmatpush1.bf16.msra.mxu0 %v1121
      %1426 = vmatprep.mubr.bf16.mxu0 %v495
      %1427 = vmatmul.mubr.bf16.gmra.mrb[0].mxu0 %v494
      %v1428 = vpop.f32.mrb[0].mxu0
      %v1429 = vadd.f32 0.0, %v1428
      %v1430 = vpop.f32.mrb[0].mxu0
      %v1431 = vpop.f32.mrb[0].mxu0
      %v1432 = vpop.f32.mrb[0].mxu0
      %1433 = vdwg.mxu0
      %1434 = vmatprep.subr.bf16.mxu0 0
      %1435 = vmatpush1.bf16.msra.mxu0 %v1122
      %1436 = vmatprep.subr.bf16.mxu0 0
      %1437 = vmatpush1.bf16.msra.mxu0 %v1123
      %1438 = vmatprep.subr.bf16.mxu0 0
      %1439 = vmatpush1.bf16.msra.mxu0 %v1124
      %1440 = vmatprep.subr.bf16.mxu0 0
      %1441 = vmatpush1.bf16.msra.mxu0 %v1125
      %1442 = vmatprep.subr.bf16.mxu0 0
      %1443 = vmatpush1.bf16.msra.mxu0 %v1126
      %1444 = vmatprep.subr.bf16.mxu0 0
      %1445 = vmatpush1.bf16.msra.mxu0 %v1127
      %1446 = vmatprep.subr.bf16.mxu0 0
      %1447 = vmatpush1.bf16.msra.mxu0 %v1128
      %1448 = vmatprep.subr.bf16.mxu0 0
      %1449 = vmatpush1.bf16.msra.mxu0 %v1129
      %1450 = vmatprep.subr.bf16.mxu0 0
      %1451 = vmatpush1.bf16.msra.mxu0 %v1130
      %1452 = vmatprep.subr.bf16.mxu0 0
      %1453 = vmatpush1.bf16.msra.mxu0 %v1131
      %1454 = vmatprep.subr.bf16.mxu0 0
      %1455 = vmatpush1.bf16.msra.mxu0 %v1132
      %1456 = vmatprep.subr.bf16.mxu0 0
      %1457 = vmatpush1.bf16.msra.mxu0 %v1133
      %1458 = vmatprep.subr.bf16.mxu0 0
      %1459 = vmatpush1.bf16.msra.mxu0 %v1134
      %1460 = vmatprep.subr.bf16.mxu0 0
      %1461 = vmatpush1.bf16.msra.mxu0 %v1135
      %1462 = vmatprep.subr.bf16.mxu0 0
      %1463 = vmatpush1.bf16.msra.mxu0 %v1136
      %1464 = vmatprep.subr.bf16.mxu0 0
      %1465 = vmatpush1.bf16.msra.mxu0 %v1137
      %1466 = vmatprep.mubr.bf16.mxu0 %v497
      %1467 = vmatmul.mubr.bf16.gmra.mrb[0].mxu0 %v496
      %v1468 = vpop.f32.mrb[0].mxu0
      %v1469 = vadd.f32 %v1429, %v1468
      %v1470 = vpop.f32.mrb[0].mxu0
      %v1471 = vpop.f32.mrb[0].mxu0
      %v1472 = vpop.f32.mrb[0].mxu0
      %1473 = vdwg.mxu0
      %1474 = vmatprep.subr.bf16.mxu0 0
      %1475 = vmatpush1.bf16.msra.mxu0 %v1138
      %1476 = vmatprep.subr.bf16.mxu0 0
      %1477 = vmatpush1.bf16.msra.mxu0 %v1139
      %1478 = vmatprep.subr.bf16.mxu0 0
      %1479 = vmatpush1.bf16.msra.mxu0 %v1140
      %1480 = vmatprep.subr.bf16.mxu0 0
      %1481 = vmatpush1.bf16.msra.mxu0 %v1141
      %1482 = vmatprep.subr.bf16.mxu0 0
      %1483 = vmatpush1.bf16.msra.mxu0 %v1142
      %1484 = vmatprep.subr.bf16.mxu0 0
      %1485 = vmatpush1.bf16.msra.mxu0 %v1143
      %1486 = vmatprep.subr.bf16.mxu0 0
      %1487 = vmatpush1.bf16.msra.mxu0 %v1144
      %1488 = vmatprep.subr.bf16.mxu0 0
      %1489 = vmatpush1.bf16.msra.mxu0 %v1145
      %1490 = vmatprep.subr.bf16.mxu0 0
      %1491 = vmatpush1.bf16.msra.mxu0 %v1146
      %1492 = vmatprep.subr.bf16.mxu0 0
      %1493 = vmatpush1.bf16.msra.mxu0 %v1147
      %1494 = vmatprep.subr.bf16.mxu0 0
      %1495 = vmatpush1.bf16.msra.mxu0 %v1148
      %1496 = vmatprep.subr.bf16.mxu0 0
      %1497 = vmatpush1.bf16.msra.mxu0 %v1149
      %1498 = vmatprep.subr.bf16.mxu0 0
      %1499 = vmatpush1.bf16.msra.mxu0 %v1150
      %1500 = vmatprep.subr.bf16.mxu0 0
      %1501 = vmatpush1.bf16.msra.mxu0 %v1151
      %1502 = vmatprep.subr.bf16.mxu0 0
      %1503 = vmatpush1.bf16.msra.mxu0 %v1152
      %1504 = vmatprep.subr.bf16.mxu0 0
      %1505 = vmatpush1.bf16.msra.mxu0 %v1153
      %1506 = vmatprep.mubr.bf16.mxu0 %v499
      %1507 = vmatmul.mubr.bf16.gmra.mrb[0].mxu0 %v498
      %v1508 = vpop.f32.mrb[0].mxu0
      %v1509 = vadd.f32 %v1469, %v1508
      %v1510 = vpop.f32.mrb[0].mxu0
      %v1511 = vpop.f32.mrb[0].mxu0
      %v1512 = vpop.f32.mrb[0].mxu0
      %1513 = vdwg.mxu0
      %1514 = vmatprep.subr.bf16.mxu0 0
      %1515 = vmatpush1.bf16.msra.mxu0 %v1154
      %1516 = vmatprep.subr.bf16.mxu0 0
      %1517 = vmatpush1.bf16.msra.mxu0 %v1155
      %1518 = vmatprep.subr.bf16.mxu0 0
      %1519 = vmatpush1.bf16.msra.mxu0 %v1156
      %1520 = vmatprep.subr.bf16.mxu0 0
      %1521 = vmatpush1.bf16.msra.mxu0 %v1157
      %1522 = vmatprep.subr.bf16.mxu0 0
      %1523 = vmatpush1.bf16.msra.mxu0 %v1158
      %1524 = vmatprep.subr.bf16.mxu0 0
      %1525 = vmatpush1.bf16.msra.mxu0 %v1159
      %1526 = vmatprep.subr.bf16.mxu0 0
      %1527 = vmatpush1.bf16.msra.mxu0 %v1160
      %1528 = vmatprep.subr.bf16.mxu0 0
      %1529 = vmatpush1.bf16.msra.mxu0 %v1161
      %1530 = vmatprep.subr.bf16.mxu0 0
      %1531 = vmatpush1.bf16.msra.mxu0 %v1162
      %1532 = vmatprep.subr.bf16.mxu0 0
      %1533 = vmatpush1.bf16.msra.mxu0 %v1163
      %1534 = vmatprep.subr.bf16.mxu0 0
      %1535 = vmatpush1.bf16.msra.mxu0 %v1164
      %1536 = vmatprep.subr.bf16.mxu0 0
      %1537 = vmatpush1.bf16.msra.mxu0 %v1165
      %1538 = vmatprep.subr.bf16.mxu0 0
      %1539 = vmatpush1.bf16.msra.mxu0 %v1166
      %1540 = vmatprep.subr.bf16.mxu0 0
      %1541 = vmatpush1.bf16.msra.mxu0 %v1167
      %1542 = vmatprep.subr.bf16.mxu0 0
      %1543 = vmatpush1.bf16.msra.mxu0 %v1168
      %1544 = vmatprep.subr.bf16.mxu0 0
      %1545 = vmatpush1.bf16.msra.mxu0 %v1169
      %1546 = vmatprep.mubr.bf16.mxu0 %v501
      %1547 = vmatmul.mubr.bf16.gmra.mrb[0].mxu0 %v500
      %v1548 = vpop.f32.mrb[0].mxu0
      %v1549 = vadd.f32 %v1509, %v1548
      %v1550 = vpop.f32.mrb[0].mxu0
      %v1551 = vpop.f32.mrb[0].mxu0
      %v1552 = vpop.f32.mrb[0].mxu0
      %1553 = vdwg.mxu0
      %1554 = vmatprep.subr.bf16.mxu0 0
      %1555 = vmatpush1.bf16.msra.mxu0 %v1170
      %1556 = vmatprep.subr.bf16.mxu0 0
      %1557 = vmatpush1.bf16.msra.mxu0 %v1171
      %1558 = vmatprep.subr.bf16.mxu0 0
      %1559 = vmatpush1.bf16.msra.mxu0 %v1172
      %1560 = vmatprep.subr.bf16.mxu0 0
      %1561 = vmatpush1.bf16.msra.mxu0 %v1173
      %1562 = vmatprep.subr.bf16.mxu0 0
      %1563 = vmatpush1.bf16.msra.mxu0 %v1174
      %1564 = vmatprep.subr.bf16.mxu0 0
      %1565 = vmatpush1.bf16.msra.mxu0 %v1175
      %1566 = vmatprep.subr.bf16.mxu0 0
      %1567 = vmatpush1.bf16.msra.mxu0 %v1176
      %1568 = vmatprep.subr.bf16.mxu0 0
      %1569 = vmatpush1.bf16.msra.mxu0 %v1177
      %1570 = vmatprep.subr.bf16.mxu0 0
      %1571 = vmatpush1.bf16.msra.mxu0 %v1178
      %1572 = vmatprep.subr.bf16.mxu0 0
      %1573 = vmatpush1.bf16.msra.mxu0 %v1179
      %1574 = vmatprep.subr.bf16.mxu0 0
      %1575 = vmatpush1.bf16.msra.mxu0 %v1180
      %1576 = vmatprep.subr.bf16.mxu0 0
      %1577 = vmatpush1.bf16.msra.mxu0 %v1181
      %1578 = vmatprep.subr.bf16.mxu0 0
      %1579 = vmatpush1.bf16.msra.mxu0 %v1182
      %1580 = vmatprep.subr.bf16.mxu0 0
      %1581 = vmatpush1.bf16.msra.mxu0 %v1183
      %1582 = vmatprep.subr.bf16.mxu0 0
      %1583 = vmatpush1.bf16.msra.mxu0 %v1184
      %1584 = vmatprep.subr.bf16.mxu0 0
      %1585 = vmatpush1.bf16.msra.mxu0 %v1185
      %1586 = vmatprep.mubr.bf16.mxu0 %v503
      %1587 = vmatmul.mubr.bf16.gmra.mrb[0].mxu0 %v502
      %v1588 = vpop.f32.mrb[0].mxu0
      %v1589 = vadd.f32 %v1549, %v1588
      %v1590 = vpop.f32.mrb[0].mxu0
      %v1591 = vpop.f32.mrb[0].mxu0
      %v1592 = vpop.f32.mrb[0].mxu0
      %1593 = vdwg.mxu0
      %1594 = vmatprep.subr.bf16.mxu0 0
      %1595 = vmatpush1.bf16.msra.mxu0 %v1186
      %1596 = vmatprep.subr.bf16.mxu0 0
      %1597 = vmatpush1.bf16.msra.mxu0 %v1187
      %1598 = vmatprep.subr.bf16.mxu0 0
      %1599 = vmatpush1.bf16.msra.mxu0 %v1188
      %1600 = vmatprep.subr.bf16.mxu0 0
      %1601 = vmatpush1.bf16.msra.mxu0 %v1189
      %1602 = vmatprep.subr.bf16.mxu0 0
      %1603 = vmatpush1.bf16.msra.mxu0 %v1190
      %1604 = vmatprep.subr.bf16.mxu0 0
      %1605 = vmatpush1.bf16.msra.mxu0 %v1191
      %1606 = vmatprep.subr.bf16.mxu0 0
      %1607 = vmatpush1.bf16.msra.mxu0 %v1192
      %1608 = vmatprep.subr.bf16.mxu0 0
      %1609 = vmatpush1.bf16.msra.mxu0 %v1193
      %1610 = vmatprep.subr.bf16.mxu0 0
      %1611 = vmatpush1.bf16.msra.mxu0 %v1194
      %1612 = vmatprep.subr.bf16.mxu0 0
      %1613 = vmatpush1.bf16.msra.mxu0 %v1195
      %1614 = vmatprep.subr.bf16.mxu0 0
      %1615 = vmatpush1.bf16.msra.mxu0 %v1196
      %1616 = vmatprep.subr.bf16.mxu0 0
      %1617 = vmatpush1.bf16.msra.mxu0 %v1197
      %1618 = vmatprep.subr.bf16.mxu0 0
      %1619 = vmatpush1.bf16.msra.mxu0 %v1198
      %1620 = vmatprep.subr.bf16.mxu0 0
      %1621 = vmatpush1.bf16.msra.mxu0 %v1199
      %1622 = vmatprep.subr.bf16.mxu0 0
      %1623 = vmatpush1.bf16.msra.mxu0 %v1200
      %1624 = vmatprep.subr.bf16.mxu0 0
      %1625 = vmatpush1.bf16.msra.mxu0 %v1201
      %1626 = vmatprep.mubr.bf16.mxu0 %v505
      %1627 = vmatmul.mubr.bf16.gmra.mrb[0].mxu0 %v504
      %v1628 = vpop.f32.mrb[0].mxu0
      %v1629 = vadd.f32 %v1589, %v1628
      %v1630 = vpop.f32.mrb[0].mxu0
      %v1631 = vpop.f32.mrb[0].mxu0
      %v1632 = vpop.f32.mrb[0].mxu0
      %1633 = vdwg.mxu0
      %1634 = vmatprep.subr.bf16.mxu0 0
      %1635 = vmatpush1.bf16.msra.mxu0 %v1202
      %1636 = vmatprep.subr.bf16.mxu0 0
      %1637 = vmatpush1.bf16.msra.mxu0 %v1203
      %1638 = vmatprep.subr.bf16.mxu0 0
      %1639 = vmatpush1.bf16.msra.mxu0 %v1204
      %1640 = vmatprep.subr.bf16.mxu0 0
      %1641 = vmatpush1.bf16.msra.mxu0 %v1205
      %1642 = vmatprep.subr.bf16.mxu0 0
      %1643 = vmatpush1.bf16.msra.mxu0 %v1206
      %1644 = vmatprep.subr.bf16.mxu0 0
      %1645 = vmatpush1.bf16.msra.mxu0 %v1207
      %1646 = vmatprep.subr.bf16.mxu0 0
      %1647 = vmatpush1.bf16.msra.mxu0 %v1208
      %1648 = vmatprep.subr.bf16.mxu0 0
      %1649 = vmatpush1.bf16.msra.mxu0 %v1209
      %1650 = vmatprep.subr.bf16.mxu0 0
      %1651 = vmatpush1.bf16.msra.mxu0 %v1210
      %1652 = vmatprep.subr.bf16.mxu0 0
      %1653 = vmatpush1.bf16.msra.mxu0 %v1211
      %1654 = vmatprep.subr.bf16.mxu0 0
      %1655 = vmatpush1.bf16.msra.mxu0 %v1212
      %1656 = vmatprep.subr.bf16.mxu0 0
      %1657 = vmatpush1.bf16.msra.mxu0 %v1213
      %1658 = vmatprep.subr.bf16.mxu0 0
      %1659 = vmatpush1.bf16.msra.mxu0 %v1214
      %1660 = vmatprep.subr.bf16.mxu0 0
      %1661 = vmatpush1.bf16.msra.mxu0 %v1215
      %1662 = vmatprep.subr.bf16.mxu0 0
      %1663 = vmatpush1.bf16.msra.mxu0 %v1216
      %1664 = vmatprep.subr.bf16.mxu0 0
      %1665 = vmatpush1.bf16.msra.mxu0 %v1217
      %1666 = vmatprep.mubr.bf16.mxu0 %v507
      %1667 = vmatmul.mubr.bf16.gmra.mrb[0].mxu0 %v506
      %v1668 = vpop.f32.mrb[0].mxu0
      %v1669 = vadd.f32 %v1629, %v1668
      %v1670 = vpop.f32.mrb[0].mxu0
      %v1671 = vpop.f32.mrb[0].mxu0
      %v1672 = vpop.f32.mrb[0].mxu0
      %1673 = vdwg.mxu0
      %1674 = vmatprep.subr.bf16.mxu0 0
      %1675 = vmatpush1.bf16.msra.mxu0 %v1218
      %1676 = vmatprep.subr.bf16.mxu0 0
      %1677 = vmatpush1.bf16.msra.mxu0 %v1219
      %1678 = vmatprep.subr.bf16.mxu0 0
      %1679 = vmatpush1.bf16.msra.mxu0 %v1220
      %1680 = vmatprep.subr.bf16.mxu0 0
      %1681 = vmatpush1.bf16.msra.mxu0 %v1221
      %1682 = vmatprep.subr.bf16.mxu0 0
      %1683 = vmatpush1.bf16.msra.mxu0 %v1222
      %1684 = vmatprep.subr.bf16.mxu0 0
      %1685 = vmatpush1.bf16.msra.mxu0 %v1223
      %1686 = vmatprep.subr.bf16.mxu0 0
      %1687 = vmatpush1.bf16.msra.mxu0 %v1224
      %1688 = vmatprep.subr.bf16.mxu0 0
      %1689 = vmatpush1.bf16.msra.mxu0 %v1225
      %1690 = vmatprep.subr.bf16.mxu0 0
      %1691 = vmatpush1.bf16.msra.mxu0 %v1226
      %1692 = vmatprep.subr.bf16.mxu0 0
      %1693 = vmatpush1.bf16.msra.mxu0 %v1227
      %1694 = vmatprep.subr.bf16.mxu0 0
      %1695 = vmatpush1.bf16.msra.mxu0 %v1228
      %1696 = vmatprep.subr.bf16.mxu0 0
      %1697 = vmatpush1.bf16.msra.mxu0 %v1229
      %1698 = vmatprep.subr.bf16.mxu0 0
      %1699 = vmatpush1.bf16.msra.mxu0 %v1230
      %1700 = vmatprep.subr.bf16.mxu0 0
      %1701 = vmatpush1.bf16.msra.mxu0 %v1231
      %1702 = vmatprep.subr.bf16.mxu0 0
      %1703 = vmatpush1.bf16.msra.mxu0 %v1232
      %1704 = vmatprep.subr.bf16.mxu0 0
      %1705 = vmatpush1.bf16.msra.mxu0 %v1233
      %1706 = vmatprep.mubr.bf16.mxu0 %v509
      %1707 = vmatmul.mubr.bf16.gmra.mrb[0].mxu0 %v508
      %v1708 = vpop.f32.mrb[0].mxu0
      %v1709 = vadd.f32 %v1669, %v1708
      %v1710 = vpop.f32.mrb[0].mxu0
      %v1711 = vpop.f32.mrb[0].mxu0
      %v1712 = vpop.f32.mrb[0].mxu0
      %1713 = vdwg.mxu0
      %1714 = vmatprep.subr.bf16.mxu0 0
      %1715 = vmatpush1.bf16.msra.mxu0 %v1234
      %1716 = vmatprep.subr.bf16.mxu0 0
      %1717 = vmatpush1.bf16.msra.mxu0 %v1235
      %1718 = vmatprep.subr.bf16.mxu0 0
      %1719 = vmatpush1.bf16.msra.mxu0 %v1236
      %1720 = vmatprep.subr.bf16.mxu0 0
      %1721 = vmatpush1.bf16.msra.mxu0 %v1237
      %1722 = vmatprep.subr.bf16.mxu0 0
      %1723 = vmatpush1.bf16.msra.mxu0 %v1238
      %1724 = vmatprep.subr.bf16.mxu0 0
      %1725 = vmatpush1.bf16.msra.mxu0 %v1239
      %1726 = vmatprep.subr.bf16.mxu0 0
      %1727 = vmatpush1.bf16.msra.mxu0 %v1240
      %1728 = vmatprep.subr.bf16.mxu0 0
      %1729 = vmatpush1.bf16.msra.mxu0 %v1241
      %1730 = vmatprep.subr.bf16.mxu0 0
      %1731 = vmatpush1.bf16.msra.mxu0 %v1242
      %1732 = vmatprep.subr.bf16.mxu0 0
      %1733 = vmatpush1.bf16.msra.mxu0 %v1243
      %1734 = vmatprep.subr.bf16.mxu0 0
      %1735 = vmatpush1.bf16.msra.mxu0 %v1244
      %1736 = vmatprep.subr.bf16.mxu0 0
      %1737 = vmatpush1.bf16.msra.mxu0 %v1245
      %1738 = vmatprep.subr.bf16.mxu0 0
      %1739 = vmatpush1.bf16.msra.mxu0 %v1246
      %1740 = vmatprep.subr.bf16.mxu0 0
      %1741 = vmatpush1.bf16.msra.mxu0 %v1247
      %1742 = vmatprep.subr.bf16.mxu0 0
      %1743 = vmatpush1.bf16.msra.mxu0 %v1248
      %1744 = vmatprep.subr.bf16.mxu0 0
      %1745 = vmatpush1.bf16.msra.mxu0 %v1249
      %1746 = vmatprep.mubr.bf16.mxu0 %v511
      %1747 = vmatmul.mubr.bf16.gmra.mrb[0].mxu0 %v510
      %v1748 = vpop.f32.mrb[0].mxu0
      %v1749 = vadd.f32 %v1709, %v1748
      %v1750 = vpop.f32.mrb[0].mxu0
      %v1751 = vpop.f32.mrb[0].mxu0
      %v1752 = vpop.f32.mrb[0].mxu0
      %1753 = vdwg.mxu0
      %v1754 = vld [vmem:[%s2] sm:$0x1]
      %v1756 = vlaneseq
      %v1757 = vshrl.u32 %v1756, 7
      %v1758 = vsub.s32 0, %v1757
      %v1759 = vrot.slane %v1754, %v1758
      %v1761 = vsub.f32 %v1749, %v1759
      %v1762 = vsub.f32 0.0, %v1749
      %v1763 = vsub.f32 %v1762, %v1759
      %vm1764 = vcmp.ge.f32.partialorder %v1761, 0.0
      %v1765 = vmul.f32 %v1761, 0.001
      %v1766 = vsel %vm1764, %v1761, %v1765
      %vm1767 = vcmp.ge.f32.partialorder %v1763, 0.0
      %v1768 = vmul.f32 %v1763, 0.01
      %v1769 = vsel %vm1767, %v1763, %v1768
      %v1770 = vsub.f32 %v1766, %v1769
      %v1771 = vpack.c.bf16 %v1770, %v1770
      %1772 = vst [vmem:[%s168] sm:$0xf] %v1771
      %p1773 = scmp.lt.s32.totalorder %s14, 1
      %s1774 = scalar_select %p1773, %s14, 1
      %s1775 = smul.addr %s1774, 4
      %s1776 = scalar_lea.vmem %s3, %s1775
      // Predicated region
      $region33: #{_lambda_.12} parent=31 // pred_check
        %p1777 = pneg %p100
      $region34: #{_lambda_.12} parent=31 // pred_check_branch
        %1779 = sbr.rel (%p1777) target = $region36
      $region35: #{_lambda_.12} parent=31 // pred_region
        _
      $region36: #{_lambda_.12} parent=31 // pred_fallthru
        _
    $region32: #{_lambda_.12} parent=5 // pred_fallthru
      _
    %p1780 = scmp.le.s32.totalorder 2, %s9
    // Predicated region
    $region37: #{_lambda_.12} parent=5 // pred_check
      %p1781 = pneg %p1780
    $region38: #{_lambda_.12} parent=5 // pred_check_branch
      %1783 = sbr.rel (%p1781) target = $region40
    $region39: #{_lambda_.12} parent=5 // pred_region
      %s1784 = ssub.s32 %s9, 2
      // Predicated region
      $region41: #{_lambda_.12} parent=39 // pred_check
        %p1785 = pneg %p106
      $region42: #{_lambda_.12} parent=39 // pred_check_branch
        %1787 = sbr.rel (%p1785) target = $region44
      $region43: #{_lambda_.12} parent=39 // pred_region
        %p1788 = scmp.lt.s32.totalorder %s15, 1
        %s1789 = scalar_select %p1788, %s15, 1
        %s1790 = smul.addr %s1789, 4
        %s1791 = scalar_lea.vmem %s3, %s1790
      $region44: #{_lambda_.12} parent=39 // pred_fallthru
        _
    $region40: #{_lambda_.12} parent=5 // pred_fallthru
      _
  $region6: #{_lambda_.12} parent=0 // loop_footer
    %s13 = sadd.s32 1, %s9
  $region7: #{_lambda_.12} parent=0 // loop_footer_branch
    %8 = sbr.rel target = $region3
  $region8: #{_lambda_.12} parent=0 // loop_exit
    _

// kernel: _lambda_.13
$region0: #{_lambda_.13}
  #allocation0 [shape = 'u32[]', space=smem, size = 0x4, offset = 0x4, fixed_abs, tag = 'smem constant byte address 0x4 - core index']
  #allocation1 [shape = 'u32[144,128]{1,0:T(1,128)}', space=vmem, size = 0x12000, scoped, tag = 'internal scratch']
  %s0 = inlined_call_operand.vmem [shape: bf16[32,256], index: 0, kind: input, shape index: {}]
  %s1 = inlined_call_operand.vmem [shape: bf16[32,256], index: 1, kind: output, shape index: {}]
  %s2 = sld [smem:[#allocation0]]
  $region37: #{_lambda_.13} parent=0
    _
  %s4 = ssub.s32 1, %s2
  %s5 = scalar_select 0, %s4, %s2
  loop: start=0, step=1, limit=4
  $region2: #{_lambda_.13} parent=0 // loop_pre_header
    _
  $region3: #{_lambda_.13} parent=0 // loop_header
    %s7 = sphi 0, %s11
    %p8 = scmp.ge.s32.totalorder %s7, 4
    %s17 = sphi 0, %s19
    %s20 = sphi 0, %s17
    %s21 = sphi 0, %s20
    %s37 = sphi 0, %s21
    %s43 = sphi 0, %s45
    %s46 = sphi 0, %s43
    %s47 = sphi 0, %s46
    %s63 = sphi 0, %s47
  $region4: #{_lambda_.13} parent=0 // loop_header_branch
    %10 = sbr.rel (%p8) target = $region8
  $region5: #{_lambda_.13} parent=0 // loop_body
    %s12 = ssub.s32 %s7, 1
    %s13 = ssub.s32 %s7, 2
    %s14 = sadd.s32 %s7, 1
    %s15 = ssub.s32 %s7, %s14
    %p16 = scmp.eq.s32.totalorder %s15, 0
    %s18 = sadd.s32 %s17, 1
    %s19 = scalar_select %p16, %s17, %s18
    %p22 = pneg %p16
    %p23 = scmp.eq.s32.totalorder %s7, 1
    %p24 = por %p22, %p23
    %p25 = scmp.ne.s32.totalorder %s17, %s20
    %p26 = scmp.eq.s32.totalorder %s7, 0
    %p27 = por %p25, %p26
    %p28 = scmp.ne.s32.totalorder %s17, %s20
    %p29 = scmp.eq.s32.totalorder %s12, 1
    %p30 = por %p28, %p29
    %p31 = scmp.ne.s32.totalorder %s20, %s21
    %p32 = scmp.eq.s32.totalorder %s12, 0
    %p33 = por %p31, %p32
    %p34 = scmp.ne.s32.totalorder %s20, %s21
    %p35 = scmp.eq.s32.totalorder %s13, 1
    %p36 = por %p34, %p35
    %p38 = scmp.ne.s32.totalorder %s21, %s37
    %p39 = scmp.eq.s32.totalorder %s13, 0
    %p40 = por %p38, %p39
    %s41 = ssub.s32 %s7, %s14
    %p42 = scmp.eq.s32.totalorder %s41, 0
    %s44 = sadd.s32 %s43, 1
    %s45 = scalar_select %p42, %s43, %s44
    %p48 = pneg %p42
    %p49 = scmp.eq.s32.totalorder %s7, 1
    %p50 = por %p48, %p49
    %p51 = scmp.ne.s32.totalorder %s43, %s46
    %p52 = scmp.eq.s32.totalorder %s7, 0
    %p53 = por %p51, %p52
    %p54 = scmp.ne.s32.totalorder %s43, %s46
    %p55 = scmp.eq.s32.totalorder %s12, 1
    %p56 = por %p54, %p55
    %p57 = scmp.ne.s32.totalorder %s46, %s47
    %p58 = scmp.eq.s32.totalorder %s12, 0
    %p59 = por %p57, %p58
    %p60 = scmp.ne.s32.totalorder %s46, %s47
    %p61 = scmp.eq.s32.totalorder %s13, 1
    %p62 = por %p60, %p61
    %p64 = scmp.ne.s32.totalorder %s47, %s63
    %p65 = scmp.eq.s32.totalorder %s13, 0
    %p66 = por %p64, %p65
    %p67 = scmp.le.s32.totalorder 1, %s7
    %p68 = scmp.lt.s32.totalorder %s7, 3
    %p69 = pnand %p67, %p68
    %p70 = pneg %p69
    // Predicated region
    $region9: #{_lambda_.13} parent=5 // pred_check
      _
    $region10: #{_lambda_.13} parent=5 // pred_check_branch
      %72 = sbr.rel (%p69) target = $region12
    $region11: #{_lambda_.13} parent=5 // pred_region
      %s73 = ssub.s32 %s7, 1
    $region12: #{_lambda_.13} parent=5 // pred_fallthru
      _
    %p74 = scmp.lt.s32.totalorder %s7, 2
    // Predicated region
    $region13: #{_lambda_.13} parent=5 // pred_check
      %p75 = pneg %p74
    $region14: #{_lambda_.13} parent=5 // pred_check_branch
      %77 = sbr.rel (%p75) target = $region16
    $region15: #{_lambda_.13} parent=5 // pred_region
      // Predicated region
      $region17: #{_lambda_.13} parent=15 // pred_check
        %p78 = pneg %p27
      $region18: #{_lambda_.13} parent=15 // pred_check_branch
        %80 = sbr.rel (%p78) target = $region20
      $region19: #{_lambda_.13} parent=15 // pred_region
        %s81 = smul.u32 2, %s7
        %p82 = scmp.lt.s32.totalorder %s81, 3
        %s83 = scalar_select %p82, %s81, 3
        %s84 = smul.addr %s83, 2
        %s85 = smul.addr %s84, 4
        %s86 = scalar_lea.vmem %s0, %s85
        %s87 = smul.u32 2, %s7
      $region20: #{_lambda_.13} parent=15 // pred_fallthru
        _
    $region16: #{_lambda_.13} parent=5 // pred_fallthru
      _
    %p88 = scmp.le.s32.totalorder 1, %s7
    %p89 = scmp.lt.s32.totalorder %s7, 3
    %p90 = pnand %p88, %p89
    %p91 = pneg %p90
    // Predicated region
    $region21: #{_lambda_.13} parent=5 // pred_check
      _
    $region22: #{_lambda_.13} parent=5 // pred_check_branch
      %93 = sbr.rel (%p90) target = $region24
    $region23: #{_lambda_.13} parent=5 // pred_region
      %s94 = ssub.s32 %s7, 1
      %s95 = smul.u32 2, %s12
      %p96 = scmp.lt.s32.totalorder %s95, 3
      %s97 = scalar_select %p96, %s95, 3
      %s98 = smul.addr %s97, 2
      %s99 = smul.addr %s98, 4
      %s100 = scalar_lea.vmem %s0, %s99
      %p101 = pneg %p33
      %p102 = pneg %p30
      %p103 = pneg %p59
      %p104 = pneg %p56
      %s105 = smul.u32 2, %s12
      %p106 = scmp.lt.s32.totalorder %s105, 3
      %s107 = scalar_select %p106, %s105, 3
      %s108 = smul.addr %s107, 2
      %s109 = smul.addr %s108, 4
      %s110 = scalar_lea.vmem %s1, %s109
      %s111 = smul.u32 2, %s12
      %p112 = scmp.lt.s32.totalorder %s111, 3
      %s113 = scalar_select %p112, %s111, 3
      %s114 = smul.addr %s113, 2
      %s115 = smul.addr %s114, 4
      %s116 = scalar_lea.vmem %s0, %s115
      %s117 = smul.u32 2, %s12
      %s118 = smul.u32 2, %s12
      %p119 = scmp.lt.s32.totalorder %s118, 3
      %s120 = scalar_select %p119, %s118, 3
      %s121 = smul.addr %s120, 2
      %s122 = smul.addr %s121, 4
      %s123 = scalar_lea.vmem %s1, %s122
      %s124 = smul.u32 2, %s12
      %v125 = vld [vmem:[%s116] sm:$0xff]
      %v126 = vld [vmem:[%s116 + $0x8] sm:$0xff]
      %v127 = vunpack.c.l.bf16 %v125
      %v128 = vunpack.c.h.bf16 %v125
      %v129 = vunpack.c.l.bf16 %v126
      %v130 = vunpack.c.h.bf16 %v126
      %133 = vrot.lane.b32.xlu0 %v127, 64
      %v134 = vpop.permute.xlu0 %133
      %135 = vrot.lane.b32.xlu0 %v129, 64
      %v136 = vpop.permute.xlu0 %135
      %v139 = vsub.f32 %v127, %v134
      %v140 = vsub.f32 %v129, %v136
      %v141 = vsub.f32 %v139, %v128
      %v142 = vsub.f32 %v140, %v130
      %145 = vrot.lane.b32.xlu0 %v128, 64
      %v146 = vpop.permute.xlu0 %145
      %147 = vrot.lane.b32.xlu0 %v130, 64
      %v148 = vpop.permute.xlu0 %147
      %v151 = vadd.f32 %v141, %v146
      %v152 = vadd.f32 %v142, %v148
      %v153 = vmul.f32 %v151, 0.5
      %v154 = vmul.f32 %v152, 0.5
      %v155 = vadd.f32 %v127, %v134
      %v156 = vadd.f32 %v129, %v136
      %v157 = vsub.f32 %v155, %v128
      %v158 = vsub.f32 %v156, %v130
      %v159 = vsub.f32 %v157, %v146
      %v160 = vsub.f32 %v158, %v148
      %v161 = vmul.f32 %v159, 0.5
      %v162 = vmul.f32 %v160, 0.5
      %v163 = vadd.f32 %v139, %v128
      %v164 = vadd.f32 %v140, %v130
      %v165 = vsub.f32 %v163, %v146
      %v166 = vsub.f32 %v164, %v148
      %v167 = vmul.f32 %v165, 0.5
      %v168 = vmul.f32 %v166, 0.5
      %v169 = vadd.f32 %v155, %v128
      %v170 = vadd.f32 %v156, %v130
      %v171 = vadd.f32 %v169, %v146
      %v172 = vadd.f32 %v170, %v148
      %v173 = vmul.f32 %v171, 0.5
      %v174 = vmul.f32 %v172, 0.5
      %177 = vrot.lane.b32.xlu0 %v161, 64
      %v178 = vpop.permute.xlu0 %177
      %179 = vrot.lane.b32.xlu0 %v162, 64
      %v180 = vpop.permute.xlu0 %179
      %185 = vrot.lane.b32.xlu0 %v173, 64
      %v186 = vpop.permute.xlu0 %185
      %187 = vrot.lane.b32.xlu0 %v174, 64
      %v188 = vpop.permute.xlu0 %187
      %vm191 = vcmask 523264
      %v192 = vsel %vm191, %v153, %v178
      %v193 = vsel %vm191, %v154, %v180
      %v194 = vsel %vm191, %v167, %v186
      %v195 = vsel %vm191, %v168, %v188
      %v196 = vpack.c.bf16 %v193, %v192
      %v197 = vpack.c.bf16 %v195, %v194
      %v200 = vunpack.c.l.b16 %v196
      %v201 = vunpack.c.l.b16 %v197
      %v202 = vunpack.c.h.b16 %v196
      %v203 = vunpack.c.h.b16 %v197
      %v204 = vpack.c.b16 %v201, %v200
      %v205 = vpack.c.b16 %v203, %v202
      %208 = vst [vmem:[%s123] sm:$0xff] %v204
      %209 = vst [vmem:[%s123 + $0x8] sm:$0xff] %v205
      %s210 = smul.u32 2, %s12
      %p211 = scmp.lt.s32.totalorder %s210, 3
      %s212 = scalar_select %p211, %s210, 3
      %s213 = smul.addr %s212, 2
      %s214 = smul.addr %s213, 4
      %s215 = scalar_lea.vmem %s1, %s214
      // Predicated region
      $region25: #{_lambda_.13} parent=23 // pred_check
        %p216 = pneg %p56
      $region26: #{_lambda_.13} parent=23 // pred_check_branch
        %218 = sbr.rel (%p216) target = $region28
      $region27: #{_lambda_.13} parent=23 // pred_region
        %s219 = smul.u32 2, %s12
      $region28: #{_lambda_.13} parent=23 // pred_fallthru
        _
    $region24: #{_lambda_.13} parent=5 // pred_fallthru
      _
    %p220 = scmp.le.s32.totalorder 2, %s7
    // Predicated region
    $region29: #{_lambda_.13} parent=5 // pred_check
      %p221 = pneg %p220
    $region30: #{_lambda_.13} parent=5 // pred_check_branch
      %223 = sbr.rel (%p221) target = $region32
    $region31: #{_lambda_.13} parent=5 // pred_region
      %s224 = ssub.s32 %s7, 2
      // Predicated region
      $region33: #{_lambda_.13} parent=31 // pred_check
        %p225 = pneg %p62
      $region34: #{_lambda_.13} parent=31 // pred_check_branch
        %227 = sbr.rel (%p225) target = $region36
      $region35: #{_lambda_.13} parent=31 // pred_region
        %s228 = smul.u32 2, %s13
        %p229 = scmp.lt.s32.totalorder %s228, 3
        %s230 = scalar_select %p229, %s228, 3
        %s231 = smul.addr %s230, 2
        %s232 = smul.addr %s231, 4
        %s233 = scalar_lea.vmem %s1, %s232
      $region36: #{_lambda_.13} parent=31 // pred_fallthru
        _
    $region32: #{_lambda_.13} parent=5 // pred_fallthru
      _
  $region6: #{_lambda_.13} parent=0 // loop_footer
    %s11 = sadd.s32 1, %s7
  $region7: #{_lambda_.13} parent=0 // loop_footer_branch
    %6 = sbr.rel target = $region3
  $region8: #{_lambda_.13} parent=0 // loop_exit
    _

// kernel: _lambda_.14
$region0: #{_lambda_.14}
  #allocation0 [shape = 'u32[]', space=smem, size = 0x4, offset = 0x4, fixed_abs, tag = 'smem constant byte address 0x4 - core index']
  #allocation1 [shape = 'u32[144,128]{1,0:T(1,128)}', space=vmem, size = 0x12000, scoped, tag = 'internal scratch']
  %s0 = inlined_call_operand.vmem [shape: bf16[64,2304], index: 0, kind: input, shape index: {}]
  %s1 = inlined_call_operand.vmem [shape: bf16[2304,128], index: 1, kind: input, shape index: {}]
  %s2 = inlined_call_operand.vmem [shape: f32[1,128], index: 2, kind: input, shape index: {}]
  %s3 = inlined_call_operand.vmem [shape: bf16[64,128], index: 3, kind: output, shape index: {}]
  %s4 = sld [smem:[#allocation0]]
  $region45: #{_lambda_.14} parent=0
    _
  %s6 = ssub.s32 1, %s4
  %s7 = scalar_select 0, %s6, %s4
  loop: start=0, step=1, limit=4
  $region2: #{_lambda_.14} parent=0 // loop_pre_header
    _
  $region3: #{_lambda_.14} parent=0 // loop_header
    %s9 = sphi 0, %s13
    %p10 = scmp.ge.s32.totalorder %s9, 4
    %s19 = sphi 0, %s21
    %s22 = sphi 0, %s19
    %s23 = sphi 0, %s22
    %s39 = sphi 0, %s23
    %s43 = sphi 0, %s43
    %s45 = sphi 0, %s43
    %s46 = sphi 0, %s45
    %s60 = sphi 0, %s46
    %s64 = sphi 0, %s64
    %s66 = sphi 0, %s64
    %s67 = sphi 0, %s66
    %s81 = sphi 0, %s67
    %s87 = sphi 0, %s89
    %s90 = sphi 0, %s87
    %s91 = sphi 0, %s90
    %s107 = sphi 0, %s91
  $region4: #{_lambda_.14} parent=0 // loop_header_branch
    %12 = sbr.rel (%p10) target = $region8
  $region5: #{_lambda_.14} parent=0 // loop_body
    %s14 = ssub.s32 %s9, 1
    %s15 = ssub.s32 %s9, 2
    %s16 = sadd.s32 %s9, 1
    %s17 = ssub.s32 %s9, %s16
    %p18 = scmp.eq.s32.totalorder %s17, 0
    %s20 = sadd.s32 %s19, 1
    %s21 = scalar_select %p18, %s19, %s20
    %p24 = pneg %p18
    %p25 = scmp.eq.s32.totalorder %s9, 1
    %p26 = por %p24, %p25
    %p27 = scmp.ne.s32.totalorder %s19, %s22
    %p28 = scmp.eq.s32.totalorder %s9, 0
    %p29 = por %p27, %p28
    %p30 = scmp.ne.s32.totalorder %s19, %s22
    %p31 = scmp.eq.s32.totalorder %s14, 1
    %p32 = por %p30, %p31
    %p33 = scmp.ne.s32.totalorder %s22, %s23
    %p34 = scmp.eq.s32.totalorder %s14, 0
    %p35 = por %p33, %p34
    %p36 = scmp.ne.s32.totalorder %s22, %s23
    %p37 = scmp.eq.s32.totalorder %s15, 1
    %p38 = por %p36, %p37
    %p40 = scmp.ne.s32.totalorder %s23, %s39
    %p41 = scmp.eq.s32.totalorder %s15, 0
    %p42 = por %p40, %p41
    %s44 = sadd.s32 %s43, 1
    %p47 = scmp.eq.s32.totalorder %s9, 1
    %p48 = scmp.ne.s32.totalorder %s43, %s45
    %p49 = scmp.eq.s32.totalorder %s9, 0
    %p50 = por %p48, %p49
    %p51 = scmp.ne.s32.totalorder %s43, %s45
    %p52 = scmp.eq.s32.totalorder %s14, 1
    %p53 = por %p51, %p52
    %p54 = scmp.ne.s32.totalorder %s45, %s46
    %p55 = scmp.eq.s32.totalorder %s14, 0
    %p56 = por %p54, %p55
    %p57 = scmp.ne.s32.totalorder %s45, %s46
    %p58 = scmp.eq.s32.totalorder %s15, 1
    %p59 = por %p57, %p58
    %p61 = scmp.ne.s32.totalorder %s46, %s60
    %p62 = scmp.eq.s32.totalorder %s15, 0
    %p63 = por %p61, %p62
    %s65 = sadd.s32 %s64, 1
    %p68 = scmp.eq.s32.totalorder %s9, 1
    %p69 = scmp.ne.s32.totalorder %s64, %s66
    %p70 = scmp.eq.s32.totalorder %s9, 0
    %p71 = por %p69, %p70
    %p72 = scmp.ne.s32.totalorder %s64, %s66
    %p73 = scmp.eq.s32.totalorder %s14, 1
    %p74 = por %p72, %p73
    %p75 = scmp.ne.s32.totalorder %s66, %s67
    %p76 = scmp.eq.s32.totalorder %s14, 0
    %p77 = por %p75, %p76
    %p78 = scmp.ne.s32.totalorder %s66, %s67
    %p79 = scmp.eq.s32.totalorder %s15, 1
    %p80 = por %p78, %p79
    %p82 = scmp.ne.s32.totalorder %s67, %s81
    %p83 = scmp.eq.s32.totalorder %s15, 0
    %p84 = por %p82, %p83
    %s85 = ssub.s32 %s9, %s16
    %p86 = scmp.eq.s32.totalorder %s85, 0
    %s88 = sadd.s32 %s87, 1
    %s89 = scalar_select %p86, %s87, %s88
    %p92 = pneg %p86
    %p93 = scmp.eq.s32.totalorder %s9, 1
    %p94 = por %p92, %p93
    %p95 = scmp.ne.s32.totalorder %s87, %s90
    %p96 = scmp.eq.s32.totalorder %s9, 0
    %p97 = por %p95, %p96
    %p98 = scmp.ne.s32.totalorder %s87, %s90
    %p99 = scmp.eq.s32.totalorder %s14, 1
    %p100 = por %p98, %p99
    %p101 = scmp.ne.s32.totalorder %s90, %s91
    %p102 = scmp.eq.s32.totalorder %s14, 0
    %p103 = por %p101, %p102
    %p104 = scmp.ne.s32.totalorder %s90, %s91
    %p105 = scmp.eq.s32.totalorder %s15, 1
    %p106 = por %p104, %p105
    %p108 = scmp.ne.s32.totalorder %s91, %s107
    %p109 = scmp.eq.s32.totalorder %s15, 0
    %p110 = por %p108, %p109
    %p111 = scmp.le.s32.totalorder 1, %s9
    %p112 = scmp.lt.s32.totalorder %s9, 3
    %p113 = pnand %p111, %p112
    %p114 = pneg %p113
    // Predicated region
    $region9: #{_lambda_.14} parent=5 // pred_check
      _
    $region10: #{_lambda_.14} parent=5 // pred_check_branch
      %116 = sbr.rel (%p113) target = $region12
    $region11: #{_lambda_.14} parent=5 // pred_region
      %s117 = ssub.s32 %s9, 1
      // Predicated region
      $region13: #{_lambda_.14} parent=11 // pred_check
        %p118 = pneg %p56
      $region14: #{_lambda_.14} parent=11 // pred_check_branch
        %120 = sbr.rel (%p118) target = $region16
      $region15: #{_lambda_.14} parent=11 // pred_region
        _
      $region16: #{_lambda_.14} parent=11 // pred_fallthru
        _
      // Predicated region
      $region17: #{_lambda_.14} parent=11 // pred_check
        %p121 = pneg %p77
      $region18: #{_lambda_.14} parent=11 // pred_check_branch
        %123 = sbr.rel (%p121) target = $region20
      $region19: #{_lambda_.14} parent=11 // pred_region
        _
      $region20: #{_lambda_.14} parent=11 // pred_fallthru
        _
    $region12: #{_lambda_.14} parent=5 // pred_fallthru
      _
    %p124 = scmp.lt.s32.totalorder %s9, 2
    // Predicated region
    $region21: #{_lambda_.14} parent=5 // pred_check
      %p125 = pneg %p124
    $region22: #{_lambda_.14} parent=5 // pred_check_branch
      %127 = sbr.rel (%p125) target = $region24
    $region23: #{_lambda_.14} parent=5 // pred_region
      // Predicated region
      $region25: #{_lambda_.14} parent=23 // pred_check
        %p128 = pneg %p29
      $region26: #{_lambda_.14} parent=23 // pred_check_branch
        %130 = sbr.rel (%p128) target = $region28
      $region27: #{_lambda_.14} parent=23 // pred_region
        %s131 = smul.u32 4, %s9
        %p132 = scmp.lt.s32.totalorder %s131, 7
        %s133 = scalar_select %p132, %s131, 7
        %s134 = smul.addr %s133, 18
        %s135 = smul.addr %s134, 4
        %s136 = scalar_lea.vmem %s0, %s135
        %s137 = smul.u32 4, %s9
      $region28: #{_lambda_.14} parent=23 // pred_fallthru
        _
    $region24: #{_lambda_.14} parent=5 // pred_fallthru
      _
    %p138 = scmp.le.s32.totalorder 1, %s9
    %p139 = scmp.lt.s32.totalorder %s9, 3
    %p140 = pnand %p138, %p139
    %p141 = pneg %p140
    // Predicated region
    $region29: #{_lambda_.14} parent=5 // pred_check
      _
    $region30: #{_lambda_.14} parent=5 // pred_check_branch
      %143 = sbr.rel (%p140) target = $region32
    $region31: #{_lambda_.14} parent=5 // pred_region
      %s144 = ssub.s32 %s9, 1
      %s145 = smul.u32 4, %s14
      %p146 = scmp.lt.s32.totalorder %s145, 7
      %s147 = scalar_select %p146, %s145, 7
      %s148 = smul.addr %s147, 18
      %s149 = smul.addr %s148, 4
      %s150 = scalar_lea.vmem %s0, %s149
      %p151 = pneg %p35
      %p152 = pneg %p32
      %p153 = pneg %p56
      %p154 = pneg %p53
      %p155 = pneg %p77
      %p156 = pneg %p74
      %p157 = pneg %p103
      %p158 = pneg %p100
      %s159 = smul.u32 4, %s14
      %p160 = scmp.lt.s32.totalorder %s159, 7
      %s161 = scalar_select %p160, %s159, 7
      %s162 = smul.addr %s161, 4
      %s163 = scalar_lea.vmem %s3, %s162
      %s164 = smul.u32 4, %s14
      %p165 = scmp.lt.s32.totalorder %s164, 7
      %s166 = scalar_select %p165, %s164, 7
      %s167 = smul.addr %s166, 18
      %s168 = smul.addr %s167, 4
      %s169 = scalar_lea.vmem %s0, %s168
      %s170 = smul.u32 4, %s14
      %s171 = smul.u32 4, %s14
      %p172 = scmp.lt.s32.totalorder %s171, 7
      %s173 = scalar_select %p172, %s171, 7
      %s174 = smul.addr %s173, 4
      %s175 = scalar_lea.vmem %s3, %s174
      %s176 = smul.u32 4, %s14
      %v178 = vld [vmem:[%s169] sm:$0xff]
      %v179 = vld [vmem:[%s169 + $0x8] sm:$0xff]
      %v180 = vld [vmem:[%s169 + $0x10] sm:$0xff]
      %v181 = vld [vmem:[%s169 + $0x18] sm:$0xff]
      %v182 = vld [vmem:[%s169 + $0x20] sm:$0xff]
      %v183 = vld [vmem:[%s169 + $0x28] sm:$0xff]
      %v184 = vld [vmem:[%s169 + $0x30] sm:$0xff]
      %v185 = vld [vmem:[%s169 + $0x38] sm:$0xff]
      %v186 = vld [vmem:[%s169 + $0x40] sm:$0xff]
      %v187 = vld [vmem:[%s169 + $0x48] sm:$0xff]
      %v188 = vld [vmem:[%s169 + $0x50] sm:$0xff]
      %v189 = vld [vmem:[%s169 + $0x58] sm:$0xff]
      %v190 = vld [vmem:[%s169 + $0x60] sm:$0xff]
      %v191 = vld [vmem:[%s169 + $0x68] sm:$0xff]
      %v192 = vld [vmem:[%s169 + $0x70] sm:$0xff]
      %v193 = vld [vmem:[%s169 + $0x78] sm:$0xff]
      %v194 = vld [vmem:[%s169 + $0x80] sm:$0xff]
      %v195 = vld [vmem:[%s169 + $0x88] sm:$0xff]
      %v196 = vld [vmem:[%s169 + $0x90] sm:$0xff]
      %v197 = vld [vmem:[%s169 + $0x98] sm:$0xff]
      %v198 = vld [vmem:[%s169 + $0xa0] sm:$0xff]
      %v199 = vld [vmem:[%s169 + $0xa8] sm:$0xff]
      %v200 = vld [vmem:[%s169 + $0xb0] sm:$0xff]
      %v201 = vld [vmem:[%s169 + $0xb8] sm:$0xff]
      %v202 = vld [vmem:[%s169 + $0xc0] sm:$0xff]
      %v203 = vld [vmem:[%s169 + $0xc8] sm:$0xff]
      %v204 = vld [vmem:[%s169 + $0xd0] sm:$0xff]
      %v205 = vld [vmem:[%s169 + $0xd8] sm:$0xff]
      %v206 = vld [vmem:[%s169 + $0xe0] sm:$0xff]
      %v207 = vld [vmem:[%s169 + $0xe8] sm:$0xff]
      %v208 = vld [vmem:[%s169 + $0xf0] sm:$0xff]
      %v209 = vld [vmem:[%s169 + $0xf8] sm:$0xff]
      %v210 = vld [vmem:[%s169 + $0x100] sm:$0xff]
      %v211 = vld [vmem:[%s169 + $0x108] sm:$0xff]
      %v212 = vld [vmem:[%s169 + $0x110] sm:$0xff]
      %v213 = vld [vmem:[%s169 + $0x118] sm:$0xff]
      %v214 = vld [vmem:[%s1] sm:$0xf]
      %v215 = vld [vmem:[%s1 + $0x4] sm:$0xf]
      %v216 = vld [vmem:[%s1 + $0x8] sm:$0xf]
      %v217 = vld [vmem:[%s1 + $0xc] sm:$0xf]
      %v218 = vld [vmem:[%s1 + $0x10] sm:$0xf]
      %v219 = vld [vmem:[%s1 + $0x14] sm:$0xf]
      %v220 = vld [vmem:[%s1 + $0x18] sm:$0xf]
      %v221 = vld [vmem:[%s1 + $0x1c] sm:$0xf]
      %v222 = vld [vmem:[%s1 + $0x20] sm:$0xf]
      %v223 = vld [vmem:[%s1 + $0x24] sm:$0xf]
      %v224 = vld [vmem:[%s1 + $0x28] sm:$0xf]
      %v225 = vld [vmem:[%s1 + $0x2c] sm:$0xf]
      %v226 = vld [vmem:[%s1 + $0x30] sm:$0xf]
      %v227 = vld [vmem:[%s1 + $0x34] sm:$0xf]
      %v228 = vld [vmem:[%s1 + $0x38] sm:$0xf]
      %v229 = vld [vmem:[%s1 + $0x3c] sm:$0xf]
      %v230 = vld [vmem:[%s1 + $0x40] sm:$0xf]
      %v231 = vld [vmem:[%s1 + $0x44] sm:$0xf]
      %v232 = vld [vmem:[%s1 + $0x48] sm:$0xf]
      %v233 = vld [vmem:[%s1 + $0x4c] sm:$0xf]
      %v234 = vld [vmem:[%s1 + $0x50] sm:$0xf]
      %v235 = vld [vmem:[%s1 + $0x54] sm:$0xf]
      %v236 = vld [vmem:[%s1 + $0x58] sm:$0xf]
      %v237 = vld [vmem:[%s1 + $0x5c] sm:$0xf]
      %v238 = vld [vmem:[%s1 + $0x60] sm:$0xf]
      %v239 = vld [vmem:[%s1 + $0x64] sm:$0xf]
      %v240 = vld [vmem:[%s1 + $0x68] sm:$0xf]
      %v241 = vld [vmem:[%s1 + $0x6c] sm:$0xf]
      %v242 = vld [vmem:[%s1 + $0x70] sm:$0xf]
      %v243 = vld [vmem:[%s1 + $0x74] sm:$0xf]
      %v244 = vld [vmem:[%s1 + $0x78] sm:$0xf]
      %v245 = vld [vmem:[%s1 + $0x7c] sm:$0xf]
      %v246 = vld [vmem:[%s1 + $0x80] sm:$0xf]
      %v247 = vld [vmem:[%s1 + $0x84] sm:$0xf]
      %v248 = vld [vmem:[%s1 + $0x88] sm:$0xf]
      %v249 = vld [vmem:[%s1 + $0x8c] sm:$0xf]
      %v250 = vld [vmem:[%s1 + $0x90] sm:$0xf]
      %v251 = vld [vmem:[%s1 + $0x94] sm:$0xf]
      %v252 = vld [vmem:[%s1 + $0x98] sm:$0xf]
      %v253 = vld [vmem:[%s1 + $0x9c] sm:$0xf]
      %v254 = vld [vmem:[%s1 + $0xa0] sm:$0xf]
      %v255 = vld [vmem:[%s1 + $0xa4] sm:$0xf]
      %v256 = vld [vmem:[%s1 + $0xa8] sm:$0xf]
      %v257 = vld [vmem:[%s1 + $0xac] sm:$0xf]
      %v258 = vld [vmem:[%s1 + $0xb0] sm:$0xf]
      %v259 = vld [vmem:[%s1 + $0xb4] sm:$0xf]
      %v260 = vld [vmem:[%s1 + $0xb8] sm:$0xf]
      %v261 = vld [vmem:[%s1 + $0xbc] sm:$0xf]
      %v262 = vld [vmem:[%s1 + $0xc0] sm:$0xf]
      %v263 = vld [vmem:[%s1 + $0xc4] sm:$0xf]
      %v264 = vld [vmem:[%s1 + $0xc8] sm:$0xf]
      %v265 = vld [vmem:[%s1 + $0xcc] sm:$0xf]
      %v266 = vld [vmem:[%s1 + $0xd0] sm:$0xf]
      %v267 = vld [vmem:[%s1 + $0xd4] sm:$0xf]
      %v268 = vld [vmem:[%s1 + $0xd8] sm:$0xf]
      %v269 = vld [vmem:[%s1 + $0xdc] sm:$0xf]
      %v270 = vld [vmem:[%s1 + $0xe0] sm:$0xf]
      %v271 = vld [vmem:[%s1 + $0xe4] sm:$0xf]
      %v272 = vld [vmem:[%s1 + $0xe8] sm:$0xf]
      %v273 = vld [vmem:[%s1 + $0xec] sm:$0xf]
      %v274 = vld [vmem:[%s1 + $0xf0] sm:$0xf]
      %v275 = vld [vmem:[%s1 + $0xf4] sm:$0xf]
      %v276 = vld [vmem:[%s1 + $0xf8] sm:$0xf]
      %v277 = vld [vmem:[%s1 + $0xfc] sm:$0xf]
      %v278 = vld [vmem:[%s1 + $0x100] sm:$0xf]
      %v279 = vld [vmem:[%s1 + $0x104] sm:$0xf]
      %v280 = vld [vmem:[%s1 + $0x108] sm:$0xf]
      %v281 = vld [vmem:[%s1 + $0x10c] sm:$0xf]
      %v282 = vld [vmem:[%s1 + $0x110] sm:$0xf]
      %v283 = vld [vmem:[%s1 + $0x114] sm:$0xf]
      %v284 = vld [vmem:[%s1 + $0x118] sm:$0xf]
      %v285 = vld [vmem:[%s1 + $0x11c] sm:$0xf]
      %v286 = vld [vmem:[%s1 + $0x120] sm:$0xf]
      %v287 = vld [vmem:[%s1 + $0x124] sm:$0xf]
      %v288 = vld [vmem:[%s1 + $0x128] sm:$0xf]
      %v289 = vld [vmem:[%s1 + $0x12c] sm:$0xf]
      %v290 = vld [vmem:[%s1 + $0x130] sm:$0xf]
      %v291 = vld [vmem:[%s1 + $0x134] sm:$0xf]
      %v292 = vld [vmem:[%s1 + $0x138] sm:$0xf]
      %v293 = vld [vmem:[%s1 + $0x13c] sm:$0xf]
      %v294 = vld [vmem:[%s1 + $0x140] sm:$0xf]
      %v295 = vld [vmem:[%s1 + $0x144] sm:$0xf]
      %v296 = vld [vmem:[%s1 + $0x148] sm:$0xf]
      %v297 = vld [vmem:[%s1 + $0x14c] sm:$0xf]
      %v298 = vld [vmem:[%s1 + $0x150] sm:$0xf]
      %v299 = vld [vmem:[%s1 + $0x154] sm:$0xf]
      %v300 = vld [vmem:[%s1 + $0x158] sm:$0xf]
      %v301 = vld [vmem:[%s1 + $0x15c] sm:$0xf]
      %v302 = vld [vmem:[%s1 + $0x160] sm:$0xf]
      %v303 = vld [vmem:[%s1 + $0x164] sm:$0xf]
      %v304 = vld [vmem:[%s1 + $0x168] sm:$0xf]
      %v305 = vld [vmem:[%s1 + $0x16c] sm:$0xf]
      %v306 = vld [vmem:[%s1 + $0x170] sm:$0xf]
      %v307 = vld [vmem:[%s1 + $0x174] sm:$0xf]
      %v308 = vld [vmem:[%s1 + $0x178] sm:$0xf]
      %v309 = vld [vmem:[%s1 + $0x17c] sm:$0xf]
      %v310 = vld [vmem:[%s1 + $0x180] sm:$0xf]
      %v311 = vld [vmem:[%s1 + $0x184] sm:$0xf]
      %v312 = vld [vmem:[%s1 + $0x188] sm:$0xf]
      %v313 = vld [vmem:[%s1 + $0x18c] sm:$0xf]
      %v314 = vld [vmem:[%s1 + $0x190] sm:$0xf]
      %v315 = vld [vmem:[%s1 + $0x194] sm:$0xf]
      %v316 = vld [vmem:[%s1 + $0x198] sm:$0xf]
      %v317 = vld [vmem:[%s1 + $0x19c] sm:$0xf]
      %v318 = vld [vmem:[%s1 + $0x1a0] sm:$0xf]
      %v319 = vld [vmem:[%s1 + $0x1a4] sm:$0xf]
      %v320 = vld [vmem:[%s1 + $0x1a8] sm:$0xf]
      %v321 = vld [vmem:[%s1 + $0x1ac] sm:$0xf]
      %v322 = vld [vmem:[%s1 + $0x1b0] sm:$0xf]
      %v323 = vld [vmem:[%s1 + $0x1b4] sm:$0xf]
      %v324 = vld [vmem:[%s1 + $0x1b8] sm:$0xf]
      %v325 = vld [vmem:[%s1 + $0x1bc] sm:$0xf]
      %v326 = vld [vmem:[%s1 + $0x1c0] sm:$0xf]
      %v327 = vld [vmem:[%s1 + $0x1c4] sm:$0xf]
      %v328 = vld [vmem:[%s1 + $0x1c8] sm:$0xf]
      %v329 = vld [vmem:[%s1 + $0x1cc] sm:$0xf]
      %v330 = vld [vmem:[%s1 + $0x1d0] sm:$0xf]
      %v331 = vld [vmem:[%s1 + $0x1d4] sm:$0xf]
      %v332 = vld [vmem:[%s1 + $0x1d8] sm:$0xf]
      %v333 = vld [vmem:[%s1 + $0x1dc] sm:$0xf]
      %v334 = vld [vmem:[%s1 + $0x1e0] sm:$0xf]
      %v335 = vld [vmem:[%s1 + $0x1e4] sm:$0xf]
      %v336 = vld [vmem:[%s1 + $0x1e8] sm:$0xf]
      %v337 = vld [vmem:[%s1 + $0x1ec] sm:$0xf]
      %v338 = vld [vmem:[%s1 + $0x1f0] sm:$0xf]
      %v339 = vld [vmem:[%s1 + $0x1f4] sm:$0xf]
      %v340 = vld [vmem:[%s1 + $0x1f8] sm:$0xf]
      %v341 = vld [vmem:[%s1 + $0x1fc] sm:$0xf]
      %v342 = vld [vmem:[%s1 + $0x200] sm:$0xf]
      %v343 = vld [vmem:[%s1 + $0x204] sm:$0xf]
      %v344 = vld [vmem:[%s1 + $0x208] sm:$0xf]
      %v345 = vld [vmem:[%s1 + $0x20c] sm:$0xf]
      %v346 = vld [vmem:[%s1 + $0x210] sm:$0xf]
      %v347 = vld [vmem:[%s1 + $0x214] sm:$0xf]
      %v348 = vld [vmem:[%s1 + $0x218] sm:$0xf]
      %v349 = vld [vmem:[%s1 + $0x21c] sm:$0xf]
      %v350 = vld [vmem:[%s1 + $0x220] sm:$0xf]
      %v351 = vld [vmem:[%s1 + $0x224] sm:$0xf]
      %v352 = vld [vmem:[%s1 + $0x228] sm:$0xf]
      %v353 = vld [vmem:[%s1 + $0x22c] sm:$0xf]
      %v354 = vld [vmem:[%s1 + $0x230] sm:$0xf]
      %v355 = vld [vmem:[%s1 + $0x234] sm:$0xf]
      %v356 = vld [vmem:[%s1 + $0x238] sm:$0xf]
      %v357 = vld [vmem:[%s1 + $0x23c] sm:$0xf]
      %v358 = vld [vmem:[%s1 + $0x240] sm:$0xf]
      %v359 = vld [vmem:[%s1 + $0x244] sm:$0xf]
      %v360 = vld [vmem:[%s1 + $0x248] sm:$0xf]
      %v361 = vld [vmem:[%s1 + $0x24c] sm:$0xf]
      %v362 = vld [vmem:[%s1 + $0x250] sm:$0xf]
      %v363 = vld [vmem:[%s1 + $0x254] sm:$0xf]
      %v364 = vld [vmem:[%s1 + $0x258] sm:$0xf]
      %v365 = vld [vmem:[%s1 + $0x25c] sm:$0xf]
      %v366 = vld [vmem:[%s1 + $0x260] sm:$0xf]
      %v367 = vld [vmem:[%s1 + $0x264] sm:$0xf]
      %v368 = vld [vmem:[%s1 + $0x268] sm:$0xf]
      %v369 = vld [vmem:[%s1 + $0x26c] sm:$0xf]
      %v370 = vld [vmem:[%s1 + $0x270] sm:$0xf]
      %v371 = vld [vmem:[%s1 + $0x274] sm:$0xf]
      %v372 = vld [vmem:[%s1 + $0x278] sm:$0xf]
      %v373 = vld [vmem:[%s1 + $0x27c] sm:$0xf]
      %v374 = vld [vmem:[%s1 + $0x280] sm:$0xf]
      %v375 = vld [vmem:[%s1 + $0x284] sm:$0xf]
      %v376 = vld [vmem:[%s1 + $0x288] sm:$0xf]
      %v377 = vld [vmem:[%s1 + $0x28c] sm:$0xf]
      %v378 = vld [vmem:[%s1 + $0x290] sm:$0xf]
      %v379 = vld [vmem:[%s1 + $0x294] sm:$0xf]
      %v380 = vld [vmem:[%s1 + $0x298] sm:$0xf]
      %v381 = vld [vmem:[%s1 + $0x29c] sm:$0xf]
      %v382 = vld [vmem:[%s1 + $0x2a0] sm:$0xf]
      %v383 = vld [vmem:[%s1 + $0x2a4] sm:$0xf]
      %v384 = vld [vmem:[%s1 + $0x2a8] sm:$0xf]
      %v385 = vld [vmem:[%s1 + $0x2ac] sm:$0xf]
      %v386 = vld [vmem:[%s1 + $0x2b0] sm:$0xf]
      %v387 = vld [vmem:[%s1 + $0x2b4] sm:$0xf]
      %v388 = vld [vmem:[%s1 + $0x2b8] sm:$0xf]
      %v389 = vld [vmem:[%s1 + $0x2bc] sm:$0xf]
      %v390 = vld [vmem:[%s1 + $0x2c0] sm:$0xf]
      %v391 = vld [vmem:[%s1 + $0x2c4] sm:$0xf]
      %v392 = vld [vmem:[%s1 + $0x2c8] sm:$0xf]
      %v393 = vld [vmem:[%s1 + $0x2cc] sm:$0xf]
      %v394 = vld [vmem:[%s1 + $0x2d0] sm:$0xf]
      %v395 = vld [vmem:[%s1 + $0x2d4] sm:$0xf]
      %v396 = vld [vmem:[%s1 + $0x2d8] sm:$0xf]
      %v397 = vld [vmem:[%s1 + $0x2dc] sm:$0xf]
      %v398 = vld [vmem:[%s1 + $0x2e0] sm:$0xf]
      %v399 = vld [vmem:[%s1 + $0x2e4] sm:$0xf]
      %v400 = vld [vmem:[%s1 + $0x2e8] sm:$0xf]
      %v401 = vld [vmem:[%s1 + $0x2ec] sm:$0xf]
      %v402 = vld [vmem:[%s1 + $0x2f0] sm:$0xf]
      %v403 = vld [vmem:[%s1 + $0x2f4] sm:$0xf]
      %v404 = vld [vmem:[%s1 + $0x2f8] sm:$0xf]
      %v405 = vld [vmem:[%s1 + $0x2fc] sm:$0xf]
      %v406 = vld [vmem:[%s1 + $0x300] sm:$0xf]
      %v407 = vld [vmem:[%s1 + $0x304] sm:$0xf]
      %v408 = vld [vmem:[%s1 + $0x308] sm:$0xf]
      %v409 = vld [vmem:[%s1 + $0x30c] sm:$0xf]
      %v410 = vld [vmem:[%s1 + $0x310] sm:$0xf]
      %v411 = vld [vmem:[%s1 + $0x314] sm:$0xf]
      %v412 = vld [vmem:[%s1 + $0x318] sm:$0xf]
      %v413 = vld [vmem:[%s1 + $0x31c] sm:$0xf]
      %v414 = vld [vmem:[%s1 + $0x320] sm:$0xf]
      %v415 = vld [vmem:[%s1 + $0x324] sm:$0xf]
      %v416 = vld [vmem:[%s1 + $0x328] sm:$0xf]
      %v417 = vld [vmem:[%s1 + $0x32c] sm:$0xf]
      %v418 = vld [vmem:[%s1 + $0x330] sm:$0xf]
      %v419 = vld [vmem:[%s1 + $0x334] sm:$0xf]
      %v420 = vld [vmem:[%s1 + $0x338] sm:$0xf]
      %v421 = vld [vmem:[%s1 + $0x33c] sm:$0xf]
      %v422 = vld [vmem:[%s1 + $0x340] sm:$0xf]
      %v423 = vld [vmem:[%s1 + $0x344] sm:$0xf]
      %v424 = vld [vmem:[%s1 + $0x348] sm:$0xf]
      %v425 = vld [vmem:[%s1 + $0x34c] sm:$0xf]
      %v426 = vld [vmem:[%s1 + $0x350] sm:$0xf]
      %v427 = vld [vmem:[%s1 + $0x354] sm:$0xf]
      %v428 = vld [vmem:[%s1 + $0x358] sm:$0xf]
      %v429 = vld [vmem:[%s1 + $0x35c] sm:$0xf]
      %v430 = vld [vmem:[%s1 + $0x360] sm:$0xf]
      %v431 = vld [vmem:[%s1 + $0x364] sm:$0xf]
      %v432 = vld [vmem:[%s1 + $0x368] sm:$0xf]
      %v433 = vld [vmem:[%s1 + $0x36c] sm:$0xf]
      %v434 = vld [vmem:[%s1 + $0x370] sm:$0xf]
      %v435 = vld [vmem:[%s1 + $0x374] sm:$0xf]
      %v436 = vld [vmem:[%s1 + $0x378] sm:$0xf]
      %v437 = vld [vmem:[%s1 + $0x37c] sm:$0xf]
      %v438 = vld [vmem:[%s1 + $0x380] sm:$0xf]
      %v439 = vld [vmem:[%s1 + $0x384] sm:$0xf]
      %v440 = vld [vmem:[%s1 + $0x388] sm:$0xf]
      %v441 = vld [vmem:[%s1 + $0x38c] sm:$0xf]
      %v442 = vld [vmem:[%s1 + $0x390] sm:$0xf]
      %v443 = vld [vmem:[%s1 + $0x394] sm:$0xf]
      %v444 = vld [vmem:[%s1 + $0x398] sm:$0xf]
      %v445 = vld [vmem:[%s1 + $0x39c] sm:$0xf]
      %v446 = vld [vmem:[%s1 + $0x3a0] sm:$0xf]
      %v447 = vld [vmem:[%s1 + $0x3a4] sm:$0xf]
      %v448 = vld [vmem:[%s1 + $0x3a8] sm:$0xf]
      %v449 = vld [vmem:[%s1 + $0x3ac] sm:$0xf]
      %v450 = vld [vmem:[%s1 + $0x3b0] sm:$0xf]
      %v451 = vld [vmem:[%s1 + $0x3b4] sm:$0xf]
      %v452 = vld [vmem:[%s1 + $0x3b8] sm:$0xf]
      %v453 = vld [vmem:[%s1 + $0x3bc] sm:$0xf]
      %v454 = vld [vmem:[%s1 + $0x3c0] sm:$0xf]
      %v455 = vld [vmem:[%s1 + $0x3c4] sm:$0xf]
      %v456 = vld [vmem:[%s1 + $0x3c8] sm:$0xf]
      %v457 = vld [vmem:[%s1 + $0x3cc] sm:$0xf]
      %v458 = vld [vmem:[%s1 + $0x3d0] sm:$0xf]
      %v459 = vld [vmem:[%s1 + $0x3d4] sm:$0xf]
      %v460 = vld [vmem:[%s1 + $0x3d8] sm:$0xf]
      %v461 = vld [vmem:[%s1 + $0x3dc] sm:$0xf]
      %v462 = vld [vmem:[%s1 + $0x3e0] sm:$0xf]
      %v463 = vld [vmem:[%s1 + $0x3e4] sm:$0xf]
      %v464 = vld [vmem:[%s1 + $0x3e8] sm:$0xf]
      %v465 = vld [vmem:[%s1 + $0x3ec] sm:$0xf]
      %v466 = vld [vmem:[%s1 + $0x3f0] sm:$0xf]
      %v467 = vld [vmem:[%s1 + $0x3f4] sm:$0xf]
      %v468 = vld [vmem:[%s1 + $0x3f8] sm:$0xf]
      %v469 = vld [vmem:[%s1 + $0x3fc] sm:$0xf]
      %v470 = vld [vmem:[%s1 + $0x400] sm:$0xf]
      %v471 = vld [vmem:[%s1 + $0x404] sm:$0xf]
      %v472 = vld [vmem:[%s1 + $0x408] sm:$0xf]
      %v473 = vld [vmem:[%s1 + $0x40c] sm:$0xf]
      %v474 = vld [vmem:[%s1 + $0x410] sm:$0xf]
      %v475 = vld [vmem:[%s1 + $0x414] sm:$0xf]
      %v476 = vld [vmem:[%s1 + $0x418] sm:$0xf]
      %v477 = vld [vmem:[%s1 + $0x41c] sm:$0xf]
      %v478 = vld [vmem:[%s1 + $0x420] sm:$0xf]
      %v479 = vld [vmem:[%s1 + $0x424] sm:$0xf]
      %v480 = vld [vmem:[%s1 + $0x428] sm:$0xf]
      %v481 = vld [vmem:[%s1 + $0x42c] sm:$0xf]
      %v482 = vld [vmem:[%s1 + $0x430] sm:$0xf]
      %v483 = vld [vmem:[%s1 + $0x434] sm:$0xf]
      %v484 = vld [vmem:[%s1 + $0x438] sm:$0xf]
      %v485 = vld [vmem:[%s1 + $0x43c] sm:$0xf]
      %v486 = vld [vmem:[%s1 + $0x440] sm:$0xf]
      %v487 = vld [vmem:[%s1 + $0x444] sm:$0xf]
      %v488 = vld [vmem:[%s1 + $0x448] sm:$0xf]
      %v489 = vld [vmem:[%s1 + $0x44c] sm:$0xf]
      %v490 = vld [vmem:[%s1 + $0x450] sm:$0xf]
      %v491 = vld [vmem:[%s1 + $0x454] sm:$0xf]
      %v492 = vld [vmem:[%s1 + $0x458] sm:$0xf]
      %v493 = vld [vmem:[%s1 + $0x45c] sm:$0xf]
      %v494 = vld [vmem:[%s1 + $0x460] sm:$0xf]
      %v495 = vld [vmem:[%s1 + $0x464] sm:$0xf]
      %v496 = vld [vmem:[%s1 + $0x468] sm:$0xf]
      %v497 = vld [vmem:[%s1 + $0x46c] sm:$0xf]
      %v498 = vld [vmem:[%s1 + $0x470] sm:$0xf]
      %v499 = vld [vmem:[%s1 + $0x474] sm:$0xf]
      %v500 = vld [vmem:[%s1 + $0x478] sm:$0xf]
      %v501 = vld [vmem:[%s1 + $0x47c] sm:$0xf]
      %v538 = vunpack.c.l.b16 %v178
      %v539 = vunpack.c.h.b16 %v178
      %v540 = vunpack.c.l.b16 %v179
      %v541 = vunpack.c.h.b16 %v179
      %v542 = vunpack.c.l.b16 %v180
      %v543 = vunpack.c.h.b16 %v180
      %v544 = vunpack.c.l.b16 %v181
      %v545 = vunpack.c.h.b16 %v181
      %v546 = vunpack.c.l.b16 %v182
      %v547 = vunpack.c.h.b16 %v182
      %v548 = vunpack.c.l.b16 %v183
      %v549 = vunpack.c.h.b16 %v183
      %v550 = vunpack.c.l.b16 %v184
      %v551 = vunpack.c.h.b16 %v184
      %v552 = vunpack.c.l.b16 %v185
      %v553 = vunpack.c.h.b16 %v185
      %v554 = vunpack.c.l.b16 %v186
      %v555 = vunpack.c.h.b16 %v186
      %v556 = vunpack.c.l.b16 %v187
      %v557 = vunpack.c.h.b16 %v187
      %v558 = vunpack.c.l.b16 %v188
      %v559 = vunpack.c.h.b16 %v188
      %v560 = vunpack.c.l.b16 %v189
      %v561 = vunpack.c.h.b16 %v189
      %v562 = vunpack.c.l.b16 %v190
      %v563 = vunpack.c.h.b16 %v190
      %v564 = vunpack.c.l.b16 %v191
      %v565 = vunpack.c.h.b16 %v191
      %v566 = vunpack.c.l.b16 %v192
      %v567 = vunpack.c.h.b16 %v192
      %v568 = vunpack.c.l.b16 %v193
      %v569 = vunpack.c.h.b16 %v193
      %v570 = vunpack.c.l.b16 %v194
      %v571 = vunpack.c.h.b16 %v194
      %v572 = vunpack.c.l.b16 %v195
      %v573 = vunpack.c.h.b16 %v195
      %v574 = vunpack.c.l.b16 %v196
      %v575 = vunpack.c.h.b16 %v196
      %v576 = vunpack.c.l.b16 %v197
      %v577 = vunpack.c.h.b16 %v197
      %v578 = vunpack.c.l.b16 %v198
      %v579 = vunpack.c.h.b16 %v198
      %v580 = vunpack.c.l.b16 %v199
      %v581 = vunpack.c.h.b16 %v199
      %v582 = vunpack.c.l.b16 %v200
      %v583 = vunpack.c.h.b16 %v200
      %v584 = vunpack.c.l.b16 %v201
      %v585 = vunpack.c.h.b16 %v201
      %v586 = vunpack.c.l.b16 %v202
      %v587 = vunpack.c.h.b16 %v202
      %v588 = vunpack.c.l.b16 %v203
      %v589 = vunpack.c.h.b16 %v203
      %v590 = vunpack.c.l.b16 %v204
      %v591 = vunpack.c.h.b16 %v204
      %v592 = vunpack.c.l.b16 %v205
      %v593 = vunpack.c.h.b16 %v205
      %v594 = vunpack.c.l.b16 %v206
      %v595 = vunpack.c.h.b16 %v206
      %v596 = vunpack.c.l.b16 %v207
      %v597 = vunpack.c.h.b16 %v207
      %v598 = vunpack.c.l.b16 %v208
      %v599 = vunpack.c.h.b16 %v208
      %v600 = vunpack.c.l.b16 %v209
      %v601 = vunpack.c.h.b16 %v209
      %v602 = vunpack.c.l.b16 %v210
      %v603 = vunpack.c.h.b16 %v210
      %v604 = vunpack.c.l.b16 %v211
      %v605 = vunpack.c.h.b16 %v211
      %v606 = vunpack.c.l.b16 %v212
      %v607 = vunpack.c.h.b16 %v212
      %v608 = vunpack.c.l.b16 %v213
      %v609 = vunpack.c.h.b16 %v213
      %v610 = vpack.c.b16 %v556, %v538
      %v611 = vpack.c.b16 %v557, %v539
      %v612 = vpack.c.b16 %v558, %v540
      %v613 = vpack.c.b16 %v559, %v541
      %v614 = vpack.c.b16 %v560, %v542
      %v615 = vpack.c.b16 %v561, %v543
      %v616 = vpack.c.b16 %v562, %v544
      %v617 = vpack.c.b16 %v563, %v545
      %v618 = vpack.c.b16 %v564, %v546
      %v619 = vpack.c.b16 %v565, %v547
      %v620 = vpack.c.b16 %v566, %v548
      %v621 = vpack.c.b16 %v567, %v549
      %v622 = vpack.c.b16 %v568, %v550
      %v623 = vpack.c.b16 %v569, %v551
      %v624 = vpack.c.b16 %v570, %v552
      %v625 = vpack.c.b16 %v571, %v553
      %v626 = vpack.c.b16 %v572, %v554
      %v627 = vpack.c.b16 %v573, %v555
      %v628 = vpack.c.b16 %v592, %v574
      %v629 = vpack.c.b16 %v593, %v575
      %v630 = vpack.c.b16 %v594, %v576
      %v631 = vpack.c.b16 %v595, %v577
      %v632 = vpack.c.b16 %v596, %v578
      %v633 = vpack.c.b16 %v597, %v579
      %v634 = vpack.c.b16 %v598, %v580
      %v635 = vpack.c.b16 %v599, %v581
      %v636 = vpack.c.b16 %v600, %v582
      %v637 = vpack.c.b16 %v601, %v583
      %v638 = vpack.c.b16 %v602, %v584
      %v639 = vpack.c.b16 %v603, %v585
      %v640 = vpack.c.b16 %v604, %v586
      %v641 = vpack.c.b16 %v605, %v587
      %v642 = vpack.c.b16 %v606, %v588
      %v643 = vpack.c.b16 %v607, %v589
      %v644 = vpack.c.b16 %v608, %v590
      %v645 = vpack.c.b16 %v609, %v591
      %v970 = vunpack.c.l.b16 %v214
      %v971 = vunpack.c.l.b16 %v215
      %v972 = vunpack.c.l.b16 %v216
      %v973 = vunpack.c.l.b16 %v217
      %v974 = vunpack.c.l.b16 %v218
      %v975 = vunpack.c.l.b16 %v219
      %v976 = vunpack.c.l.b16 %v220
      %v977 = vunpack.c.l.b16 %v221
      %v978 = vunpack.c.l.b16 %v222
      %v979 = vunpack.c.l.b16 %v223
      %v980 = vunpack.c.l.b16 %v224
      %v981 = vunpack.c.l.b16 %v225
      %v982 = vunpack.c.l.b16 %v226
      %v983 = vunpack.c.l.b16 %v227
      %v984 = vunpack.c.l.b16 %v228
      %v985 = vunpack.c.l.b16 %v229
      %v986 = vunpack.c.l.b16 %v230
      %v987 = vunpack.c.l.b16 %v231
      %v988 = vunpack.c.l.b16 %v232
      %v989 = vunpack.c.l.b16 %v233
      %v990 = vunpack.c.l.b16 %v234
      %v991 = vunpack.c.l.b16 %v235
      %v992 = vunpack.c.l.b16 %v236
      %v993 = vunpack.c.l.b16 %v237
      %v994 = vunpack.c.l.b16 %v238
      %v995 = vunpack.c.l.b16 %v239
      %v996 = vunpack.c.l.b16 %v240
      %v997 = vunpack.c.l.b16 %v241
      %v998 = vunpack.c.l.b16 %v242
      %v999 = vunpack.c.l.b16 %v243
      %v1000 = vunpack.c.l.b16 %v244
      %v1001 = vunpack.c.l.b16 %v245
      %v1002 = vunpack.c.l.b16 %v246
      %v1003 = vunpack.c.l.b16 %v247
      %v1004 = vunpack.c.l.b16 %v248
      %v1005 = vunpack.c.l.b16 %v249
      %v1006 = vunpack.c.l.b16 %v250
      %v1007 = vunpack.c.l.b16 %v251
      %v1008 = vunpack.c.l.b16 %v252
      %v1009 = vunpack.c.l.b16 %v253
      %v1010 = vunpack.c.l.b16 %v254
      %v1011 = vunpack.c.l.b16 %v255
      %v1012 = vunpack.c.l.b16 %v256
      %v1013 = vunpack.c.l.b16 %v257
      %v1014 = vunpack.c.l.b16 %v258
      %v1015 = vunpack.c.l.b16 %v259
      %v1016 = vunpack.c.l.b16 %v260
      %v1017 = vunpack.c.l.b16 %v261
      %v1018 = vunpack.c.l.b16 %v262
      %v1019 = vunpack.c.l.b16 %v263
      %v1020 = vunpack.c.l.b16 %v264
      %v1021 = vunpack.c.l.b16 %v265
      %v1022 = vunpack.c.l.b16 %v266
      %v1023 = vunpack.c.l.b16 %v267
      %v1024 = vunpack.c.l.b16 %v268
      %v1025 = vunpack.c.l.b16 %v269
      %v1026 = vunpack.c.l.b16 %v270
      %v1027 = vunpack.c.l.b16 %v271
      %v1028 = vunpack.c.l.b16 %v272
      %v1029 = vunpack.c.l.b16 %v273
      %v1030 = vunpack.c.l.b16 %v274
      %v1031 = vunpack.c.l.b16 %v275
      %v1032 = vunpack.c.l.b16 %v276
      %v1033 = vunpack.c.l.b16 %v277
      %v1034 = vunpack.c.l.b16 %v278
      %v1035 = vunpack.c.l.b16 %v279
      %v1036 = vunpack.c.l.b16 %v280
      %v1037 = vunpack.c.l.b16 %v281
      %v1038 = vunpack.c.l.b16 %v282
      %v1039 = vunpack.c.l.b16 %v283
      %v1040 = vunpack.c.l.b16 %v284
      %v1041 = vunpack.c.l.b16 %v285
      %v1042 = vunpack.c.l.b16 %v286
      %v1043 = vunpack.c.l.b16 %v287
      %v1044 = vunpack.c.l.b16 %v288
      %v1045 = vunpack.c.l.b16 %v289
      %v1046 = vunpack.c.l.b16 %v290
      %v1047 = vunpack.c.l.b16 %v291
      %v1048 = vunpack.c.l.b16 %v292
      %v1049 = vunpack.c.l.b16 %v293
      %v1050 = vunpack.c.l.b16 %v294
      %v1051 = vunpack.c.l.b16 %v295
      %v1052 = vunpack.c.l.b16 %v296
      %v1053 = vunpack.c.l.b16 %v297
      %v1054 = vunpack.c.l.b16 %v298
      %v1055 = vunpack.c.l.b16 %v299
      %v1056 = vunpack.c.l.b16 %v300
      %v1057 = vunpack.c.l.b16 %v301
      %v1058 = vunpack.c.l.b16 %v302
      %v1059 = vunpack.c.l.b16 %v303
      %v1060 = vunpack.c.l.b16 %v304
      %v1061 = vunpack.c.l.b16 %v305
      %v1062 = vunpack.c.l.b16 %v306
      %v1063 = vunpack.c.l.b16 %v307
      %v1064 = vunpack.c.l.b16 %v308
      %v1065 = vunpack.c.l.b16 %v309
      %v1066 = vunpack.c.l.b16 %v310
      %v1067 = vunpack.c.l.b16 %v311
      %v1068 = vunpack.c.l.b16 %v312
      %v1069 = vunpack.c.l.b16 %v313
      %v1070 = vunpack.c.l.b16 %v314
      %v1071 = vunpack.c.l.b16 %v315
      %v1072 = vunpack.c.l.b16 %v316
      %v1073 = vunpack.c.l.b16 %v317
      %v1074 = vunpack.c.l.b16 %v318
      %v1075 = vunpack.c.l.b16 %v319
      %v1076 = vunpack.c.l.b16 %v320
      %v1077 = vunpack.c.l.b16 %v321
      %v1078 = vunpack.c.l.b16 %v322
      %v1079 = vunpack.c.l.b16 %v323
      %v1080 = vunpack.c.l.b16 %v324
      %v1081 = vunpack.c.l.b16 %v325
      %v1082 = vunpack.c.l.b16 %v326
      %v1083 = vunpack.c.l.b16 %v327
      %v1084 = vunpack.c.l.b16 %v328
      %v1085 = vunpack.c.l.b16 %v329
      %v1086 = vunpack.c.l.b16 %v330
      %v1087 = vunpack.c.l.b16 %v331
      %v1088 = vunpack.c.l.b16 %v332
      %v1089 = vunpack.c.l.b16 %v333
      %v1090 = vunpack.c.l.b16 %v334
      %v1091 = vunpack.c.l.b16 %v335
      %v1092 = vunpack.c.l.b16 %v336
      %v1093 = vunpack.c.l.b16 %v337
      %v1094 = vunpack.c.l.b16 %v338
      %v1095 = vunpack.c.l.b16 %v339
      %v1096 = vunpack.c.l.b16 %v340
      %v1097 = vunpack.c.l.b16 %v341
      %v1098 = vunpack.c.l.b16 %v342
      %v1099 = vunpack.c.l.b16 %v343
      %v1100 = vunpack.c.l.b16 %v344
      %v1101 = vunpack.c.l.b16 %v345
      %v1102 = vunpack.c.l.b16 %v346
      %v1103 = vunpack.c.l.b16 %v347
      %v1104 = vunpack.c.l.b16 %v348
      %v1105 = vunpack.c.l.b16 %v349
      %v1106 = vunpack.c.l.b16 %v350
      %v1107 = vunpack.c.l.b16 %v351
      %v1108 = vunpack.c.l.b16 %v352
      %v1109 = vunpack.c.l.b16 %v353
      %v1110 = vunpack.c.l.b16 %v354
      %v1111 = vunpack.c.l.b16 %v355
      %v1112 = vunpack.c.l.b16 %v356
      %v1113 = vunpack.c.l.b16 %v357
      %v1114 = vunpack.c.l.b16 %v358
      %v1115 = vunpack.c.l.b16 %v359
      %v1116 = vunpack.c.l.b16 %v360
      %v1117 = vunpack.c.l.b16 %v361
      %v1118 = vunpack.c.l.b16 %v362
      %v1119 = vunpack.c.l.b16 %v363
      %v1120 = vunpack.c.l.b16 %v364
      %v1121 = vunpack.c.l.b16 %v365
      %v1122 = vunpack.c.l.b16 %v366
      %v1123 = vunpack.c.l.b16 %v367
      %v1124 = vunpack.c.l.b16 %v368
      %v1125 = vunpack.c.l.b16 %v369
      %v1126 = vunpack.c.l.b16 %v370
      %v1127 = vunpack.c.l.b16 %v371
      %v1128 = vunpack.c.l.b16 %v372
      %v1129 = vunpack.c.l.b16 %v373
      %v1130 = vunpack.c.l.b16 %v374
      %v1131 = vunpack.c.l.b16 %v375
      %v1132 = vunpack.c.l.b16 %v376
      %v1133 = vunpack.c.l.b16 %v377
      %v1134 = vunpack.c.l.b16 %v378
      %v1135 = vunpack.c.l.b16 %v379
      %v1136 = vunpack.c.l.b16 %v380
      %v1137 = vunpack.c.l.b16 %v381
      %v1138 = vunpack.c.l.b16 %v382
      %v1139 = vunpack.c.l.b16 %v383
      %v1140 = vunpack.c.l.b16 %v384
      %v1141 = vunpack.c.l.b16 %v385
      %v1142 = vunpack.c.l.b16 %v386
      %v1143 = vunpack.c.l.b16 %v387
      %v1144 = vunpack.c.l.b16 %v388
      %v1145 = vunpack.c.l.b16 %v389
      %v1146 = vunpack.c.l.b16 %v390
      %v1147 = vunpack.c.l.b16 %v391
      %v1148 = vunpack.c.l.b16 %v392
      %v1149 = vunpack.c.l.b16 %v393
      %v1150 = vunpack.c.l.b16 %v394
      %v1151 = vunpack.c.l.b16 %v395
      %v1152 = vunpack.c.l.b16 %v396
      %v1153 = vunpack.c.l.b16 %v397
      %v1154 = vunpack.c.l.b16 %v398
      %v1155 = vunpack.c.l.b16 %v399
      %v1156 = vunpack.c.l.b16 %v400
      %v1157 = vunpack.c.l.b16 %v401
      %v1158 = vunpack.c.l.b16 %v402
      %v1159 = vunpack.c.l.b16 %v403
      %v1160 = vunpack.c.l.b16 %v404
      %v1161 = vunpack.c.l.b16 %v405
      %v1162 = vunpack.c.l.b16 %v406
      %v1163 = vunpack.c.l.b16 %v407
      %v1164 = vunpack.c.l.b16 %v408
      %v1165 = vunpack.c.l.b16 %v409
      %v1166 = vunpack.c.l.b16 %v410
      %v1167 = vunpack.c.l.b16 %v411
      %v1168 = vunpack.c.l.b16 %v412
      %v1169 = vunpack.c.l.b16 %v413
      %v1170 = vunpack.c.l.b16 %v414
      %v1171 = vunpack.c.l.b16 %v415
      %v1172 = vunpack.c.l.b16 %v416
      %v1173 = vunpack.c.l.b16 %v417
      %v1174 = vunpack.c.l.b16 %v418
      %v1175 = vunpack.c.l.b16 %v419
      %v1176 = vunpack.c.l.b16 %v420
      %v1177 = vunpack.c.l.b16 %v421
      %v1178 = vunpack.c.l.b16 %v422
      %v1179 = vunpack.c.l.b16 %v423
      %v1180 = vunpack.c.l.b16 %v424
      %v1181 = vunpack.c.l.b16 %v425
      %v1182 = vunpack.c.l.b16 %v426
      %v1183 = vunpack.c.l.b16 %v427
      %v1184 = vunpack.c.l.b16 %v428
      %v1185 = vunpack.c.l.b16 %v429
      %v1186 = vunpack.c.l.b16 %v430
      %v1187 = vunpack.c.l.b16 %v431
      %v1188 = vunpack.c.l.b16 %v432
      %v1189 = vunpack.c.l.b16 %v433
      %v1190 = vunpack.c.l.b16 %v434
      %v1191 = vunpack.c.l.b16 %v435
      %v1192 = vunpack.c.l.b16 %v436
      %v1193 = vunpack.c.l.b16 %v437
      %v1194 = vunpack.c.l.b16 %v438
      %v1195 = vunpack.c.l.b16 %v439
      %v1196 = vunpack.c.l.b16 %v440
      %v1197 = vunpack.c.l.b16 %v441
      %v1198 = vunpack.c.l.b16 %v442
      %v1199 = vunpack.c.l.b16 %v443
      %v1200 = vunpack.c.l.b16 %v444
      %v1201 = vunpack.c.l.b16 %v445
      %v1202 = vunpack.c.l.b16 %v446
      %v1203 = vunpack.c.l.b16 %v447
      %v1204 = vunpack.c.l.b16 %v448
      %v1205 = vunpack.c.l.b16 %v449
      %v1206 = vunpack.c.l.b16 %v450
      %v1207 = vunpack.c.l.b16 %v451
      %v1208 = vunpack.c.l.b16 %v452
      %v1209 = vunpack.c.l.b16 %v453
      %v1210 = vunpack.c.l.b16 %v454
      %v1211 = vunpack.c.l.b16 %v455
      %v1212 = vunpack.c.l.b16 %v456
      %v1213 = vunpack.c.l.b16 %v457
      %v1214 = vunpack.c.l.b16 %v458
      %v1215 = vunpack.c.l.b16 %v459
      %v1216 = vunpack.c.l.b16 %v460
      %v1217 = vunpack.c.l.b16 %v461
      %v1218 = vunpack.c.l.b16 %v462
      %v1219 = vunpack.c.l.b16 %v463
      %v1220 = vunpack.c.l.b16 %v464
      %v1221 = vunpack.c.l.b16 %v465
      %v1222 = vunpack.c.l.b16 %v466
      %v1223 = vunpack.c.l.b16 %v467
      %v1224 = vunpack.c.l.b16 %v468
      %v1225 = vunpack.c.l.b16 %v469
      %v1226 = vunpack.c.l.b16 %v470
      %v1227 = vunpack.c.l.b16 %v471
      %v1228 = vunpack.c.l.b16 %v472
      %v1229 = vunpack.c.l.b16 %v473
      %v1230 = vunpack.c.l.b16 %v474
      %v1231 = vunpack.c.l.b16 %v475
      %v1232 = vunpack.c.l.b16 %v476
      %v1233 = vunpack.c.l.b16 %v477
      %v1234 = vunpack.c.l.b16 %v478
      %v1235 = vunpack.c.l.b16 %v479
      %v1236 = vunpack.c.l.b16 %v480
      %v1237 = vunpack.c.l.b16 %v481
      %v1238 = vunpack.c.l.b16 %v482
      %v1239 = vunpack.c.l.b16 %v483
      %v1240 = vunpack.c.l.b16 %v484
      %v1241 = vunpack.c.l.b16 %v485
      %v1242 = vunpack.c.l.b16 %v486
      %v1243 = vunpack.c.l.b16 %v487
      %v1244 = vunpack.c.l.b16 %v488
      %v1245 = vunpack.c.l.b16 %v489
      %v1246 = vunpack.c.l.b16 %v490
      %v1247 = vunpack.c.l.b16 %v491
      %v1248 = vunpack.c.l.b16 %v492
      %v1249 = vunpack.c.l.b16 %v493
      %v1250 = vunpack.c.l.b16 %v494
      %v1251 = vunpack.c.l.b16 %v495
      %v1252 = vunpack.c.l.b16 %v496
      %v1253 = vunpack.c.l.b16 %v497
      %v1254 = vunpack.c.l.b16 %v498
      %v1255 = vunpack.c.l.b16 %v499
      %v1256 = vunpack.c.l.b16 %v500
      %v1257 = vunpack.c.l.b16 %v501
      %v1258 = vpack.c.b16 %v971, %v970
      %v1259 = vpack.c.b16 %v973, %v972
      %v1260 = vpack.c.b16 %v975, %v974
      %v1261 = vpack.c.b16 %v977, %v976
      %v1262 = vpack.c.b16 %v979, %v978
      %v1263 = vpack.c.b16 %v981, %v980
      %v1264 = vpack.c.b16 %v983, %v982
      %v1265 = vpack.c.b16 %v985, %v984
      %v1266 = vpack.c.b16 %v987, %v986
      %v1267 = vpack.c.b16 %v989, %v988
      %v1268 = vpack.c.b16 %v991, %v990
      %v1269 = vpack.c.b16 %v993, %v992
      %v1270 = vpack.c.b16 %v995, %v994
      %v1271 = vpack.c.b16 %v997, %v996
      %v1272 = vpack.c.b16 %v999, %v998
      %v1273 = vpack.c.b16 %v1001, %v1000
      %v1274 = vpack.c.b16 %v1003, %v1002
      %v1275 = vpack.c.b16 %v1005, %v1004
      %v1276 = vpack.c.b16 %v1007, %v1006
      %v1277 = vpack.c.b16 %v1009, %v1008
      %v1278 = vpack.c.b16 %v1011, %v1010
      %v1279 = vpack.c.b16 %v1013, %v1012
      %v1280 = vpack.c.b16 %v1015, %v1014
      %v1281 = vpack.c.b16 %v1017, %v1016
      %v1282 = vpack.c.b16 %v1019, %v1018
      %v1283 = vpack.c.b16 %v1021, %v1020
      %v1284 = vpack.c.b16 %v1023, %v1022
      %v1285 = vpack.c.b16 %v1025, %v1024
      %v1286 = vpack.c.b16 %v1027, %v1026
      %v1287 = vpack.c.b16 %v1029, %v1028
      %v1288 = vpack.c.b16 %v1031, %v1030
      %v1289 = vpack.c.b16 %v1033, %v1032
      %v1290 = vpack.c.b16 %v1035, %v1034
      %v1291 = vpack.c.b16 %v1037, %v1036
      %v1292 = vpack.c.b16 %v1039, %v1038
      %v1293 = vpack.c.b16 %v1041, %v1040
      %v1294 = vpack.c.b16 %v1043, %v1042
      %v1295 = vpack.c.b16 %v1045, %v1044
      %v1296 = vpack.c.b16 %v1047, %v1046
      %v1297 = vpack.c.b16 %v1049, %v1048
      %v1298 = vpack.c.b16 %v1051, %v1050
      %v1299 = vpack.c.b16 %v1053, %v1052
      %v1300 = vpack.c.b16 %v1055, %v1054
      %v1301 = vpack.c.b16 %v1057, %v1056
      %v1302 = vpack.c.b16 %v1059, %v1058
      %v1303 = vpack.c.b16 %v1061, %v1060
      %v1304 = vpack.c.b16 %v1063, %v1062
      %v1305 = vpack.c.b16 %v1065, %v1064
      %v1306 = vpack.c.b16 %v1067, %v1066
      %v1307 = vpack.c.b16 %v1069, %v1068
      %v1308 = vpack.c.b16 %v1071, %v1070
      %v1309 = vpack.c.b16 %v1073, %v1072
      %v1310 = vpack.c.b16 %v1075, %v1074
      %v1311 = vpack.c.b16 %v1077, %v1076
      %v1312 = vpack.c.b16 %v1079, %v1078
      %v1313 = vpack.c.b16 %v1081, %v1080
      %v1314 = vpack.c.b16 %v1083, %v1082
      %v1315 = vpack.c.b16 %v1085, %v1084
      %v1316 = vpack.c.b16 %v1087, %v1086
      %v1317 = vpack.c.b16 %v1089, %v1088
      %v1318 = vpack.c.b16 %v1091, %v1090
      %v1319 = vpack.c.b16 %v1093, %v1092
      %v1320 = vpack.c.b16 %v1095, %v1094
      %v1321 = vpack.c.b16 %v1097, %v1096
      %v1322 = vpack.c.b16 %v1099, %v1098
      %v1323 = vpack.c.b16 %v1101, %v1100
      %v1324 = vpack.c.b16 %v1103, %v1102
      %v1325 = vpack.c.b16 %v1105, %v1104
      %v1326 = vpack.c.b16 %v1107, %v1106
      %v1327 = vpack.c.b16 %v1109, %v1108
      %v1328 = vpack.c.b16 %v1111, %v1110
      %v1329 = vpack.c.b16 %v1113, %v1112
      %v1330 = vpack.c.b16 %v1115, %v1114
      %v1331 = vpack.c.b16 %v1117, %v1116
      %v1332 = vpack.c.b16 %v1119, %v1118
      %v1333 = vpack.c.b16 %v1121, %v1120
      %v1334 = vpack.c.b16 %v1123, %v1122
      %v1335 = vpack.c.b16 %v1125, %v1124
      %v1336 = vpack.c.b16 %v1127, %v1126
      %v1337 = vpack.c.b16 %v1129, %v1128
      %v1338 = vpack.c.b16 %v1131, %v1130
      %v1339 = vpack.c.b16 %v1133, %v1132
      %v1340 = vpack.c.b16 %v1135, %v1134
      %v1341 = vpack.c.b16 %v1137, %v1136
      %v1342 = vpack.c.b16 %v1139, %v1138
      %v1343 = vpack.c.b16 %v1141, %v1140
      %v1344 = vpack.c.b16 %v1143, %v1142
      %v1345 = vpack.c.b16 %v1145, %v1144
      %v1346 = vpack.c.b16 %v1147, %v1146
      %v1347 = vpack.c.b16 %v1149, %v1148
      %v1348 = vpack.c.b16 %v1151, %v1150
      %v1349 = vpack.c.b16 %v1153, %v1152
      %v1350 = vpack.c.b16 %v1155, %v1154
      %v1351 = vpack.c.b16 %v1157, %v1156
      %v1352 = vpack.c.b16 %v1159, %v1158
      %v1353 = vpack.c.b16 %v1161, %v1160
      %v1354 = vpack.c.b16 %v1163, %v1162
      %v1355 = vpack.c.b16 %v1165, %v1164
      %v1356 = vpack.c.b16 %v1167, %v1166
      %v1357 = vpack.c.b16 %v1169, %v1168
      %v1358 = vpack.c.b16 %v1171, %v1170
      %v1359 = vpack.c.b16 %v1173, %v1172
      %v1360 = vpack.c.b16 %v1175, %v1174
      %v1361 = vpack.c.b16 %v1177, %v1176
      %v1362 = vpack.c.b16 %v1179, %v1178
      %v1363 = vpack.c.b16 %v1181, %v1180
      %v1364 = vpack.c.b16 %v1183, %v1182
      %v1365 = vpack.c.b16 %v1185, %v1184
      %v1366 = vpack.c.b16 %v1187, %v1186
      %v1367 = vpack.c.b16 %v1189, %v1188
      %v1368 = vpack.c.b16 %v1191, %v1190
      %v1369 = vpack.c.b16 %v1193, %v1192
      %v1370 = vpack.c.b16 %v1195, %v1194
      %v1371 = vpack.c.b16 %v1197, %v1196
      %v1372 = vpack.c.b16 %v1199, %v1198
      %v1373 = vpack.c.b16 %v1201, %v1200
      %v1374 = vpack.c.b16 %v1203, %v1202
      %v1375 = vpack.c.b16 %v1205, %v1204
      %v1376 = vpack.c.b16 %v1207, %v1206
      %v1377 = vpack.c.b16 %v1209, %v1208
      %v1378 = vpack.c.b16 %v1211, %v1210
      %v1379 = vpack.c.b16 %v1213, %v1212
      %v1380 = vpack.c.b16 %v1215, %v1214
      %v1381 = vpack.c.b16 %v1217, %v1216
      %v1382 = vpack.c.b16 %v1219, %v1218
      %v1383 = vpack.c.b16 %v1221, %v1220
      %v1384 = vpack.c.b16 %v1223, %v1222
      %v1385 = vpack.c.b16 %v1225, %v1224
      %v1386 = vpack.c.b16 %v1227, %v1226
      %v1387 = vpack.c.b16 %v1229, %v1228
      %v1388 = vpack.c.b16 %v1231, %v1230
      %v1389 = vpack.c.b16 %v1233, %v1232
      %v1390 = vpack.c.b16 %v1235, %v1234
      %v1391 = vpack.c.b16 %v1237, %v1236
      %v1392 = vpack.c.b16 %v1239, %v1238
      %v1393 = vpack.c.b16 %v1241, %v1240
      %v1394 = vpack.c.b16 %v1243, %v1242
      %v1395 = vpack.c.b16 %v1245, %v1244
      %v1396 = vpack.c.b16 %v1247, %v1246
      %v1397 = vpack.c.b16 %v1249, %v1248
      %v1398 = vpack.c.b16 %v1251, %v1250
      %v1399 = vpack.c.b16 %v1253, %v1252
      %v1400 = vpack.c.b16 %v1255, %v1254
      %v1401 = vpack.c.b16 %v1257, %v1256
      %1546 = vmatprep.subr.bf16.mxu0 0
      %1547 = vmatpush1.bf16.msra.mxu0 %v1258
      %1548 = vmatprep.subr.bf16.mxu0 0
      %1549 = vmatpush1.bf16.msra.mxu0 %v1259
      %1550 = vmatprep.subr.bf16.mxu0 0
      %1551 = vmatpush1.bf16.msra.mxu0 %v1260
      %1552 = vmatprep.subr.bf16.mxu0 0
      %1553 = vmatpush1.bf16.msra.mxu0 %v1261
      %1554 = vmatprep.subr.bf16.mxu0 0
      %1555 = vmatpush1.bf16.msra.mxu0 %v1262
      %1556 = vmatprep.subr.bf16.mxu0 0
      %1557 = vmatpush1.bf16.msra.mxu0 %v1263
      %1558 = vmatprep.subr.bf16.mxu0 0
      %1559 = vmatpush1.bf16.msra.mxu0 %v1264
      %1560 = vmatprep.subr.bf16.mxu0 0
      %1561 = vmatpush1.bf16.msra.mxu0 %v1265
      %1562 = vmatprep.subr.bf16.mxu0 0
      %1563 = vmatpush1.bf16.msra.mxu0 %v1266
      %1564 = vmatprep.subr.bf16.mxu0 0
      %1565 = vmatpush1.bf16.msra.mxu0 %v1267
      %1566 = vmatprep.subr.bf16.mxu0 0
      %1567 = vmatpush1.bf16.msra.mxu0 %v1268
      %1568 = vmatprep.subr.bf16.mxu0 0
      %1569 = vmatpush1.bf16.msra.mxu0 %v1269
      %1570 = vmatprep.subr.bf16.mxu0 0
      %1571 = vmatpush1.bf16.msra.mxu0 %v1270
      %1572 = vmatprep.subr.bf16.mxu0 0
      %1573 = vmatpush1.bf16.msra.mxu0 %v1271
      %1574 = vmatprep.subr.bf16.mxu0 0
      %1575 = vmatpush1.bf16.msra.mxu0 %v1272
      %1576 = vmatprep.subr.bf16.mxu0 0
      %1577 = vmatpush1.bf16.msra.mxu0 %v1273
      %1578 = vmatprep.mubr.bf16.mxu0 %v611
      %1579 = vmatmul.mubr.bf16.gmra.mrb[0].mxu0 %v610
      %v1580 = vpop.f32.mrb[0].mxu0
      %v1581 = vadd.f32 0.0, %v1580
      %v1582 = vpop.f32.mrb[0].mxu0
      %v1583 = vpop.f32.mrb[0].mxu0
      %v1584 = vadd.f32 0.0, %v1583
      %v1585 = vpop.f32.mrb[0].mxu0
      %1586 = vmatprep.mubr.bf16.mxu0 %v629
      %1587 = vmatmul.mubr.bf16.gmra.mrb[0].mxu0 %v628
      %v1588 = vpop.f32.mrb[0].mxu0
      %v1589 = vadd.f32 0.0, %v1588
      %v1590 = vpop.f32.mrb[0].mxu0
      %v1591 = vpop.f32.mrb[0].mxu0
      %v1592 = vadd.f32 0.0, %v1591
      %v1593 = vpop.f32.mrb[0].mxu0
      %1594 = vdwg.mxu0
      %1595 = vmatprep.subr.bf16.mxu0 0
      %1596 = vmatpush1.bf16.msra.mxu0 %v1274
      %1597 = vmatprep.subr.bf16.mxu0 0
      %1598 = vmatpush1.bf16.msra.mxu0 %v1275
      %1599 = vmatprep.subr.bf16.mxu0 0
      %1600 = vmatpush1.bf16.msra.mxu0 %v1276
      %1601 = vmatprep.subr.bf16.mxu0 0
      %1602 = vmatpush1.bf16.msra.mxu0 %v1277
      %1603 = vmatprep.subr.bf16.mxu0 0
      %1604 = vmatpush1.bf16.msra.mxu0 %v1278
      %1605 = vmatprep.subr.bf16.mxu0 0
      %1606 = vmatpush1.bf16.msra.mxu0 %v1279
      %1607 = vmatprep.subr.bf16.mxu0 0
      %1608 = vmatpush1.bf16.msra.mxu0 %v1280
      %1609 = vmatprep.subr.bf16.mxu0 0
      %1610 = vmatpush1.bf16.msra.mxu0 %v1281
      %1611 = vmatprep.subr.bf16.mxu0 0
      %1612 = vmatpush1.bf16.msra.mxu0 %v1282
      %1613 = vmatprep.subr.bf16.mxu0 0
      %1614 = vmatpush1.bf16.msra.mxu0 %v1283
      %1615 = vmatprep.subr.bf16.mxu0 0
      %1616 = vmatpush1.bf16.msra.mxu0 %v1284
      %1617 = vmatprep.subr.bf16.mxu0 0
      %1618 = vmatpush1.bf16.msra.mxu0 %v1285
      %1619 = vmatprep.subr.bf16.mxu0 0
      %1620 = vmatpush1.bf16.msra.mxu0 %v1286
      %1621 = vmatprep.subr.bf16.mxu0 0
      %1622 = vmatpush1.bf16.msra.mxu0 %v1287
      %1623 = vmatprep.subr.bf16.mxu0 0
      %1624 = vmatpush1.bf16.msra.mxu0 %v1288
      %1625 = vmatprep.subr.bf16.mxu0 0
      %1626 = vmatpush1.bf16.msra.mxu0 %v1289
      %1627 = vmatprep.mubr.bf16.mxu0 %v613
      %1628 = vmatmul.mubr.bf16.gmra.mrb[0].mxu0 %v612
      %v1629 = vpop.f32.mrb[0].mxu0
      %v1630 = vadd.f32 %v1581, %v1629
      %v1631 = vpop.f32.mrb[0].mxu0
      %v1632 = vpop.f32.mrb[0].mxu0
      %v1633 = vadd.f32 %v1584, %v1632
      %v1634 = vpop.f32.mrb[0].mxu0
      %1635 = vmatprep.mubr.bf16.mxu0 %v631
      %1636 = vmatmul.mubr.bf16.gmra.mrb[0].mxu0 %v630
      %v1637 = vpop.f32.mrb[0].mxu0
      %v1638 = vadd.f32 %v1589, %v1637
      %v1639 = vpop.f32.mrb[0].mxu0
      %v1640 = vpop.f32.mrb[0].mxu0
      %v1641 = vadd.f32 %v1592, %v1640
      %v1642 = vpop.f32.mrb[0].mxu0
      %1643 = vdwg.mxu0
      %1644 = vmatprep.subr.bf16.mxu0 0
      %1645 = vmatpush1.bf16.msra.mxu0 %v1290
      %1646 = vmatprep.subr.bf16.mxu0 0
      %1647 = vmatpush1.bf16.msra.mxu0 %v1291
      %1648 = vmatprep.subr.bf16.mxu0 0
      %1649 = vmatpush1.bf16.msra.mxu0 %v1292
      %1650 = vmatprep.subr.bf16.mxu0 0
      %1651 = vmatpush1.bf16.msra.mxu0 %v1293
      %1652 = vmatprep.subr.bf16.mxu0 0
      %1653 = vmatpush1.bf16.msra.mxu0 %v1294
      %1654 = vmatprep.subr.bf16.mxu0 0
      %1655 = vmatpush1.bf16.msra.mxu0 %v1295
      %1656 = vmatprep.subr.bf16.mxu0 0
      %1657 = vmatpush1.bf16.msra.mxu0 %v1296
      %1658 = vmatprep.subr.bf16.mxu0 0
      %1659 = vmatpush1.bf16.msra.mxu0 %v1297
      %1660 = vmatprep.subr.bf16.mxu0 0
      %1661 = vmatpush1.bf16.msra.mxu0 %v1298
      %1662 = vmatprep.subr.bf16.mxu0 0
      %1663 = vmatpush1.bf16.msra.mxu0 %v1299
      %1664 = vmatprep.subr.bf16.mxu0 0
      %1665 = vmatpush1.bf16.msra.mxu0 %v1300
      %1666 = vmatprep.subr.bf16.mxu0 0
      %1667 = vmatpush1.bf16.msra.mxu0 %v1301
      %1668 = vmatprep.subr.bf16.mxu0 0
      %1669 = vmatpush1.bf16.msra.mxu0 %v1302
      %1670 = vmatprep.subr.bf16.mxu0 0
      %1671 = vmatpush1.bf16.msra.mxu0 %v1303
      %1672 = vmatprep.subr.bf16.mxu0 0
      %1673 = vmatpush1.bf16.msra.mxu0 %v1304
      %1674 = vmatprep.subr.bf16.mxu0 0
      %1675 = vmatpush1.bf16.msra.mxu0 %v1305
      %1676 = vmatprep.mubr.bf16.mxu0 %v615
      %1677 = vmatmul.mubr.bf16.gmra.mrb[0].mxu0 %v614
      %v1678 = vpop.f32.mrb[0].mxu0
      %v1679 = vadd.f32 %v1630, %v1678
      %v1680 = vpop.f32.mrb[0].mxu0
      %v1681 = vpop.f32.mrb[0].mxu0
      %v1682 = vadd.f32 %v1633, %v1681
      %v1683 = vpop.f32.mrb[0].mxu0
      %1684 = vmatprep.mubr.bf16.mxu0 %v633
      %1685 = vmatmul.mubr.bf16.gmra.mrb[0].mxu0 %v632
      %v1686 = vpop.f32.mrb[0].mxu0
      %v1687 = vadd.f32 %v1638, %v1686
      %v1688 = vpop.f32.mrb[0].mxu0
      %v1689 = vpop.f32.mrb[0].mxu0
      %v1690 = vadd.f32 %v1641, %v1689
      %v1691 = vpop.f32.mrb[0].mxu0
      %1692 = vdwg.mxu0
      %1693 = vmatprep.subr.bf16.mxu0 0
      %1694 = vmatpush1.bf16.msra.mxu0 %v1306
      %1695 = vmatprep.subr.bf16.mxu0 0
      %1696 = vmatpush1.bf16.msra.mxu0 %v1307
      %1697 = vmatprep.subr.bf16.mxu0 0
      %1698 = vmatpush1.bf16.msra.mxu0 %v1308
      %1699 = vmatprep.subr.bf16.mxu0 0
      %1700 = vmatpush1.bf16.msra.mxu0 %v1309
      %1701 = vmatprep.subr.bf16.mxu0 0
      %1702 = vmatpush1.bf16.msra.mxu0 %v1310
      %1703 = vmatprep.subr.bf16.mxu0 0
      %1704 = vmatpush1.bf16.msra.mxu0 %v1311
      %1705 = vmatprep.subr.bf16.mxu0 0
      %1706 = vmatpush1.bf16.msra.mxu0 %v1312
      %1707 = vmatprep.subr.bf16.mxu0 0
      %1708 = vmatpush1.bf16.msra.mxu0 %v1313
      %1709 = vmatprep.subr.bf16.mxu0 0
      %1710 = vmatpush1.bf16.msra.mxu0 %v1314
      %1711 = vmatprep.subr.bf16.mxu0 0
      %1712 = vmatpush1.bf16.msra.mxu0 %v1315
      %1713 = vmatprep.subr.bf16.mxu0 0
      %1714 = vmatpush1.bf16.msra.mxu0 %v1316
      %1715 = vmatprep.subr.bf16.mxu0 0
      %1716 = vmatpush1.bf16.msra.mxu0 %v1317
      %1717 = vmatprep.subr.bf16.mxu0 0
      %1718 = vmatpush1.bf16.msra.mxu0 %v1318
      %1719 = vmatprep.subr.bf16.mxu0 0
      %1720 = vmatpush1.bf16.msra.mxu0 %v1319
      %1721 = vmatprep.subr.bf16.mxu0 0
      %1722 = vmatpush1.bf16.msra.mxu0 %v1320
      %1723 = vmatprep.subr.bf16.mxu0 0
      %1724 = vmatpush1.bf16.msra.mxu0 %v1321
      %1725 = vmatprep.mubr.bf16.mxu0 %v617
      %1726 = vmatmul.mubr.bf16.gmra.mrb[0].mxu0 %v616
      %v1727 = vpop.f32.mrb[0].mxu0
      %v1728 = vadd.f32 %v1679, %v1727
      %v1729 = vpop.f32.mrb[0].mxu0
      %v1730 = vpop.f32.mrb[0].mxu0
      %v1731 = vadd.f32 %v1682, %v1730
      %v1732 = vpop.f32.mrb[0].mxu0
      %1733 = vmatprep.mubr.bf16.mxu0 %v635
      %1734 = vmatmul.mubr.bf16.gmra.mrb[0].mxu0 %v634
      %v1735 = vpop.f32.mrb[0].mxu0
      %v1736 = vadd.f32 %v1687, %v1735
      %v1737 = vpop.f32.mrb[0].mxu0
      %v1738 = vpop.f32.mrb[0].mxu0
      %v1739 = vadd.f32 %v1690, %v1738
      %v1740 = vpop.f32.mrb[0].mxu0
      %1741 = vdwg.mxu0
      %1742 = vmatprep.subr.bf16.mxu0 0
      %1743 = vmatpush1.bf16.msra.mxu0 %v1322
      %1744 = vmatprep.subr.bf16.mxu0 0
      %1745 = vmatpush1.bf16.msra.mxu0 %v1323
      %1746 = vmatprep.subr.bf16.mxu0 0
      %1747 = vmatpush1.bf16.msra.mxu0 %v1324
      %1748 = vmatprep.subr.bf16.mxu0 0
      %1749 = vmatpush1.bf16.msra.mxu0 %v1325
      %1750 = vmatprep.subr.bf16.mxu0 0
      %1751 = vmatpush1.bf16.msra.mxu0 %v1326
      %1752 = vmatprep.subr.bf16.mxu0 0
      %1753 = vmatpush1.bf16.msra.mxu0 %v1327
      %1754 = vmatprep.subr.bf16.mxu0 0
      %1755 = vmatpush1.bf16.msra.mxu0 %v1328
      %1756 = vmatprep.subr.bf16.mxu0 0
      %1757 = vmatpush1.bf16.msra.mxu0 %v1329
      %1758 = vmatprep.subr.bf16.mxu0 0
      %1759 = vmatpush1.bf16.msra.mxu0 %v1330
      %1760 = vmatprep.subr.bf16.mxu0 0
      %1761 = vmatpush1.bf16.msra.mxu0 %v1331
      %1762 = vmatprep.subr.bf16.mxu0 0
      %1763 = vmatpush1.bf16.msra.mxu0 %v1332
      %1764 = vmatprep.subr.bf16.mxu0 0
      %1765 = vmatpush1.bf16.msra.mxu0 %v1333
      %1766 = vmatprep.subr.bf16.mxu0 0
      %1767 = vmatpush1.bf16.msra.mxu0 %v1334
      %1768 = vmatprep.subr.bf16.mxu0 0
      %1769 = vmatpush1.bf16.msra.mxu0 %v1335
      %1770 = vmatprep.subr.bf16.mxu0 0
      %1771 = vmatpush1.bf16.msra.mxu0 %v1336
      %1772 = vmatprep.subr.bf16.mxu0 0
      %1773 = vmatpush1.bf16.msra.mxu0 %v1337
      %1774 = vmatprep.mubr.bf16.mxu0 %v619
      %1775 = vmatmul.mubr.bf16.gmra.mrb[0].mxu0 %v618
      %v1776 = vpop.f32.mrb[0].mxu0
      %v1777 = vadd.f32 %v1728, %v1776
      %v1778 = vpop.f32.mrb[0].mxu0
      %v1779 = vpop.f32.mrb[0].mxu0
      %v1780 = vadd.f32 %v1731, %v1779
      %v1781 = vpop.f32.mrb[0].mxu0
      %1782 = vmatprep.mubr.bf16.mxu0 %v637
      %1783 = vmatmul.mubr.bf16.gmra.mrb[0].mxu0 %v636
      %v1784 = vpop.f32.mrb[0].mxu0
      %v1785 = vadd.f32 %v1736, %v1784
      %v1786 = vpop.f32.mrb[0].mxu0
      %v1787 = vpop.f32.mrb[0].mxu0
      %v1788 = vadd.f32 %v1739, %v1787
      %v1789 = vpop.f32.mrb[0].mxu0
      %1790 = vdwg.mxu0
      %1791 = vmatprep.subr.bf16.mxu0 0
      %1792 = vmatpush1.bf16.msra.mxu0 %v1338
      %1793 = vmatprep.subr.bf16.mxu0 0
      %1794 = vmatpush1.bf16.msra.mxu0 %v1339
      %1795 = vmatprep.subr.bf16.mxu0 0
      %1796 = vmatpush1.bf16.msra.mxu0 %v1340
      %1797 = vmatprep.subr.bf16.mxu0 0
      %1798 = vmatpush1.bf16.msra.mxu0 %v1341
      %1799 = vmatprep.subr.bf16.mxu0 0
      %1800 = vmatpush1.bf16.msra.mxu0 %v1342
      %1801 = vmatprep.subr.bf16.mxu0 0
      %1802 = vmatpush1.bf16.msra.mxu0 %v1343
      %1803 = vmatprep.subr.bf16.mxu0 0
      %1804 = vmatpush1.bf16.msra.mxu0 %v1344
      %1805 = vmatprep.subr.bf16.mxu0 0
      %1806 = vmatpush1.bf16.msra.mxu0 %v1345
      %1807 = vmatprep.subr.bf16.mxu0 0
      %1808 = vmatpush1.bf16.msra.mxu0 %v1346
      %1809 = vmatprep.subr.bf16.mxu0 0
      %1810 = vmatpush1.bf16.msra.mxu0 %v1347
      %1811 = vmatprep.subr.bf16.mxu0 0
      %1812 = vmatpush1.bf16.msra.mxu0 %v1348
      %1813 = vmatprep.subr.bf16.mxu0 0
      %1814 = vmatpush1.bf16.msra.mxu0 %v1349
      %1815 = vmatprep.subr.bf16.mxu0 0
      %1816 = vmatpush1.bf16.msra.mxu0 %v1350
      %1817 = vmatprep.subr.bf16.mxu0 0
      %1818 = vmatpush1.bf16.msra.mxu0 %v1351
      %1819 = vmatprep.subr.bf16.mxu0 0
      %1820 = vmatpush1.bf16.msra.mxu0 %v1352
      %1821 = vmatprep.subr.bf16.mxu0 0
      %1822 = vmatpush1.bf16.msra.mxu0 %v1353
      %1823 = vmatprep.mubr.bf16.mxu0 %v621
      %1824 = vmatmul.mubr.bf16.gmra.mrb[0].mxu0 %v620
      %v1825 = vpop.f32.mrb[0].mxu0
      %v1826 = vadd.f32 %v1777, %v1825
      %v1827 = vpop.f32.mrb[0].mxu0
      %v1828 = vpop.f32.mrb[0].mxu0
      %v1829 = vadd.f32 %v1780, %v1828
      %v1830 = vpop.f32.mrb[0].mxu0
      %1831 = vmatprep.mubr.bf16.mxu0 %v639
      %1832 = vmatmul.mubr.bf16.gmra.mrb[0].mxu0 %v638
      %v1833 = vpop.f32.mrb[0].mxu0
      %v1834 = vadd.f32 %v1785, %v1833
      %v1835 = vpop.f32.mrb[0].mxu0
      %v1836 = vpop.f32.mrb[0].mxu0
      %v1837 = vadd.f32 %v1788, %v1836
      %v1838 = vpop.f32.mrb[0].mxu0
      %1839 = vdwg.mxu0
      %1840 = vmatprep.subr.bf16.mxu0 0
      %1841 = vmatpush1.bf16.msra.mxu0 %v1354
      %1842 = vmatprep.subr.bf16.mxu0 0
      %1843 = vmatpush1.bf16.msra.mxu0 %v1355
      %1844 = vmatprep.subr.bf16.mxu0 0
      %1845 = vmatpush1.bf16.msra.mxu0 %v1356
      %1846 = vmatprep.subr.bf16.mxu0 0
      %1847 = vmatpush1.bf16.msra.mxu0 %v1357
      %1848 = vmatprep.subr.bf16.mxu0 0
      %1849 = vmatpush1.bf16.msra.mxu0 %v1358
      %1850 = vmatprep.subr.bf16.mxu0 0
      %1851 = vmatpush1.bf16.msra.mxu0 %v1359
      %1852 = vmatprep.subr.bf16.mxu0 0
      %1853 = vmatpush1.bf16.msra.mxu0 %v1360
      %1854 = vmatprep.subr.bf16.mxu0 0
      %1855 = vmatpush1.bf16.msra.mxu0 %v1361
      %1856 = vmatprep.subr.bf16.mxu0 0
      %1857 = vmatpush1.bf16.msra.mxu0 %v1362
      %1858 = vmatprep.subr.bf16.mxu0 0
      %1859 = vmatpush1.bf16.msra.mxu0 %v1363
      %1860 = vmatprep.subr.bf16.mxu0 0
      %1861 = vmatpush1.bf16.msra.mxu0 %v1364
      %1862 = vmatprep.subr.bf16.mxu0 0
      %1863 = vmatpush1.bf16.msra.mxu0 %v1365
      %1864 = vmatprep.subr.bf16.mxu0 0
      %1865 = vmatpush1.bf16.msra.mxu0 %v1366
      %1866 = vmatprep.subr.bf16.mxu0 0
      %1867 = vmatpush1.bf16.msra.mxu0 %v1367
      %1868 = vmatprep.subr.bf16.mxu0 0
      %1869 = vmatpush1.bf16.msra.mxu0 %v1368
      %1870 = vmatprep.subr.bf16.mxu0 0
      %1871 = vmatpush1.bf16.msra.mxu0 %v1369
      %1872 = vmatprep.mubr.bf16.mxu0 %v623
      %1873 = vmatmul.mubr.bf16.gmra.mrb[0].mxu0 %v622
      %v1874 = vpop.f32.mrb[0].mxu0
      %v1875 = vadd.f32 %v1826, %v1874
      %v1876 = vpop.f32.mrb[0].mxu0
      %v1877 = vpop.f32.mrb[0].mxu0
      %v1878 = vadd.f32 %v1829, %v1877
      %v1879 = vpop.f32.mrb[0].mxu0
      %1880 = vmatprep.mubr.bf16.mxu0 %v641
      %1881 = vmatmul.mubr.bf16.gmra.mrb[0].mxu0 %v640
      %v1882 = vpop.f32.mrb[0].mxu0
      %v1883 = vadd.f32 %v1834, %v1882
      %v1884 = vpop.f32.mrb[0].mxu0
      %v1885 = vpop.f32.mrb[0].mxu0
      %v1886 = vadd.f32 %v1837, %v1885
      %v1887 = vpop.f32.mrb[0].mxu0
      %1888 = vdwg.mxu0
      %1889 = vmatprep.subr.bf16.mxu0 0
      %1890 = vmatpush1.bf16.msra.mxu0 %v1370
      %1891 = vmatprep.subr.bf16.mxu0 0
      %1892 = vmatpush1.bf16.msra.mxu0 %v1371
      %1893 = vmatprep.subr.bf16.mxu0 0
      %1894 = vmatpush1.bf16.msra.mxu0 %v1372
      %1895 = vmatprep.subr.bf16.mxu0 0
      %1896 = vmatpush1.bf16.msra.mxu0 %v1373
      %1897 = vmatprep.subr.bf16.mxu0 0
      %1898 = vmatpush1.bf16.msra.mxu0 %v1374
      %1899 = vmatprep.subr.bf16.mxu0 0
      %1900 = vmatpush1.bf16.msra.mxu0 %v1375
      %1901 = vmatprep.subr.bf16.mxu0 0
      %1902 = vmatpush1.bf16.msra.mxu0 %v1376
      %1903 = vmatprep.subr.bf16.mxu0 0
      %1904 = vmatpush1.bf16.msra.mxu0 %v1377
      %1905 = vmatprep.subr.bf16.mxu0 0
      %1906 = vmatpush1.bf16.msra.mxu0 %v1378
      %1907 = vmatprep.subr.bf16.mxu0 0
      %1908 = vmatpush1.bf16.msra.mxu0 %v1379
      %1909 = vmatprep.subr.bf16.mxu0 0
      %1910 = vmatpush1.bf16.msra.mxu0 %v1380
      %1911 = vmatprep.subr.bf16.mxu0 0
      %1912 = vmatpush1.bf16.msra.mxu0 %v1381
      %1913 = vmatprep.subr.bf16.mxu0 0
      %1914 = vmatpush1.bf16.msra.mxu0 %v1382
      %1915 = vmatprep.subr.bf16.mxu0 0
      %1916 = vmatpush1.bf16.msra.mxu0 %v1383
      %1917 = vmatprep.subr.bf16.mxu0 0
      %1918 = vmatpush1.bf16.msra.mxu0 %v1384
      %1919 = vmatprep.subr.bf16.mxu0 0
      %1920 = vmatpush1.bf16.msra.mxu0 %v1385
      %1921 = vmatprep.mubr.bf16.mxu0 %v625
      %1922 = vmatmul.mubr.bf16.gmra.mrb[0].mxu0 %v624
      %v1923 = vpop.f32.mrb[0].mxu0
      %v1924 = vadd.f32 %v1875, %v1923
      %v1925 = vpop.f32.mrb[0].mxu0
      %v1926 = vpop.f32.mrb[0].mxu0
      %v1927 = vadd.f32 %v1878, %v1926
      %v1928 = vpop.f32.mrb[0].mxu0
      %1929 = vmatprep.mubr.bf16.mxu0 %v643
      %1930 = vmatmul.mubr.bf16.gmra.mrb[0].mxu0 %v642
      %v1931 = vpop.f32.mrb[0].mxu0
      %v1932 = vadd.f32 %v1883, %v1931
      %v1933 = vpop.f32.mrb[0].mxu0
      %v1934 = vpop.f32.mrb[0].mxu0
      %v1935 = vadd.f32 %v1886, %v1934
      %v1936 = vpop.f32.mrb[0].mxu0
      %1937 = vdwg.mxu0
      %1938 = vmatprep.subr.bf16.mxu0 0
      %1939 = vmatpush1.bf16.msra.mxu0 %v1386
      %1940 = vmatprep.subr.bf16.mxu0 0
      %1941 = vmatpush1.bf16.msra.mxu0 %v1387
      %1942 = vmatprep.subr.bf16.mxu0 0
      %1943 = vmatpush1.bf16.msra.mxu0 %v1388
      %1944 = vmatprep.subr.bf16.mxu0 0
      %1945 = vmatpush1.bf16.msra.mxu0 %v1389
      %1946 = vmatprep.subr.bf16.mxu0 0
      %1947 = vmatpush1.bf16.msra.mxu0 %v1390
      %1948 = vmatprep.subr.bf16.mxu0 0
      %1949 = vmatpush1.bf16.msra.mxu0 %v1391
      %1950 = vmatprep.subr.bf16.mxu0 0
      %1951 = vmatpush1.bf16.msra.mxu0 %v1392
      %1952 = vmatprep.subr.bf16.mxu0 0
      %1953 = vmatpush1.bf16.msra.mxu0 %v1393
      %1954 = vmatprep.subr.bf16.mxu0 0
      %1955 = vmatpush1.bf16.msra.mxu0 %v1394
      %1956 = vmatprep.subr.bf16.mxu0 0
      %1957 = vmatpush1.bf16.msra.mxu0 %v1395
      %1958 = vmatprep.subr.bf16.mxu0 0
      %1959 = vmatpush1.bf16.msra.mxu0 %v1396
      %1960 = vmatprep.subr.bf16.mxu0 0
      %1961 = vmatpush1.bf16.msra.mxu0 %v1397
      %1962 = vmatprep.subr.bf16.mxu0 0
      %1963 = vmatpush1.bf16.msra.mxu0 %v1398
      %1964 = vmatprep.subr.bf16.mxu0 0
      %1965 = vmatpush1.bf16.msra.mxu0 %v1399
      %1966 = vmatprep.subr.bf16.mxu0 0
      %1967 = vmatpush1.bf16.msra.mxu0 %v1400
      %1968 = vmatprep.subr.bf16.mxu0 0
      %1969 = vmatpush1.bf16.msra.mxu0 %v1401
      %1970 = vmatprep.mubr.bf16.mxu0 %v627
      %1971 = vmatmul.mubr.bf16.gmra.mrb[0].mxu0 %v626
      %v1972 = vpop.f32.mrb[0].mxu0
      %v1973 = vadd.f32 %v1924, %v1972
      %v1974 = vpop.f32.mrb[0].mxu0
      %v1975 = vpop.f32.mrb[0].mxu0
      %v1976 = vadd.f32 %v1927, %v1975
      %v1977 = vpop.f32.mrb[0].mxu0
      %1978 = vmatprep.mubr.bf16.mxu0 %v645
      %1979 = vmatmul.mubr.bf16.gmra.mrb[0].mxu0 %v644
      %v1980 = vpop.f32.mrb[0].mxu0
      %v1981 = vadd.f32 %v1932, %v1980
      %v1982 = vpop.f32.mrb[0].mxu0
      %v1983 = vpop.f32.mrb[0].mxu0
      %v1984 = vadd.f32 %v1935, %v1983
      %v1985 = vpop.f32.mrb[0].mxu0
      %1986 = vdwg.mxu0
      %v1987 = vld [vmem:[%s2] sm:$0x1]
      %v1989 = vlaneseq
      %v1990 = vshrl.u32 %v1989, 7
      %v1991 = vsub.s32 0, %v1990
      %v1992 = vrot.slane %v1987, %v1991
      %v1994 = vsub.f32 %v1973, %v1992
      %v1995 = vsub.f32 %v1976, %v1992
      %v1996 = vsub.f32 %v1981, %v1992
      %v1997 = vsub.f32 %v1984, %v1992
      %v1998 = vsub.f32 0.0, %v1973
      %v1999 = vsub.f32 0.0, %v1976
      %v2000 = vsub.f32 0.0, %v1981
      %v2001 = vsub.f32 0.0, %v1984
      %v2002 = vsub.f32 %v1998, %v1992
      %v2003 = vsub.f32 %v1999, %v1992
      %v2004 = vsub.f32 %v2000, %v1992
      %v2005 = vsub.f32 %v2001, %v1992
      %vm2006 = vcmp.ge.f32.partialorder %v1994, 0.0
      %vm2007 = vcmp.ge.f32.partialorder %v1995, 0.0
      %vm2008 = vcmp.ge.f32.partialorder %v1996, 0.0
      %vm2009 = vcmp.ge.f32.partialorder %v1997, 0.0
      %v2010 = vmul.f32 %v1994, 0.001
      %v2011 = vmul.f32 %v1995, 0.001
      %v2012 = vmul.f32 %v1996, 0.001
      %v2013 = vmul.f32 %v1997, 0.001
      %v2014 = vsel %vm2006, %v1994, %v2010
      %v2015 = vsel %vm2007, %v1995, %v2011
      %v2016 = vsel %vm2008, %v1996, %v2012
      %v2017 = vsel %vm2009, %v1997, %v2013
      %vm2018 = vcmp.ge.f32.partialorder %v2002, 0.0
      %vm2019 = vcmp.ge.f32.partialorder %v2003, 0.0
      %vm2020 = vcmp.ge.f32.partialorder %v2004, 0.0
      %vm2021 = vcmp.ge.f32.partialorder %v2005, 0.0
      %v2022 = vmul.f32 %v2002, 0.01
      %v2023 = vmul.f32 %v2003, 0.01
      %v2024 = vmul.f32 %v2004, 0.01
      %v2025 = vmul.f32 %v2005, 0.01
      %v2026 = vsel %vm2018, %v2002, %v2022
      %v2027 = vsel %vm2019, %v2003, %v2023
      %v2028 = vsel %vm2020, %v2004, %v2024
      %v2029 = vsel %vm2021, %v2005, %v2025
      %v2030 = vsub.f32 %v2014, %v2026
      %v2031 = vsub.f32 %v2015, %v2027
      %v2032 = vsub.f32 %v2016, %v2028
      %v2033 = vsub.f32 %v2017, %v2029
      %v2034 = vpack.c.bf16 %v2031, %v2030
      %v2035 = vpack.c.bf16 %v2033, %v2032
      %v2038 = vunpack.c.l.b16 %v2034
      %v2039 = vunpack.c.h.b16 %v2034
      %v2040 = vunpack.c.l.b16 %v2035
      %v2041 = vunpack.c.h.b16 %v2035
      %v2042 = vpack.c.b16 %v2038, %v2038
      %v2043 = vpack.c.b16 %v2039, %v2039
      %v2044 = vpack.c.b16 %v2040, %v2040
      %v2045 = vpack.c.b16 %v2041, %v2041
      %2050 = vst [vmem:[%s175] sm:$0xf] %v2042
      %2051 = vst [vmem:[%s175 + $0x4] sm:$0xf] %v2043
      %2052 = vst [vmem:[%s175 + $0x8] sm:$0xf] %v2044
      %2053 = vst [vmem:[%s175 + $0xc] sm:$0xf] %v2045
      %s2054 = smul.u32 4, %s14
      %p2055 = scmp.lt.s32.totalorder %s2054, 7
      %s2056 = scalar_select %p2055, %s2054, 7
      %s2057 = smul.addr %s2056, 4
      %s2058 = scalar_lea.vmem %s3, %s2057
      // Predicated region
      $region33: #{_lambda_.14} parent=31 // pred_check
        %p2059 = pneg %p100
      $region34: #{_lambda_.14} parent=31 // pred_check_branch
        %2061 = sbr.rel (%p2059) target = $region36
      $region35: #{_lambda_.14} parent=31 // pred_region
        %s2062 = smul.u32 4, %s14
      $region36: #{_lambda_.14} parent=31 // pred_fallthru
        _
    $region32: #{_lambda_.14} parent=5 // pred_fallthru
      _
    %p2063 = scmp.le.s32.totalorder 2, %s9
    // Predicated region
    $region37: #{_lambda_.14} parent=5 // pred_check
      %p2064 = pneg %p2063
    $region38: #{_lambda_.14} parent=5 // pred_check_branch
      %2066 = sbr.rel (%p2064) target = $region40
    $region39: #{_lambda_.14} parent=5 // pred_region
      %s2067 = ssub.s32 %s9, 2
      // Predicated region
      $region41: #{_lambda_.14} parent=39 // pred_check
        %p2068 = pneg %p106
      $region42: #{_lambda_.14} parent=39 // pred_check_branch
        %2070 = sbr.rel (%p2068) target = $region44
      $region43: #{_lambda_.14} parent=39 // pred_region
        %s2071 = smul.u32 4, %s15
        %p2072 = scmp.lt.s32.totalorder %s2071, 7
        %s2073 = scalar_select %p2072, %s2071, 7
        %s2074 = smul.addr %s2073, 4
        %s2075 = scalar_lea.vmem %s3, %s2074
      $region44: #{_lambda_.14} parent=39 // pred_fallthru
        _
    $region40: #{_lambda_.14} parent=5 // pred_fallthru
      _
  $region6: #{_lambda_.14} parent=0 // loop_footer
    %s13 = sadd.s32 1, %s9
  $region7: #{_lambda_.14} parent=0 // loop_footer_branch
    %8 = sbr.rel target = $region3
  $region8: #{_lambda_.14} parent=0 // loop_exit
    _

// kernel: _lambda_.15
$region0: #{_lambda_.15}
  #allocation0 [shape = 'u32[]', space=smem, size = 0x4, offset = 0x4, fixed_abs, tag = 'smem constant byte address 0x4 - core index']
  #allocation1 [shape = 'u32[144,128]{1,0:T(1,128)}', space=vmem, size = 0x12000, scoped, tag = 'internal scratch']
  #allocation2 [shape = 'f32[1,1]{1,0:T(1,128)S(1)}', space=vmem, size = 0x200, scoped, tag = 'scoped memory for _lambda_.15']
  %s0 = inlined_call_operand.vmem [shape: bf16[16,4608], index: 0, kind: input, shape index: {}]
  %s1 = inlined_call_operand.vmem [shape: bf16[4608,128], index: 1, kind: input, shape index: {}]
  %s2 = inlined_call_operand.vmem [shape: f32[1,128], index: 2, kind: input, shape index: {}]
  %s3 = inlined_call_operand.<no memory space> [shape: f32[1,1], index: 3, kind: input, shape index: {}]
  %s4 = inlined_call_operand.vmem [shape: f32[16,128], index: 4, kind: output, shape index: {0}]
  %s5 = inlined_call_operand.vmem [shape: f32[16,128], index: 5, kind: output, shape index: {1}]
  %6 = xla_tuple %s4, %s5
  %s7 = sld [smem:[#allocation0]]
  $region57: #{_lambda_.15} parent=0
    _
  %s9 = ssub.s32 1, %s7
  %s10 = scalar_select 0, %s9, %s7
  %v11 = vstv %s3
  %12 = vst [vmem:[#allocation2] sm:$0x1] %v11
  loop: start=0, step=1, limit=4
  $region2: #{_lambda_.15} parent=0 // loop_pre_header
    _
  $region3: #{_lambda_.15} parent=0 // loop_header
    %s14 = sphi 0, %s18
    %p15 = scmp.ge.s32.totalorder %s14, 4
    %s24 = sphi 0, %s26
    %s27 = sphi 0, %s24
    %s28 = sphi 0, %s27
    %s44 = sphi 0, %s28
    %s48 = sphi 0, %s48
    %s50 = sphi 0, %s48
    %s51 = sphi 0, %s50
    %s65 = sphi 0, %s51
    %s69 = sphi 0, %s69
    %s71 = sphi 0, %s69
    %s72 = sphi 0, %s71
    %s86 = sphi 0, %s72
    %s90 = sphi 0, %s90
    %s92 = sphi 0, %s90
    %s93 = sphi 0, %s92
    %s107 = sphi 0, %s93
    %s113 = sphi 0, %s115
    %s116 = sphi 0, %s113
    %s117 = sphi 0, %s116
    %s133 = sphi 0, %s117
    %s139 = sphi 0, %s141
    %s142 = sphi 0, %s139
    %s143 = sphi 0, %s142
    %s159 = sphi 0, %s143
  $region4: #{_lambda_.15} parent=0 // loop_header_branch
    %17 = sbr.rel (%p15) target = $region8
  $region5: #{_lambda_.15} parent=0 // loop_body
    %s19 = ssub.s32 %s14, 1
    %s20 = ssub.s32 %s14, 2
    %s21 = sadd.s32 %s14, 1
    %s22 = ssub.s32 %s14, %s21
    %p23 = scmp.eq.s32.totalorder %s22, 0
    %s25 = sadd.s32 %s24, 1
    %s26 = scalar_select %p23, %s24, %s25
    %p29 = pneg %p23
    %p30 = scmp.eq.s32.totalorder %s14, 1
    %p31 = por %p29, %p30
    %p32 = scmp.ne.s32.totalorder %s24, %s27
    %p33 = scmp.eq.s32.totalorder %s14, 0
    %p34 = por %p32, %p33
    %p35 = scmp.ne.s32.totalorder %s24, %s27
    %p36 = scmp.eq.s32.totalorder %s19, 1
    %p37 = por %p35, %p36
    %p38 = scmp.ne.s32.totalorder %s27, %s28
    %p39 = scmp.eq.s32.totalorder %s19, 0
    %p40 = por %p38, %p39
    %p41 = scmp.ne.s32.totalorder %s27, %s28
    %p42 = scmp.eq.s32.totalorder %s20, 1
    %p43 = por %p41, %p42
    %p45 = scmp.ne.s32.totalorder %s28, %s44
    %p46 = scmp.eq.s32.totalorder %s20, 0
    %p47 = por %p45, %p46
    %s49 = sadd.s32 %s48, 1
    %p52 = scmp.eq.s32.totalorder %s14, 1
    %p53 = scmp.ne.s32.totalorder %s48, %s50
    %p54 = scmp.eq.s32.totalorder %s14, 0
    %p55 = por %p53, %p54
    %p56 = scmp.ne.s32.totalorder %s48, %s50
    %p57 = scmp.eq.s32.totalorder %s19, 1
    %p58 = por %p56, %p57
    %p59 = scmp.ne.s32.totalorder %s50, %s51
    %p60 = scmp.eq.s32.totalorder %s19, 0
    %p61 = por %p59, %p60
    %p62 = scmp.ne.s32.totalorder %s50, %s51
    %p63 = scmp.eq.s32.totalorder %s20, 1
    %p64 = por %p62, %p63
    %p66 = scmp.ne.s32.totalorder %s51, %s65
    %p67 = scmp.eq.s32.totalorder %s20, 0
    %p68 = por %p66, %p67
    %s70 = sadd.s32 %s69, 1
    %p73 = scmp.eq.s32.totalorder %s14, 1
    %p74 = scmp.ne.s32.totalorder %s69, %s71
    %p75 = scmp.eq.s32.totalorder %s14, 0
    %p76 = por %p74, %p75
    %p77 = scmp.ne.s32.totalorder %s69, %s71
    %p78 = scmp.eq.s32.totalorder %s19, 1
    %p79 = por %p77, %p78
    %p80 = scmp.ne.s32.totalorder %s71, %s72
    %p81 = scmp.eq.s32.totalorder %s19, 0
    %p82 = por %p80, %p81
    %p83 = scmp.ne.s32.totalorder %s71, %s72
    %p84 = scmp.eq.s32.totalorder %s20, 1
    %p85 = por %p83, %p84
    %p87 = scmp.ne.s32.totalorder %s72, %s86
    %p88 = scmp.eq.s32.totalorder %s20, 0
    %p89 = por %p87, %p88
    %s91 = sadd.s32 %s90, 1
    %p94 = scmp.eq.s32.totalorder %s14, 1
    %p95 = scmp.ne.s32.totalorder %s90, %s92
    %p96 = scmp.eq.s32.totalorder %s14, 0
    %p97 = por %p95, %p96
    %p98 = scmp.ne.s32.totalorder %s90, %s92
    %p99 = scmp.eq.s32.totalorder %s19, 1
    %p100 = por %p98, %p99
    %p101 = scmp.ne.s32.totalorder %s92, %s93
    %p102 = scmp.eq.s32.totalorder %s19, 0
    %p103 = por %p101, %p102
    %p104 = scmp.ne.s32.totalorder %s92, %s93
    %p105 = scmp.eq.s32.totalorder %s20, 1
    %p106 = por %p104, %p105
    %p108 = scmp.ne.s32.totalorder %s93, %s107
    %p109 = scmp.eq.s32.totalorder %s20, 0
    %p110 = por %p108, %p109
    %s111 = ssub.s32 %s14, %s21
    %p112 = scmp.eq.s32.totalorder %s111, 0
    %s114 = sadd.s32 %s113, 1
    %s115 = scalar_select %p112, %s113, %s114
    %p118 = pneg %p112
    %p119 = scmp.eq.s32.totalorder %s14, 1
    %p120 = por %p118, %p119
    %p121 = scmp.ne.s32.totalorder %s113, %s116
    %p122 = scmp.eq.s32.totalorder %s14, 0
    %p123 = por %p121, %p122
    %p124 = scmp.ne.s32.totalorder %s113, %s116
    %p125 = scmp.eq.s32.totalorder %s19, 1
    %p126 = por %p124, %p125
    %p127 = scmp.ne.s32.totalorder %s116, %s117
    %p128 = scmp.eq.s32.totalorder %s19, 0
    %p129 = por %p127, %p128
    %p130 = scmp.ne.s32.totalorder %s116, %s117
    %p131 = scmp.eq.s32.totalorder %s20, 1
    %p132 = por %p130, %p131
    %p134 = scmp.ne.s32.totalorder %s117, %s133
    %p135 = scmp.eq.s32.totalorder %s20, 0
    %p136 = por %p134, %p135
    %s137 = ssub.s32 %s14, %s21
    %p138 = scmp.eq.s32.totalorder %s137, 0
    %s140 = sadd.s32 %s139, 1
    %s141 = scalar_select %p138, %s139, %s140
    %p144 = pneg %p138
    %p145 = scmp.eq.s32.totalorder %s14, 1
    %p146 = por %p144, %p145
    %p147 = scmp.ne.s32.totalorder %s139, %s142
    %p148 = scmp.eq.s32.totalorder %s14, 0
    %p149 = por %p147, %p148
    %p150 = scmp.ne.s32.totalorder %s139, %s142
    %p151 = scmp.eq.s32.totalorder %s19, 1
    %p152 = por %p150, %p151
    %p153 = scmp.ne.s32.totalorder %s142, %s143
    %p154 = scmp.eq.s32.totalorder %s19, 0
    %p155 = por %p153, %p154
    %p156 = scmp.ne.s32.totalorder %s142, %s143
    %p157 = scmp.eq.s32.totalorder %s20, 1
    %p158 = por %p156, %p157
    %p160 = scmp.ne.s32.totalorder %s143, %s159
    %p161 = scmp.eq.s32.totalorder %s20, 0
    %p162 = por %p160, %p161
    %p163 = scmp.le.s32.totalorder 1, %s14
    %p164 = scmp.lt.s32.totalorder %s14, 3
    %p165 = pnand %p163, %p164
    %p166 = pneg %p165
    // Predicated region
    $region9: #{_lambda_.15} parent=5 // pred_check
      _
    $region10: #{_lambda_.15} parent=5 // pred_check_branch
      %168 = sbr.rel (%p165) target = $region12
    $region11: #{_lambda_.15} parent=5 // pred_region
      %s169 = ssub.s32 %s14, 1
      // Predicated region
      $region13: #{_lambda_.15} parent=11 // pred_check
        %p170 = pneg %p61
      $region14: #{_lambda_.15} parent=11 // pred_check_branch
        %172 = sbr.rel (%p170) target = $region16
      $region15: #{_lambda_.15} parent=11 // pred_region
        _
      $region16: #{_lambda_.15} parent=11 // pred_fallthru
        _
      // Predicated region
      $region17: #{_lambda_.15} parent=11 // pred_check
        %p173 = pneg %p82
      $region18: #{_lambda_.15} parent=11 // pred_check_branch
        %175 = sbr.rel (%p173) target = $region20
      $region19: #{_lambda_.15} parent=11 // pred_region
        _
      $region20: #{_lambda_.15} parent=11 // pred_fallthru
        _
      // Predicated region
      $region21: #{_lambda_.15} parent=11 // pred_check
        %p176 = pneg %p103
      $region22: #{_lambda_.15} parent=11 // pred_check_branch
        %178 = sbr.rel (%p176) target = $region24
      $region23: #{_lambda_.15} parent=11 // pred_region
        _
      $region24: #{_lambda_.15} parent=11 // pred_fallthru
        _
    $region12: #{_lambda_.15} parent=5 // pred_fallthru
      _
    %p179 = scmp.lt.s32.totalorder %s14, 2
    // Predicated region
    $region25: #{_lambda_.15} parent=5 // pred_check
      %p180 = pneg %p179
    $region26: #{_lambda_.15} parent=5 // pred_check_branch
      %182 = sbr.rel (%p180) target = $region28
    $region27: #{_lambda_.15} parent=5 // pred_region
      // Predicated region
      $region29: #{_lambda_.15} parent=27 // pred_check
        %p183 = pneg %p34
      $region30: #{_lambda_.15} parent=27 // pred_check_branch
        %185 = sbr.rel (%p183) target = $region32
      $region31: #{_lambda_.15} parent=27 // pred_region
        %p186 = scmp.lt.s32.totalorder %s14, 1
        %s187 = scalar_select %p186, %s14, 1
        %s188 = smul.addr %s187, 36
        %s189 = smul.addr %s188, 4
        %s190 = scalar_lea.vmem %s0, %s189
      $region32: #{_lambda_.15} parent=27 // pred_fallthru
        _
    $region28: #{_lambda_.15} parent=5 // pred_fallthru
      _
    %p191 = scmp.le.s32.totalorder 1, %s14
    %p192 = scmp.lt.s32.totalorder %s14, 3
    %p193 = pnand %p191, %p192
    %p194 = pneg %p193
    // Predicated region
    $region33: #{_lambda_.15} parent=5 // pred_check
      _
    $region34: #{_lambda_.15} parent=5 // pred_check_branch
      %196 = sbr.rel (%p193) target = $region36
    $region35: #{_lambda_.15} parent=5 // pred_region
      %s197 = ssub.s32 %s14, 1
      %p198 = scmp.lt.s32.totalorder %s19, 1
      %s199 = scalar_select %p198, %s19, 1
      %s200 = smul.addr %s199, 36
      %s201 = smul.addr %s200, 4
      %s202 = scalar_lea.vmem %s0, %s201
      %p203 = pneg %p40
      %p204 = pneg %p37
      %p205 = pneg %p61
      %p206 = pneg %p58
      %p207 = pneg %p82
      %p208 = pneg %p79
      %p209 = pneg %p103
      %p210 = pneg %p100
      %p211 = pneg %p129
      %p212 = pneg %p126
      %p213 = scmp.lt.s32.totalorder %s19, 1
      %s214 = scalar_select %p213, %s19, 1
      %s215 = smul.addr %s214, 8
      %s216 = scalar_lea.vmem %s4, %s215
      %p217 = pneg %p155
      %p218 = pneg %p152
      %p219 = scmp.lt.s32.totalorder %s19, 1
      %s220 = scalar_select %p219, %s19, 1
      %s221 = smul.addr %s220, 8
      %s222 = scalar_lea.vmem %s5, %s221
      %p223 = scmp.lt.s32.totalorder %s19, 1
      %s224 = scalar_select %p223, %s19, 1
      %s225 = smul.addr %s224, 36
      %s226 = smul.addr %s225, 4
      %s227 = scalar_lea.vmem %s0, %s226
      %p228 = scmp.lt.s32.totalorder %s19, 1
      %s229 = scalar_select %p228, %s19, 1
      %s230 = smul.addr %s229, 8
      %s231 = scalar_lea.vmem %s4, %s230
      %p232 = scmp.lt.s32.totalorder %s19, 1
      %s233 = scalar_select %p232, %s19, 1
      %s234 = smul.addr %s233, 8
      %s235 = scalar_lea.vmem %s5, %s234
      %v237 = vld [vmem:[%s227] sm:$0xff]
      %v238 = vld [vmem:[%s227 + $0x8] sm:$0xff]
      %v239 = vld [vmem:[%s227 + $0x10] sm:$0xff]
      %v240 = vld [vmem:[%s227 + $0x18] sm:$0xff]
      %v241 = vld [vmem:[%s227 + $0x20] sm:$0xff]
      %v242 = vld [vmem:[%s227 + $0x28] sm:$0xff]
      %v243 = vld [vmem:[%s227 + $0x30] sm:$0xff]
      %v244 = vld [vmem:[%s227 + $0x38] sm:$0xff]
      %v245 = vld [vmem:[%s227 + $0x40] sm:$0xff]
      %v246 = vld [vmem:[%s227 + $0x48] sm:$0xff]
      %v247 = vld [vmem:[%s227 + $0x50] sm:$0xff]
      %v248 = vld [vmem:[%s227 + $0x58] sm:$0xff]
      %v249 = vld [vmem:[%s227 + $0x60] sm:$0xff]
      %v250 = vld [vmem:[%s227 + $0x68] sm:$0xff]
      %v251 = vld [vmem:[%s227 + $0x70] sm:$0xff]
      %v252 = vld [vmem:[%s227 + $0x78] sm:$0xff]
      %v253 = vld [vmem:[%s227 + $0x80] sm:$0xff]
      %v254 = vld [vmem:[%s227 + $0x88] sm:$0xff]
      %v255 = vld [vmem:[%s1] sm:$0xf]
      %v256 = vld [vmem:[%s1 + $0x4] sm:$0xf]
      %v257 = vld [vmem:[%s1 + $0x8] sm:$0xf]
      %v258 = vld [vmem:[%s1 + $0xc] sm:$0xf]
      %v259 = vld [vmem:[%s1 + $0x10] sm:$0xf]
      %v260 = vld [vmem:[%s1 + $0x14] sm:$0xf]
      %v261 = vld [vmem:[%s1 + $0x18] sm:$0xf]
      %v262 = vld [vmem:[%s1 + $0x1c] sm:$0xf]
      %v263 = vld [vmem:[%s1 + $0x20] sm:$0xf]
      %v264 = vld [vmem:[%s1 + $0x24] sm:$0xf]
      %v265 = vld [vmem:[%s1 + $0x28] sm:$0xf]
      %v266 = vld [vmem:[%s1 + $0x2c] sm:$0xf]
      %v267 = vld [vmem:[%s1 + $0x30] sm:$0xf]
      %v268 = vld [vmem:[%s1 + $0x34] sm:$0xf]
      %v269 = vld [vmem:[%s1 + $0x38] sm:$0xf]
      %v270 = vld [vmem:[%s1 + $0x3c] sm:$0xf]
      %v271 = vld [vmem:[%s1 + $0x40] sm:$0xf]
      %v272 = vld [vmem:[%s1 + $0x44] sm:$0xf]
      %v273 = vld [vmem:[%s1 + $0x48] sm:$0xf]
      %v274 = vld [vmem:[%s1 + $0x4c] sm:$0xf]
      %v275 = vld [vmem:[%s1 + $0x50] sm:$0xf]
      %v276 = vld [vmem:[%s1 + $0x54] sm:$0xf]
      %v277 = vld [vmem:[%s1 + $0x58] sm:$0xf]
      %v278 = vld [vmem:[%s1 + $0x5c] sm:$0xf]
      %v279 = vld [vmem:[%s1 + $0x60] sm:$0xf]
      %v280 = vld [vmem:[%s1 + $0x64] sm:$0xf]
      %v281 = vld [vmem:[%s1 + $0x68] sm:$0xf]
      %v282 = vld [vmem:[%s1 + $0x6c] sm:$0xf]
      %v283 = vld [vmem:[%s1 + $0x70] sm:$0xf]
      %v284 = vld [vmem:[%s1 + $0x74] sm:$0xf]
      %v285 = vld [vmem:[%s1 + $0x78] sm:$0xf]
      %v286 = vld [vmem:[%s1 + $0x7c] sm:$0xf]
      %v287 = vld [vmem:[%s1 + $0x80] sm:$0xf]
      %v288 = vld [vmem:[%s1 + $0x84] sm:$0xf]
      %v289 = vld [vmem:[%s1 + $0x88] sm:$0xf]
      %v290 = vld [vmem:[%s1 + $0x8c] sm:$0xf]
      %v291 = vld [vmem:[%s1 + $0x90] sm:$0xf]
      %v292 = vld [vmem:[%s1 + $0x94] sm:$0xf]
      %v293 = vld [vmem:[%s1 + $0x98] sm:$0xf]
      %v294 = vld [vmem:[%s1 + $0x9c] sm:$0xf]
      %v295 = vld [vmem:[%s1 + $0xa0] sm:$0xf]
      %v296 = vld [vmem:[%s1 + $0xa4] sm:$0xf]
      %v297 = vld [vmem:[%s1 + $0xa8] sm:$0xf]
      %v298 = vld [vmem:[%s1 + $0xac] sm:$0xf]
      %v299 = vld [vmem:[%s1 + $0xb0] sm:$0xf]
      %v300 = vld [vmem:[%s1 + $0xb4] sm:$0xf]
      %v301 = vld [vmem:[%s1 + $0xb8] sm:$0xf]
      %v302 = vld [vmem:[%s1 + $0xbc] sm:$0xf]
      %v303 = vld [vmem:[%s1 + $0xc0] sm:$0xf]
      %v304 = vld [vmem:[%s1 + $0xc4] sm:$0xf]
      %v305 = vld [vmem:[%s1 + $0xc8] sm:$0xf]
      %v306 = vld [vmem:[%s1 + $0xcc] sm:$0xf]
      %v307 = vld [vmem:[%s1 + $0xd0] sm:$0xf]
      %v308 = vld [vmem:[%s1 + $0xd4] sm:$0xf]
      %v309 = vld [vmem:[%s1 + $0xd8] sm:$0xf]
      %v310 = vld [vmem:[%s1 + $0xdc] sm:$0xf]
      %v311 = vld [vmem:[%s1 + $0xe0] sm:$0xf]
      %v312 = vld [vmem:[%s1 + $0xe4] sm:$0xf]
      %v313 = vld [vmem:[%s1 + $0xe8] sm:$0xf]
      %v314 = vld [vmem:[%s1 + $0xec] sm:$0xf]
      %v315 = vld [vmem:[%s1 + $0xf0] sm:$0xf]
      %v316 = vld [vmem:[%s1 + $0xf4] sm:$0xf]
      %v317 = vld [vmem:[%s1 + $0xf8] sm:$0xf]
      %v318 = vld [vmem:[%s1 + $0xfc] sm:$0xf]
      %v319 = vld [vmem:[%s1 + $0x100] sm:$0xf]
      %v320 = vld [vmem:[%s1 + $0x104] sm:$0xf]
      %v321 = vld [vmem:[%s1 + $0x108] sm:$0xf]
      %v322 = vld [vmem:[%s1 + $0x10c] sm:$0xf]
      %v323 = vld [vmem:[%s1 + $0x110] sm:$0xf]
      %v324 = vld [vmem:[%s1 + $0x114] sm:$0xf]
      %v325 = vld [vmem:[%s1 + $0x118] sm:$0xf]
      %v326 = vld [vmem:[%s1 + $0x11c] sm:$0xf]
      %v327 = vld [vmem:[%s1 + $0x120] sm:$0xf]
      %v328 = vld [vmem:[%s1 + $0x124] sm:$0xf]
      %v329 = vld [vmem:[%s1 + $0x128] sm:$0xf]
      %v330 = vld [vmem:[%s1 + $0x12c] sm:$0xf]
      %v331 = vld [vmem:[%s1 + $0x130] sm:$0xf]
      %v332 = vld [vmem:[%s1 + $0x134] sm:$0xf]
      %v333 = vld [vmem:[%s1 + $0x138] sm:$0xf]
      %v334 = vld [vmem:[%s1 + $0x13c] sm:$0xf]
      %v335 = vld [vmem:[%s1 + $0x140] sm:$0xf]
      %v336 = vld [vmem:[%s1 + $0x144] sm:$0xf]
      %v337 = vld [vmem:[%s1 + $0x148] sm:$0xf]
      %v338 = vld [vmem:[%s1 + $0x14c] sm:$0xf]
      %v339 = vld [vmem:[%s1 + $0x150] sm:$0xf]
      %v340 = vld [vmem:[%s1 + $0x154] sm:$0xf]
      %v341 = vld [vmem:[%s1 + $0x158] sm:$0xf]
      %v342 = vld [vmem:[%s1 + $0x15c] sm:$0xf]
      %v343 = vld [vmem:[%s1 + $0x160] sm:$0xf]
      %v344 = vld [vmem:[%s1 + $0x164] sm:$0xf]
      %v345 = vld [vmem:[%s1 + $0x168] sm:$0xf]
      %v346 = vld [vmem:[%s1 + $0x16c] sm:$0xf]
      %v347 = vld [vmem:[%s1 + $0x170] sm:$0xf]
      %v348 = vld [vmem:[%s1 + $0x174] sm:$0xf]
      %v349 = vld [vmem:[%s1 + $0x178] sm:$0xf]
      %v350 = vld [vmem:[%s1 + $0x17c] sm:$0xf]
      %v351 = vld [vmem:[%s1 + $0x180] sm:$0xf]
      %v352 = vld [vmem:[%s1 + $0x184] sm:$0xf]
      %v353 = vld [vmem:[%s1 + $0x188] sm:$0xf]
      %v354 = vld [vmem:[%s1 + $0x18c] sm:$0xf]
      %v355 = vld [vmem:[%s1 + $0x190] sm:$0xf]
      %v356 = vld [vmem:[%s1 + $0x194] sm:$0xf]
      %v357 = vld [vmem:[%s1 + $0x198] sm:$0xf]
      %v358 = vld [vmem:[%s1 + $0x19c] sm:$0xf]
      %v359 = vld [vmem:[%s1 + $0x1a0] sm:$0xf]
      %v360 = vld [vmem:[%s1 + $0x1a4] sm:$0xf]
      %v361 = vld [vmem:[%s1 + $0x1a8] sm:$0xf]
      %v362 = vld [vmem:[%s1 + $0x1ac] sm:$0xf]
      %v363 = vld [vmem:[%s1 + $0x1b0] sm:$0xf]
      %v364 = vld [vmem:[%s1 + $0x1b4] sm:$0xf]
      %v365 = vld [vmem:[%s1 + $0x1b8] sm:$0xf]
      %v366 = vld [vmem:[%s1 + $0x1bc] sm:$0xf]
      %v367 = vld [vmem:[%s1 + $0x1c0] sm:$0xf]
      %v368 = vld [vmem:[%s1 + $0x1c4] sm:$0xf]
      %v369 = vld [vmem:[%s1 + $0x1c8] sm:$0xf]
      %v370 = vld [vmem:[%s1 + $0x1cc] sm:$0xf]
      %v371 = vld [vmem:[%s1 + $0x1d0] sm:$0xf]
      %v372 = vld [vmem:[%s1 + $0x1d4] sm:$0xf]
      %v373 = vld [vmem:[%s1 + $0x1d8] sm:$0xf]
      %v374 = vld [vmem:[%s1 + $0x1dc] sm:$0xf]
      %v375 = vld [vmem:[%s1 + $0x1e0] sm:$0xf]
      %v376 = vld [vmem:[%s1 + $0x1e4] sm:$0xf]
      %v377 = vld [vmem:[%s1 + $0x1e8] sm:$0xf]
      %v378 = vld [vmem:[%s1 + $0x1ec] sm:$0xf]
      %v379 = vld [vmem:[%s1 + $0x1f0] sm:$0xf]
      %v380 = vld [vmem:[%s1 + $0x1f4] sm:$0xf]
      %v381 = vld [vmem:[%s1 + $0x1f8] sm:$0xf]
      %v382 = vld [vmem:[%s1 + $0x1fc] sm:$0xf]
      %v383 = vld [vmem:[%s1 + $0x200] sm:$0xf]
      %v384 = vld [vmem:[%s1 + $0x204] sm:$0xf]
      %v385 = vld [vmem:[%s1 + $0x208] sm:$0xf]
      %v386 = vld [vmem:[%s1 + $0x20c] sm:$0xf]
      %v387 = vld [vmem:[%s1 + $0x210] sm:$0xf]
      %v388 = vld [vmem:[%s1 + $0x214] sm:$0xf]
      %v389 = vld [vmem:[%s1 + $0x218] sm:$0xf]
      %v390 = vld [vmem:[%s1 + $0x21c] sm:$0xf]
      %v391 = vld [vmem:[%s1 + $0x220] sm:$0xf]
      %v392 = vld [vmem:[%s1 + $0x224] sm:$0xf]
      %v393 = vld [vmem:[%s1 + $0x228] sm:$0xf]
      %v394 = vld [vmem:[%s1 + $0x22c] sm:$0xf]
      %v395 = vld [vmem:[%s1 + $0x230] sm:$0xf]
      %v396 = vld [vmem:[%s1 + $0x234] sm:$0xf]
      %v397 = vld [vmem:[%s1 + $0x238] sm:$0xf]
      %v398 = vld [vmem:[%s1 + $0x23c] sm:$0xf]
      %v399 = vld [vmem:[%s1 + $0x240] sm:$0xf]
      %v400 = vld [vmem:[%s1 + $0x244] sm:$0xf]
      %v401 = vld [vmem:[%s1 + $0x248] sm:$0xf]
      %v402 = vld [vmem:[%s1 + $0x24c] sm:$0xf]
      %v403 = vld [vmem:[%s1 + $0x250] sm:$0xf]
      %v404 = vld [vmem:[%s1 + $0x254] sm:$0xf]
      %v405 = vld [vmem:[%s1 + $0x258] sm:$0xf]
      %v406 = vld [vmem:[%s1 + $0x25c] sm:$0xf]
      %v407 = vld [vmem:[%s1 + $0x260] sm:$0xf]
      %v408 = vld [vmem:[%s1 + $0x264] sm:$0xf]
      %v409 = vld [vmem:[%s1 + $0x268] sm:$0xf]
      %v410 = vld [vmem:[%s1 + $0x26c] sm:$0xf]
      %v411 = vld [vmem:[%s1 + $0x270] sm:$0xf]
      %v412 = vld [vmem:[%s1 + $0x274] sm:$0xf]
      %v413 = vld [vmem:[%s1 + $0x278] sm:$0xf]
      %v414 = vld [vmem:[%s1 + $0x27c] sm:$0xf]
      %v415 = vld [vmem:[%s1 + $0x280] sm:$0xf]
      %v416 = vld [vmem:[%s1 + $0x284] sm:$0xf]
      %v417 = vld [vmem:[%s1 + $0x288] sm:$0xf]
      %v418 = vld [vmem:[%s1 + $0x28c] sm:$0xf]
      %v419 = vld [vmem:[%s1 + $0x290] sm:$0xf]
      %v420 = vld [vmem:[%s1 + $0x294] sm:$0xf]
      %v421 = vld [vmem:[%s1 + $0x298] sm:$0xf]
      %v422 = vld [vmem:[%s1 + $0x29c] sm:$0xf]
      %v423 = vld [vmem:[%s1 + $0x2a0] sm:$0xf]
      %v424 = vld [vmem:[%s1 + $0x2a4] sm:$0xf]
      %v425 = vld [vmem:[%s1 + $0x2a8] sm:$0xf]
      %v426 = vld [vmem:[%s1 + $0x2ac] sm:$0xf]
      %v427 = vld [vmem:[%s1 + $0x2b0] sm:$0xf]
      %v428 = vld [vmem:[%s1 + $0x2b4] sm:$0xf]
      %v429 = vld [vmem:[%s1 + $0x2b8] sm:$0xf]
      %v430 = vld [vmem:[%s1 + $0x2bc] sm:$0xf]
      %v431 = vld [vmem:[%s1 + $0x2c0] sm:$0xf]
      %v432 = vld [vmem:[%s1 + $0x2c4] sm:$0xf]
      %v433 = vld [vmem:[%s1 + $0x2c8] sm:$0xf]
      %v434 = vld [vmem:[%s1 + $0x2cc] sm:$0xf]
      %v435 = vld [vmem:[%s1 + $0x2d0] sm:$0xf]
      %v436 = vld [vmem:[%s1 + $0x2d4] sm:$0xf]
      %v437 = vld [vmem:[%s1 + $0x2d8] sm:$0xf]
      %v438 = vld [vmem:[%s1 + $0x2dc] sm:$0xf]
      %v439 = vld [vmem:[%s1 + $0x2e0] sm:$0xf]
      %v440 = vld [vmem:[%s1 + $0x2e4] sm:$0xf]
      %v441 = vld [vmem:[%s1 + $0x2e8] sm:$0xf]
      %v442 = vld [vmem:[%s1 + $0x2ec] sm:$0xf]
      %v443 = vld [vmem:[%s1 + $0x2f0] sm:$0xf]
      %v444 = vld [vmem:[%s1 + $0x2f4] sm:$0xf]
      %v445 = vld [vmem:[%s1 + $0x2f8] sm:$0xf]
      %v446 = vld [vmem:[%s1 + $0x2fc] sm:$0xf]
      %v447 = vld [vmem:[%s1 + $0x300] sm:$0xf]
      %v448 = vld [vmem:[%s1 + $0x304] sm:$0xf]
      %v449 = vld [vmem:[%s1 + $0x308] sm:$0xf]
      %v450 = vld [vmem:[%s1 + $0x30c] sm:$0xf]
      %v451 = vld [vmem:[%s1 + $0x310] sm:$0xf]
      %v452 = vld [vmem:[%s1 + $0x314] sm:$0xf]
      %v453 = vld [vmem:[%s1 + $0x318] sm:$0xf]
      %v454 = vld [vmem:[%s1 + $0x31c] sm:$0xf]
      %v455 = vld [vmem:[%s1 + $0x320] sm:$0xf]
      %v456 = vld [vmem:[%s1 + $0x324] sm:$0xf]
      %v457 = vld [vmem:[%s1 + $0x328] sm:$0xf]
      %v458 = vld [vmem:[%s1 + $0x32c] sm:$0xf]
      %v459 = vld [vmem:[%s1 + $0x330] sm:$0xf]
      %v460 = vld [vmem:[%s1 + $0x334] sm:$0xf]
      %v461 = vld [vmem:[%s1 + $0x338] sm:$0xf]
      %v462 = vld [vmem:[%s1 + $0x33c] sm:$0xf]
      %v463 = vld [vmem:[%s1 + $0x340] sm:$0xf]
      %v464 = vld [vmem:[%s1 + $0x344] sm:$0xf]
      %v465 = vld [vmem:[%s1 + $0x348] sm:$0xf]
      %v466 = vld [vmem:[%s1 + $0x34c] sm:$0xf]
      %v467 = vld [vmem:[%s1 + $0x350] sm:$0xf]
      %v468 = vld [vmem:[%s1 + $0x354] sm:$0xf]
      %v469 = vld [vmem:[%s1 + $0x358] sm:$0xf]
      %v470 = vld [vmem:[%s1 + $0x35c] sm:$0xf]
      %v471 = vld [vmem:[%s1 + $0x360] sm:$0xf]
      %v472 = vld [vmem:[%s1 + $0x364] sm:$0xf]
      %v473 = vld [vmem:[%s1 + $0x368] sm:$0xf]
      %v474 = vld [vmem:[%s1 + $0x36c] sm:$0xf]
      %v475 = vld [vmem:[%s1 + $0x370] sm:$0xf]
      %v476 = vld [vmem:[%s1 + $0x374] sm:$0xf]
      %v477 = vld [vmem:[%s1 + $0x378] sm:$0xf]
      %v478 = vld [vmem:[%s1 + $0x37c] sm:$0xf]
      %v479 = vld [vmem:[%s1 + $0x380] sm:$0xf]
      %v480 = vld [vmem:[%s1 + $0x384] sm:$0xf]
      %v481 = vld [vmem:[%s1 + $0x388] sm:$0xf]
      %v482 = vld [vmem:[%s1 + $0x38c] sm:$0xf]
      %v483 = vld [vmem:[%s1 + $0x390] sm:$0xf]
      %v484 = vld [vmem:[%s1 + $0x394] sm:$0xf]
      %v485 = vld [vmem:[%s1 + $0x398] sm:$0xf]
      %v486 = vld [vmem:[%s1 + $0x39c] sm:$0xf]
      %v487 = vld [vmem:[%s1 + $0x3a0] sm:$0xf]
      %v488 = vld [vmem:[%s1 + $0x3a4] sm:$0xf]
      %v489 = vld [vmem:[%s1 + $0x3a8] sm:$0xf]
      %v490 = vld [vmem:[%s1 + $0x3ac] sm:$0xf]
      %v491 = vld [vmem:[%s1 + $0x3b0] sm:$0xf]
      %v492 = vld [vmem:[%s1 + $0x3b4] sm:$0xf]
      %v493 = vld [vmem:[%s1 + $0x3b8] sm:$0xf]
      %v494 = vld [vmem:[%s1 + $0x3bc] sm:$0xf]
      %v495 = vld [vmem:[%s1 + $0x3c0] sm:$0xf]
      %v496 = vld [vmem:[%s1 + $0x3c4] sm:$0xf]
      %v497 = vld [vmem:[%s1 + $0x3c8] sm:$0xf]
      %v498 = vld [vmem:[%s1 + $0x3cc] sm:$0xf]
      %v499 = vld [vmem:[%s1 + $0x3d0] sm:$0xf]
      %v500 = vld [vmem:[%s1 + $0x3d4] sm:$0xf]
      %v501 = vld [vmem:[%s1 + $0x3d8] sm:$0xf]
      %v502 = vld [vmem:[%s1 + $0x3dc] sm:$0xf]
      %v503 = vld [vmem:[%s1 + $0x3e0] sm:$0xf]
      %v504 = vld [vmem:[%s1 + $0x3e4] sm:$0xf]
      %v505 = vld [vmem:[%s1 + $0x3e8] sm:$0xf]
      %v506 = vld [vmem:[%s1 + $0x3ec] sm:$0xf]
      %v507 = vld [vmem:[%s1 + $0x3f0] sm:$0xf]
      %v508 = vld [vmem:[%s1 + $0x3f4] sm:$0xf]
      %v509 = vld [vmem:[%s1 + $0x3f8] sm:$0xf]
      %v510 = vld [vmem:[%s1 + $0x3fc] sm:$0xf]
      %v511 = vld [vmem:[%s1 + $0x400] sm:$0xf]
      %v512 = vld [vmem:[%s1 + $0x404] sm:$0xf]
      %v513 = vld [vmem:[%s1 + $0x408] sm:$0xf]
      %v514 = vld [vmem:[%s1 + $0x40c] sm:$0xf]
      %v515 = vld [vmem:[%s1 + $0x410] sm:$0xf]
      %v516 = vld [vmem:[%s1 + $0x414] sm:$0xf]
      %v517 = vld [vmem:[%s1 + $0x418] sm:$0xf]
      %v518 = vld [vmem:[%s1 + $0x41c] sm:$0xf]
      %v519 = vld [vmem:[%s1 + $0x420] sm:$0xf]
      %v520 = vld [vmem:[%s1 + $0x424] sm:$0xf]
      %v521 = vld [vmem:[%s1 + $0x428] sm:$0xf]
      %v522 = vld [vmem:[%s1 + $0x42c] sm:$0xf]
      %v523 = vld [vmem:[%s1 + $0x430] sm:$0xf]
      %v524 = vld [vmem:[%s1 + $0x434] sm:$0xf]
      %v525 = vld [vmem:[%s1 + $0x438] sm:$0xf]
      %v526 = vld [vmem:[%s1 + $0x43c] sm:$0xf]
      %v527 = vld [vmem:[%s1 + $0x440] sm:$0xf]
      %v528 = vld [vmem:[%s1 + $0x444] sm:$0xf]
      %v529 = vld [vmem:[%s1 + $0x448] sm:$0xf]
      %v530 = vld [vmem:[%s1 + $0x44c] sm:$0xf]
      %v531 = vld [vmem:[%s1 + $0x450] sm:$0xf]
      %v532 = vld [vmem:[%s1 + $0x454] sm:$0xf]
      %v533 = vld [vmem:[%s1 + $0x458] sm:$0xf]
      %v534 = vld [vmem:[%s1 + $0x45c] sm:$0xf]
      %v535 = vld [vmem:[%s1 + $0x460] sm:$0xf]
      %v536 = vld [vmem:[%s1 + $0x464] sm:$0xf]
      %v537 = vld [vmem:[%s1 + $0x468] sm:$0xf]
      %v538 = vld [vmem:[%s1 + $0x46c] sm:$0xf]
      %v539 = vld [vmem:[%s1 + $0x470] sm:$0xf]
      %v540 = vld [vmem:[%s1 + $0x474] sm:$0xf]
      %v541 = vld [vmem:[%s1 + $0x478] sm:$0xf]
      %v542 = vld [vmem:[%s1 + $0x47c] sm:$0xf]
      %v543 = vld [vmem:[%s1 + $0x480] sm:$0xf]
      %v544 = vld [vmem:[%s1 + $0x484] sm:$0xf]
      %v545 = vld [vmem:[%s1 + $0x488] sm:$0xf]
      %v546 = vld [vmem:[%s1 + $0x48c] sm:$0xf]
      %v547 = vld [vmem:[%s1 + $0x490] sm:$0xf]
      %v548 = vld [vmem:[%s1 + $0x494] sm:$0xf]
      %v549 = vld [vmem:[%s1 + $0x498] sm:$0xf]
      %v550 = vld [vmem:[%s1 + $0x49c] sm:$0xf]
      %v551 = vld [vmem:[%s1 + $0x4a0] sm:$0xf]
      %v552 = vld [vmem:[%s1 + $0x4a4] sm:$0xf]
      %v553 = vld [vmem:[%s1 + $0x4a8] sm:$0xf]
      %v554 = vld [vmem:[%s1 + $0x4ac] sm:$0xf]
      %v555 = vld [vmem:[%s1 + $0x4b0] sm:$0xf]
      %v556 = vld [vmem:[%s1 + $0x4b4] sm:$0xf]
      %v557 = vld [vmem:[%s1 + $0x4b8] sm:$0xf]
      %v558 = vld [vmem:[%s1 + $0x4bc] sm:$0xf]
      %v559 = vld [vmem:[%s1 + $0x4c0] sm:$0xf]
      %v560 = vld [vmem:[%s1 + $0x4c4] sm:$0xf]
      %v561 = vld [vmem:[%s1 + $0x4c8] sm:$0xf]
      %v562 = vld [vmem:[%s1 + $0x4cc] sm:$0xf]
      %v563 = vld [vmem:[%s1 + $0x4d0] sm:$0xf]
      %v564 = vld [vmem:[%s1 + $0x4d4] sm:$0xf]
      %v565 = vld [vmem:[%s1 + $0x4d8] sm:$0xf]
      %v566 = vld [vmem:[%s1 + $0x4dc] sm:$0xf]
      %v567 = vld [vmem:[%s1 + $0x4e0] sm:$0xf]
      %v568 = vld [vmem:[%s1 + $0x4e4] sm:$0xf]
      %v569 = vld [vmem:[%s1 + $0x4e8] sm:$0xf]
      %v570 = vld [vmem:[%s1 + $0x4ec] sm:$0xf]
      %v571 = vld [vmem:[%s1 + $0x4f0] sm:$0xf]
      %v572 = vld [vmem:[%s1 + $0x4f4] sm:$0xf]
      %v573 = vld [vmem:[%s1 + $0x4f8] sm:$0xf]
      %v574 = vld [vmem:[%s1 + $0x4fc] sm:$0xf]
      %v575 = vld [vmem:[%s1 + $0x500] sm:$0xf]
      %v576 = vld [vmem:[%s1 + $0x504] sm:$0xf]
      %v577 = vld [vmem:[%s1 + $0x508] sm:$0xf]
      %v578 = vld [vmem:[%s1 + $0x50c] sm:$0xf]
      %v579 = vld [vmem:[%s1 + $0x510] sm:$0xf]
      %v580 = vld [vmem:[%s1 + $0x514] sm:$0xf]
      %v581 = vld [vmem:[%s1 + $0x518] sm:$0xf]
      %v582 = vld [vmem:[%s1 + $0x51c] sm:$0xf]
      %v583 = vld [vmem:[%s1 + $0x520] sm:$0xf]
      %v584 = vld [vmem:[%s1 + $0x524] sm:$0xf]
      %v585 = vld [vmem:[%s1 + $0x528] sm:$0xf]
      %v586 = vld [vmem:[%s1 + $0x52c] sm:$0xf]
      %v587 = vld [vmem:[%s1 + $0x530] sm:$0xf]
      %v588 = vld [vmem:[%s1 + $0x534] sm:$0xf]
      %v589 = vld [vmem:[%s1 + $0x538] sm:$0xf]
      %v590 = vld [vmem:[%s1 + $0x53c] sm:$0xf]
      %v591 = vld [vmem:[%s1 + $0x540] sm:$0xf]
      %v592 = vld [vmem:[%s1 + $0x544] sm:$0xf]
      %v593 = vld [vmem:[%s1 + $0x548] sm:$0xf]
      %v594 = vld [vmem:[%s1 + $0x54c] sm:$0xf]
      %v595 = vld [vmem:[%s1 + $0x550] sm:$0xf]
      %v596 = vld [vmem:[%s1 + $0x554] sm:$0xf]
      %v597 = vld [vmem:[%s1 + $0x558] sm:$0xf]
      %v598 = vld [vmem:[%s1 + $0x55c] sm:$0xf]
      %v599 = vld [vmem:[%s1 + $0x560] sm:$0xf]
      %v600 = vld [vmem:[%s1 + $0x564] sm:$0xf]
      %v601 = vld [vmem:[%s1 + $0x568] sm:$0xf]
      %v602 = vld [vmem:[%s1 + $0x56c] sm:$0xf]
      %v603 = vld [vmem:[%s1 + $0x570] sm:$0xf]
      %v604 = vld [vmem:[%s1 + $0x574] sm:$0xf]
      %v605 = vld [vmem:[%s1 + $0x578] sm:$0xf]
      %v606 = vld [vmem:[%s1 + $0x57c] sm:$0xf]
      %v607 = vld [vmem:[%s1 + $0x580] sm:$0xf]
      %v608 = vld [vmem:[%s1 + $0x584] sm:$0xf]
      %v609 = vld [vmem:[%s1 + $0x588] sm:$0xf]
      %v610 = vld [vmem:[%s1 + $0x58c] sm:$0xf]
      %v611 = vld [vmem:[%s1 + $0x590] sm:$0xf]
      %v612 = vld [vmem:[%s1 + $0x594] sm:$0xf]
      %v613 = vld [vmem:[%s1 + $0x598] sm:$0xf]
      %v614 = vld [vmem:[%s1 + $0x59c] sm:$0xf]
      %v615 = vld [vmem:[%s1 + $0x5a0] sm:$0xf]
      %v616 = vld [vmem:[%s1 + $0x5a4] sm:$0xf]
      %v617 = vld [vmem:[%s1 + $0x5a8] sm:$0xf]
      %v618 = vld [vmem:[%s1 + $0x5ac] sm:$0xf]
      %v619 = vld [vmem:[%s1 + $0x5b0] sm:$0xf]
      %v620 = vld [vmem:[%s1 + $0x5b4] sm:$0xf]
      %v621 = vld [vmem:[%s1 + $0x5b8] sm:$0xf]
      %v622 = vld [vmem:[%s1 + $0x5bc] sm:$0xf]
      %v623 = vld [vmem:[%s1 + $0x5c0] sm:$0xf]
      %v624 = vld [vmem:[%s1 + $0x5c4] sm:$0xf]
      %v625 = vld [vmem:[%s1 + $0x5c8] sm:$0xf]
      %v626 = vld [vmem:[%s1 + $0x5cc] sm:$0xf]
      %v627 = vld [vmem:[%s1 + $0x5d0] sm:$0xf]
      %v628 = vld [vmem:[%s1 + $0x5d4] sm:$0xf]
      %v629 = vld [vmem:[%s1 + $0x5d8] sm:$0xf]
      %v630 = vld [vmem:[%s1 + $0x5dc] sm:$0xf]
      %v631 = vld [vmem:[%s1 + $0x5e0] sm:$0xf]
      %v632 = vld [vmem:[%s1 + $0x5e4] sm:$0xf]
      %v633 = vld [vmem:[%s1 + $0x5e8] sm:$0xf]
      %v634 = vld [vmem:[%s1 + $0x5ec] sm:$0xf]
      %v635 = vld [vmem:[%s1 + $0x5f0] sm:$0xf]
      %v636 = vld [vmem:[%s1 + $0x5f4] sm:$0xf]
      %v637 = vld [vmem:[%s1 + $0x5f8] sm:$0xf]
      %v638 = vld [vmem:[%s1 + $0x5fc] sm:$0xf]
      %v639 = vld [vmem:[%s1 + $0x600] sm:$0xf]
      %v640 = vld [vmem:[%s1 + $0x604] sm:$0xf]
      %v641 = vld [vmem:[%s1 + $0x608] sm:$0xf]
      %v642 = vld [vmem:[%s1 + $0x60c] sm:$0xf]
      %v643 = vld [vmem:[%s1 + $0x610] sm:$0xf]
      %v644 = vld [vmem:[%s1 + $0x614] sm:$0xf]
      %v645 = vld [vmem:[%s1 + $0x618] sm:$0xf]
      %v646 = vld [vmem:[%s1 + $0x61c] sm:$0xf]
      %v647 = vld [vmem:[%s1 + $0x620] sm:$0xf]
      %v648 = vld [vmem:[%s1 + $0x624] sm:$0xf]
      %v649 = vld [vmem:[%s1 + $0x628] sm:$0xf]
      %v650 = vld [vmem:[%s1 + $0x62c] sm:$0xf]
      %v651 = vld [vmem:[%s1 + $0x630] sm:$0xf]
      %v652 = vld [vmem:[%s1 + $0x634] sm:$0xf]
      %v653 = vld [vmem:[%s1 + $0x638] sm:$0xf]
      %v654 = vld [vmem:[%s1 + $0x63c] sm:$0xf]
      %v655 = vld [vmem:[%s1 + $0x640] sm:$0xf]
      %v656 = vld [vmem:[%s1 + $0x644] sm:$0xf]
      %v657 = vld [vmem:[%s1 + $0x648] sm:$0xf]
      %v658 = vld [vmem:[%s1 + $0x64c] sm:$0xf]
      %v659 = vld [vmem:[%s1 + $0x650] sm:$0xf]
      %v660 = vld [vmem:[%s1 + $0x654] sm:$0xf]
      %v661 = vld [vmem:[%s1 + $0x658] sm:$0xf]
      %v662 = vld [vmem:[%s1 + $0x65c] sm:$0xf]
      %v663 = vld [vmem:[%s1 + $0x660] sm:$0xf]
      %v664 = vld [vmem:[%s1 + $0x664] sm:$0xf]
      %v665 = vld [vmem:[%s1 + $0x668] sm:$0xf]
      %v666 = vld [vmem:[%s1 + $0x66c] sm:$0xf]
      %v667 = vld [vmem:[%s1 + $0x670] sm:$0xf]
      %v668 = vld [vmem:[%s1 + $0x674] sm:$0xf]
      %v669 = vld [vmem:[%s1 + $0x678] sm:$0xf]
      %v670 = vld [vmem:[%s1 + $0x67c] sm:$0xf]
      %v671 = vld [vmem:[%s1 + $0x680] sm:$0xf]
      %v672 = vld [vmem:[%s1 + $0x684] sm:$0xf]
      %v673 = vld [vmem:[%s1 + $0x688] sm:$0xf]
      %v674 = vld [vmem:[%s1 + $0x68c] sm:$0xf]
      %v675 = vld [vmem:[%s1 + $0x690] sm:$0xf]
      %v676 = vld [vmem:[%s1 + $0x694] sm:$0xf]
      %v677 = vld [vmem:[%s1 + $0x698] sm:$0xf]
      %v678 = vld [vmem:[%s1 + $0x69c] sm:$0xf]
      %v679 = vld [vmem:[%s1 + $0x6a0] sm:$0xf]
      %v680 = vld [vmem:[%s1 + $0x6a4] sm:$0xf]
      %v681 = vld [vmem:[%s1 + $0x6a8] sm:$0xf]
      %v682 = vld [vmem:[%s1 + $0x6ac] sm:$0xf]
      %v683 = vld [vmem:[%s1 + $0x6b0] sm:$0xf]
      %v684 = vld [vmem:[%s1 + $0x6b4] sm:$0xf]
      %v685 = vld [vmem:[%s1 + $0x6b8] sm:$0xf]
      %v686 = vld [vmem:[%s1 + $0x6bc] sm:$0xf]
      %v687 = vld [vmem:[%s1 + $0x6c0] sm:$0xf]
      %v688 = vld [vmem:[%s1 + $0x6c4] sm:$0xf]
      %v689 = vld [vmem:[%s1 + $0x6c8] sm:$0xf]
      %v690 = vld [vmem:[%s1 + $0x6cc] sm:$0xf]
      %v691 = vld [vmem:[%s1 + $0x6d0] sm:$0xf]
      %v692 = vld [vmem:[%s1 + $0x6d4] sm:$0xf]
      %v693 = vld [vmem:[%s1 + $0x6d8] sm:$0xf]
      %v694 = vld [vmem:[%s1 + $0x6dc] sm:$0xf]
      %v695 = vld [vmem:[%s1 + $0x6e0] sm:$0xf]
      %v696 = vld [vmem:[%s1 + $0x6e4] sm:$0xf]
      %v697 = vld [vmem:[%s1 + $0x6e8] sm:$0xf]
      %v698 = vld [vmem:[%s1 + $0x6ec] sm:$0xf]
      %v699 = vld [vmem:[%s1 + $0x6f0] sm:$0xf]
      %v700 = vld [vmem:[%s1 + $0x6f4] sm:$0xf]
      %v701 = vld [vmem:[%s1 + $0x6f8] sm:$0xf]
      %v702 = vld [vmem:[%s1 + $0x6fc] sm:$0xf]
      %v703 = vld [vmem:[%s1 + $0x700] sm:$0xf]
      %v704 = vld [vmem:[%s1 + $0x704] sm:$0xf]
      %v705 = vld [vmem:[%s1 + $0x708] sm:$0xf]
      %v706 = vld [vmem:[%s1 + $0x70c] sm:$0xf]
      %v707 = vld [vmem:[%s1 + $0x710] sm:$0xf]
      %v708 = vld [vmem:[%s1 + $0x714] sm:$0xf]
      %v709 = vld [vmem:[%s1 + $0x718] sm:$0xf]
      %v710 = vld [vmem:[%s1 + $0x71c] sm:$0xf]
      %v711 = vld [vmem:[%s1 + $0x720] sm:$0xf]
      %v712 = vld [vmem:[%s1 + $0x724] sm:$0xf]
      %v713 = vld [vmem:[%s1 + $0x728] sm:$0xf]
      %v714 = vld [vmem:[%s1 + $0x72c] sm:$0xf]
      %v715 = vld [vmem:[%s1 + $0x730] sm:$0xf]
      %v716 = vld [vmem:[%s1 + $0x734] sm:$0xf]
      %v717 = vld [vmem:[%s1 + $0x738] sm:$0xf]
      %v718 = vld [vmem:[%s1 + $0x73c] sm:$0xf]
      %v719 = vld [vmem:[%s1 + $0x740] sm:$0xf]
      %v720 = vld [vmem:[%s1 + $0x744] sm:$0xf]
      %v721 = vld [vmem:[%s1 + $0x748] sm:$0xf]
      %v722 = vld [vmem:[%s1 + $0x74c] sm:$0xf]
      %v723 = vld [vmem:[%s1 + $0x750] sm:$0xf]
      %v724 = vld [vmem:[%s1 + $0x754] sm:$0xf]
      %v725 = vld [vmem:[%s1 + $0x758] sm:$0xf]
      %v726 = vld [vmem:[%s1 + $0x75c] sm:$0xf]
      %v727 = vld [vmem:[%s1 + $0x760] sm:$0xf]
      %v728 = vld [vmem:[%s1 + $0x764] sm:$0xf]
      %v729 = vld [vmem:[%s1 + $0x768] sm:$0xf]
      %v730 = vld [vmem:[%s1 + $0x76c] sm:$0xf]
      %v731 = vld [vmem:[%s1 + $0x770] sm:$0xf]
      %v732 = vld [vmem:[%s1 + $0x774] sm:$0xf]
      %v733 = vld [vmem:[%s1 + $0x778] sm:$0xf]
      %v734 = vld [vmem:[%s1 + $0x77c] sm:$0xf]
      %v735 = vld [vmem:[%s1 + $0x780] sm:$0xf]
      %v736 = vld [vmem:[%s1 + $0x784] sm:$0xf]
      %v737 = vld [vmem:[%s1 + $0x788] sm:$0xf]
      %v738 = vld [vmem:[%s1 + $0x78c] sm:$0xf]
      %v739 = vld [vmem:[%s1 + $0x790] sm:$0xf]
      %v740 = vld [vmem:[%s1 + $0x794] sm:$0xf]
      %v741 = vld [vmem:[%s1 + $0x798] sm:$0xf]
      %v742 = vld [vmem:[%s1 + $0x79c] sm:$0xf]
      %v743 = vld [vmem:[%s1 + $0x7a0] sm:$0xf]
      %v744 = vld [vmem:[%s1 + $0x7a4] sm:$0xf]
      %v745 = vld [vmem:[%s1 + $0x7a8] sm:$0xf]
      %v746 = vld [vmem:[%s1 + $0x7ac] sm:$0xf]
      %v747 = vld [vmem:[%s1 + $0x7b0] sm:$0xf]
      %v748 = vld [vmem:[%s1 + $0x7b4] sm:$0xf]
      %v749 = vld [vmem:[%s1 + $0x7b8] sm:$0xf]
      %v750 = vld [vmem:[%s1 + $0x7bc] sm:$0xf]
      %v751 = vld [vmem:[%s1 + $0x7c0] sm:$0xf]
      %v752 = vld [vmem:[%s1 + $0x7c4] sm:$0xf]
      %v753 = vld [vmem:[%s1 + $0x7c8] sm:$0xf]
      %v754 = vld [vmem:[%s1 + $0x7cc] sm:$0xf]
      %v755 = vld [vmem:[%s1 + $0x7d0] sm:$0xf]
      %v756 = vld [vmem:[%s1 + $0x7d4] sm:$0xf]
      %v757 = vld [vmem:[%s1 + $0x7d8] sm:$0xf]
      %v758 = vld [vmem:[%s1 + $0x7dc] sm:$0xf]
      %v759 = vld [vmem:[%s1 + $0x7e0] sm:$0xf]
      %v760 = vld [vmem:[%s1 + $0x7e4] sm:$0xf]
      %v761 = vld [vmem:[%s1 + $0x7e8] sm:$0xf]
      %v762 = vld [vmem:[%s1 + $0x7ec] sm:$0xf]
      %v763 = vld [vmem:[%s1 + $0x7f0] sm:$0xf]
      %v764 = vld [vmem:[%s1 + $0x7f4] sm:$0xf]
      %v765 = vld [vmem:[%s1 + $0x7f8] sm:$0xf]
      %v766 = vld [vmem:[%s1 + $0x7fc] sm:$0xf]
      %v767 = vld [vmem:[%s1 + $0x800] sm:$0xf]
      %v768 = vld [vmem:[%s1 + $0x804] sm:$0xf]
      %v769 = vld [vmem:[%s1 + $0x808] sm:$0xf]
      %v770 = vld [vmem:[%s1 + $0x80c] sm:$0xf]
      %v771 = vld [vmem:[%s1 + $0x810] sm:$0xf]
      %v772 = vld [vmem:[%s1 + $0x814] sm:$0xf]
      %v773 = vld [vmem:[%s1 + $0x818] sm:$0xf]
      %v774 = vld [vmem:[%s1 + $0x81c] sm:$0xf]
      %v775 = vld [vmem:[%s1 + $0x820] sm:$0xf]
      %v776 = vld [vmem:[%s1 + $0x824] sm:$0xf]
      %v777 = vld [vmem:[%s1 + $0x828] sm:$0xf]
      %v778 = vld [vmem:[%s1 + $0x82c] sm:$0xf]
      %v779 = vld [vmem:[%s1 + $0x830] sm:$0xf]
      %v780 = vld [vmem:[%s1 + $0x834] sm:$0xf]
      %v781 = vld [vmem:[%s1 + $0x838] sm:$0xf]
      %v782 = vld [vmem:[%s1 + $0x83c] sm:$0xf]
      %v783 = vld [vmem:[%s1 + $0x840] sm:$0xf]
      %v784 = vld [vmem:[%s1 + $0x844] sm:$0xf]
      %v785 = vld [vmem:[%s1 + $0x848] sm:$0xf]
      %v786 = vld [vmem:[%s1 + $0x84c] sm:$0xf]
      %v787 = vld [vmem:[%s1 + $0x850] sm:$0xf]
      %v788 = vld [vmem:[%s1 + $0x854] sm:$0xf]
      %v789 = vld [vmem:[%s1 + $0x858] sm:$0xf]
      %v790 = vld [vmem:[%s1 + $0x85c] sm:$0xf]
      %v791 = vld [vmem:[%s1 + $0x860] sm:$0xf]
      %v792 = vld [vmem:[%s1 + $0x864] sm:$0xf]
      %v793 = vld [vmem:[%s1 + $0x868] sm:$0xf]
      %v794 = vld [vmem:[%s1 + $0x86c] sm:$0xf]
      %v795 = vld [vmem:[%s1 + $0x870] sm:$0xf]
      %v796 = vld [vmem:[%s1 + $0x874] sm:$0xf]
      %v797 = vld [vmem:[%s1 + $0x878] sm:$0xf]
      %v798 = vld [vmem:[%s1 + $0x87c] sm:$0xf]
      %v799 = vld [vmem:[%s1 + $0x880] sm:$0xf]
      %v800 = vld [vmem:[%s1 + $0x884] sm:$0xf]
      %v801 = vld [vmem:[%s1 + $0x888] sm:$0xf]
      %v802 = vld [vmem:[%s1 + $0x88c] sm:$0xf]
      %v803 = vld [vmem:[%s1 + $0x890] sm:$0xf]
      %v804 = vld [vmem:[%s1 + $0x894] sm:$0xf]
      %v805 = vld [vmem:[%s1 + $0x898] sm:$0xf]
      %v806 = vld [vmem:[%s1 + $0x89c] sm:$0xf]
      %v807 = vld [vmem:[%s1 + $0x8a0] sm:$0xf]
      %v808 = vld [vmem:[%s1 + $0x8a4] sm:$0xf]
      %v809 = vld [vmem:[%s1 + $0x8a8] sm:$0xf]
      %v810 = vld [vmem:[%s1 + $0x8ac] sm:$0xf]
      %v811 = vld [vmem:[%s1 + $0x8b0] sm:$0xf]
      %v812 = vld [vmem:[%s1 + $0x8b4] sm:$0xf]
      %v813 = vld [vmem:[%s1 + $0x8b8] sm:$0xf]
      %v814 = vld [vmem:[%s1 + $0x8bc] sm:$0xf]
      %v815 = vld [vmem:[%s1 + $0x8c0] sm:$0xf]
      %v816 = vld [vmem:[%s1 + $0x8c4] sm:$0xf]
      %v817 = vld [vmem:[%s1 + $0x8c8] sm:$0xf]
      %v818 = vld [vmem:[%s1 + $0x8cc] sm:$0xf]
      %v819 = vld [vmem:[%s1 + $0x8d0] sm:$0xf]
      %v820 = vld [vmem:[%s1 + $0x8d4] sm:$0xf]
      %v821 = vld [vmem:[%s1 + $0x8d8] sm:$0xf]
      %v822 = vld [vmem:[%s1 + $0x8dc] sm:$0xf]
      %v823 = vld [vmem:[%s1 + $0x8e0] sm:$0xf]
      %v824 = vld [vmem:[%s1 + $0x8e4] sm:$0xf]
      %v825 = vld [vmem:[%s1 + $0x8e8] sm:$0xf]
      %v826 = vld [vmem:[%s1 + $0x8ec] sm:$0xf]
      %v827 = vld [vmem:[%s1 + $0x8f0] sm:$0xf]
      %v828 = vld [vmem:[%s1 + $0x8f4] sm:$0xf]
      %v829 = vld [vmem:[%s1 + $0x8f8] sm:$0xf]
      %v830 = vld [vmem:[%s1 + $0x8fc] sm:$0xf]
      %v849 = vunpack.c.l.b16 %v237
      %v850 = vunpack.c.h.b16 %v237
      %v851 = vunpack.c.l.b16 %v238
      %v852 = vunpack.c.h.b16 %v238
      %v853 = vunpack.c.l.b16 %v239
      %v854 = vunpack.c.h.b16 %v239
      %v855 = vunpack.c.l.b16 %v240
      %v856 = vunpack.c.h.b16 %v240
      %v857 = vunpack.c.l.b16 %v241
      %v858 = vunpack.c.h.b16 %v241
      %v859 = vunpack.c.l.b16 %v242
      %v860 = vunpack.c.h.b16 %v242
      %v861 = vunpack.c.l.b16 %v243
      %v862 = vunpack.c.h.b16 %v243
      %v863 = vunpack.c.l.b16 %v244
      %v864 = vunpack.c.h.b16 %v244
      %v865 = vunpack.c.l.b16 %v245
      %v866 = vunpack.c.h.b16 %v245
      %v867 = vunpack.c.l.b16 %v246
      %v868 = vunpack.c.h.b16 %v246
      %v869 = vunpack.c.l.b16 %v247
      %v870 = vunpack.c.h.b16 %v247
      %v871 = vunpack.c.l.b16 %v248
      %v872 = vunpack.c.h.b16 %v248
      %v873 = vunpack.c.l.b16 %v249
      %v874 = vunpack.c.h.b16 %v249
      %v875 = vunpack.c.l.b16 %v250
      %v876 = vunpack.c.h.b16 %v250
      %v877 = vunpack.c.l.b16 %v251
      %v878 = vunpack.c.h.b16 %v251
      %v879 = vunpack.c.l.b16 %v252
      %v880 = vunpack.c.h.b16 %v252
      %v881 = vunpack.c.l.b16 %v253
      %v882 = vunpack.c.h.b16 %v253
      %v883 = vunpack.c.l.b16 %v254
      %v884 = vunpack.c.h.b16 %v254
      %v885 = vpack.c.b16 %v849, %v849
      %v886 = vpack.c.b16 %v850, %v850
      %v887 = vpack.c.b16 %v851, %v851
      %v888 = vpack.c.b16 %v852, %v852
      %v889 = vpack.c.b16 %v853, %v853
      %v890 = vpack.c.b16 %v854, %v854
      %v891 = vpack.c.b16 %v855, %v855
      %v892 = vpack.c.b16 %v856, %v856
      %v893 = vpack.c.b16 %v857, %v857
      %v894 = vpack.c.b16 %v858, %v858
      %v895 = vpack.c.b16 %v859, %v859
      %v896 = vpack.c.b16 %v860, %v860
      %v897 = vpack.c.b16 %v861, %v861
      %v898 = vpack.c.b16 %v862, %v862
      %v899 = vpack.c.b16 %v863, %v863
      %v900 = vpack.c.b16 %v864, %v864
      %v901 = vpack.c.b16 %v865, %v865
      %v902 = vpack.c.b16 %v866, %v866
      %v903 = vpack.c.b16 %v867, %v867
      %v904 = vpack.c.b16 %v868, %v868
      %v905 = vpack.c.b16 %v869, %v869
      %v906 = vpack.c.b16 %v870, %v870
      %v907 = vpack.c.b16 %v871, %v871
      %v908 = vpack.c.b16 %v872, %v872
      %v909 = vpack.c.b16 %v873, %v873
      %v910 = vpack.c.b16 %v874, %v874
      %v911 = vpack.c.b16 %v875, %v875
      %v912 = vpack.c.b16 %v876, %v876
      %v913 = vpack.c.b16 %v877, %v877
      %v914 = vpack.c.b16 %v878, %v878
      %v915 = vpack.c.b16 %v879, %v879
      %v916 = vpack.c.b16 %v880, %v880
      %v917 = vpack.c.b16 %v881, %v881
      %v918 = vpack.c.b16 %v882, %v882
      %v919 = vpack.c.b16 %v883, %v883
      %v920 = vpack.c.b16 %v884, %v884
      %v1533 = vunpack.c.l.b16 %v255
      %v1534 = vunpack.c.l.b16 %v256
      %v1535 = vunpack.c.l.b16 %v257
      %v1536 = vunpack.c.l.b16 %v258
      %v1537 = vunpack.c.l.b16 %v259
      %v1538 = vunpack.c.l.b16 %v260
      %v1539 = vunpack.c.l.b16 %v261
      %v1540 = vunpack.c.l.b16 %v262
      %v1541 = vunpack.c.l.b16 %v263
      %v1542 = vunpack.c.l.b16 %v264
      %v1543 = vunpack.c.l.b16 %v265
      %v1544 = vunpack.c.l.b16 %v266
      %v1545 = vunpack.c.l.b16 %v267
      %v1546 = vunpack.c.l.b16 %v268
      %v1547 = vunpack.c.l.b16 %v269
      %v1548 = vunpack.c.l.b16 %v270
      %v1549 = vunpack.c.l.b16 %v271
      %v1550 = vunpack.c.l.b16 %v272
      %v1551 = vunpack.c.l.b16 %v273
      %v1552 = vunpack.c.l.b16 %v274
      %v1553 = vunpack.c.l.b16 %v275
      %v1554 = vunpack.c.l.b16 %v276
      %v1555 = vunpack.c.l.b16 %v277
      %v1556 = vunpack.c.l.b16 %v278
      %v1557 = vunpack.c.l.b16 %v279
      %v1558 = vunpack.c.l.b16 %v280
      %v1559 = vunpack.c.l.b16 %v281
      %v1560 = vunpack.c.l.b16 %v282
      %v1561 = vunpack.c.l.b16 %v283
      %v1562 = vunpack.c.l.b16 %v284
      %v1563 = vunpack.c.l.b16 %v285
      %v1564 = vunpack.c.l.b16 %v286
      %v1565 = vunpack.c.l.b16 %v287
      %v1566 = vunpack.c.l.b16 %v288
      %v1567 = vunpack.c.l.b16 %v289
      %v1568 = vunpack.c.l.b16 %v290
      %v1569 = vunpack.c.l.b16 %v291
      %v1570 = vunpack.c.l.b16 %v292
      %v1571 = vunpack.c.l.b16 %v293
      %v1572 = vunpack.c.l.b16 %v294
      %v1573 = vunpack.c.l.b16 %v295
      %v1574 = vunpack.c.l.b16 %v296
      %v1575 = vunpack.c.l.b16 %v297
      %v1576 = vunpack.c.l.b16 %v298
      %v1577 = vunpack.c.l.b16 %v299
      %v1578 = vunpack.c.l.b16 %v300
      %v1579 = vunpack.c.l.b16 %v301
      %v1580 = vunpack.c.l.b16 %v302
      %v1581 = vunpack.c.l.b16 %v303
      %v1582 = vunpack.c.l.b16 %v304
      %v1583 = vunpack.c.l.b16 %v305
      %v1584 = vunpack.c.l.b16 %v306
      %v1585 = vunpack.c.l.b16 %v307
      %v1586 = vunpack.c.l.b16 %v308
      %v1587 = vunpack.c.l.b16 %v309
      %v1588 = vunpack.c.l.b16 %v310
      %v1589 = vunpack.c.l.b16 %v311
      %v1590 = vunpack.c.l.b16 %v312
      %v1591 = vunpack.c.l.b16 %v313
      %v1592 = vunpack.c.l.b16 %v314
      %v1593 = vunpack.c.l.b16 %v315
      %v1594 = vunpack.c.l.b16 %v316
      %v1595 = vunpack.c.l.b16 %v317
      %v1596 = vunpack.c.l.b16 %v318
      %v1597 = vunpack.c.l.b16 %v319
      %v1598 = vunpack.c.l.b16 %v320
      %v1599 = vunpack.c.l.b16 %v321
      %v1600 = vunpack.c.l.b16 %v322
      %v1601 = vunpack.c.l.b16 %v323
      %v1602 = vunpack.c.l.b16 %v324
      %v1603 = vunpack.c.l.b16 %v325
      %v1604 = vunpack.c.l.b16 %v326
      %v1605 = vunpack.c.l.b16 %v327
      %v1606 = vunpack.c.l.b16 %v328
      %v1607 = vunpack.c.l.b16 %v329
      %v1608 = vunpack.c.l.b16 %v330
      %v1609 = vunpack.c.l.b16 %v331
      %v1610 = vunpack.c.l.b16 %v332
      %v1611 = vunpack.c.l.b16 %v333
      %v1612 = vunpack.c.l.b16 %v334
      %v1613 = vunpack.c.l.b16 %v335
      %v1614 = vunpack.c.l.b16 %v336
      %v1615 = vunpack.c.l.b16 %v337
      %v1616 = vunpack.c.l.b16 %v338
      %v1617 = vunpack.c.l.b16 %v339
      %v1618 = vunpack.c.l.b16 %v340
      %v1619 = vunpack.c.l.b16 %v341
      %v1620 = vunpack.c.l.b16 %v342
      %v1621 = vunpack.c.l.b16 %v343
      %v1622 = vunpack.c.l.b16 %v344
      %v1623 = vunpack.c.l.b16 %v345
      %v1624 = vunpack.c.l.b16 %v346
      %v1625 = vunpack.c.l.b16 %v347
      %v1626 = vunpack.c.l.b16 %v348
      %v1627 = vunpack.c.l.b16 %v349
      %v1628 = vunpack.c.l.b16 %v350
      %v1629 = vunpack.c.l.b16 %v351
      %v1630 = vunpack.c.l.b16 %v352
      %v1631 = vunpack.c.l.b16 %v353
      %v1632 = vunpack.c.l.b16 %v354
      %v1633 = vunpack.c.l.b16 %v355
      %v1634 = vunpack.c.l.b16 %v356
      %v1635 = vunpack.c.l.b16 %v357
      %v1636 = vunpack.c.l.b16 %v358
      %v1637 = vunpack.c.l.b16 %v359
      %v1638 = vunpack.c.l.b16 %v360
      %v1639 = vunpack.c.l.b16 %v361
      %v1640 = vunpack.c.l.b16 %v362
      %v1641 = vunpack.c.l.b16 %v363
      %v1642 = vunpack.c.l.b16 %v364
      %v1643 = vunpack.c.l.b16 %v365
      %v1644 = vunpack.c.l.b16 %v366
      %v1645 = vunpack.c.l.b16 %v367
      %v1646 = vunpack.c.l.b16 %v368
      %v1647 = vunpack.c.l.b16 %v369
      %v1648 = vunpack.c.l.b16 %v370
      %v1649 = vunpack.c.l.b16 %v371
      %v1650 = vunpack.c.l.b16 %v372
      %v1651 = vunpack.c.l.b16 %v373
      %v1652 = vunpack.c.l.b16 %v374
      %v1653 = vunpack.c.l.b16 %v375
      %v1654 = vunpack.c.l.b16 %v376
      %v1655 = vunpack.c.l.b16 %v377
      %v1656 = vunpack.c.l.b16 %v378
      %v1657 = vunpack.c.l.b16 %v379
      %v1658 = vunpack.c.l.b16 %v380
      %v1659 = vunpack.c.l.b16 %v381
      %v1660 = vunpack.c.l.b16 %v382
      %v1661 = vunpack.c.l.b16 %v383
      %v1662 = vunpack.c.l.b16 %v384
      %v1663 = vunpack.c.l.b16 %v385
      %v1664 = vunpack.c.l.b16 %v386
      %v1665 = vunpack.c.l.b16 %v387
      %v1666 = vunpack.c.l.b16 %v388
      %v1667 = vunpack.c.l.b16 %v389
      %v1668 = vunpack.c.l.b16 %v390
      %v1669 = vunpack.c.l.b16 %v391
      %v1670 = vunpack.c.l.b16 %v392
      %v1671 = vunpack.c.l.b16 %v393
      %v1672 = vunpack.c.l.b16 %v394
      %v1673 = vunpack.c.l.b16 %v395
      %v1674 = vunpack.c.l.b16 %v396
      %v1675 = vunpack.c.l.b16 %v397
      %v1676 = vunpack.c.l.b16 %v398
      %v1677 = vunpack.c.l.b16 %v399
      %v1678 = vunpack.c.l.b16 %v400
      %v1679 = vunpack.c.l.b16 %v401
      %v1680 = vunpack.c.l.b16 %v402
      %v1681 = vunpack.c.l.b16 %v403
      %v1682 = vunpack.c.l.b16 %v404
      %v1683 = vunpack.c.l.b16 %v405
      %v1684 = vunpack.c.l.b16 %v406
      %v1685 = vunpack.c.l.b16 %v407
      %v1686 = vunpack.c.l.b16 %v408
      %v1687 = vunpack.c.l.b16 %v409
      %v1688 = vunpack.c.l.b16 %v410
      %v1689 = vunpack.c.l.b16 %v411
      %v1690 = vunpack.c.l.b16 %v412
      %v1691 = vunpack.c.l.b16 %v413
      %v1692 = vunpack.c.l.b16 %v414
      %v1693 = vunpack.c.l.b16 %v415
      %v1694 = vunpack.c.l.b16 %v416
      %v1695 = vunpack.c.l.b16 %v417
      %v1696 = vunpack.c.l.b16 %v418
      %v1697 = vunpack.c.l.b16 %v419
      %v1698 = vunpack.c.l.b16 %v420
      %v1699 = vunpack.c.l.b16 %v421
      %v1700 = vunpack.c.l.b16 %v422
      %v1701 = vunpack.c.l.b16 %v423
      %v1702 = vunpack.c.l.b16 %v424
      %v1703 = vunpack.c.l.b16 %v425
      %v1704 = vunpack.c.l.b16 %v426
      %v1705 = vunpack.c.l.b16 %v427
      %v1706 = vunpack.c.l.b16 %v428
      %v1707 = vunpack.c.l.b16 %v429
      %v1708 = vunpack.c.l.b16 %v430
      %v1709 = vunpack.c.l.b16 %v431
      %v1710 = vunpack.c.l.b16 %v432
      %v1711 = vunpack.c.l.b16 %v433
      %v1712 = vunpack.c.l.b16 %v434
      %v1713 = vunpack.c.l.b16 %v435
      %v1714 = vunpack.c.l.b16 %v436
      %v1715 = vunpack.c.l.b16 %v437
      %v1716 = vunpack.c.l.b16 %v438
      %v1717 = vunpack.c.l.b16 %v439
      %v1718 = vunpack.c.l.b16 %v440
      %v1719 = vunpack.c.l.b16 %v441
      %v1720 = vunpack.c.l.b16 %v442
      %v1721 = vunpack.c.l.b16 %v443
      %v1722 = vunpack.c.l.b16 %v444
      %v1723 = vunpack.c.l.b16 %v445
      %v1724 = vunpack.c.l.b16 %v446
      %v1725 = vunpack.c.l.b16 %v447
      %v1726 = vunpack.c.l.b16 %v448
      %v1727 = vunpack.c.l.b16 %v449
      %v1728 = vunpack.c.l.b16 %v450
      %v1729 = vunpack.c.l.b16 %v451
      %v1730 = vunpack.c.l.b16 %v452
      %v1731 = vunpack.c.l.b16 %v453
      %v1732 = vunpack.c.l.b16 %v454
      %v1733 = vunpack.c.l.b16 %v455
      %v1734 = vunpack.c.l.b16 %v456
      %v1735 = vunpack.c.l.b16 %v457
      %v1736 = vunpack.c.l.b16 %v458
      %v1737 = vunpack.c.l.b16 %v459
      %v1738 = vunpack.c.l.b16 %v460
      %v1739 = vunpack.c.l.b16 %v461
      %v1740 = vunpack.c.l.b16 %v462
      %v1741 = vunpack.c.l.b16 %v463
      %v1742 = vunpack.c.l.b16 %v464
      %v1743 = vunpack.c.l.b16 %v465
      %v1744 = vunpack.c.l.b16 %v466
      %v1745 = vunpack.c.l.b16 %v467
      %v1746 = vunpack.c.l.b16 %v468
      %v1747 = vunpack.c.l.b16 %v469
      %v1748 = vunpack.c.l.b16 %v470
      %v1749 = vunpack.c.l.b16 %v471
      %v1750 = vunpack.c.l.b16 %v472
      %v1751 = vunpack.c.l.b16 %v473
      %v1752 = vunpack.c.l.b16 %v474
      %v1753 = vunpack.c.l.b16 %v475
      %v1754 = vunpack.c.l.b16 %v476
      %v1755 = vunpack.c.l.b16 %v477
      %v1756 = vunpack.c.l.b16 %v478
      %v1757 = vunpack.c.l.b16 %v479
      %v1758 = vunpack.c.l.b16 %v480
      %v1759 = vunpack.c.l.b16 %v481
      %v1760 = vunpack.c.l.b16 %v482
      %v1761 = vunpack.c.l.b16 %v483
      %v1762 = vunpack.c.l.b16 %v484
      %v1763 = vunpack.c.l.b16 %v485
      %v1764 = vunpack.c.l.b16 %v486
      %v1765 = vunpack.c.l.b16 %v487
      %v1766 = vunpack.c.l.b16 %v488
      %v1767 = vunpack.c.l.b16 %v489
      %v1768 = vunpack.c.l.b16 %v490
      %v1769 = vunpack.c.l.b16 %v491
      %v1770 = vunpack.c.l.b16 %v492
      %v1771 = vunpack.c.l.b16 %v493
      %v1772 = vunpack.c.l.b16 %v494
      %v1773 = vunpack.c.l.b16 %v495
      %v1774 = vunpack.c.l.b16 %v496
      %v1775 = vunpack.c.l.b16 %v497
      %v1776 = vunpack.c.l.b16 %v498
      %v1777 = vunpack.c.l.b16 %v499
      %v1778 = vunpack.c.l.b16 %v500
      %v1779 = vunpack.c.l.b16 %v501
      %v1780 = vunpack.c.l.b16 %v502
      %v1781 = vunpack.c.l.b16 %v503
      %v1782 = vunpack.c.l.b16 %v504
      %v1783 = vunpack.c.l.b16 %v505
      %v1784 = vunpack.c.l.b16 %v506
      %v1785 = vunpack.c.l.b16 %v507
      %v1786 = vunpack.c.l.b16 %v508
      %v1787 = vunpack.c.l.b16 %v509
      %v1788 = vunpack.c.l.b16 %v510
      %v1789 = vunpack.c.l.b16 %v511
      %v1790 = vunpack.c.l.b16 %v512
      %v1791 = vunpack.c.l.b16 %v513
      %v1792 = vunpack.c.l.b16 %v514
      %v1793 = vunpack.c.l.b16 %v515
      %v1794 = vunpack.c.l.b16 %v516
      %v1795 = vunpack.c.l.b16 %v517
      %v1796 = vunpack.c.l.b16 %v518
      %v1797 = vunpack.c.l.b16 %v519
      %v1798 = vunpack.c.l.b16 %v520
      %v1799 = vunpack.c.l.b16 %v521
      %v1800 = vunpack.c.l.b16 %v522
      %v1801 = vunpack.c.l.b16 %v523
      %v1802 = vunpack.c.l.b16 %v524
      %v1803 = vunpack.c.l.b16 %v525
      %v1804 = vunpack.c.l.b16 %v526
      %v1805 = vunpack.c.l.b16 %v527
      %v1806 = vunpack.c.l.b16 %v528
      %v1807 = vunpack.c.l.b16 %v529
      %v1808 = vunpack.c.l.b16 %v530
      %v1809 = vunpack.c.l.b16 %v531
      %v1810 = vunpack.c.l.b16 %v532
      %v1811 = vunpack.c.l.b16 %v533
      %v1812 = vunpack.c.l.b16 %v534
      %v1813 = vunpack.c.l.b16 %v535
      %v1814 = vunpack.c.l.b16 %v536
      %v1815 = vunpack.c.l.b16 %v537
      %v1816 = vunpack.c.l.b16 %v538
      %v1817 = vunpack.c.l.b16 %v539
      %v1818 = vunpack.c.l.b16 %v540
      %v1819 = vunpack.c.l.b16 %v541
      %v1820 = vunpack.c.l.b16 %v542
      %v1821 = vunpack.c.l.b16 %v543
      %v1822 = vunpack.c.l.b16 %v544
      %v1823 = vunpack.c.l.b16 %v545
      %v1824 = vunpack.c.l.b16 %v546
      %v1825 = vunpack.c.l.b16 %v547
      %v1826 = vunpack.c.l.b16 %v548
      %v1827 = vunpack.c.l.b16 %v549
      %v1828 = vunpack.c.l.b16 %v550
      %v1829 = vunpack.c.l.b16 %v551
      %v1830 = vunpack.c.l.b16 %v552
      %v1831 = vunpack.c.l.b16 %v553
      %v1832 = vunpack.c.l.b16 %v554
      %v1833 = vunpack.c.l.b16 %v555
      %v1834 = vunpack.c.l.b16 %v556
      %v1835 = vunpack.c.l.b16 %v557
      %v1836 = vunpack.c.l.b16 %v558
      %v1837 = vunpack.c.l.b16 %v559
      %v1838 = vunpack.c.l.b16 %v560
      %v1839 = vunpack.c.l.b16 %v561
      %v1840 = vunpack.c.l.b16 %v562
      %v1841 = vunpack.c.l.b16 %v563
      %v1842 = vunpack.c.l.b16 %v564
      %v1843 = vunpack.c.l.b16 %v565
      %v1844 = vunpack.c.l.b16 %v566
      %v1845 = vunpack.c.l.b16 %v567
      %v1846 = vunpack.c.l.b16 %v568
      %v1847 = vunpack.c.l.b16 %v569
      %v1848 = vunpack.c.l.b16 %v570
      %v1849 = vunpack.c.l.b16 %v571
      %v1850 = vunpack.c.l.b16 %v572
      %v1851 = vunpack.c.l.b16 %v573
      %v1852 = vunpack.c.l.b16 %v574
      %v1853 = vunpack.c.l.b16 %v575
      %v1854 = vunpack.c.l.b16 %v576
      %v1855 = vunpack.c.l.b16 %v577
      %v1856 = vunpack.c.l.b16 %v578
      %v1857 = vunpack.c.l.b16 %v579
      %v1858 = vunpack.c.l.b16 %v580
      %v1859 = vunpack.c.l.b16 %v581
      %v1860 = vunpack.c.l.b16 %v582
      %v1861 = vunpack.c.l.b16 %v583
      %v1862 = vunpack.c.l.b16 %v584
      %v1863 = vunpack.c.l.b16 %v585
      %v1864 = vunpack.c.l.b16 %v586
      %v1865 = vunpack.c.l.b16 %v587
      %v1866 = vunpack.c.l.b16 %v588
      %v1867 = vunpack.c.l.b16 %v589
      %v1868 = vunpack.c.l.b16 %v590
      %v1869 = vunpack.c.l.b16 %v591
      %v1870 = vunpack.c.l.b16 %v592
      %v1871 = vunpack.c.l.b16 %v593
      %v1872 = vunpack.c.l.b16 %v594
      %v1873 = vunpack.c.l.b16 %v595
      %v1874 = vunpack.c.l.b16 %v596
      %v1875 = vunpack.c.l.b16 %v597
      %v1876 = vunpack.c.l.b16 %v598
      %v1877 = vunpack.c.l.b16 %v599
      %v1878 = vunpack.c.l.b16 %v600
      %v1879 = vunpack.c.l.b16 %v601
      %v1880 = vunpack.c.l.b16 %v602
      %v1881 = vunpack.c.l.b16 %v603
      %v1882 = vunpack.c.l.b16 %v604
      %v1883 = vunpack.c.l.b16 %v605
      %v1884 = vunpack.c.l.b16 %v606
      %v1885 = vunpack.c.l.b16 %v607
      %v1886 = vunpack.c.l.b16 %v608
      %v1887 = vunpack.c.l.b16 %v609
      %v1888 = vunpack.c.l.b16 %v610
      %v1889 = vunpack.c.l.b16 %v611
      %v1890 = vunpack.c.l.b16 %v612
      %v1891 = vunpack.c.l.b16 %v613
      %v1892 = vunpack.c.l.b16 %v614
      %v1893 = vunpack.c.l.b16 %v615
      %v1894 = vunpack.c.l.b16 %v616
      %v1895 = vunpack.c.l.b16 %v617
      %v1896 = vunpack.c.l.b16 %v618
      %v1897 = vunpack.c.l.b16 %v619
      %v1898 = vunpack.c.l.b16 %v620
      %v1899 = vunpack.c.l.b16 %v621
      %v1900 = vunpack.c.l.b16 %v622
      %v1901 = vunpack.c.l.b16 %v623
      %v1902 = vunpack.c.l.b16 %v624
      %v1903 = vunpack.c.l.b16 %v625
      %v1904 = vunpack.c.l.b16 %v626
      %v1905 = vunpack.c.l.b16 %v627
      %v1906 = vunpack.c.l.b16 %v628
      %v1907 = vunpack.c.l.b16 %v629
      %v1908 = vunpack.c.l.b16 %v630
      %v1909 = vunpack.c.l.b16 %v631
      %v1910 = vunpack.c.l.b16 %v632
      %v1911 = vunpack.c.l.b16 %v633
      %v1912 = vunpack.c.l.b16 %v634
      %v1913 = vunpack.c.l.b16 %v635
      %v1914 = vunpack.c.l.b16 %v636
      %v1915 = vunpack.c.l.b16 %v637
      %v1916 = vunpack.c.l.b16 %v638
      %v1917 = vunpack.c.l.b16 %v639
      %v1918 = vunpack.c.l.b16 %v640
      %v1919 = vunpack.c.l.b16 %v641
      %v1920 = vunpack.c.l.b16 %v642
      %v1921 = vunpack.c.l.b16 %v643
      %v1922 = vunpack.c.l.b16 %v644
      %v1923 = vunpack.c.l.b16 %v645
      %v1924 = vunpack.c.l.b16 %v646
      %v1925 = vunpack.c.l.b16 %v647
      %v1926 = vunpack.c.l.b16 %v648
      %v1927 = vunpack.c.l.b16 %v649
      %v1928 = vunpack.c.l.b16 %v650
      %v1929 = vunpack.c.l.b16 %v651
      %v1930 = vunpack.c.l.b16 %v652
      %v1931 = vunpack.c.l.b16 %v653
      %v1932 = vunpack.c.l.b16 %v654
      %v1933 = vunpack.c.l.b16 %v655
      %v1934 = vunpack.c.l.b16 %v656
      %v1935 = vunpack.c.l.b16 %v657
      %v1936 = vunpack.c.l.b16 %v658
      %v1937 = vunpack.c.l.b16 %v659
      %v1938 = vunpack.c.l.b16 %v660
      %v1939 = vunpack.c.l.b16 %v661
      %v1940 = vunpack.c.l.b16 %v662
      %v1941 = vunpack.c.l.b16 %v663
      %v1942 = vunpack.c.l.b16 %v664
      %v1943 = vunpack.c.l.b16 %v665
      %v1944 = vunpack.c.l.b16 %v666
      %v1945 = vunpack.c.l.b16 %v667
      %v1946 = vunpack.c.l.b16 %v668
      %v1947 = vunpack.c.l.b16 %v669
      %v1948 = vunpack.c.l.b16 %v670
      %v1949 = vunpack.c.l.b16 %v671
      %v1950 = vunpack.c.l.b16 %v672
      %v1951 = vunpack.c.l.b16 %v673
      %v1952 = vunpack.c.l.b16 %v674
      %v1953 = vunpack.c.l.b16 %v675
      %v1954 = vunpack.c.l.b16 %v676
      %v1955 = vunpack.c.l.b16 %v677
      %v1956 = vunpack.c.l.b16 %v678
      %v1957 = vunpack.c.l.b16 %v679
      %v1958 = vunpack.c.l.b16 %v680
      %v1959 = vunpack.c.l.b16 %v681
      %v1960 = vunpack.c.l.b16 %v682
      %v1961 = vunpack.c.l.b16 %v683
      %v1962 = vunpack.c.l.b16 %v684
      %v1963 = vunpack.c.l.b16 %v685
      %v1964 = vunpack.c.l.b16 %v686
      %v1965 = vunpack.c.l.b16 %v687
      %v1966 = vunpack.c.l.b16 %v688
      %v1967 = vunpack.c.l.b16 %v689
      %v1968 = vunpack.c.l.b16 %v690
      %v1969 = vunpack.c.l.b16 %v691
      %v1970 = vunpack.c.l.b16 %v692
      %v1971 = vunpack.c.l.b16 %v693
      %v1972 = vunpack.c.l.b16 %v694
      %v1973 = vunpack.c.l.b16 %v695
      %v1974 = vunpack.c.l.b16 %v696
      %v1975 = vunpack.c.l.b16 %v697
      %v1976 = vunpack.c.l.b16 %v698
      %v1977 = vunpack.c.l.b16 %v699
      %v1978 = vunpack.c.l.b16 %v700
      %v1979 = vunpack.c.l.b16 %v701
      %v1980 = vunpack.c.l.b16 %v702
      %v1981 = vunpack.c.l.b16 %v703
      %v1982 = vunpack.c.l.b16 %v704
      %v1983 = vunpack.c.l.b16 %v705
      %v1984 = vunpack.c.l.b16 %v706
      %v1985 = vunpack.c.l.b16 %v707
      %v1986 = vunpack.c.l.b16 %v708
      %v1987 = vunpack.c.l.b16 %v709
      %v1988 = vunpack.c.l.b16 %v710
      %v1989 = vunpack.c.l.b16 %v711
      %v1990 = vunpack.c.l.b16 %v712
      %v1991 = vunpack.c.l.b16 %v713
      %v1992 = vunpack.c.l.b16 %v714
      %v1993 = vunpack.c.l.b16 %v715
      %v1994 = vunpack.c.l.b16 %v716
      %v1995 = vunpack.c.l.b16 %v717
      %v1996 = vunpack.c.l.b16 %v718
      %v1997 = vunpack.c.l.b16 %v719
      %v1998 = vunpack.c.l.b16 %v720
      %v1999 = vunpack.c.l.b16 %v721
      %v2000 = vunpack.c.l.b16 %v722
      %v2001 = vunpack.c.l.b16 %v723
      %v2002 = vunpack.c.l.b16 %v724
      %v2003 = vunpack.c.l.b16 %v725
      %v2004 = vunpack.c.l.b16 %v726
      %v2005 = vunpack.c.l.b16 %v727
      %v2006 = vunpack.c.l.b16 %v728
      %v2007 = vunpack.c.l.b16 %v729
      %v2008 = vunpack.c.l.b16 %v730
      %v2009 = vunpack.c.l.b16 %v731
      %v2010 = vunpack.c.l.b16 %v732
      %v2011 = vunpack.c.l.b16 %v733
      %v2012 = vunpack.c.l.b16 %v734
      %v2013 = vunpack.c.l.b16 %v735
      %v2014 = vunpack.c.l.b16 %v736
      %v2015 = vunpack.c.l.b16 %v737
      %v2016 = vunpack.c.l.b16 %v738
      %v2017 = vunpack.c.l.b16 %v739
      %v2018 = vunpack.c.l.b16 %v740
      %v2019 = vunpack.c.l.b16 %v741
      %v2020 = vunpack.c.l.b16 %v742
      %v2021 = vunpack.c.l.b16 %v743
      %v2022 = vunpack.c.l.b16 %v744
      %v2023 = vunpack.c.l.b16 %v745
      %v2024 = vunpack.c.l.b16 %v746
      %v2025 = vunpack.c.l.b16 %v747
      %v2026 = vunpack.c.l.b16 %v748
      %v2027 = vunpack.c.l.b16 %v749
      %v2028 = vunpack.c.l.b16 %v750
      %v2029 = vunpack.c.l.b16 %v751
      %v2030 = vunpack.c.l.b16 %v752
      %v2031 = vunpack.c.l.b16 %v753
      %v2032 = vunpack.c.l.b16 %v754
      %v2033 = vunpack.c.l.b16 %v755
      %v2034 = vunpack.c.l.b16 %v756
      %v2035 = vunpack.c.l.b16 %v757
      %v2036 = vunpack.c.l.b16 %v758
      %v2037 = vunpack.c.l.b16 %v759
      %v2038 = vunpack.c.l.b16 %v760
      %v2039 = vunpack.c.l.b16 %v761
      %v2040 = vunpack.c.l.b16 %v762
      %v2041 = vunpack.c.l.b16 %v763
      %v2042 = vunpack.c.l.b16 %v764
      %v2043 = vunpack.c.l.b16 %v765
      %v2044 = vunpack.c.l.b16 %v766
      %v2045 = vunpack.c.l.b16 %v767
      %v2046 = vunpack.c.l.b16 %v768
      %v2047 = vunpack.c.l.b16 %v769
      %v2048 = vunpack.c.l.b16 %v770
      %v2049 = vunpack.c.l.b16 %v771
      %v2050 = vunpack.c.l.b16 %v772
      %v2051 = vunpack.c.l.b16 %v773
      %v2052 = vunpack.c.l.b16 %v774
      %v2053 = vunpack.c.l.b16 %v775
      %v2054 = vunpack.c.l.b16 %v776
      %v2055 = vunpack.c.l.b16 %v777
      %v2056 = vunpack.c.l.b16 %v778
      %v2057 = vunpack.c.l.b16 %v779
      %v2058 = vunpack.c.l.b16 %v780
      %v2059 = vunpack.c.l.b16 %v781
      %v2060 = vunpack.c.l.b16 %v782
      %v2061 = vunpack.c.l.b16 %v783
      %v2062 = vunpack.c.l.b16 %v784
      %v2063 = vunpack.c.l.b16 %v785
      %v2064 = vunpack.c.l.b16 %v786
      %v2065 = vunpack.c.l.b16 %v787
      %v2066 = vunpack.c.l.b16 %v788
      %v2067 = vunpack.c.l.b16 %v789
      %v2068 = vunpack.c.l.b16 %v790
      %v2069 = vunpack.c.l.b16 %v791
      %v2070 = vunpack.c.l.b16 %v792
      %v2071 = vunpack.c.l.b16 %v793
      %v2072 = vunpack.c.l.b16 %v794
      %v2073 = vunpack.c.l.b16 %v795
      %v2074 = vunpack.c.l.b16 %v796
      %v2075 = vunpack.c.l.b16 %v797
      %v2076 = vunpack.c.l.b16 %v798
      %v2077 = vunpack.c.l.b16 %v799
      %v2078 = vunpack.c.l.b16 %v800
      %v2079 = vunpack.c.l.b16 %v801
      %v2080 = vunpack.c.l.b16 %v802
      %v2081 = vunpack.c.l.b16 %v803
      %v2082 = vunpack.c.l.b16 %v804
      %v2083 = vunpack.c.l.b16 %v805
      %v2084 = vunpack.c.l.b16 %v806
      %v2085 = vunpack.c.l.b16 %v807
      %v2086 = vunpack.c.l.b16 %v808
      %v2087 = vunpack.c.l.b16 %v809
      %v2088 = vunpack.c.l.b16 %v810
      %v2089 = vunpack.c.l.b16 %v811
      %v2090 = vunpack.c.l.b16 %v812
      %v2091 = vunpack.c.l.b16 %v813
      %v2092 = vunpack.c.l.b16 %v814
      %v2093 = vunpack.c.l.b16 %v815
      %v2094 = vunpack.c.l.b16 %v816
      %v2095 = vunpack.c.l.b16 %v817
      %v2096 = vunpack.c.l.b16 %v818
      %v2097 = vunpack.c.l.b16 %v819
      %v2098 = vunpack.c.l.b16 %v820
      %v2099 = vunpack.c.l.b16 %v821
      %v2100 = vunpack.c.l.b16 %v822
      %v2101 = vunpack.c.l.b16 %v823
      %v2102 = vunpack.c.l.b16 %v824
      %v2103 = vunpack.c.l.b16 %v825
      %v2104 = vunpack.c.l.b16 %v826
      %v2105 = vunpack.c.l.b16 %v827
      %v2106 = vunpack.c.l.b16 %v828
      %v2107 = vunpack.c.l.b16 %v829
      %v2108 = vunpack.c.l.b16 %v830
      %v2109 = vpack.c.b16 %v1534, %v1533
      %v2110 = vpack.c.b16 %v1536, %v1535
      %v2111 = vpack.c.b16 %v1538, %v1537
      %v2112 = vpack.c.b16 %v1540, %v1539
      %v2113 = vpack.c.b16 %v1542, %v1541
      %v2114 = vpack.c.b16 %v1544, %v1543
      %v2115 = vpack.c.b16 %v1546, %v1545
      %v2116 = vpack.c.b16 %v1548, %v1547
      %v2117 = vpack.c.b16 %v1550, %v1549
      %v2118 = vpack.c.b16 %v1552, %v1551
      %v2119 = vpack.c.b16 %v1554, %v1553
      %v2120 = vpack.c.b16 %v1556, %v1555
      %v2121 = vpack.c.b16 %v1558, %v1557
      %v2122 = vpack.c.b16 %v1560, %v1559
      %v2123 = vpack.c.b16 %v1562, %v1561
      %v2124 = vpack.c.b16 %v1564, %v1563
      %v2125 = vpack.c.b16 %v1566, %v1565
      %v2126 = vpack.c.b16 %v1568, %v1567
      %v2127 = vpack.c.b16 %v1570, %v1569
      %v2128 = vpack.c.b16 %v1572, %v1571
      %v2129 = vpack.c.b16 %v1574, %v1573
      %v2130 = vpack.c.b16 %v1576, %v1575
      %v2131 = vpack.c.b16 %v1578, %v1577
      %v2132 = vpack.c.b16 %v1580, %v1579
      %v2133 = vpack.c.b16 %v1582, %v1581
      %v2134 = vpack.c.b16 %v1584, %v1583
      %v2135 = vpack.c.b16 %v1586, %v1585
      %v2136 = vpack.c.b16 %v1588, %v1587
      %v2137 = vpack.c.b16 %v1590, %v1589
      %v2138 = vpack.c.b16 %v1592, %v1591
      %v2139 = vpack.c.b16 %v1594, %v1593
      %v2140 = vpack.c.b16 %v1596, %v1595
      %v2141 = vpack.c.b16 %v1598, %v1597
      %v2142 = vpack.c.b16 %v1600, %v1599
      %v2143 = vpack.c.b16 %v1602, %v1601
      %v2144 = vpack.c.b16 %v1604, %v1603
      %v2145 = vpack.c.b16 %v1606, %v1605
      %v2146 = vpack.c.b16 %v1608, %v1607
      %v2147 = vpack.c.b16 %v1610, %v1609
      %v2148 = vpack.c.b16 %v1612, %v1611
      %v2149 = vpack.c.b16 %v1614, %v1613
      %v2150 = vpack.c.b16 %v1616, %v1615
      %v2151 = vpack.c.b16 %v1618, %v1617
      %v2152 = vpack.c.b16 %v1620, %v1619
      %v2153 = vpack.c.b16 %v1622, %v1621
      %v2154 = vpack.c.b16 %v1624, %v1623
      %v2155 = vpack.c.b16 %v1626, %v1625
      %v2156 = vpack.c.b16 %v1628, %v1627
      %v2157 = vpack.c.b16 %v1630, %v1629
      %v2158 = vpack.c.b16 %v1632, %v1631
      %v2159 = vpack.c.b16 %v1634, %v1633
      %v2160 = vpack.c.b16 %v1636, %v1635
      %v2161 = vpack.c.b16 %v1638, %v1637
      %v2162 = vpack.c.b16 %v1640, %v1639
      %v2163 = vpack.c.b16 %v1642, %v1641
      %v2164 = vpack.c.b16 %v1644, %v1643
      %v2165 = vpack.c.b16 %v1646, %v1645
      %v2166 = vpack.c.b16 %v1648, %v1647
      %v2167 = vpack.c.b16 %v1650, %v1649
      %v2168 = vpack.c.b16 %v1652, %v1651
      %v2169 = vpack.c.b16 %v1654, %v1653
      %v2170 = vpack.c.b16 %v1656, %v1655
      %v2171 = vpack.c.b16 %v1658, %v1657
      %v2172 = vpack.c.b16 %v1660, %v1659
      %v2173 = vpack.c.b16 %v1662, %v1661
      %v2174 = vpack.c.b16 %v1664, %v1663
      %v2175 = vpack.c.b16 %v1666, %v1665
      %v2176 = vpack.c.b16 %v1668, %v1667
      %v2177 = vpack.c.b16 %v1670, %v1669
      %v2178 = vpack.c.b16 %v1672, %v1671
      %v2179 = vpack.c.b16 %v1674, %v1673
      %v2180 = vpack.c.b16 %v1676, %v1675
      %v2181 = vpack.c.b16 %v1678, %v1677
      %v2182 = vpack.c.b16 %v1680, %v1679
      %v2183 = vpack.c.b16 %v1682, %v1681
      %v2184 = vpack.c.b16 %v1684, %v1683
      %v2185 = vpack.c.b16 %v1686, %v1685
      %v2186 = vpack.c.b16 %v1688, %v1687
      %v2187 = vpack.c.b16 %v1690, %v1689
      %v2188 = vpack.c.b16 %v1692, %v1691
      %v2189 = vpack.c.b16 %v1694, %v1693
      %v2190 = vpack.c.b16 %v1696, %v1695
      %v2191 = vpack.c.b16 %v1698, %v1697
      %v2192 = vpack.c.b16 %v1700, %v1699
      %v2193 = vpack.c.b16 %v1702, %v1701
      %v2194 = vpack.c.b16 %v1704, %v1703
      %v2195 = vpack.c.b16 %v1706, %v1705
      %v2196 = vpack.c.b16 %v1708, %v1707
      %v2197 = vpack.c.b16 %v1710, %v1709
      %v2198 = vpack.c.b16 %v1712, %v1711
      %v2199 = vpack.c.b16 %v1714, %v1713
      %v2200 = vpack.c.b16 %v1716, %v1715
      %v2201 = vpack.c.b16 %v1718, %v1717
      %v2202 = vpack.c.b16 %v1720, %v1719
      %v2203 = vpack.c.b16 %v1722, %v1721
      %v2204 = vpack.c.b16 %v1724, %v1723
      %v2205 = vpack.c.b16 %v1726, %v1725
      %v2206 = vpack.c.b16 %v1728, %v1727
      %v2207 = vpack.c.b16 %v1730, %v1729
      %v2208 = vpack.c.b16 %v1732, %v1731
      %v2209 = vpack.c.b16 %v1734, %v1733
      %v2210 = vpack.c.b16 %v1736, %v1735
      %v2211 = vpack.c.b16 %v1738, %v1737
      %v2212 = vpack.c.b16 %v1740, %v1739
      %v2213 = vpack.c.b16 %v1742, %v1741
      %v2214 = vpack.c.b16 %v1744, %v1743
      %v2215 = vpack.c.b16 %v1746, %v1745
      %v2216 = vpack.c.b16 %v1748, %v1747
      %v2217 = vpack.c.b16 %v1750, %v1749
      %v2218 = vpack.c.b16 %v1752, %v1751
      %v2219 = vpack.c.b16 %v1754, %v1753
      %v2220 = vpack.c.b16 %v1756, %v1755
      %v2221 = vpack.c.b16 %v1758, %v1757
      %v2222 = vpack.c.b16 %v1760, %v1759
      %v2223 = vpack.c.b16 %v1762, %v1761
      %v2224 = vpack.c.b16 %v1764, %v1763
      %v2225 = vpack.c.b16 %v1766, %v1765
      %v2226 = vpack.c.b16 %v1768, %v1767
      %v2227 = vpack.c.b16 %v1770, %v1769
      %v2228 = vpack.c.b16 %v1772, %v1771
      %v2229 = vpack.c.b16 %v1774, %v1773
      %v2230 = vpack.c.b16 %v1776, %v1775
      %v2231 = vpack.c.b16 %v1778, %v1777
      %v2232 = vpack.c.b16 %v1780, %v1779
      %v2233 = vpack.c.b16 %v1782, %v1781
      %v2234 = vpack.c.b16 %v1784, %v1783
      %v2235 = vpack.c.b16 %v1786, %v1785
      %v2236 = vpack.c.b16 %v1788, %v1787
      %v2237 = vpack.c.b16 %v1790, %v1789
      %v2238 = vpack.c.b16 %v1792, %v1791
      %v2239 = vpack.c.b16 %v1794, %v1793
      %v2240 = vpack.c.b16 %v1796, %v1795
      %v2241 = vpack.c.b16 %v1798, %v1797
      %v2242 = vpack.c.b16 %v1800, %v1799
      %v2243 = vpack.c.b16 %v1802, %v1801
      %v2244 = vpack.c.b16 %v1804, %v1803
      %v2245 = vpack.c.b16 %v1806, %v1805
      %v2246 = vpack.c.b16 %v1808, %v1807
      %v2247 = vpack.c.b16 %v1810, %v1809
      %v2248 = vpack.c.b16 %v1812, %v1811
      %v2249 = vpack.c.b16 %v1814, %v1813
      %v2250 = vpack.c.b16 %v1816, %v1815
      %v2251 = vpack.c.b16 %v1818, %v1817
      %v2252 = vpack.c.b16 %v1820, %v1819
      %v2253 = vpack.c.b16 %v1822, %v1821
      %v2254 = vpack.c.b16 %v1824, %v1823
      %v2255 = vpack.c.b16 %v1826, %v1825
      %v2256 = vpack.c.b16 %v1828, %v1827
      %v2257 = vpack.c.b16 %v1830, %v1829
      %v2258 = vpack.c.b16 %v1832, %v1831
      %v2259 = vpack.c.b16 %v1834, %v1833
      %v2260 = vpack.c.b16 %v1836, %v1835
      %v2261 = vpack.c.b16 %v1838, %v1837
      %v2262 = vpack.c.b16 %v1840, %v1839
      %v2263 = vpack.c.b16 %v1842, %v1841
      %v2264 = vpack.c.b16 %v1844, %v1843
      %v2265 = vpack.c.b16 %v1846, %v1845
      %v2266 = vpack.c.b16 %v1848, %v1847
      %v2267 = vpack.c.b16 %v1850, %v1849
      %v2268 = vpack.c.b16 %v1852, %v1851
      %v2269 = vpack.c.b16 %v1854, %v1853
      %v2270 = vpack.c.b16 %v1856, %v1855
      %v2271 = vpack.c.b16 %v1858, %v1857
      %v2272 = vpack.c.b16 %v1860, %v1859
      %v2273 = vpack.c.b16 %v1862, %v1861
      %v2274 = vpack.c.b16 %v1864, %v1863
      %v2275 = vpack.c.b16 %v1866, %v1865
      %v2276 = vpack.c.b16 %v1868, %v1867
      %v2277 = vpack.c.b16 %v1870, %v1869
      %v2278 = vpack.c.b16 %v1872, %v1871
      %v2279 = vpack.c.b16 %v1874, %v1873
      %v2280 = vpack.c.b16 %v1876, %v1875
      %v2281 = vpack.c.b16 %v1878, %v1877
      %v2282 = vpack.c.b16 %v1880, %v1879
      %v2283 = vpack.c.b16 %v1882, %v1881
      %v2284 = vpack.c.b16 %v1884, %v1883
      %v2285 = vpack.c.b16 %v1886, %v1885
      %v2286 = vpack.c.b16 %v1888, %v1887
      %v2287 = vpack.c.b16 %v1890, %v1889
      %v2288 = vpack.c.b16 %v1892, %v1891
      %v2289 = vpack.c.b16 %v1894, %v1893
      %v2290 = vpack.c.b16 %v1896, %v1895
      %v2291 = vpack.c.b16 %v1898, %v1897
      %v2292 = vpack.c.b16 %v1900, %v1899
      %v2293 = vpack.c.b16 %v1902, %v1901
      %v2294 = vpack.c.b16 %v1904, %v1903
      %v2295 = vpack.c.b16 %v1906, %v1905
      %v2296 = vpack.c.b16 %v1908, %v1907
      %v2297 = vpack.c.b16 %v1910, %v1909
      %v2298 = vpack.c.b16 %v1912, %v1911
      %v2299 = vpack.c.b16 %v1914, %v1913
      %v2300 = vpack.c.b16 %v1916, %v1915
      %v2301 = vpack.c.b16 %v1918, %v1917
      %v2302 = vpack.c.b16 %v1920, %v1919
      %v2303 = vpack.c.b16 %v1922, %v1921
      %v2304 = vpack.c.b16 %v1924, %v1923
      %v2305 = vpack.c.b16 %v1926, %v1925
      %v2306 = vpack.c.b16 %v1928, %v1927
      %v2307 = vpack.c.b16 %v1930, %v1929
      %v2308 = vpack.c.b16 %v1932, %v1931
      %v2309 = vpack.c.b16 %v1934, %v1933
      %v2310 = vpack.c.b16 %v1936, %v1935
      %v2311 = vpack.c.b16 %v1938, %v1937
      %v2312 = vpack.c.b16 %v1940, %v1939
      %v2313 = vpack.c.b16 %v1942, %v1941
      %v2314 = vpack.c.b16 %v1944, %v1943
      %v2315 = vpack.c.b16 %v1946, %v1945
      %v2316 = vpack.c.b16 %v1948, %v1947
      %v2317 = vpack.c.b16 %v1950, %v1949
      %v2318 = vpack.c.b16 %v1952, %v1951
      %v2319 = vpack.c.b16 %v1954, %v1953
      %v2320 = vpack.c.b16 %v1956, %v1955
      %v2321 = vpack.c.b16 %v1958, %v1957
      %v2322 = vpack.c.b16 %v1960, %v1959
      %v2323 = vpack.c.b16 %v1962, %v1961
      %v2324 = vpack.c.b16 %v1964, %v1963
      %v2325 = vpack.c.b16 %v1966, %v1965
      %v2326 = vpack.c.b16 %v1968, %v1967
      %v2327 = vpack.c.b16 %v1970, %v1969
      %v2328 = vpack.c.b16 %v1972, %v1971
      %v2329 = vpack.c.b16 %v1974, %v1973
      %v2330 = vpack.c.b16 %v1976, %v1975
      %v2331 = vpack.c.b16 %v1978, %v1977
      %v2332 = vpack.c.b16 %v1980, %v1979
      %v2333 = vpack.c.b16 %v1982, %v1981
      %v2334 = vpack.c.b16 %v1984, %v1983
      %v2335 = vpack.c.b16 %v1986, %v1985
      %v2336 = vpack.c.b16 %v1988, %v1987
      %v2337 = vpack.c.b16 %v1990, %v1989
      %v2338 = vpack.c.b16 %v1992, %v1991
      %v2339 = vpack.c.b16 %v1994, %v1993
      %v2340 = vpack.c.b16 %v1996, %v1995
      %v2341 = vpack.c.b16 %v1998, %v1997
      %v2342 = vpack.c.b16 %v2000, %v1999
      %v2343 = vpack.c.b16 %v2002, %v2001
      %v2344 = vpack.c.b16 %v2004, %v2003
      %v2345 = vpack.c.b16 %v2006, %v2005
      %v2346 = vpack.c.b16 %v2008, %v2007
      %v2347 = vpack.c.b16 %v2010, %v2009
      %v2348 = vpack.c.b16 %v2012, %v2011
      %v2349 = vpack.c.b16 %v2014, %v2013
      %v2350 = vpack.c.b16 %v2016, %v2015
      %v2351 = vpack.c.b16 %v2018, %v2017
      %v2352 = vpack.c.b16 %v2020, %v2019
      %v2353 = vpack.c.b16 %v2022, %v2021
      %v2354 = vpack.c.b16 %v2024, %v2023
      %v2355 = vpack.c.b16 %v2026, %v2025
      %v2356 = vpack.c.b16 %v2028, %v2027
      %v2357 = vpack.c.b16 %v2030, %v2029
      %v2358 = vpack.c.b16 %v2032, %v2031
      %v2359 = vpack.c.b16 %v2034, %v2033
      %v2360 = vpack.c.b16 %v2036, %v2035
      %v2361 = vpack.c.b16 %v2038, %v2037
      %v2362 = vpack.c.b16 %v2040, %v2039
      %v2363 = vpack.c.b16 %v2042, %v2041
      %v2364 = vpack.c.b16 %v2044, %v2043
      %v2365 = vpack.c.b16 %v2046, %v2045
      %v2366 = vpack.c.b16 %v2048, %v2047
      %v2367 = vpack.c.b16 %v2050, %v2049
      %v2368 = vpack.c.b16 %v2052, %v2051
      %v2369 = vpack.c.b16 %v2054, %v2053
      %v2370 = vpack.c.b16 %v2056, %v2055
      %v2371 = vpack.c.b16 %v2058, %v2057
      %v2372 = vpack.c.b16 %v2060, %v2059
      %v2373 = vpack.c.b16 %v2062, %v2061
      %v2374 = vpack.c.b16 %v2064, %v2063
      %v2375 = vpack.c.b16 %v2066, %v2065
      %v2376 = vpack.c.b16 %v2068, %v2067
      %v2377 = vpack.c.b16 %v2070, %v2069
      %v2378 = vpack.c.b16 %v2072, %v2071
      %v2379 = vpack.c.b16 %v2074, %v2073
      %v2380 = vpack.c.b16 %v2076, %v2075
      %v2381 = vpack.c.b16 %v2078, %v2077
      %v2382 = vpack.c.b16 %v2080, %v2079
      %v2383 = vpack.c.b16 %v2082, %v2081
      %v2384 = vpack.c.b16 %v2084, %v2083
      %v2385 = vpack.c.b16 %v2086, %v2085
      %v2386 = vpack.c.b16 %v2088, %v2087
      %v2387 = vpack.c.b16 %v2090, %v2089
      %v2388 = vpack.c.b16 %v2092, %v2091
      %v2389 = vpack.c.b16 %v2094, %v2093
      %v2390 = vpack.c.b16 %v2096, %v2095
      %v2391 = vpack.c.b16 %v2098, %v2097
      %v2392 = vpack.c.b16 %v2100, %v2099
      %v2393 = vpack.c.b16 %v2102, %v2101
      %v2394 = vpack.c.b16 %v2104, %v2103
      %v2395 = vpack.c.b16 %v2106, %v2105
      %v2396 = vpack.c.b16 %v2108, %v2107
      %2685 = vmatprep.subr.bf16.mxu0 0
      %2686 = vmatpush1.bf16.msra.mxu0 %v2109
      %2687 = vmatprep.subr.bf16.mxu0 0
      %2688 = vmatpush1.bf16.msra.mxu0 %v2110
      %2689 = vmatprep.subr.bf16.mxu0 0
      %2690 = vmatpush1.bf16.msra.mxu0 %v2111
      %2691 = vmatprep.subr.bf16.mxu0 0
      %2692 = vmatpush1.bf16.msra.mxu0 %v2112
      %2693 = vmatprep.subr.bf16.mxu0 0
      %2694 = vmatpush1.bf16.msra.mxu0 %v2113
      %2695 = vmatprep.subr.bf16.mxu0 0
      %2696 = vmatpush1.bf16.msra.mxu0 %v2114
      %2697 = vmatprep.subr.bf16.mxu0 0
      %2698 = vmatpush1.bf16.msra.mxu0 %v2115
      %2699 = vmatprep.subr.bf16.mxu0 0
      %2700 = vmatpush1.bf16.msra.mxu0 %v2116
      %2701 = vmatprep.subr.bf16.mxu0 0
      %2702 = vmatpush1.bf16.msra.mxu0 %v2117
      %2703 = vmatprep.subr.bf16.mxu0 0
      %2704 = vmatpush1.bf16.msra.mxu0 %v2118
      %2705 = vmatprep.subr.bf16.mxu0 0
      %2706 = vmatpush1.bf16.msra.mxu0 %v2119
      %2707 = vmatprep.subr.bf16.mxu0 0
      %2708 = vmatpush1.bf16.msra.mxu0 %v2120
      %2709 = vmatprep.subr.bf16.mxu0 0
      %2710 = vmatpush1.bf16.msra.mxu0 %v2121
      %2711 = vmatprep.subr.bf16.mxu0 0
      %2712 = vmatpush1.bf16.msra.mxu0 %v2122
      %2713 = vmatprep.subr.bf16.mxu0 0
      %2714 = vmatpush1.bf16.msra.mxu0 %v2123
      %2715 = vmatprep.subr.bf16.mxu0 0
      %2716 = vmatpush1.bf16.msra.mxu0 %v2124
      %2717 = vmatprep.mubr.bf16.mxu0 %v886
      %2718 = vmatmul.mubr.bf16.gmra.mrb[0].mxu0 %v885
      %v2719 = vpop.f32.mrb[0].mxu0
      %v2720 = vadd.f32 0.0, %v2719
      %v2721 = vpop.f32.mrb[0].mxu0
      %v2722 = vpop.f32.mrb[0].mxu0
      %v2723 = vpop.f32.mrb[0].mxu0
      %2724 = vdwg.mxu0
      %2725 = vmatprep.subr.bf16.mxu0 0
      %2726 = vmatpush1.bf16.msra.mxu0 %v2125
      %2727 = vmatprep.subr.bf16.mxu0 0
      %2728 = vmatpush1.bf16.msra.mxu0 %v2126
      %2729 = vmatprep.subr.bf16.mxu0 0
      %2730 = vmatpush1.bf16.msra.mxu0 %v2127
      %2731 = vmatprep.subr.bf16.mxu0 0
      %2732 = vmatpush1.bf16.msra.mxu0 %v2128
      %2733 = vmatprep.subr.bf16.mxu0 0
      %2734 = vmatpush1.bf16.msra.mxu0 %v2129
      %2735 = vmatprep.subr.bf16.mxu0 0
      %2736 = vmatpush1.bf16.msra.mxu0 %v2130
      %2737 = vmatprep.subr.bf16.mxu0 0
      %2738 = vmatpush1.bf16.msra.mxu0 %v2131
      %2739 = vmatprep.subr.bf16.mxu0 0
      %2740 = vmatpush1.bf16.msra.mxu0 %v2132
      %2741 = vmatprep.subr.bf16.mxu0 0
      %2742 = vmatpush1.bf16.msra.mxu0 %v2133
      %2743 = vmatprep.subr.bf16.mxu0 0
      %2744 = vmatpush1.bf16.msra.mxu0 %v2134
      %2745 = vmatprep.subr.bf16.mxu0 0
      %2746 = vmatpush1.bf16.msra.mxu0 %v2135
      %2747 = vmatprep.subr.bf16.mxu0 0
      %2748 = vmatpush1.bf16.msra.mxu0 %v2136
      %2749 = vmatprep.subr.bf16.mxu0 0
      %2750 = vmatpush1.bf16.msra.mxu0 %v2137
      %2751 = vmatprep.subr.bf16.mxu0 0
      %2752 = vmatpush1.bf16.msra.mxu0 %v2138
      %2753 = vmatprep.subr.bf16.mxu0 0
      %2754 = vmatpush1.bf16.msra.mxu0 %v2139
      %2755 = vmatprep.subr.bf16.mxu0 0
      %2756 = vmatpush1.bf16.msra.mxu0 %v2140
      %2757 = vmatprep.mubr.bf16.mxu0 %v888
      %2758 = vmatmul.mubr.bf16.gmra.mrb[0].mxu0 %v887
      %v2759 = vpop.f32.mrb[0].mxu0
      %v2760 = vadd.f32 %v2720, %v2759
      %v2761 = vpop.f32.mrb[0].mxu0
      %v2762 = vpop.f32.mrb[0].mxu0
      %v2763 = vpop.f32.mrb[0].mxu0
      %2764 = vdwg.mxu0
      %2765 = vmatprep.subr.bf16.mxu0 0
      %2766 = vmatpush1.bf16.msra.mxu0 %v2141
      %2767 = vmatprep.subr.bf16.mxu0 0
      %2768 = vmatpush1.bf16.msra.mxu0 %v2142
      %2769 = vmatprep.subr.bf16.mxu0 0
      %2770 = vmatpush1.bf16.msra.mxu0 %v2143
      %2771 = vmatprep.subr.bf16.mxu0 0
      %2772 = vmatpush1.bf16.msra.mxu0 %v2144
      %2773 = vmatprep.subr.bf16.mxu0 0
      %2774 = vmatpush1.bf16.msra.mxu0 %v2145
      %2775 = vmatprep.subr.bf16.mxu0 0
      %2776 = vmatpush1.bf16.msra.mxu0 %v2146
      %2777 = vmatprep.subr.bf16.mxu0 0
      %2778 = vmatpush1.bf16.msra.mxu0 %v2147
      %2779 = vmatprep.subr.bf16.mxu0 0
      %2780 = vmatpush1.bf16.msra.mxu0 %v2148
      %2781 = vmatprep.subr.bf16.mxu0 0
      %2782 = vmatpush1.bf16.msra.mxu0 %v2149
      %2783 = vmatprep.subr.bf16.mxu0 0
      %2784 = vmatpush1.bf16.msra.mxu0 %v2150
      %2785 = vmatprep.subr.bf16.mxu0 0
      %2786 = vmatpush1.bf16.msra.mxu0 %v2151
      %2787 = vmatprep.subr.bf16.mxu0 0
      %2788 = vmatpush1.bf16.msra.mxu0 %v2152
      %2789 = vmatprep.subr.bf16.mxu0 0
      %2790 = vmatpush1.bf16.msra.mxu0 %v2153
      %2791 = vmatprep.subr.bf16.mxu0 0
      %2792 = vmatpush1.bf16.msra.mxu0 %v2154
      %2793 = vmatprep.subr.bf16.mxu0 0
      %2794 = vmatpush1.bf16.msra.mxu0 %v2155
      %2795 = vmatprep.subr.bf16.mxu0 0
      %2796 = vmatpush1.bf16.msra.mxu0 %v2156
      %2797 = vmatprep.mubr.bf16.mxu0 %v890
      %2798 = vmatmul.mubr.bf16.gmra.mrb[0].mxu0 %v889
      %v2799 = vpop.f32.mrb[0].mxu0
      %v2800 = vadd.f32 %v2760, %v2799
      %v2801 = vpop.f32.mrb[0].mxu0
      %v2802 = vpop.f32.mrb[0].mxu0
      %v2803 = vpop.f32.mrb[0].mxu0
      %2804 = vdwg.mxu0
      %2805 = vmatprep.subr.bf16.mxu0 0
      %2806 = vmatpush1.bf16.msra.mxu0 %v2157
      %2807 = vmatprep.subr.bf16.mxu0 0
      %2808 = vmatpush1.bf16.msra.mxu0 %v2158
      %2809 = vmatprep.subr.bf16.mxu0 0
      %2810 = vmatpush1.bf16.msra.mxu0 %v2159
      %2811 = vmatprep.subr.bf16.mxu0 0
      %2812 = vmatpush1.bf16.msra.mxu0 %v2160
      %2813 = vmatprep.subr.bf16.mxu0 0
      %2814 = vmatpush1.bf16.msra.mxu0 %v2161
      %2815 = vmatprep.subr.bf16.mxu0 0
      %2816 = vmatpush1.bf16.msra.mxu0 %v2162
      %2817 = vmatprep.subr.bf16.mxu0 0
      %2818 = vmatpush1.bf16.msra.mxu0 %v2163
      %2819 = vmatprep.subr.bf16.mxu0 0
      %2820 = vmatpush1.bf16.msra.mxu0 %v2164
      %2821 = vmatprep.subr.bf16.mxu0 0
      %2822 = vmatpush1.bf16.msra.mxu0 %v2165
      %2823 = vmatprep.subr.bf16.mxu0 0
      %2824 = vmatpush1.bf16.msra.mxu0 %v2166
      %2825 = vmatprep.subr.bf16.mxu0 0
      %2826 = vmatpush1.bf16.msra.mxu0 %v2167
      %2827 = vmatprep.subr.bf16.mxu0 0
      %2828 = vmatpush1.bf16.msra.mxu0 %v2168
      %2829 = vmatprep.subr.bf16.mxu0 0
      %2830 = vmatpush1.bf16.msra.mxu0 %v2169
      %2831 = vmatprep.subr.bf16.mxu0 0
      %2832 = vmatpush1.bf16.msra.mxu0 %v2170
      %2833 = vmatprep.subr.bf16.mxu0 0
      %2834 = vmatpush1.bf16.msra.mxu0 %v2171
      %2835 = vmatprep.subr.bf16.mxu0 0
      %2836 = vmatpush1.bf16.msra.mxu0 %v2172
      %2837 = vmatprep.mubr.bf16.mxu0 %v892
      %2838 = vmatmul.mubr.bf16.gmra.mrb[0].mxu0 %v891
      %v2839 = vpop.f32.mrb[0].mxu0
      %v2840 = vadd.f32 %v2800, %v2839
      %v2841 = vpop.f32.mrb[0].mxu0
      %v2842 = vpop.f32.mrb[0].mxu0
      %v2843 = vpop.f32.mrb[0].mxu0
      %2844 = vdwg.mxu0
      %2845 = vmatprep.subr.bf16.mxu0 0
      %2846 = vmatpush1.bf16.msra.mxu0 %v2173
      %2847 = vmatprep.subr.bf16.mxu0 0
      %2848 = vmatpush1.bf16.msra.mxu0 %v2174
      %2849 = vmatprep.subr.bf16.mxu0 0
      %2850 = vmatpush1.bf16.msra.mxu0 %v2175
      %2851 = vmatprep.subr.bf16.mxu0 0
      %2852 = vmatpush1.bf16.msra.mxu0 %v2176
      %2853 = vmatprep.subr.bf16.mxu0 0
      %2854 = vmatpush1.bf16.msra.mxu0 %v2177
      %2855 = vmatprep.subr.bf16.mxu0 0
      %2856 = vmatpush1.bf16.msra.mxu0 %v2178
      %2857 = vmatprep.subr.bf16.mxu0 0
      %2858 = vmatpush1.bf16.msra.mxu0 %v2179
      %2859 = vmatprep.subr.bf16.mxu0 0
      %2860 = vmatpush1.bf16.msra.mxu0 %v2180
      %2861 = vmatprep.subr.bf16.mxu0 0
      %2862 = vmatpush1.bf16.msra.mxu0 %v2181
      %2863 = vmatprep.subr.bf16.mxu0 0
      %2864 = vmatpush1.bf16.msra.mxu0 %v2182
      %2865 = vmatprep.subr.bf16.mxu0 0
      %2866 = vmatpush1.bf16.msra.mxu0 %v2183
      %2867 = vmatprep.subr.bf16.mxu0 0
      %2868 = vmatpush1.bf16.msra.mxu0 %v2184
      %2869 = vmatprep.subr.bf16.mxu0 0
      %2870 = vmatpush1.bf16.msra.mxu0 %v2185
      %2871 = vmatprep.subr.bf16.mxu0 0
      %2872 = vmatpush1.bf16.msra.mxu0 %v2186
      %2873 = vmatprep.subr.bf16.mxu0 0
      %2874 = vmatpush1.bf16.msra.mxu0 %v2187
      %2875 = vmatprep.subr.bf16.mxu0 0
      %2876 = vmatpush1.bf16.msra.mxu0 %v2188
      %2877 = vmatprep.mubr.bf16.mxu0 %v894
      %2878 = vmatmul.mubr.bf16.gmra.mrb[0].mxu0 %v893
      %v2879 = vpop.f32.mrb[0].mxu0
      %v2880 = vadd.f32 %v2840, %v2879
      %v2881 = vpop.f32.mrb[0].mxu0
      %v2882 = vpop.f32.mrb[0].mxu0
      %v2883 = vpop.f32.mrb[0].mxu0
      %2884 = vdwg.mxu0
      %2885 = vmatprep.subr.bf16.mxu0 0
      %2886 = vmatpush1.bf16.msra.mxu0 %v2189
      %2887 = vmatprep.subr.bf16.mxu0 0
      %2888 = vmatpush1.bf16.msra.mxu0 %v2190
      %2889 = vmatprep.subr.bf16.mxu0 0
      %2890 = vmatpush1.bf16.msra.mxu0 %v2191
      %2891 = vmatprep.subr.bf16.mxu0 0
      %2892 = vmatpush1.bf16.msra.mxu0 %v2192
      %2893 = vmatprep.subr.bf16.mxu0 0
      %2894 = vmatpush1.bf16.msra.mxu0 %v2193
      %2895 = vmatprep.subr.bf16.mxu0 0
      %2896 = vmatpush1.bf16.msra.mxu0 %v2194
      %2897 = vmatprep.subr.bf16.mxu0 0
      %2898 = vmatpush1.bf16.msra.mxu0 %v2195
      %2899 = vmatprep.subr.bf16.mxu0 0
      %2900 = vmatpush1.bf16.msra.mxu0 %v2196
      %2901 = vmatprep.subr.bf16.mxu0 0
      %2902 = vmatpush1.bf16.msra.mxu0 %v2197
      %2903 = vmatprep.subr.bf16.mxu0 0
      %2904 = vmatpush1.bf16.msra.mxu0 %v2198
      %2905 = vmatprep.subr.bf16.mxu0 0
      %2906 = vmatpush1.bf16.msra.mxu0 %v2199
      %2907 = vmatprep.subr.bf16.mxu0 0
      %2908 = vmatpush1.bf16.msra.mxu0 %v2200
      %2909 = vmatprep.subr.bf16.mxu0 0
      %2910 = vmatpush1.bf16.msra.mxu0 %v2201
      %2911 = vmatprep.subr.bf16.mxu0 0
      %2912 = vmatpush1.bf16.msra.mxu0 %v2202
      %2913 = vmatprep.subr.bf16.mxu0 0
      %2914 = vmatpush1.bf16.msra.mxu0 %v2203
      %2915 = vmatprep.subr.bf16.mxu0 0
      %2916 = vmatpush1.bf16.msra.mxu0 %v2204
      %2917 = vmatprep.mubr.bf16.mxu0 %v896
      %2918 = vmatmul.mubr.bf16.gmra.mrb[0].mxu0 %v895
      %v2919 = vpop.f32.mrb[0].mxu0
      %v2920 = vadd.f32 %v2880, %v2919
      %v2921 = vpop.f32.mrb[0].mxu0
      %v2922 = vpop.f32.mrb[0].mxu0
      %v2923 = vpop.f32.mrb[0].mxu0
      %2924 = vdwg.mxu0
      %2925 = vmatprep.subr.bf16.mxu0 0
      %2926 = vmatpush1.bf16.msra.mxu0 %v2205
      %2927 = vmatprep.subr.bf16.mxu0 0
      %2928 = vmatpush1.bf16.msra.mxu0 %v2206
      %2929 = vmatprep.subr.bf16.mxu0 0
      %2930 = vmatpush1.bf16.msra.mxu0 %v2207
      %2931 = vmatprep.subr.bf16.mxu0 0
      %2932 = vmatpush1.bf16.msra.mxu0 %v2208
      %2933 = vmatprep.subr.bf16.mxu0 0
      %2934 = vmatpush1.bf16.msra.mxu0 %v2209
      %2935 = vmatprep.subr.bf16.mxu0 0
      %2936 = vmatpush1.bf16.msra.mxu0 %v2210
      %2937 = vmatprep.subr.bf16.mxu0 0
      %2938 = vmatpush1.bf16.msra.mxu0 %v2211
      %2939 = vmatprep.subr.bf16.mxu0 0
      %2940 = vmatpush1.bf16.msra.mxu0 %v2212
      %2941 = vmatprep.subr.bf16.mxu0 0
      %2942 = vmatpush1.bf16.msra.mxu0 %v2213
      %2943 = vmatprep.subr.bf16.mxu0 0
      %2944 = vmatpush1.bf16.msra.mxu0 %v2214
      %2945 = vmatprep.subr.bf16.mxu0 0
      %2946 = vmatpush1.bf16.msra.mxu0 %v2215
      %2947 = vmatprep.subr.bf16.mxu0 0
      %2948 = vmatpush1.bf16.msra.mxu0 %v2216
      %2949 = vmatprep.subr.bf16.mxu0 0
      %2950 = vmatpush1.bf16.msra.mxu0 %v2217
      %2951 = vmatprep.subr.bf16.mxu0 0
      %2952 = vmatpush1.bf16.msra.mxu0 %v2218
      %2953 = vmatprep.subr.bf16.mxu0 0
      %2954 = vmatpush1.bf16.msra.mxu0 %v2219
      %2955 = vmatprep.subr.bf16.mxu0 0
      %2956 = vmatpush1.bf16.msra.mxu0 %v2220
      %2957 = vmatprep.mubr.bf16.mxu0 %v898
      %2958 = vmatmul.mubr.bf16.gmra.mrb[0].mxu0 %v897
      %v2959 = vpop.f32.mrb[0].mxu0
      %v2960 = vadd.f32 %v2920, %v2959
      %v2961 = vpop.f32.mrb[0].mxu0
      %v2962 = vpop.f32.mrb[0].mxu0
      %v2963 = vpop.f32.mrb[0].mxu0
      %2964 = vdwg.mxu0
      %2965 = vmatprep.subr.bf16.mxu0 0
      %2966 = vmatpush1.bf16.msra.mxu0 %v2221
      %2967 = vmatprep.subr.bf16.mxu0 0
      %2968 = vmatpush1.bf16.msra.mxu0 %v2222
      %2969 = vmatprep.subr.bf16.mxu0 0
      %2970 = vmatpush1.bf16.msra.mxu0 %v2223
      %2971 = vmatprep.subr.bf16.mxu0 0
      %2972 = vmatpush1.bf16.msra.mxu0 %v2224
      %2973 = vmatprep.subr.bf16.mxu0 0
      %2974 = vmatpush1.bf16.msra.mxu0 %v2225
      %2975 = vmatprep.subr.bf16.mxu0 0
      %2976 = vmatpush1.bf16.msra.mxu0 %v2226
      %2977 = vmatprep.subr.bf16.mxu0 0
      %2978 = vmatpush1.bf16.msra.mxu0 %v2227
      %2979 = vmatprep.subr.bf16.mxu0 0
      %2980 = vmatpush1.bf16.msra.mxu0 %v2228
      %2981 = vmatprep.subr.bf16.mxu0 0
      %2982 = vmatpush1.bf16.msra.mxu0 %v2229
      %2983 = vmatprep.subr.bf16.mxu0 0
      %2984 = vmatpush1.bf16.msra.mxu0 %v2230
      %2985 = vmatprep.subr.bf16.mxu0 0
      %2986 = vmatpush1.bf16.msra.mxu0 %v2231
      %2987 = vmatprep.subr.bf16.mxu0 0
      %2988 = vmatpush1.bf16.msra.mxu0 %v2232
      %2989 = vmatprep.subr.bf16.mxu0 0
      %2990 = vmatpush1.bf16.msra.mxu0 %v2233
      %2991 = vmatprep.subr.bf16.mxu0 0
      %2992 = vmatpush1.bf16.msra.mxu0 %v2234
      %2993 = vmatprep.subr.bf16.mxu0 0
      %2994 = vmatpush1.bf16.msra.mxu0 %v2235
      %2995 = vmatprep.subr.bf16.mxu0 0
      %2996 = vmatpush1.bf16.msra.mxu0 %v2236
      %2997 = vmatprep.mubr.bf16.mxu0 %v900
      %2998 = vmatmul.mubr.bf16.gmra.mrb[0].mxu0 %v899
      %v2999 = vpop.f32.mrb[0].mxu0
      %v3000 = vadd.f32 %v2960, %v2999
      %v3001 = vpop.f32.mrb[0].mxu0
      %v3002 = vpop.f32.mrb[0].mxu0
      %v3003 = vpop.f32.mrb[0].mxu0
      %3004 = vdwg.mxu0
      %3005 = vmatprep.subr.bf16.mxu0 0
      %3006 = vmatpush1.bf16.msra.mxu0 %v2237
      %3007 = vmatprep.subr.bf16.mxu0 0
      %3008 = vmatpush1.bf16.msra.mxu0 %v2238
      %3009 = vmatprep.subr.bf16.mxu0 0
      %3010 = vmatpush1.bf16.msra.mxu0 %v2239
      %3011 = vmatprep.subr.bf16.mxu0 0
      %3012 = vmatpush1.bf16.msra.mxu0 %v2240
      %3013 = vmatprep.subr.bf16.mxu0 0
      %3014 = vmatpush1.bf16.msra.mxu0 %v2241
      %3015 = vmatprep.subr.bf16.mxu0 0
      %3016 = vmatpush1.bf16.msra.mxu0 %v2242
      %3017 = vmatprep.subr.bf16.mxu0 0
      %3018 = vmatpush1.bf16.msra.mxu0 %v2243
      %3019 = vmatprep.subr.bf16.mxu0 0
      %3020 = vmatpush1.bf16.msra.mxu0 %v2244
      %3021 = vmatprep.subr.bf16.mxu0 0
      %3022 = vmatpush1.bf16.msra.mxu0 %v2245
      %3023 = vmatprep.subr.bf16.mxu0 0
      %3024 = vmatpush1.bf16.msra.mxu0 %v2246
      %3025 = vmatprep.subr.bf16.mxu0 0
      %3026 = vmatpush1.bf16.msra.mxu0 %v2247
      %3027 = vmatprep.subr.bf16.mxu0 0
      %3028 = vmatpush1.bf16.msra.mxu0 %v2248
      %3029 = vmatprep.subr.bf16.mxu0 0
      %3030 = vmatpush1.bf16.msra.mxu0 %v2249
      %3031 = vmatprep.subr.bf16.mxu0 0
      %3032 = vmatpush1.bf16.msra.mxu0 %v2250
      %3033 = vmatprep.subr.bf16.mxu0 0
      %3034 = vmatpush1.bf16.msra.mxu0 %v2251
      %3035 = vmatprep.subr.bf16.mxu0 0
      %3036 = vmatpush1.bf16.msra.mxu0 %v2252
      %3037 = vmatprep.mubr.bf16.mxu0 %v902
      %3038 = vmatmul.mubr.bf16.gmra.mrb[0].mxu0 %v901
      %v3039 = vpop.f32.mrb[0].mxu0
      %v3040 = vadd.f32 %v3000, %v3039
      %v3041 = vpop.f32.mrb[0].mxu0
      %v3042 = vpop.f32.mrb[0].mxu0
      %v3043 = vpop.f32.mrb[0].mxu0
      %3044 = vdwg.mxu0
      %3045 = vmatprep.subr.bf16.mxu0 0
      %3046 = vmatpush1.bf16.msra.mxu0 %v2253
      %3047 = vmatprep.subr.bf16.mxu0 0
      %3048 = vmatpush1.bf16.msra.mxu0 %v2254
      %3049 = vmatprep.subr.bf16.mxu0 0
      %3050 = vmatpush1.bf16.msra.mxu0 %v2255
      %3051 = vmatprep.subr.bf16.mxu0 0
      %3052 = vmatpush1.bf16.msra.mxu0 %v2256
      %3053 = vmatprep.subr.bf16.mxu0 0
      %3054 = vmatpush1.bf16.msra.mxu0 %v2257
      %3055 = vmatprep.subr.bf16.mxu0 0
      %3056 = vmatpush1.bf16.msra.mxu0 %v2258
      %3057 = vmatprep.subr.bf16.mxu0 0
      %3058 = vmatpush1.bf16.msra.mxu0 %v2259
      %3059 = vmatprep.subr.bf16.mxu0 0
      %3060 = vmatpush1.bf16.msra.mxu0 %v2260
      %3061 = vmatprep.subr.bf16.mxu0 0
      %3062 = vmatpush1.bf16.msra.mxu0 %v2261
      %3063 = vmatprep.subr.bf16.mxu0 0
      %3064 = vmatpush1.bf16.msra.mxu0 %v2262
      %3065 = vmatprep.subr.bf16.mxu0 0
      %3066 = vmatpush1.bf16.msra.mxu0 %v2263
      %3067 = vmatprep.subr.bf16.mxu0 0
      %3068 = vmatpush1.bf16.msra.mxu0 %v2264
      %3069 = vmatprep.subr.bf16.mxu0 0
      %3070 = vmatpush1.bf16.msra.mxu0 %v2265
      %3071 = vmatprep.subr.bf16.mxu0 0
      %3072 = vmatpush1.bf16.msra.mxu0 %v2266
      %3073 = vmatprep.subr.bf16.mxu0 0
      %3074 = vmatpush1.bf16.msra.mxu0 %v2267
      %3075 = vmatprep.subr.bf16.mxu0 0
      %3076 = vmatpush1.bf16.msra.mxu0 %v2268
      %3077 = vmatprep.mubr.bf16.mxu0 %v904
      %3078 = vmatmul.mubr.bf16.gmra.mrb[0].mxu0 %v903
      %v3079 = vpop.f32.mrb[0].mxu0
      %v3080 = vadd.f32 %v3040, %v3079
      %v3081 = vpop.f32.mrb[0].mxu0
      %v3082 = vpop.f32.mrb[0].mxu0
      %v3083 = vpop.f32.mrb[0].mxu0
      %3084 = vdwg.mxu0
      %3085 = vmatprep.subr.bf16.mxu0 0
      %3086 = vmatpush1.bf16.msra.mxu0 %v2269
      %3087 = vmatprep.subr.bf16.mxu0 0
      %3088 = vmatpush1.bf16.msra.mxu0 %v2270
      %3089 = vmatprep.subr.bf16.mxu0 0
      %3090 = vmatpush1.bf16.msra.mxu0 %v2271
      %3091 = vmatprep.subr.bf16.mxu0 0
      %3092 = vmatpush1.bf16.msra.mxu0 %v2272
      %3093 = vmatprep.subr.bf16.mxu0 0
      %3094 = vmatpush1.bf16.msra.mxu0 %v2273
      %3095 = vmatprep.subr.bf16.mxu0 0
      %3096 = vmatpush1.bf16.msra.mxu0 %v2274
      %3097 = vmatprep.subr.bf16.mxu0 0
      %3098 = vmatpush1.bf16.msra.mxu0 %v2275
      %3099 = vmatprep.subr.bf16.mxu0 0
      %3100 = vmatpush1.bf16.msra.mxu0 %v2276
      %3101 = vmatprep.subr.bf16.mxu0 0
      %3102 = vmatpush1.bf16.msra.mxu0 %v2277
      %3103 = vmatprep.subr.bf16.mxu0 0
      %3104 = vmatpush1.bf16.msra.mxu0 %v2278
      %3105 = vmatprep.subr.bf16.mxu0 0
      %3106 = vmatpush1.bf16.msra.mxu0 %v2279
      %3107 = vmatprep.subr.bf16.mxu0 0
      %3108 = vmatpush1.bf16.msra.mxu0 %v2280
      %3109 = vmatprep.subr.bf16.mxu0 0
      %3110 = vmatpush1.bf16.msra.mxu0 %v2281
      %3111 = vmatprep.subr.bf16.mxu0 0
      %3112 = vmatpush1.bf16.msra.mxu0 %v2282
      %3113 = vmatprep.subr.bf16.mxu0 0
      %3114 = vmatpush1.bf16.msra.mxu0 %v2283
      %3115 = vmatprep.subr.bf16.mxu0 0
      %3116 = vmatpush1.bf16.msra.mxu0 %v2284
      %3117 = vmatprep.mubr.bf16.mxu0 %v906
      %3118 = vmatmul.mubr.bf16.gmra.mrb[0].mxu0 %v905
      %v3119 = vpop.f32.mrb[0].mxu0
      %v3120 = vadd.f32 %v3080, %v3119
      %v3121 = vpop.f32.mrb[0].mxu0
      %v3122 = vpop.f32.mrb[0].mxu0
      %v3123 = vpop.f32.mrb[0].mxu0
      %3124 = vdwg.mxu0
      %3125 = vmatprep.subr.bf16.mxu0 0
      %3126 = vmatpush1.bf16.msra.mxu0 %v2285
      %3127 = vmatprep.subr.bf16.mxu0 0
      %3128 = vmatpush1.bf16.msra.mxu0 %v2286
      %3129 = vmatprep.subr.bf16.mxu0 0
      %3130 = vmatpush1.bf16.msra.mxu0 %v2287
      %3131 = vmatprep.subr.bf16.mxu0 0
      %3132 = vmatpush1.bf16.msra.mxu0 %v2288
      %3133 = vmatprep.subr.bf16.mxu0 0
      %3134 = vmatpush1.bf16.msra.mxu0 %v2289
      %3135 = vmatprep.subr.bf16.mxu0 0
      %3136 = vmatpush1.bf16.msra.mxu0 %v2290
      %3137 = vmatprep.subr.bf16.mxu0 0
      %3138 = vmatpush1.bf16.msra.mxu0 %v2291
      %3139 = vmatprep.subr.bf16.mxu0 0
      %3140 = vmatpush1.bf16.msra.mxu0 %v2292
      %3141 = vmatprep.subr.bf16.mxu0 0
      %3142 = vmatpush1.bf16.msra.mxu0 %v2293
      %3143 = vmatprep.subr.bf16.mxu0 0
      %3144 = vmatpush1.bf16.msra.mxu0 %v2294
      %3145 = vmatprep.subr.bf16.mxu0 0
      %3146 = vmatpush1.bf16.msra.mxu0 %v2295
      %3147 = vmatprep.subr.bf16.mxu0 0
      %3148 = vmatpush1.bf16.msra.mxu0 %v2296
      %3149 = vmatprep.subr.bf16.mxu0 0
      %3150 = vmatpush1.bf16.msra.mxu0 %v2297
      %3151 = vmatprep.subr.bf16.mxu0 0
      %3152 = vmatpush1.bf16.msra.mxu0 %v2298
      %3153 = vmatprep.subr.bf16.mxu0 0
      %3154 = vmatpush1.bf16.msra.mxu0 %v2299
      %3155 = vmatprep.subr.bf16.mxu0 0
      %3156 = vmatpush1.bf16.msra.mxu0 %v2300
      %3157 = vmatprep.mubr.bf16.mxu0 %v908
      %3158 = vmatmul.mubr.bf16.gmra.mrb[0].mxu0 %v907
      %v3159 = vpop.f32.mrb[0].mxu0
      %v3160 = vadd.f32 %v3120, %v3159
      %v3161 = vpop.f32.mrb[0].mxu0
      %v3162 = vpop.f32.mrb[0].mxu0
      %v3163 = vpop.f32.mrb[0].mxu0
      %3164 = vdwg.mxu0
      %3165 = vmatprep.subr.bf16.mxu0 0
      %3166 = vmatpush1.bf16.msra.mxu0 %v2301
      %3167 = vmatprep.subr.bf16.mxu0 0
      %3168 = vmatpush1.bf16.msra.mxu0 %v2302
      %3169 = vmatprep.subr.bf16.mxu0 0
      %3170 = vmatpush1.bf16.msra.mxu0 %v2303
      %3171 = vmatprep.subr.bf16.mxu0 0
      %3172 = vmatpush1.bf16.msra.mxu0 %v2304
      %3173 = vmatprep.subr.bf16.mxu0 0
      %3174 = vmatpush1.bf16.msra.mxu0 %v2305
      %3175 = vmatprep.subr.bf16.mxu0 0
      %3176 = vmatpush1.bf16.msra.mxu0 %v2306
      %3177 = vmatprep.subr.bf16.mxu0 0
      %3178 = vmatpush1.bf16.msra.mxu0 %v2307
      %3179 = vmatprep.subr.bf16.mxu0 0
      %3180 = vmatpush1.bf16.msra.mxu0 %v2308
      %3181 = vmatprep.subr.bf16.mxu0 0
      %3182 = vmatpush1.bf16.msra.mxu0 %v2309
      %3183 = vmatprep.subr.bf16.mxu0 0
      %3184 = vmatpush1.bf16.msra.mxu0 %v2310
      %3185 = vmatprep.subr.bf16.mxu0 0
      %3186 = vmatpush1.bf16.msra.mxu0 %v2311
      %3187 = vmatprep.subr.bf16.mxu0 0
      %3188 = vmatpush1.bf16.msra.mxu0 %v2312
      %3189 = vmatprep.subr.bf16.mxu0 0
      %3190 = vmatpush1.bf16.msra.mxu0 %v2313
      %3191 = vmatprep.subr.bf16.mxu0 0
      %3192 = vmatpush1.bf16.msra.mxu0 %v2314
      %3193 = vmatprep.subr.bf16.mxu0 0
      %3194 = vmatpush1.bf16.msra.mxu0 %v2315
      %3195 = vmatprep.subr.bf16.mxu0 0
      %3196 = vmatpush1.bf16.msra.mxu0 %v2316
      %3197 = vmatprep.mubr.bf16.mxu0 %v910
      %3198 = vmatmul.mubr.bf16.gmra.mrb[0].mxu0 %v909
      %v3199 = vpop.f32.mrb[0].mxu0
      %v3200 = vadd.f32 %v3160, %v3199
      %v3201 = vpop.f32.mrb[0].mxu0
      %v3202 = vpop.f32.mrb[0].mxu0
      %v3203 = vpop.f32.mrb[0].mxu0
      %3204 = vdwg.mxu0
      %3205 = vmatprep.subr.bf16.mxu0 0
      %3206 = vmatpush1.bf16.msra.mxu0 %v2317
      %3207 = vmatprep.subr.bf16.mxu0 0
      %3208 = vmatpush1.bf16.msra.mxu0 %v2318
      %3209 = vmatprep.subr.bf16.mxu0 0
      %3210 = vmatpush1.bf16.msra.mxu0 %v2319
      %3211 = vmatprep.subr.bf16.mxu0 0
      %3212 = vmatpush1.bf16.msra.mxu0 %v2320
      %3213 = vmatprep.subr.bf16.mxu0 0
      %3214 = vmatpush1.bf16.msra.mxu0 %v2321
      %3215 = vmatprep.subr.bf16.mxu0 0
      %3216 = vmatpush1.bf16.msra.mxu0 %v2322
      %3217 = vmatprep.subr.bf16.mxu0 0
      %3218 = vmatpush1.bf16.msra.mxu0 %v2323
      %3219 = vmatprep.subr.bf16.mxu0 0
      %3220 = vmatpush1.bf16.msra.mxu0 %v2324
      %3221 = vmatprep.subr.bf16.mxu0 0
      %3222 = vmatpush1.bf16.msra.mxu0 %v2325
      %3223 = vmatprep.subr.bf16.mxu0 0
      %3224 = vmatpush1.bf16.msra.mxu0 %v2326
      %3225 = vmatprep.subr.bf16.mxu0 0
      %3226 = vmatpush1.bf16.msra.mxu0 %v2327
      %3227 = vmatprep.subr.bf16.mxu0 0
      %3228 = vmatpush1.bf16.msra.mxu0 %v2328
      %3229 = vmatprep.subr.bf16.mxu0 0
      %3230 = vmatpush1.bf16.msra.mxu0 %v2329
      %3231 = vmatprep.subr.bf16.mxu0 0
      %3232 = vmatpush1.bf16.msra.mxu0 %v2330
      %3233 = vmatprep.subr.bf16.mxu0 0
      %3234 = vmatpush1.bf16.msra.mxu0 %v2331
      %3235 = vmatprep.subr.bf16.mxu0 0
      %3236 = vmatpush1.bf16.msra.mxu0 %v2332
      %3237 = vmatprep.mubr.bf16.mxu0 %v912
      %3238 = vmatmul.mubr.bf16.gmra.mrb[0].mxu0 %v911
      %v3239 = vpop.f32.mrb[0].mxu0
      %v3240 = vadd.f32 %v3200, %v3239
      %v3241 = vpop.f32.mrb[0].mxu0
      %v3242 = vpop.f32.mrb[0].mxu0
      %v3243 = vpop.f32.mrb[0].mxu0
      %3244 = vdwg.mxu0
      %3245 = vmatprep.subr.bf16.mxu0 0
      %3246 = vmatpush1.bf16.msra.mxu0 %v2333
      %3247 = vmatprep.subr.bf16.mxu0 0
      %3248 = vmatpush1.bf16.msra.mxu0 %v2334
      %3249 = vmatprep.subr.bf16.mxu0 0
      %3250 = vmatpush1.bf16.msra.mxu0 %v2335
      %3251 = vmatprep.subr.bf16.mxu0 0
      %3252 = vmatpush1.bf16.msra.mxu0 %v2336
      %3253 = vmatprep.subr.bf16.mxu0 0
      %3254 = vmatpush1.bf16.msra.mxu0 %v2337
      %3255 = vmatprep.subr.bf16.mxu0 0
      %3256 = vmatpush1.bf16.msra.mxu0 %v2338
      %3257 = vmatprep.subr.bf16.mxu0 0
      %3258 = vmatpush1.bf16.msra.mxu0 %v2339
      %3259 = vmatprep.subr.bf16.mxu0 0
      %3260 = vmatpush1.bf16.msra.mxu0 %v2340
      %3261 = vmatprep.subr.bf16.mxu0 0
      %3262 = vmatpush1.bf16.msra.mxu0 %v2341
      %3263 = vmatprep.subr.bf16.mxu0 0
      %3264 = vmatpush1.bf16.msra.mxu0 %v2342
      %3265 = vmatprep.subr.bf16.mxu0 0
      %3266 = vmatpush1.bf16.msra.mxu0 %v2343
      %3267 = vmatprep.subr.bf16.mxu0 0
      %3268 = vmatpush1.bf16.msra.mxu0 %v2344
      %3269 = vmatprep.subr.bf16.mxu0 0
      %3270 = vmatpush1.bf16.msra.mxu0 %v2345
      %3271 = vmatprep.subr.bf16.mxu0 0
      %3272 = vmatpush1.bf16.msra.mxu0 %v2346
      %3273 = vmatprep.subr.bf16.mxu0 0
      %3274 = vmatpush1.bf16.msra.mxu0 %v2347
      %3275 = vmatprep.subr.bf16.mxu0 0
      %3276 = vmatpush1.bf16.msra.mxu0 %v2348
      %3277 = vmatprep.mubr.bf16.mxu0 %v914
      %3278 = vmatmul.mubr.bf16.gmra.mrb[0].mxu0 %v913
      %v3279 = vpop.f32.mrb[0].mxu0
      %v3280 = vadd.f32 %v3240, %v3279
      %v3281 = vpop.f32.mrb[0].mxu0
      %v3282 = vpop.f32.mrb[0].mxu0
      %v3283 = vpop.f32.mrb[0].mxu0
      %3284 = vdwg.mxu0
      %3285 = vmatprep.subr.bf16.mxu0 0
      %3286 = vmatpush1.bf16.msra.mxu0 %v2349
      %3287 = vmatprep.subr.bf16.mxu0 0
      %3288 = vmatpush1.bf16.msra.mxu0 %v2350
      %3289 = vmatprep.subr.bf16.mxu0 0
      %3290 = vmatpush1.bf16.msra.mxu0 %v2351
      %3291 = vmatprep.subr.bf16.mxu0 0
      %3292 = vmatpush1.bf16.msra.mxu0 %v2352
      %3293 = vmatprep.subr.bf16.mxu0 0
      %3294 = vmatpush1.bf16.msra.mxu0 %v2353
      %3295 = vmatprep.subr.bf16.mxu0 0
      %3296 = vmatpush1.bf16.msra.mxu0 %v2354
      %3297 = vmatprep.subr.bf16.mxu0 0
      %3298 = vmatpush1.bf16.msra.mxu0 %v2355
      %3299 = vmatprep.subr.bf16.mxu0 0
      %3300 = vmatpush1.bf16.msra.mxu0 %v2356
      %3301 = vmatprep.subr.bf16.mxu0 0
      %3302 = vmatpush1.bf16.msra.mxu0 %v2357
      %3303 = vmatprep.subr.bf16.mxu0 0
      %3304 = vmatpush1.bf16.msra.mxu0 %v2358
      %3305 = vmatprep.subr.bf16.mxu0 0
      %3306 = vmatpush1.bf16.msra.mxu0 %v2359
      %3307 = vmatprep.subr.bf16.mxu0 0
      %3308 = vmatpush1.bf16.msra.mxu0 %v2360
      %3309 = vmatprep.subr.bf16.mxu0 0
      %3310 = vmatpush1.bf16.msra.mxu0 %v2361
      %3311 = vmatprep.subr.bf16.mxu0 0
      %3312 = vmatpush1.bf16.msra.mxu0 %v2362
      %3313 = vmatprep.subr.bf16.mxu0 0
      %3314 = vmatpush1.bf16.msra.mxu0 %v2363
      %3315 = vmatprep.subr.bf16.mxu0 0
      %3316 = vmatpush1.bf16.msra.mxu0 %v2364
      %3317 = vmatprep.mubr.bf16.mxu0 %v916
      %3318 = vmatmul.mubr.bf16.gmra.mrb[0].mxu0 %v915
      %v3319 = vpop.f32.mrb[0].mxu0
      %v3320 = vadd.f32 %v3280, %v3319
      %v3321 = vpop.f32.mrb[0].mxu0
      %v3322 = vpop.f32.mrb[0].mxu0
      %v3323 = vpop.f32.mrb[0].mxu0
      %3324 = vdwg.mxu0
      %3325 = vmatprep.subr.bf16.mxu0 0
      %3326 = vmatpush1.bf16.msra.mxu0 %v2365
      %3327 = vmatprep.subr.bf16.mxu0 0
      %3328 = vmatpush1.bf16.msra.mxu0 %v2366
      %3329 = vmatprep.subr.bf16.mxu0 0
      %3330 = vmatpush1.bf16.msra.mxu0 %v2367
      %3331 = vmatprep.subr.bf16.mxu0 0
      %3332 = vmatpush1.bf16.msra.mxu0 %v2368
      %3333 = vmatprep.subr.bf16.mxu0 0
      %3334 = vmatpush1.bf16.msra.mxu0 %v2369
      %3335 = vmatprep.subr.bf16.mxu0 0
      %3336 = vmatpush1.bf16.msra.mxu0 %v2370
      %3337 = vmatprep.subr.bf16.mxu0 0
      %3338 = vmatpush1.bf16.msra.mxu0 %v2371
      %3339 = vmatprep.subr.bf16.mxu0 0
      %3340 = vmatpush1.bf16.msra.mxu0 %v2372
      %3341 = vmatprep.subr.bf16.mxu0 0
      %3342 = vmatpush1.bf16.msra.mxu0 %v2373
      %3343 = vmatprep.subr.bf16.mxu0 0
      %3344 = vmatpush1.bf16.msra.mxu0 %v2374
      %3345 = vmatprep.subr.bf16.mxu0 0
      %3346 = vmatpush1.bf16.msra.mxu0 %v2375
      %3347 = vmatprep.subr.bf16.mxu0 0
      %3348 = vmatpush1.bf16.msra.mxu0 %v2376
      %3349 = vmatprep.subr.bf16.mxu0 0
      %3350 = vmatpush1.bf16.msra.mxu0 %v2377
      %3351 = vmatprep.subr.bf16.mxu0 0
      %3352 = vmatpush1.bf16.msra.mxu0 %v2378
      %3353 = vmatprep.subr.bf16.mxu0 0
      %3354 = vmatpush1.bf16.msra.mxu0 %v2379
      %3355 = vmatprep.subr.bf16.mxu0 0
      %3356 = vmatpush1.bf16.msra.mxu0 %v2380
      %3357 = vmatprep.mubr.bf16.mxu0 %v918
      %3358 = vmatmul.mubr.bf16.gmra.mrb[0].mxu0 %v917
      %v3359 = vpop.f32.mrb[0].mxu0
      %v3360 = vadd.f32 %v3320, %v3359
      %v3361 = vpop.f32.mrb[0].mxu0
      %v3362 = vpop.f32.mrb[0].mxu0
      %v3363 = vpop.f32.mrb[0].mxu0
      %3364 = vdwg.mxu0
      %3365 = vmatprep.subr.bf16.mxu0 0
      %3366 = vmatpush1.bf16.msra.mxu0 %v2381
      %3367 = vmatprep.subr.bf16.mxu0 0
      %3368 = vmatpush1.bf16.msra.mxu0 %v2382
      %3369 = vmatprep.subr.bf16.mxu0 0
      %3370 = vmatpush1.bf16.msra.mxu0 %v2383
      %3371 = vmatprep.subr.bf16.mxu0 0
      %3372 = vmatpush1.bf16.msra.mxu0 %v2384
      %3373 = vmatprep.subr.bf16.mxu0 0
      %3374 = vmatpush1.bf16.msra.mxu0 %v2385
      %3375 = vmatprep.subr.bf16.mxu0 0
      %3376 = vmatpush1.bf16.msra.mxu0 %v2386
      %3377 = vmatprep.subr.bf16.mxu0 0
      %3378 = vmatpush1.bf16.msra.mxu0 %v2387
      %3379 = vmatprep.subr.bf16.mxu0 0
      %3380 = vmatpush1.bf16.msra.mxu0 %v2388
      %3381 = vmatprep.subr.bf16.mxu0 0
      %3382 = vmatpush1.bf16.msra.mxu0 %v2389
      %3383 = vmatprep.subr.bf16.mxu0 0
      %3384 = vmatpush1.bf16.msra.mxu0 %v2390
      %3385 = vmatprep.subr.bf16.mxu0 0
      %3386 = vmatpush1.bf16.msra.mxu0 %v2391
      %3387 = vmatprep.subr.bf16.mxu0 0
      %3388 = vmatpush1.bf16.msra.mxu0 %v2392
      %3389 = vmatprep.subr.bf16.mxu0 0
      %3390 = vmatpush1.bf16.msra.mxu0 %v2393
      %3391 = vmatprep.subr.bf16.mxu0 0
      %3392 = vmatpush1.bf16.msra.mxu0 %v2394
      %3393 = vmatprep.subr.bf16.mxu0 0
      %3394 = vmatpush1.bf16.msra.mxu0 %v2395
      %3395 = vmatprep.subr.bf16.mxu0 0
      %3396 = vmatpush1.bf16.msra.mxu0 %v2396
      %3397 = vmatprep.mubr.bf16.mxu0 %v920
      %3398 = vmatmul.mubr.bf16.gmra.mrb[0].mxu0 %v919
      %v3399 = vpop.f32.mrb[0].mxu0
      %v3400 = vadd.f32 %v3360, %v3399
      %v3401 = vpop.f32.mrb[0].mxu0
      %v3402 = vpop.f32.mrb[0].mxu0
      %v3403 = vpop.f32.mrb[0].mxu0
      %3404 = vdwg.mxu0
      %v3405 = vld [vmem:[%s2] sm:$0x1]
      %v3407 = vlaneseq
      %v3408 = vshrl.u32 %v3407, 7
      %v3409 = vsub.s32 0, %v3408
      %v3410 = vrot.slane %v3405, %v3409
      %v3412 = vsub.f32 %v3400, %v3410
      %v3413 = vsub.f32 0.0, %v3400
      %v3414 = vsub.f32 %v3413, %v3410
      %vm3415 = vcmp.ge.f32.partialorder %v3412, 0.0
      %v3416 = vmul.f32 %v3412, 0.001
      %v3417 = vsel %vm3415, %v3412, %v3416
      %vm3418 = vcmp.ge.f32.partialorder %v3414, 0.0
      %v3419 = vmul.f32 %v3414, 0.01
      %v3420 = vsel %vm3418, %v3414, %v3419
      %v3421 = vsub.f32 %v3417, %v3420
      %3422 = vst [vmem:[%s231] sm:$0xff] %v3421
      %v3423 = vld [vmem:[#allocation2] sm:$0x1]
      %v3425 = vlaneseq
      %v3426 = vshrl.u32 %v3425, 7
      %v3427 = vsub.s32 0, %v3426
      %v3428 = vrot.slane %v3423, %v3427
      %3429 = vset.pattern.permute.xlu0 0
      %3430 = vperm.xlu0 %3429, %v3428
      %v3431 = vpop.permute.xlu0 %3430
      %v3433 = vmul.f32 %v3421, %v3431
      %v3434 = vmax.f32 %v3433, 0.0
      %v3435 = vmin.f32 %v3434, 1.0
      %3436 = vst [vmem:[%s235] sm:$0xff] %v3435
      %p3437 = scmp.lt.s32.totalorder %s19, 1
      %s3438 = scalar_select %p3437, %s19, 1
      %s3439 = smul.addr %s3438, 8
      %s3440 = scalar_lea.vmem %s4, %s3439
      %p3441 = scmp.lt.s32.totalorder %s19, 1
      %s3442 = scalar_select %p3441, %s19, 1
      %s3443 = smul.addr %s3442, 8
      %s3444 = scalar_lea.vmem %s5, %s3443
      // Predicated region
      $region37: #{_lambda_.15} parent=35 // pred_check
        %p3445 = pneg %p126
      $region38: #{_lambda_.15} parent=35 // pred_check_branch
        %3447 = sbr.rel (%p3445) target = $region40
      $region39: #{_lambda_.15} parent=35 // pred_region
        _
      $region40: #{_lambda_.15} parent=35 // pred_fallthru
        _
      // Predicated region
      $region41: #{_lambda_.15} parent=35 // pred_check
        %p3448 = pneg %p152
      $region42: #{_lambda_.15} parent=35 // pred_check_branch
        %3450 = sbr.rel (%p3448) target = $region44
      $region43: #{_lambda_.15} parent=35 // pred_region
        _
      $region44: #{_lambda_.15} parent=35 // pred_fallthru
        _
    $region36: #{_lambda_.15} parent=5 // pred_fallthru
      _
    %p3451 = scmp.le.s32.totalorder 2, %s14
    // Predicated region
    $region45: #{_lambda_.15} parent=5 // pred_check
      %p3452 = pneg %p3451
    $region46: #{_lambda_.15} parent=5 // pred_check_branch
      %3454 = sbr.rel (%p3452) target = $region48
    $region47: #{_lambda_.15} parent=5 // pred_region
      %s3455 = ssub.s32 %s14, 2
      // Predicated region
      $region49: #{_lambda_.15} parent=47 // pred_check
        %p3456 = pneg %p132
      $region50: #{_lambda_.15} parent=47 // pred_check_branch
        %3458 = sbr.rel (%p3456) target = $region52
      $region51: #{_lambda_.15} parent=47 // pred_region
        %p3459 = scmp.lt.s32.totalorder %s20, 1
        %s3460 = scalar_select %p3459, %s20, 1
        %s3461 = smul.addr %s3460, 8
        %s3462 = scalar_lea.vmem %s4, %s3461
      $region52: #{_lambda_.15} parent=47 // pred_fallthru
        _
      // Predicated region
      $region53: #{_lambda_.15} parent=47 // pred_check
        %p3463 = pneg %p158
      $region54: #{_lambda_.15} parent=47 // pred_check_branch
        %3465 = sbr.rel (%p3463) target = $region56
      $region55: #{_lambda_.15} parent=47 // pred_region
        %p3466 = scmp.lt.s32.totalorder %s20, 1
        %s3467 = scalar_select %p3466, %s20, 1
        %s3468 = smul.addr %s3467, 8
        %s3469 = scalar_lea.vmem %s5, %s3468
      $region56: #{_lambda_.15} parent=47 // pred_fallthru
        _
    $region48: #{_lambda_.15} parent=5 // pred_fallthru
      _
  $region6: #{_lambda_.15} parent=0 // loop_footer
    %s18 = sadd.s32 1, %s14
  $region7: #{_lambda_.15} parent=0 // loop_footer_branch
    %13 = sbr.rel target = $region3
  $region8: #{_lambda_.15} parent=0 // loop_exit
    _

</llo_original>
